<compile_context>
chip_gen: v6e
topology: v6e:2x2x1
jax: 0.10.0
libtpu: 0.0.40
codegen_flags: <defaults>
</compile_context>

<pallas_src>
import functools

import jax
import jax.numpy as jnp
from jax.experimental import pallas as pl
from jax.experimental.pallas import tpu as pltpu


# ----------------------------------------------------------------------------
# Static helpers
# ----------------------------------------------------------------------------
def _round_up(x, m):
    return (x + m - 1) // m * m


def _pad_axis_to(a, axis, size):
    if a.shape[axis] == size:
        return a
    pads = [(0, 0)] * a.ndim
    pads[axis] = (0, size - a.shape[axis])
    return jnp.pad(a, pads)


def _pad_gate_cols(w, Hp):
    """Pad the last (4H) dim gate-wise to 4*Hp so gate k occupies cols [k*Hp, (k+1)*Hp)."""
    parts = jnp.split(w, 4, axis=-1)
    return jnp.concatenate([_pad_axis_to(p, -1, Hp) for p in parts], axis=-1)


def _layer_vmem_bytes(tt, Bp, in_dims, Hp, itemsize):
    """Rough per-grid-step VMEM working set of the fused bidirectional layer."""
    H4 = 4 * Hp
    b = 0
    b += 2 * 2 * sum(tt * Bp * d for d in in_dims) * itemsize   # fwd+bwd input views, x2 buffers
    b += 2 * 2 * tt * Bp * Hp * itemsize                        # two hidden outputs, x2 buffers
    b += 2 * (2 * sum(in_dims) * H4 + 2 * Hp * H4) * itemsize   # resident weights (x2 buffers)
    b += 2 * 2 * H4 * 4                                         # biases (f32)
    b += 2 * tt * Bp * H4 * 4                                   # f32 gate scratch, both dirs
    b += 4 * Bp * Hp * 4                                        # f32 h/c state
    return b


def _choose_time_chunk(T, Bp, in_dims, Hp, itemsize, budget_bytes, max_tt=64):
    """Largest divisor of T (<= max_tt) whose working set fits the VMEM budget."""
    best = 1
    for tt in range(1, min(T, max_tt) + 1):
        if T % tt == 0 and _layer_vmem_bytes(tt, Bp, in_dims, Hp, itemsize) <= budget_bytes:
            best = tt
    return best


def _choose_row_tile(T, Bp, Hp, Fp, itemsize, budget_bytes, max_rows=4096):
    """Row tile for the output projection: always t_div * Bp (divides T*Bp, sublane aligned)."""
    best = Bp
    for td in range(1, T + 1):
        if T % td:
            continue
        rt = td * Bp
        if rt > max_rows:
            continue
        use = (2 * 2 * rt * Hp * itemsize           # two input streams, double-buffered
               + 2 * rt * Fp * 4                    # f32 output, double-buffered
               + 2 * 2 * Hp * Fp * itemsize         # resident weights (x2 buffers)
               + 2 * Fp * 4)
        if use <= budget_bytes and rt >= best:
            best = rt
    return best


def _vmem_limit(est_bytes):
    # Explicit scoped-VMEM request: headroom over the estimate, but capped so the
    # request is valid on v7x (64 MiB physical per TensorCore).
    return int(min(48 * 1024 * 1024, max(32 * 1024 * 1024, int(1.5 * est_bytes))))


# ----------------------------------------------------------------------------
# Fused bidirectional LSTM layer: input projection + recurrence in one kernel
# ----------------------------------------------------------------------------
def _make_bilstm_kernel(n_in, unroll):
    """Kernel factory; n_in = number of input feature streams (1 for layer 1, 2 for layer 2)."""

    def kernel(*refs):
        n = n_in
        xf_refs = refs[0:n]                       # (TT*Bp, Ds) forward-order chunk(s)
        xb_refs = refs[n:2 * n]                   # (TT*Bp, Ds) mirrored chunk(s)
        wf_refs = refs[2 * n:3 * n]               # (Ds, 4Hp) input weights, fwd dir
        wb_refs = refs[3 * n:4 * n]               # (Ds, 4Hp) input weights, bwd dir
        whh_f_ref, whh_b_ref, bf_ref, bb_ref = refs[4 * n:4 * n + 4]
        hf_out, hb_out = refs[4 * n + 4:4 * n + 6]            # (TT, Bp, Hp)
        gxf, gxb, hf_s, cf_s, hb_s, cb_s = refs[4 * n + 6:4 * n + 12]

        TT, Bp, Hp = hf_out.shape

        @pl.when(pl.program_id(0) == 0)
        def _():
            hf_s[...] = jnp.zeros_like(hf_s)
            cf_s[...] = jnp.zeros_like(cf_s)
            hb_s[...] = jnp.zeros_like(hb_s)
            cb_s[...] = jnp.zeros_like(cb_s)

        # ---- fused input projection: one big MXU matmul per direction per stream ----
        accf = jnp.dot(xf_refs[0][...], wf_refs[0][...], preferred_element_type=jnp.float32)
        accb = jnp.dot(xb_refs[0][...], wb_refs[0][...], preferred_element_type=jnp.float32)
        for s in range(1, n):
            accf = accf + jnp.dot(xf_refs[s][...], wf_refs[s][...],
                                  preferred_element_type=jnp.float32)
            accb = accb + jnp.dot(xb_refs[s][...], wb_refs[s][...],
                                  preferred_element_type=jnp.float32)
        gxf[...] = accf + bf_ref[...]             # f32 gate scratch (TT*Bp, 4Hp)
        gxb[...] = accb + bb_ref[...]

        # Resident recurrent weights, hoisted out of the step loop.
        whh_f = whh_f_ref[...]
        whh_b = whh_b_ref[...]

        def cell(gates, c_prev):
            # PyTorch gate order [i, f, g, o]; Hp is a multiple of 128 -> lane-dense slices.
            i_g = jax.nn.sigmoid(gates[:, 0 * Hp:1 * Hp])
            f_g = jax.nn.sigmoid(gates[:, 1 * Hp:2 * Hp])
            g_g = jnp.tanh(gates[:, 2 * Hp:3 * Hp])
            o_g = jax.nn.sigmoid(gates[:, 3 * Hp:4 * Hp])
            c_new = f_g * c_prev + i_g * g_g
            h_new = o_g * jnp.tanh(c_new)
            return h_new, c_new

        def step(t, carry):
            # Forward direction: local time t within this chunk.
            rf = pl.multiple_of(t * Bp, Bp)
            gf = gxf[pl.ds(rf, Bp), :] + jnp.dot(
                hf_s[...].astype(whh_f.dtype), whh_f, preferred_element_type=jnp.float32)
            hf_new, cf_new = cell(gf, cf_s[...])
            hf_s[...] = hf_new
            cf_s[...] = cf_new
            hf_out[t] = hf_new.astype(hf_out.dtype)

            # Backward direction: local time TT-1-t within the mirrored chunk.
            tb = TT - 1 - t
            rb = pl.multiple_of(tb * Bp, Bp)
            gb = gxb[pl.ds(rb, Bp), :] + jnp.dot(
                hb_s[...].astype(whh_b.dtype), whh_b, preferred_element_type=jnp.float32)
            hb_new, cb_new = cell(gb, cb_s[...])
            hb_s[...] = hb_new
            cb_s[...] = cb_new
            hb_out[tb] = hb_new.astype(hb_out.dtype)
            return carry

        jax.lax.fori_loop(0, TT, step, 0, unroll=unroll)

    return kernel


def bilstm_layer(in_rows, wih_f, wih_b, whh_f, whh_b, b_f, b_b,
                 *, T, Bp, Hp, out_dtype, time_chunk, vmem_limit):
    """One fused bidirectional LSTM layer.

    in_rows: list of (T*Bp, Ds) row-major input streams (1 stream for layer 1, the
             2 direction outputs of the previous layer for layer 2, concat-free).
    wih_f/wih_b: matching lists of (Ds, 4Hp) input weights per direction.
    Returns (hf, hb): (T, Bp, Hp) hidden outputs per direction.
    """
    n = len(in_rows)
    H4 = 4 * Hp
    TT = time_chunk
    assert T % TT == 0, "time_chunk must divide T"
    NC = T // TT
    RB = TT * Bp

    # Unroll: full for short chunks, else a divisor of TT (gives the scheduler the
    # two independent fwd/bwd matmul+EUP chains to interleave).
    if TT <= 8:
        unroll = TT
    elif TT % 4 == 0:
        unroll = 4
    elif TT % 2 == 0:
        unroll = 2
    else:
        unroll = 1

    kernel = _make_bilstm_kernel(n, unroll)

    fwd_row_specs = [pl.BlockSpec((RB, x.shape[1]), lambda c: (c, 0)) for x in in_rows]
    bwd_row_specs = [pl.BlockSpec((RB, x.shape[1]), lambda c: (NC - 1 - c, 0)) for x in in_rows]
    # NOTE: weight/bias index maps are constant -> fetched once; pl.Buffered(1)
    # could single-buffer them for extra VMEM headroom at very large H.
    w_specs = [pl.BlockSpec(w.shape, lambda c: (0, 0)) for w in list(wih_f) + list(wih_b)]
    whh_spec = pl.BlockSpec((Hp, H4), lambda c: (0, 0))
    b_spec = pl.BlockSpec((1, H4), lambda c: (0, 0))

    out_spec_f = pl.BlockSpec((TT, Bp, Hp), lambda c: (c, 0, 0))
    out_spec_b = pl.BlockSpec((TT, Bp, Hp), lambda c: (NC - 1 - c, 0, 0))

    in_dims = [x.shape[1] for x in in_rows]
    itemsize = jnp.dtype(out_dtype).itemsize
    cost = pl.CostEstimate(
        flops=int(2 * 2 * T * Bp * H4 * (sum(in_dims) + Hp)),
        transcendentals=int(2 * 5 * T * Bp * Hp),
        bytes_accessed=int((2 * T * Bp * sum(in_dims) + 2 * T * Bp * Hp) * itemsize
                           + (2 * sum(in_dims) * H4 + 2 * Hp * H4) * itemsize
                           + 2 * H4 * 4),
    )

    grid_spec = pltpu.PrefetchScalarGridSpec(
        num_scalar_prefetch=0,
        grid=(NC,),
        in_specs=(fwd_row_specs + bwd_row_specs + w_specs
                  + [whh_spec, whh_spec, b_spec, b_spec]),
        out_specs=[out_spec_f, out_spec_b],
        scratch_shapes=[
            pltpu.VMEM((RB, H4), jnp.float32),    # fwd chunk gates (f32)
            pltpu.VMEM((RB, H4), jnp.float32),    # bwd chunk gates (f32)
            pltpu.VMEM((Bp, Hp), jnp.float32),    # h fwd
            pltpu.VMEM((Bp, Hp), jnp.float32),    # c fwd
            pltpu.VMEM((Bp, Hp), jnp.float32),    # h bwd
            pltpu.VMEM((Bp, Hp), jnp.float32),    # c bwd
        ],
    )

    hf, hb = pl.pallas_call(
        kernel,
        out_shape=(jax.ShapeDtypeStruct((T, Bp, Hp), out_dtype),
                   jax.ShapeDtypeStruct((T, Bp, Hp), out_dtype)),
        grid_spec=grid_spec,
        compiler_params=pltpu.CompilerParams(
            dimension_semantics=("arbitrary",),   # time chunks are sequential
            # TODO(synk): on v7x the two directions could be split across the two
            # TensorCores with a leading "parallel" direction axis; kept fused here.
            vmem_limit_bytes=vmem_limit),
        cost_estimate=cost,
    )(*(list(in_rows) + list(in_rows) + list(wih_f) + list(wih_b)
        + [whh_f, whh_b, b_f, b_b]))
    return hf, hb


# ----------------------------------------------------------------------------
# Output projection (concat-free, row-tiled, lane-dense padded output)
# ----------------------------------------------------------------------------
def _out_proj_kernel(hf_ref, hb_ref, wt_ref, wb_ref, b_ref, y_ref):
    y_ref[...] = (
        jnp.dot(hf_ref[...], wt_ref[...], preferred_element_type=jnp.float32)
        + jnp.dot(hb_ref[...], wb_ref[...], preferred_element_type=jnp.float32)
        + b_ref[...]
    ).astype(y_ref.dtype)


def out_projection(hf_rows, hb_rows, w_top, w_bot, b, *, row_tile, vmem_limit):
    rows, Hp = hf_rows.shape
    Fp = w_top.shape[1]
    y = pl.pallas_call(
        _out_proj_kernel,
        out_shape=jax.ShapeDtypeStruct((rows, Fp), jnp.float32),
        grid_spec=pltpu.PrefetchScalarGridSpec(
            num_scalar_prefetch=0,
            grid=(rows // row_tile,),
            in_specs=[
                pl.BlockSpec((row_tile, Hp), lambda i: (i, 0)),
                pl.BlockSpec((row_tile, Hp), lambda i: (i, 0)),
                pl.BlockSpec((Hp, Fp), lambda i: (0, 0)),
                pl.BlockSpec((Hp, Fp), lambda i: (0, 0)),
                pl.BlockSpec((1, Fp), lambda i: (0, 0)),
            ],
            out_specs=pl.BlockSpec((row_tile, Fp), lambda i: (i, 0)),
        ),
        compiler_params=pltpu.CompilerParams(
            dimension_semantics=("parallel",),
            vmem_limit_bytes=vmem_limit),
    )(hf_rows, hb_rows, w_top, w_bot, b)
    return y


# ----------------------------------------------------------------------------
# Full model forward
# ----------------------------------------------------------------------------
def blstm_conversion_forward(x, kp, *, out_channels, time_chunk=None,
                             vmem_budget_bytes=40 * 1024 * 1024):
    """x: (T, B, in_channels) f32; kp: output of prepare_params. Returns (T, B, out_channels) f32."""
    T, B, D = x.shape
    dtype = kp["proj_w_top"].dtype
    itemsize = jnp.dtype(dtype).itemsize
    Hp = kp["l1"]["whh_f"].shape[0]
    Fp = kp["proj_w_top"].shape[1]
    # Sublane-aligned batch padding (16 for bf16 packing, 8 for f32).
    Bp = _round_up(B, 16 if itemsize < 4 else 8)

    tt1 = time_chunk if time_chunk is not None else _choose_time_chunk(
        T, Bp, [D], Hp, itemsize, vmem_budget_bytes)
    tt2 = time_chunk if time_chunk is not None else _choose_time_chunk(
        T, Bp, [Hp, Hp], Hp, itemsize, vmem_budget_bytes)
    assert T % tt1 == 0 and T % tt2 == 0, "time_chunk must divide T"
    vlim1 = _vmem_limit(_layer_vmem_bytes(tt1, Bp, [D], Hp, itemsize))
    vlim2 = _vmem_limit(_layer_vmem_bytes(tt2, Bp, [Hp, Hp], Hp, itemsize))

    # Layer 1: fused projection + recurrence on a row-major (T*Bp, D) view of x.
    x_rows = _pad_axis_to(x, 1, Bp).astype(dtype).reshape(T * Bp, D)
    l1 = kp["l1"]
    hf1, hb1 = bilstm_layer([x_rows], l1["wih_f"], l1["wih_b"],
                            l1["whh_f"], l1["whh_b"], l1["b_f"], l1["b_b"],
                            T=T, Bp=Bp, Hp=Hp, out_dtype=dtype,
                            time_chunk=tt1, vmem_limit=vlim1)

    # Layer 2: concat-free (two input streams with pre-split weights).
    l2 = kp["l2"]
    hf2, hb2 = bilstm_layer([hf1.reshape(T * Bp, Hp), hb1.reshape(T * Bp, Hp)],
                            l2["wih_f"], l2["wih_b"],
                            l2["whh_f"], l2["whh_b"], l2["b_f"], l2["b_b"],
                            T=T, Bp=Bp, Hp=Hp, out_dtype=dtype,
                            time_chunk=tt2, vmem_limit=vlim2)

    # Output projection, lane-dense padded feature dim, sliced back outside.
    row_tile = _choose_row_tile(T, Bp, Hp, Fp, itemsize, vmem_budget_bytes)
    proj_est = (2 * 2 * row_tile * Hp * itemsize + 2 * row_tile * Fp * 4
                + 2 * 2 * Hp * Fp * itemsize + 2 * Fp * 4)
    y_rows = out_projection(hf2.reshape(T * Bp, Hp), hb2.reshape(T * Bp, Hp),
                            kp["proj_w_top"], kp["proj_w_bot"], kp["proj_b"],
                            row_tile=row_tile, vmem_limit=_vmem_limit(proj_est))
    return y_rows.reshape(T, Bp, Fp)[:, :B, :out_channels]


# ----------------------------------------------------------------------------
# Parameters: PyTorch-style init (logical layout) + one-time kernel preparation
# ----------------------------------------------------------------------------
def init_lstm_dir(key, in_dim, hidden):
    k = 1.0 / jnp.sqrt(hidden)
    keys = jax.random.split(key, 4)
    w_ih = jax.random.uniform(keys[0], (in_dim, 4 * hidden), jnp.float32, -k, k)
    w_hh = jax.random.uniform(keys[1], (hidden, 4 * hidden), jnp.float32, -k, k)
    b_ih = jax.random.uniform(keys[2], (4 * hidden,), jnp.float32, -k, k)
    b_hh = jax.random.uniform(keys[3], (4 * hidden,), jnp.float32, -k, k)
    return w_ih, w_hh, (b_ih + b_hh)[None, :]


def init_params(key, in_channels, out_channels, lstm_hidden):
    ks = jax.random.split(key, 6)
    wih_f1, whh_f1, b_f1 = init_lstm_dir(ks[0], in_channels, lstm_hidden)
    wih_b1, whh_b1, b_b1 = init_lstm_dir(ks[1], in_channels, lstm_hidden)
    wih_f2, whh_f2, b_f2 = init_lstm_dir(ks[2], 2 * lstm_hidden, lstm_hidden)
    wih_b2, whh_b2, b_b2 = init_lstm_dir(ks[3], 2 * lstm_hidden, lstm_hidden)
    kpj = 1.0 / jnp.sqrt(2 * lstm_hidden)
    proj_w = jax.random.uniform(ks[4], (2 * lstm_hidden, out_channels),
                                jnp.float32, -kpj, kpj)
    proj_b = jax.random.uniform(ks[5], (out_channels,), jnp.float32, -kpj, kpj)
    return {
        "blstm1": dict(wih_f=wih_f1, whh_f=whh_f1, b_f=b_f1,
                       wih_b=wih_b1, whh_b=whh_b1, b_b=b_b1),
        "blstm2": dict(wih_f=wih_f2, whh_f=whh_f2, b_f=b_f2,
                       wih_b=wih_b2, whh_b=whh_b2, b_b=b_b2),
        "proj_w": proj_w,
        "proj_b": proj_b,
    }


def prepare_params(params, *, dtype=jnp.float32):
    """One-time (outside the jitted forward) weight split + lane-padding + cast.

    * H is padded gate-wise to a multiple of 128; padded gate columns are zero
      (zero weight + zero bias), so the padded hidden lanes stay exactly 0.
    * Layer-2 and projection weights are pre-split into their hf/hb halves
      (concat-free matmuls, no slicing on the forward critical path).
    * Matmul operands are stored in `dtype` (f32 or bf16); biases stay f32.
    """
    H = params["blstm1"]["whh_f"].shape[0]
    Hp = _round_up(H, 128)
    Fout = params["proj_w"].shape[1]
    Fp = _round_up(Fout, 128)

    def pad_ih(w):        # (Din, 4H) -> (Din, 4Hp)
        return _pad_gate_cols(w, Hp).astype(dtype)

    def pad_ih_rows(w):   # (H, 4H) -> (Hp, 4Hp)
        return _pad_axis_to(_pad_gate_cols(w, Hp), 0, Hp).astype(dtype)

    def pad_hh(w):        # (H, 4H) -> (Hp, 4Hp)
        return _pad_axis_to(_pad_gate_cols(w, Hp), 0, Hp).astype(dtype)

    def pad_b(b):         # (1, 4H) -> (1, 4Hp), kept f32
        return _pad_gate_cols(b, Hp).astype(jnp.float32)

    p1, p2 = params["blstm1"], params["blstm2"]
    return {
        "l1": dict(
            wih_f=[pad_ih(p1["wih_f"])], wih_b=[pad_ih(p1["wih_b"])],
            whh_f=pad_hh(p1["whh_f"]), whh_b=pad_hh(p1["whh_b"]),
            b_f=pad_b(p1["b_f"]), b_b=pad_b(p1["b_b"])),
        "l2": dict(
            wih_f=[pad_ih_rows(p2["wih_f"][:H]), pad_ih_rows(p2["wih_f"][H:])],
            wih_b=[pad_ih_rows(p2["wih_b"][:H]), pad_ih_rows(p2["wih_b"][H:])],
            whh_f=pad_hh(p2["whh_f"]), whh_b=pad_hh(p2["whh_b"]),
            b_f=pad_b(p2["b_f"]), b_b=pad_b(p2["b_b"])),
        "proj_w_top": _pad_axis_to(_pad_axis_to(params["proj_w"][:H], 1, Fp), 0, Hp).astype(dtype),
        "proj_w_bot": _pad_axis_to(_pad_axis_to(params["proj_w"][H:], 1, Fp), 0, Hp).astype(dtype),
        "proj_b": _pad_axis_to(params["proj_b"][None, :], 1, Fp).astype(jnp.float32),
    }


# ----------------------------------------------------------------------------
# Pure-JAX reference (lax.scan) for correctness
# ----------------------------------------------------------------------------
def lstm_dir_ref(x, w_ih, w_hh, b, *, reverse):
    T, B, _ = x.shape
    H = w_hh.shape[0]
    xs = x[::-1] if reverse else x

    def step(carry, xt):
        h, c = carry
        gates = xt @ w_ih + h @ w_hh + b
        i, f, g, o = jnp.split(gates, 4, axis=-1)
        i = jax.nn.sigmoid(i)
        f = jax.nn.sigmoid(f)
        g = jnp.tanh(g)
        o = jax.nn.sigmoid(o)
        c = f * c + i * g
        h = o * jnp.tanh(c)
        return (h, c), h

    init = (jnp.zeros((B, H), jnp.float32), jnp.zeros((B, H), jnp.float32))
    _, hs = jax.lax.scan(step, init, xs)
    return hs[::-1] if reverse else hs


def forward_ref(x, params):
    def layer(x, p):
        f = lstm_dir_ref(x, p["wih_f"], p["whh_f"], p["b_f"], reverse=False)
        b = lstm_dir_ref(x, p["wih_b"], p["whh_b"], p["b_b"], reverse=True)
        return jnp.concatenate([f, b], axis=-1)

    h1 = layer(x, params["blstm1"])
    h2 = layer(h1, params["blstm2"])
    return h2 @ params["proj_w"] + params["proj_b"]


# ----------------------------------------------------------------------------
if __name__ == "__main__":
    T, B = 8, 2
    in_channels, out_channels, lstm_hidden = 16, 16, 32

    key = jax.random.PRNGKey(0)
    kx, kparam = jax.random.split(key)
    x = jax.random.normal(kx, (T, B, in_channels), jnp.float32)
    params = init_params(kparam, in_channels, out_channels, lstm_hidden)
    y_ref = forward_ref(x, params)

    # f32 operand path; explicit time_chunk=4 -> 2 grid chunks per layer, which
    # exercises the cross-chunk (h, c) carry in VMEM scratch.
    kp32 = prepare_params(params, dtype=jnp.float32)
    fwd32 = jax.jit(functools.partial(blstm_conversion_forward,
                                      out_channels=out_channels, time_chunk=4))
    y32 = jax.block_until_ready(fwd32(x, kp32))
    assert y32.shape == (T, B, out_channels)
    err32 = float(jnp.max(jnp.abs(y32 - y_ref)))
    assert err32 < 2e-4, f"f32 kernel mismatch vs JAX reference: {err32}"

    # bf16 MXU-operand path (halves HBM traffic / resident-weight VMEM); gates,
    # cell state and activations remain f32 inside the kernels.
    kpbf = prepare_params(params, dtype=jnp.bfloat16)
    fwdbf = jax.jit(functools.partial(blstm_conversion_forward,
                                      out_channels=out_channels))
    ybf = jax.block_until_ready(fwdbf(x, kpbf))
    assert ybf.shape == (T, B, out_channels)
    errbf = float(jnp.max(jnp.abs(ybf - y_ref)))
    assert errbf < 0.35, f"bf16 kernel mismatch vs JAX reference: {errbf}"

    print("KERNEL_OK")
</pallas_src>

<mosaic_0001>
module attributes {stable_mosaic.version = 11 : i64} {
  func.func @_out_proj_kernel(%arg0: i32, %arg1: memref<64x128xf32, #tpu.memory_space<vmem>>, %arg2: memref<64x128xf32, #tpu.memory_space<vmem>>, %arg3: memref<128x128xf32, #tpu.memory_space<vmem>>, %arg4: memref<128x128xf32, #tpu.memory_space<vmem>>, %arg5: memref<1x128xf32, #tpu.memory_space<vmem>>, %arg6: memref<64x128xf32, #tpu.memory_space<vmem>>) attributes {dimension_semantics = [#tpu.dimension_semantics<parallel>], iteration_bounds = array<i64: 1>, scalar_prefetch = 0 : i64, scratch_operands = 0 : i64, tpu.core_type = #tpu.core_type<tc>, window_params = [{transform_indices = @transform_0, window_bounds = array<i64: 64, 128>}, {transform_indices = @transform_1, window_bounds = array<i64: 64, 128>}, {pipeline_mode = #tpu.pipeline_mode<synchronous>, transform_indices = @transform_2, window_bounds = array<i64: 128, 128>}, {pipeline_mode = #tpu.pipeline_mode<synchronous>, transform_indices = @transform_3, window_bounds = array<i64: 128, 128>}, {pipeline_mode = #tpu.pipeline_mode<synchronous>, transform_indices = @transform_4, window_bounds = array<i64: 1, 128>}, {transform_indices = @transform_5, window_bounds = array<i64: 64, 128>}]} {
    %c0 = arith.constant 0 : index
    %c0_0 = arith.constant 0 : index
    %0 = vector.load %arg1[%c0, %c0_0] : memref<64x128xf32, #tpu.memory_space<vmem>>, vector<64x128xf32>
    %c0_1 = arith.constant 0 : index
    %c0_2 = arith.constant 0 : index
    %1 = vector.load %arg3[%c0_1, %c0_2] : memref<128x128xf32, #tpu.memory_space<vmem>>, vector<128x128xf32>
    %cst = arith.constant dense<0.000000e+00> : vector<64x128xf32>
    %2 = tpu.matmul %0, %1, %cst {dimension_numbers = #tpu.dot_dimension_numbers<[1], [0], [0], [1], [0, 0, 1, 1], [], []>} : vector<64x128xf32>, vector<128x128xf32>, vector<64x128xf32> -> vector<64x128xf32>
    %c0_3 = arith.constant 0 : index
    %c0_4 = arith.constant 0 : index
    %3 = vector.load %arg2[%c0_3, %c0_4] : memref<64x128xf32, #tpu.memory_space<vmem>>, vector<64x128xf32>
    %c0_5 = arith.constant 0 : index
    %c0_6 = arith.constant 0 : index
    %4 = vector.load %arg4[%c0_5, %c0_6] : memref<128x128xf32, #tpu.memory_space<vmem>>, vector<128x128xf32>
    %cst_7 = arith.constant dense<0.000000e+00> : vector<64x128xf32>
    %5 = tpu.matmul %3, %4, %cst_7 {dimension_numbers = #tpu.dot_dimension_numbers<[1], [0], [0], [1], [0, 0, 1, 1], [], []>} : vector<64x128xf32>, vector<128x128xf32>, vector<64x128xf32> -> vector<64x128xf32>
    %6 = arith.addf %2, %5 : vector<64x128xf32>
    %c0_8 = arith.constant 0 : index
    %c0_9 = arith.constant 0 : index
    %7 = vector.load %arg5[%c0_8, %c0_9] : memref<1x128xf32, #tpu.memory_space<vmem>>, vector<1x128xf32>
    %8 = vector.broadcast %7 : vector<1x128xf32> to vector<64x128xf32>
    %9 = arith.addf %6, %8 : vector<64x128xf32>
    %c0_10 = arith.constant 0 : index
    %c0_11 = arith.constant 0 : index
    %10 = vector.load %arg6[%c0_10, %c0_11] : memref<64x128xf32, #tpu.memory_space<vmem>>, vector<64x128xf32>
    tpu.vector_store %arg6[%c0_10, %c0_11], %9 {strides = array<i32>} : memref<64x128xf32, #tpu.memory_space<vmem>>, vector<64x128xf32>,
    return
  }
  func.func @transform_0(%arg0: i32) -> (i32, i32) {
    %c0_i32 = arith.constant 0 : i32
    %c0_i32_0 = arith.constant 0 : i32
    return %arg0, %c0_i32 : i32, i32
  }
  func.func @transform_1(%arg0: i32) -> (i32, i32) {
    %c0_i32 = arith.constant 0 : i32
    %c0_i32_0 = arith.constant 0 : i32
    return %arg0, %c0_i32 : i32, i32
  }
  func.func @transform_2(%arg0: i32) -> (i32, i32) {
    %c0_i32 = arith.constant 0 : i32
    %c0_i32_0 = arith.constant 0 : i32
    %c0_i32_1 = arith.constant 0 : i32
    return %c0_i32, %c0_i32_0 : i32, i32
  }
  func.func @transform_3(%arg0: i32) -> (i32, i32) {
    %c0_i32 = arith.constant 0 : i32
    %c0_i32_0 = arith.constant 0 : i32
    %c0_i32_1 = arith.constant 0 : i32
    return %c0_i32, %c0_i32_0 : i32, i32
  }
  func.func @transform_4(%arg0: i32) -> (i32, i32) {
    %c0_i32 = arith.constant 0 : i32
    %c0_i32_0 = arith.constant 0 : i32
    %c0_i32_1 = arith.constant 0 : i32
    return %c0_i32, %c0_i32_0 : i32, i32
  }
  func.func @transform_5(%arg0: i32) -> (i32, i32) {
    %c0_i32 = arith.constant 0 : i32
    %c0_i32_0 = arith.constant 0 : i32
    return %arg0, %c0_i32 : i32, i32
  }
}

module attributes {stable_mosaic.version = 11 : i64} {
  func.func @kernel(%arg0: i32, %arg1: memref<32x128xf32, #tpu.memory_space<vmem>>, %arg2: memref<32x128xf32, #tpu.memory_space<vmem>>, %arg3: memref<32x128xf32, #tpu.memory_space<vmem>>, %arg4: memref<32x128xf32, #tpu.memory_space<vmem>>, %arg5: memref<128x512xf32, #tpu.memory_space<vmem>>, %arg6: memref<128x512xf32, #tpu.memory_space<vmem>>, %arg7: memref<128x512xf32, #tpu.memory_space<vmem>>, %arg8: memref<128x512xf32, #tpu.memory_space<vmem>>, %arg9: memref<128x512xf32, #tpu.memory_space<vmem>>, %arg10: memref<128x512xf32, #tpu.memory_space<vmem>>, %arg11: memref<1x512xf32, #tpu.memory_space<vmem>>, %arg12: memref<1x512xf32, #tpu.memory_space<vmem>>, %arg13: memref<4x8x128xf32, #tpu.memory_space<vmem>>, %arg14: memref<4x8x128xf32, #tpu.memory_space<vmem>>, %arg15: memref<32x512xf32, #tpu.memory_space<vmem>>, %arg16: memref<32x512xf32, #tpu.memory_space<vmem>>, %arg17: memref<8x128xf32, #tpu.memory_space<vmem>>, %arg18: memref<8x128xf32, #tpu.memory_space<vmem>>, %arg19: memref<8x128xf32, #tpu.memory_space<vmem>>, %arg20: memref<8x128xf32, #tpu.memory_space<vmem>>) attributes {dimension_semantics = [#tpu.dimension_semantics<arbitrary>], iteration_bounds = array<i64: 2>, scalar_prefetch = 0 : i64, scratch_operands = 6 : i64, tpu.core_type = #tpu.core_type<tc>, window_params = [{transform_indices = @transform_0, window_bounds = array<i64: 32, 128>}, {transform_indices = @transform_1, window_bounds = array<i64: 32, 128>}, {transform_indices = @transform_2, window_bounds = array<i64: 32, 128>}, {transform_indices = @transform_3, window_bounds = array<i64: 32, 128>}, {pipeline_mode = #tpu.pipeline_mode<synchronous>, transform_indices = @transform_4, window_bounds = array<i64: 128, 512>}, {pipeline_mode = #tpu.pipeline_mode<synchronous>, transform_indices = @transform_5, window_bounds = array<i64: 128, 512>}, {pipeline_mode = #tpu.pipeline_mode<synchronous>, transform_indices = @transform_6, window_bounds = array<i64: 128, 512>}, {pipeline_mode = #tpu.pipeline_mode<synchronous>, transform_indices = @transform_7, window_bounds = array<i64: 128, 512>}, {pipeline_mode = #tpu.pipeline_mode<synchronous>, transform_indices = @transform_8, window_bounds = array<i64: 128, 512>}, {pipeline_mode = #tpu.pipeline_mode<synchronous>, transform_indices = @transform_9, window_bounds = array<i64: 128, 512>}, {pipeline_mode = #tpu.pipeline_mode<synchronous>, transform_indices = @transform_10, window_bounds = array<i64: 1, 512>}, {pipeline_mode = #tpu.pipeline_mode<synchronous>, transform_indices = @transform_11, window_bounds = array<i64: 1, 512>}, {transform_indices = @transform_12, window_bounds = array<i64: 4, 8, 128>}, {transform_indices = @transform_13, window_bounds = array<i64: 4, 8, 128>}]} {
    %c0_i32 = arith.constant 0 : i32
    %0 = arith.cmpi eq, %arg0, %c0_i32 : i32
    %1 = arith.extui %0 : i1 to i32
    %c0_i32_0 = arith.constant 0 : i32
    %2 = arith.cmpi ne, %1, %c0_i32_0 : i32
    scf.if %2 {
      %cst_163 = arith.constant 0.000000e+00 : f32
      %343 = vector.broadcast %cst_163 : f32 to vector<8x128xf32>
      %c0_164 = arith.constant 0 : index
      %c0_165 = arith.constant 0 : index
      %344 = vector.load %arg17[%c0_164, %c0_165] : memref<8x128xf32, #tpu.memory_space<vmem>>, vector<8x128xf32>
      tpu.vector_store %arg17[%c0_164, %c0_165], %343 {strides = array<i32>} : memref<8x128xf32, #tpu.memory_space<vmem>>, vector<8x128xf32>,
      %cst_166 = arith.constant 0.000000e+00 : f32
      %345 = vector.broadcast %cst_166 : f32 to vector<8x128xf32>
      %c0_167 = arith.constant 0 : index
      %c0_168 = arith.constant 0 : index
      %346 = vector.load %arg18[%c0_167, %c0_168] : memref<8x128xf32, #tpu.memory_space<vmem>>, vector<8x128xf32>
      tpu.vector_store %arg18[%c0_167, %c0_168], %345 {strides = array<i32>} : memref<8x128xf32, #tpu.memory_space<vmem>>, vector<8x128xf32>,
      %cst_169 = arith.constant 0.000000e+00 : f32
      %347 = vector.broadcast %cst_169 : f32 to vector<8x128xf32>
      %c0_170 = arith.constant 0 : index
      %c0_171 = arith.constant 0 : index
      %348 = vector.load %arg19[%c0_170, %c0_171] : memref<8x128xf32, #tpu.memory_space<vmem>>, vector<8x128xf32>
      tpu.vector_store %arg19[%c0_170, %c0_171], %347 {strides = array<i32>} : memref<8x128xf32, #tpu.memory_space<vmem>>, vector<8x128xf32>,
      %cst_172 = arith.constant 0.000000e+00 : f32
      %349 = vector.broadcast %cst_172 : f32 to vector<8x128xf32>
      %c0_173 = arith.constant 0 : index
      %c0_174 = arith.constant 0 : index
      %350 = vector.load %arg20[%c0_173, %c0_174] : memref<8x128xf32, #tpu.memory_space<vmem>>, vector<8x128xf32>
      tpu.vector_store %arg20[%c0_173, %c0_174], %349 {strides = array<i32>} : memref<8x128xf32, #tpu.memory_space<vmem>>, vector<8x128xf32>,
    } else {
    }
    %c0 = arith.constant 0 : index
    %c0_1 = arith.constant 0 : index
    %3 = vector.load %arg1[%c0, %c0_1] : memref<32x128xf32, #tpu.memory_space<vmem>>, vector<32x128xf32>
    %c0_2 = arith.constant 0 : index
    %c0_3 = arith.constant 0 : index
    %4 = vector.load %arg5[%c0_2, %c0_3] : memref<128x512xf32, #tpu.memory_space<vmem>>, vector<128x512xf32>
    %cst = arith.constant dense<0.000000e+00> : vector<32x512xf32>
    %5 = tpu.matmul %3, %4, %cst {dimension_numbers = #tpu.dot_dimension_numbers<[1], [0], [0], [1], [0, 0, 1, 1], [], []>} : vector<32x128xf32>, vector<128x512xf32>, vector<32x512xf32> -> vector<32x512xf32>
    %c0_4 = arith.constant 0 : index
    %c0_5 = arith.constant 0 : index
    %6 = vector.load %arg3[%c0_4, %c0_5] : memref<32x128xf32, #tpu.memory_space<vmem>>, vector<32x128xf32>
    %c0_6 = arith.constant 0 : index
    %c0_7 = arith.constant 0 : index
    %7 = vector.load %arg7[%c0_6, %c0_7] : memref<128x512xf32, #tpu.memory_space<vmem>>, vector<128x512xf32>
    %cst_8 = arith.constant dense<0.000000e+00> : vector<32x512xf32>
    %8 = tpu.matmul %6, %7, %cst_8 {dimension_numbers = #tpu.dot_dimension_numbers<[1], [0], [0], [1], [0, 0, 1, 1], [], []>} : vector<32x128xf32>, vector<128x512xf32>, vector<32x512xf32> -> vector<32x512xf32>
    %c0_9 = arith.constant 0 : index
    %c0_10 = arith.constant 0 : index
    %9 = vector.load %arg2[%c0_9, %c0_10] : memref<32x128xf32, #tpu.memory_space<vmem>>, vector<32x128xf32>
    %c0_11 = arith.constant 0 : index
    %c0_12 = arith.constant 0 : index
    %10 = vector.load %arg6[%c0_11, %c0_12] : memref<128x512xf32, #tpu.memory_space<vmem>>, vector<128x512xf32>
    %cst_13 = arith.constant dense<0.000000e+00> : vector<32x512xf32>
    %11 = tpu.matmul %9, %10, %cst_13 {dimension_numbers = #tpu.dot_dimension_numbers<[1], [0], [0], [1], [0, 0, 1, 1], [], []>} : vector<32x128xf32>, vector<128x512xf32>, vector<32x512xf32> -> vector<32x512xf32>
    %12 = arith.addf %5, %11 : vector<32x512xf32>
    %c0_14 = arith.constant 0 : index
    %c0_15 = arith.constant 0 : index
    %13 = vector.load %arg4[%c0_14, %c0_15] : memref<32x128xf32, #tpu.memory_space<vmem>>, vector<32x128xf32>
    %c0_16 = arith.constant 0 : index
    %c0_17 = arith.constant 0 : index
    %14 = vector.load %arg8[%c0_16, %c0_17] : memref<128x512xf32, #tpu.memory_space<vmem>>, vector<128x512xf32>
    %cst_18 = arith.constant dense<0.000000e+00> : vector<32x512xf32>
    %15 = tpu.matmul %13, %14, %cst_18 {dimension_numbers = #tpu.dot_dimension_numbers<[1], [0], [0], [1], [0, 0, 1, 1], [], []>} : vector<32x128xf32>, vector<128x512xf32>, vector<32x512xf32> -> vector<32x512xf32>
    %16 = arith.addf %8, %15 : vector<32x512xf32>
    %c0_19 = arith.constant 0 : index
    %c0_20 = arith.constant 0 : index
    %17 = vector.load %arg11[%c0_19, %c0_20] : memref<1x512xf32, #tpu.memory_space<vmem>>, vector<1x512xf32>
    %18 = vector.broadcast %17 : vector<1x512xf32> to vector<32x512xf32>
    %19 = arith.addf %12, %18 : vector<32x512xf32>
    %c0_21 = arith.constant 0 : index
    %c0_22 = arith.constant 0 : index
    %20 = vector.load %arg15[%c0_21, %c0_22] : memref<32x512xf32, #tpu.memory_space<vmem>>, vector<32x512xf32>
    tpu.vector_store %arg15[%c0_21, %c0_22], %19 {strides = array<i32>} : memref<32x512xf32, #tpu.memory_space<vmem>>, vector<32x512xf32>,
    %c0_23 = arith.constant 0 : index
    %c0_24 = arith.constant 0 : index
    %21 = vector.load %arg12[%c0_23, %c0_24] : memref<1x512xf32, #tpu.memory_space<vmem>>, vector<1x512xf32>
    %22 = vector.broadcast %21 : vector<1x512xf32> to vector<32x512xf32>
    %23 = arith.addf %16, %22 : vector<32x512xf32>
    %c0_25 = arith.constant 0 : index
    %c0_26 = arith.constant 0 : index
    %24 = vector.load %arg16[%c0_25, %c0_26] : memref<32x512xf32, #tpu.memory_space<vmem>>, vector<32x512xf32>
    tpu.vector_store %arg16[%c0_25, %c0_26], %23 {strides = array<i32>} : memref<32x512xf32, #tpu.memory_space<vmem>>, vector<32x512xf32>,
    %c0_27 = arith.constant 0 : index
    %c0_28 = arith.constant 0 : index
    %25 = vector.load %arg9[%c0_27, %c0_28] : memref<128x512xf32, #tpu.memory_space<vmem>>, vector<128x512xf32>
    %c0_29 = arith.constant 0 : index
    %c0_30 = arith.constant 0 : index
    %26 = vector.load %arg10[%c0_29, %c0_30] : memref<128x512xf32, #tpu.memory_space<vmem>>, vector<128x512xf32>
    %c0_i32_31 = arith.constant 0 : i32
    %c8_i32 = arith.constant 8 : i32
    %27 = arith.muli %c0_i32_31, %c8_i32 : i32
    %28 = tpu.assume_multiple %27, 8 : i32
    %29 = arith.index_cast %28 : i32 to index
    %c0_32 = arith.constant 0 : index
    %30 = vector.load %arg15[%29, %c0_32] : memref<32x512xf32, #tpu.memory_space<vmem>>, vector<8x512xf32>
    %c0_33 = arith.constant 0 : index
    %c0_34 = arith.constant 0 : index
    %31 = vector.load %arg17[%c0_33, %c0_34] : memref<8x128xf32, #tpu.memory_space<vmem>>, vector<8x128xf32>
    %cst_35 = arith.constant dense<0.000000e+00> : vector<8x512xf32>
    %32 = tpu.matmul %31, %25, %cst_35 {dimension_numbers = #tpu.dot_dimension_numbers<[1], [0], [0], [1], [0, 0, 1, 1], [], []>} : vector<8x128xf32>, vector<128x512xf32>, vector<8x512xf32> -> vector<8x512xf32>
    %33 = arith.addf %30, %32 : vector<8x512xf32>
    %c0_36 = arith.constant 0 : index
    %c0_37 = arith.constant 0 : index
    %34 = vector.load %arg18[%c0_36, %c0_37] : memref<8x128xf32, #tpu.memory_space<vmem>>, vector<8x128xf32>
    %35 = vector.extract_strided_slice %33 {offsets = [0, 0], sizes = [8, 128], strides = [1, 1]} : vector<8x512xf32> to vector<8x128xf32>
    %36 = arith.negf %35 : vector<8x128xf32>
    %37 = math.exp %36 : vector<8x128xf32>
    %cst_38 = arith.constant 1.000000e+00 : f32
    %38 = vector.broadcast %cst_38 : f32 to vector<8x128xf32>
    %39 = arith.addf %38, %37 : vector<8x128xf32>
    %40 = arith.divf %38, %39 : vector<8x128xf32>
    %41 = vector.extract_strided_slice %33 {offsets = [0, 128], sizes = [8, 128], strides = [1, 1]} : vector<8x512xf32> to vector<8x128xf32>
    %42 = arith.negf %41 : vector<8x128xf32>
    %43 = math.exp %42 : vector<8x128xf32>
    %cst_39 = arith.constant 1.000000e+00 : f32
    %44 = vector.broadcast %cst_39 : f32 to vector<8x128xf32>
    %45 = arith.addf %44, %43 : vector<8x128xf32>
    %46 = arith.divf %44, %45 : vector<8x128xf32>
    %47 = vector.extract_strided_slice %33 {offsets = [0, 256], sizes = [8, 128], strides = [1, 1]} : vector<8x512xf32> to vector<8x128xf32>
    %48 = math.tanh %47 : vector<8x128xf32>
    %49 = vector.extract_strided_slice %33 {offsets = [0, 384], sizes = [8, 128], strides = [1, 1]} : vector<8x512xf32> to vector<8x128xf32>
    %50 = arith.negf %49 : vector<8x128xf32>
    %51 = math.exp %50 : vector<8x128xf32>
    %cst_40 = arith.constant 1.000000e+00 : f32
    %52 = vector.broadcast %cst_40 : f32 to vector<8x128xf32>
    %53 = arith.addf %52, %51 : vector<8x128xf32>
    %54 = arith.divf %52, %53 : vector<8x128xf32>
    %55 = arith.mulf %46, %34 : vector<8x128xf32>
    %56 = arith.mulf %40, %48 : vector<8x128xf32>
    %57 = arith.addf %55, %56 : vector<8x128xf32>
    %58 = math.tanh %57 : vector<8x128xf32>
    %59 = arith.mulf %54, %58 : vector<8x128xf32>
    %c0_41 = arith.constant 0 : index
    %c0_42 = arith.constant 0 : index
    %60 = vector.load %arg17[%c0_41, %c0_42] : memref<8x128xf32, #tpu.memory_space<vmem>>, vector<8x128xf32>
    tpu.vector_store %arg17[%c0_41, %c0_42], %59 {strides = array<i32>} : memref<8x128xf32, #tpu.memory_space<vmem>>, vector<8x128xf32>,
    %c0_43 = arith.constant 0 : index
    %c0_44 = arith.constant 0 : index
    %61 = vector.load %arg18[%c0_43, %c0_44] : memref<8x128xf32, #tpu.memory_space<vmem>>, vector<8x128xf32>
    tpu.vector_store %arg18[%c0_43, %c0_44], %57 {strides = array<i32>} : memref<8x128xf32, #tpu.memory_space<vmem>>, vector<8x128xf32>,
    %62 = arith.index_cast %c0_i32_31 : i32 to index
    %c0_45 = arith.constant 0 : index
    %c0_46 = arith.constant 0 : index
    %63 = vector.load %arg13[%62, %c0_45, %c0_46] : memref<4x8x128xf32, #tpu.memory_space<vmem>>, vector<1x8x128xf32>
    %64 = vector.shape_cast %63 : vector<1x8x128xf32> to vector<8x128xf32>
    %65 = vector.shape_cast %59 : vector<8x128xf32> to vector<1x8x128xf32>
    tpu.vector_store %arg13[%62, %c0_45, %c0_46], %65 {strides = array<i32>} : memref<4x8x128xf32, #tpu.memory_space<vmem>>, vector<1x8x128xf32>,
    %c3_i32 = arith.constant 3 : i32
    %66 = arith.subi %c3_i32, %c0_i32_31 : i32
    %c8_i32_47 = arith.constant 8 : i32
    %67 = arith.muli %66, %c8_i32_47 : i32
    %68 = tpu.assume_multiple %67, 8 : i32
    %69 = arith.index_cast %68 : i32 to index
    %c0_48 = arith.constant 0 : index
    %70 = vector.load %arg16[%69, %c0_48] : memref<32x512xf32, #tpu.memory_space<vmem>>, vector<8x512xf32>
    %c0_49 = arith.constant 0 : index
    %c0_50 = arith.constant 0 : index
    %71 = vector.load %arg19[%c0_49, %c0_50] : memref<8x128xf32, #tpu.memory_space<vmem>>, vector<8x128xf32>
    %cst_51 = arith.constant dense<0.000000e+00> : vector<8x512xf32>
    %72 = tpu.matmul %71, %26, %cst_51 {dimension_numbers = #tpu.dot_dimension_numbers<[1], [0], [0], [1], [0, 0, 1, 1], [], []>} : vector<8x128xf32>, vector<128x512xf32>, vector<8x512xf32> -> vector<8x512xf32>
    %73 = arith.addf %70, %72 : vector<8x512xf32>
    %c0_52 = arith.constant 0 : index
    %c0_53 = arith.constant 0 : index
    %74 = vector.load %arg20[%c0_52, %c0_53] : memref<8x128xf32, #tpu.memory_space<vmem>>, vector<8x128xf32>
    %75 = vector.extract_strided_slice %73 {offsets = [0, 0], sizes = [8, 128], strides = [1, 1]} : vector<8x512xf32> to vector<8x128xf32>
    %76 = arith.negf %75 : vector<8x128xf32>
    %77 = math.exp %76 : vector<8x128xf32>
    %cst_54 = arith.constant 1.000000e+00 : f32
    %78 = vector.broadcast %cst_54 : f32 to vector<8x128xf32>
    %79 = arith.addf %78, %77 : vector<8x128xf32>
    %80 = arith.divf %78, %79 : vector<8x128xf32>
    %81 = vector.extract_strided_slice %73 {offsets = [0, 128], sizes = [8, 128], strides = [1, 1]} : vector<8x512xf32> to vector<8x128xf32>
    %82 = arith.negf %81 : vector<8x128xf32>
    %83 = math.exp %82 : vector<8x128xf32>
    %cst_55 = arith.constant 1.000000e+00 : f32
    %84 = vector.broadcast %cst_55 : f32 to vector<8x128xf32>
    %85 = arith.addf %84, %83 : vector<8x128xf32>
    %86 = arith.divf %84, %85 : vector<8x128xf32>
    %87 = vector.extract_strided_slice %73 {offsets = [0, 256], sizes = [8, 128], strides = [1, 1]} : vector<8x512xf32> to vector<8x128xf32>
    %88 = math.tanh %87 : vector<8x128xf32>
    %89 = vector.extract_strided_slice %73 {offsets = [0, 384], sizes = [8, 128], strides = [1, 1]} : vector<8x512xf32> to vector<8x128xf32>
    %90 = arith.negf %89 : vector<8x128xf32>
    %91 = math.exp %90 : vector<8x128xf32>
    %cst_56 = arith.constant 1.000000e+00 : f32
    %92 = vector.broadcast %cst_56 : f32 to vector<8x128xf32>
    %93 = arith.addf %92, %91 : vector<8x128xf32>
    %94 = arith.divf %92, %93 : vector<8x128xf32>
    %95 = arith.mulf %86, %74 : vector<8x128xf32>
    %96 = arith.mulf %80, %88 : vector<8x128xf32>
    %97 = arith.addf %95, %96 : vector<8x128xf32>
    %98 = math.tanh %97 : vector<8x128xf32>
    %99 = arith.mulf %94, %98 : vector<8x128xf32>
    %c0_57 = arith.constant 0 : index
    %c0_58 = arith.constant 0 : index
    %100 = vector.load %arg19[%c0_57, %c0_58] : memref<8x128xf32, #tpu.memory_space<vmem>>, vector<8x128xf32>
    tpu.vector_store %arg19[%c0_57, %c0_58], %99 {strides = array<i32>} : memref<8x128xf32, #tpu.memory_space<vmem>>, vector<8x128xf32>,
    %c0_59 = arith.constant 0 : index
    %c0_60 = arith.constant 0 : index
    %101 = vector.load %arg20[%c0_59, %c0_60] : memref<8x128xf32, #tpu.memory_space<vmem>>, vector<8x128xf32>
    tpu.vector_store %arg20[%c0_59, %c0_60], %97 {strides = array<i32>} : memref<8x128xf32, #tpu.memory_space<vmem>>, vector<8x128xf32>,
    %102 = arith.index_cast %66 : i32 to index
    %c0_61 = arith.constant 0 : index
    %c0_62 = arith.constant 0 : index
    %103 = vector.load %arg14[%102, %c0_61, %c0_62] : memref<4x8x128xf32, #tpu.memory_space<vmem>>, vector<1x8x128xf32>
    %104 = vector.shape_cast %103 : vector<1x8x128xf32> to vector<8x128xf32>
    %105 = vector.shape_cast %99 : vector<8x128xf32> to vector<1x8x128xf32>
    tpu.vector_store %arg14[%102, %c0_61, %c0_62], %105 {strides = array<i32>} : memref<4x8x128xf32, #tpu.memory_space<vmem>>, vector<1x8x128xf32>,
    %c1_i32 = arith.constant 1 : i32
    %c8_i32_63 = arith.constant 8 : i32
    %106 = arith.muli %c1_i32, %c8_i32_63 : i32
    %107 = tpu.assume_multiple %106, 8 : i32
    %108 = arith.index_cast %107 : i32 to index
    %c0_64 = arith.constant 0 : index
    %109 = vector.load %arg15[%108, %c0_64] : memref<32x512xf32, #tpu.memory_space<vmem>>, vector<8x512xf32>
    %c0_65 = arith.constant 0 : index
    %c0_66 = arith.constant 0 : index
    %110 = vector.load %arg17[%c0_65, %c0_66] : memref<8x128xf32, #tpu.memory_space<vmem>>, vector<8x128xf32>
    %cst_67 = arith.constant dense<0.000000e+00> : vector<8x512xf32>
    %111 = tpu.matmul %110, %25, %cst_67 {dimension_numbers = #tpu.dot_dimension_numbers<[1], [0], [0], [1], [0, 0, 1, 1], [], []>} : vector<8x128xf32>, vector<128x512xf32>, vector<8x512xf32> -> vector<8x512xf32>
    %112 = arith.addf %109, %111 : vector<8x512xf32>
    %c0_68 = arith.constant 0 : index
    %c0_69 = arith.constant 0 : index
    %113 = vector.load %arg18[%c0_68, %c0_69] : memref<8x128xf32, #tpu.memory_space<vmem>>, vector<8x128xf32>
    %114 = vector.extract_strided_slice %112 {offsets = [0, 0], sizes = [8, 128], strides = [1, 1]} : vector<8x512xf32> to vector<8x128xf32>
    %115 = arith.negf %114 : vector<8x128xf32>
    %116 = math.exp %115 : vector<8x128xf32>
    %cst_70 = arith.constant 1.000000e+00 : f32
    %117 = vector.broadcast %cst_70 : f32 to vector<8x128xf32>
    %118 = arith.addf %117, %116 : vector<8x128xf32>
    %119 = arith.divf %117, %118 : vector<8x128xf32>
    %120 = vector.extract_strided_slice %112 {offsets = [0, 128], sizes = [8, 128], strides = [1, 1]} : vector<8x512xf32> to vector<8x128xf32>
    %121 = arith.negf %120 : vector<8x128xf32>
    %122 = math.exp %121 : vector<8x128xf32>
    %cst_71 = arith.constant 1.000000e+00 : f32
    %123 = vector.broadcast %cst_71 : f32 to vector<8x128xf32>
    %124 = arith.addf %123, %122 : vector<8x128xf32>
    %125 = arith.divf %123, %124 : vector<8x128xf32>
    %126 = vector.extract_strided_slice %112 {offsets = [0, 256], sizes = [8, 128], strides = [1, 1]} : vector<8x512xf32> to vector<8x128xf32>
    %127 = math.tanh %126 : vector<8x128xf32>
    %128 = vector.extract_strided_slice %112 {offsets = [0, 384], sizes = [8, 128], strides = [1, 1]} : vector<8x512xf32> to vector<8x128xf32>
    %129 = arith.negf %128 : vector<8x128xf32>
    %130 = math.exp %129 : vector<8x128xf32>
    %cst_72 = arith.constant 1.000000e+00 : f32
    %131 = vector.broadcast %cst_72 : f32 to vector<8x128xf32>
    %132 = arith.addf %131, %130 : vector<8x128xf32>
    %133 = arith.divf %131, %132 : vector<8x128xf32>
    %134 = arith.mulf %125, %113 : vector<8x128xf32>
    %135 = arith.mulf %119, %127 : vector<8x128xf32>
    %136 = arith.addf %134, %135 : vector<8x128xf32>
    %137 = math.tanh %136 : vector<8x128xf32>
    %138 = arith.mulf %133, %137 : vector<8x128xf32>
    %c0_73 = arith.constant 0 : index
    %c0_74 = arith.constant 0 : index
    %139 = vector.load %arg17[%c0_73, %c0_74] : memref<8x128xf32, #tpu.memory_space<vmem>>, vector<8x128xf32>
    tpu.vector_store %arg17[%c0_73, %c0_74], %138 {strides = array<i32>} : memref<8x128xf32, #tpu.memory_space<vmem>>, vector<8x128xf32>,
    %c0_75 = arith.constant 0 : index
    %c0_76 = arith.constant 0 : index
    %140 = vector.load %arg18[%c0_75, %c0_76] : memref<8x128xf32, #tpu.memory_space<vmem>>, vector<8x128xf32>
    tpu.vector_store %arg18[%c0_75, %c0_76], %136 {strides = array<i32>} : memref<8x128xf32, #tpu.memory_space<vmem>>, vector<8x128xf32>,
    %141 = arith.index_cast %c1_i32 : i32 to index
    %c0_77 = arith.constant 0 : index
    %c0_78 = arith.constant 0 : index
    %142 = vector.load %arg13[%141, %c0_77, %c0_78] : memref<4x8x128xf32, #tpu.memory_space<vmem>>, vector<1x8x128xf32>
    %143 = vector.shape_cast %142 : vector<1x8x128xf32> to vector<8x128xf32>
    %144 = vector.shape_cast %138 : vector<8x128xf32> to vector<1x8x128xf32>
    tpu.vector_store %arg13[%141, %c0_77, %c0_78], %144 {strides = array<i32>} : memref<4x8x128xf32, #tpu.memory_space<vmem>>, vector<1x8x128xf32>,
    %c3_i32_79 = arith.constant 3 : i32
    %145 = arith.subi %c3_i32_79, %c1_i32 : i32
    %c8_i32_80 = arith.constant 8 : i32
    %146 = arith.muli %145, %c8_i32_80 : i32
    %147 = tpu.assume_multiple %146, 8 : i32
    %148 = arith.index_cast %147 : i32 to index
    %c0_81 = arith.constant 0 : index
    %149 = vector.load %arg16[%148, %c0_81] : memref<32x512xf32, #tpu.memory_space<vmem>>, vector<8x512xf32>
    %c0_82 = arith.constant 0 : index
    %c0_83 = arith.constant 0 : index
    %150 = vector.load %arg19[%c0_82, %c0_83] : memref<8x128xf32, #tpu.memory_space<vmem>>, vector<8x128xf32>
    %cst_84 = arith.constant dense<0.000000e+00> : vector<8x512xf32>
    %151 = tpu.matmul %150, %26, %cst_84 {dimension_numbers = #tpu.dot_dimension_numbers<[1], [0], [0], [1], [0, 0, 1, 1], [], []>} : vector<8x128xf32>, vector<128x512xf32>, vector<8x512xf32> -> vector<8x512xf32>
    %152 = arith.addf %149, %151 : vector<8x512xf32>
    %c0_85 = arith.constant 0 : index
    %c0_86 = arith.constant 0 : index
    %153 = vector.load %arg20[%c0_85, %c0_86] : memref<8x128xf32, #tpu.memory_space<vmem>>, vector<8x128xf32>
    %154 = vector.extract_strided_slice %152 {offsets = [0, 0], sizes = [8, 128], strides = [1, 1]} : vector<8x512xf32> to vector<8x128xf32>
    %155 = arith.negf %154 : vector<8x128xf32>
    %156 = math.exp %155 : vector<8x128xf32>
    %cst_87 = arith.constant 1.000000e+00 : f32
    %157 = vector.broadcast %cst_87 : f32 to vector<8x128xf32>
    %158 = arith.addf %157, %156 : vector<8x128xf32>
    %159 = arith.divf %157, %158 : vector<8x128xf32>
    %160 = vector.extract_strided_slice %152 {offsets = [0, 128], sizes = [8, 128], strides = [1, 1]} : vector<8x512xf32> to vector<8x128xf32>
    %161 = arith.negf %160 : vector<8x128xf32>
    %162 = math.exp %161 : vector<8x128xf32>
    %cst_88 = arith.constant 1.000000e+00 : f32
    %163 = vector.broadcast %cst_88 : f32 to vector<8x128xf32>
    %164 = arith.addf %163, %162 : vector<8x128xf32>
    %165 = arith.divf %163, %164 : vector<8x128xf32>
    %166 = vector.extract_strided_slice %152 {offsets = [0, 256], sizes = [8, 128], strides = [1, 1]} : vector<8x512xf32> to vector<8x128xf32>
    %167 = math.tanh %166 : vector<8x128xf32>
    %168 = vector.extract_strided_slice %152 {offsets = [0, 384], sizes = [8, 128], strides = [1, 1]} : vector<8x512xf32> to vector<8x128xf32>
    %169 = arith.negf %168 : vector<8x128xf32>
    %170 = math.exp %169 : vector<8x128xf32>
    %cst_89 = arith.constant 1.000000e+00 : f32
    %171 = vector.broadcast %cst_89 : f32 to vector<8x128xf32>
    %172 = arith.addf %171, %170 : vector<8x128xf32>
    %173 = arith.divf %171, %172 : vector<8x128xf32>
    %174 = arith.mulf %165, %153 : vector<8x128xf32>
    %175 = arith.mulf %159, %167 : vector<8x128xf32>
    %176 = arith.addf %174, %175 : vector<8x128xf32>
    %177 = math.tanh %176 : vector<8x128xf32>
    %178 = arith.mulf %173, %177 : vector<8x128xf32>
    %c0_90 = arith.constant 0 : index
    %c0_91 = arith.constant 0 : index
    %179 = vector.load %arg19[%c0_90, %c0_91] : memref<8x128xf32, #tpu.memory_space<vmem>>, vector<8x128xf32>
    tpu.vector_store %arg19[%c0_90, %c0_91], %178 {strides = array<i32>} : memref<8x128xf32, #tpu.memory_space<vmem>>, vector<8x128xf32>,
    %c0_92 = arith.constant 0 : index
    %c0_93 = arith.constant 0 : index
    %180 = vector.load %arg20[%c0_92, %c0_93] : memref<8x128xf32, #tpu.memory_space<vmem>>, vector<8x128xf32>
    tpu.vector_store %arg20[%c0_92, %c0_93], %176 {strides = array<i32>} : memref<8x128xf32, #tpu.memory_space<vmem>>, vector<8x128xf32>,
    %181 = arith.index_cast %145 : i32 to index
    %c0_94 = arith.constant 0 : index
    %c0_95 = arith.constant 0 : index
    %182 = vector.load %arg14[%181, %c0_94, %c0_95] : memref<4x8x128xf32, #tpu.memory_space<vmem>>, vector<1x8x128xf32>
    %183 = vector.shape_cast %182 : vector<1x8x128xf32> to vector<8x128xf32>
    %184 = vector.shape_cast %178 : vector<8x128xf32> to vector<1x8x128xf32>
    tpu.vector_store %arg14[%181, %c0_94, %c0_95], %184 {strides = array<i32>} : memref<4x8x128xf32, #tpu.memory_space<vmem>>, vector<1x8x128xf32>,
    %c2_i32 = arith.constant 2 : i32
    %c8_i32_96 = arith.constant 8 : i32
    %185 = arith.muli %c2_i32, %c8_i32_96 : i32
    %186 = tpu.assume_multiple %185, 8 : i32
    %187 = arith.index_cast %186 : i32 to index
    %c0_97 = arith.constant 0 : index
    %188 = vector.load %arg15[%187, %c0_97] : memref<32x512xf32, #tpu.memory_space<vmem>>, vector<8x512xf32>
    %c0_98 = arith.constant 0 : index
    %c0_99 = arith.constant 0 : index
    %189 = vector.load %arg17[%c0_98, %c0_99] : memref<8x128xf32, #tpu.memory_space<vmem>>, vector<8x128xf32>
    %cst_100 = arith.constant dense<0.000000e+00> : vector<8x512xf32>
    %190 = tpu.matmul %189, %25, %cst_100 {dimension_numbers = #tpu.dot_dimension_numbers<[1], [0], [0], [1], [0, 0, 1, 1], [], []>} : vector<8x128xf32>, vector<128x512xf32>, vector<8x512xf32> -> vector<8x512xf32>
    %191 = arith.addf %188, %190 : vector<8x512xf32>
    %c0_101 = arith.constant 0 : index
    %c0_102 = arith.constant 0 : index
    %192 = vector.load %arg18[%c0_101, %c0_102] : memref<8x128xf32, #tpu.memory_space<vmem>>, vector<8x128xf32>
    %193 = vector.extract_strided_slice %191 {offsets = [0, 0], sizes = [8, 128], strides = [1, 1]} : vector<8x512xf32> to vector<8x128xf32>
    %194 = arith.negf %193 : vector<8x128xf32>
    %195 = math.exp %194 : vector<8x128xf32>
    %cst_103 = arith.constant 1.000000e+00 : f32
    %196 = vector.broadcast %cst_103 : f32 to vector<8x128xf32>
    %197 = arith.addf %196, %195 : vector<8x128xf32>
    %198 = arith.divf %196, %197 : vector<8x128xf32>
    %199 = vector.extract_strided_slice %191 {offsets = [0, 128], sizes = [8, 128], strides = [1, 1]} : vector<8x512xf32> to vector<8x128xf32>
    %200 = arith.negf %199 : vector<8x128xf32>
    %201 = math.exp %200 : vector<8x128xf32>
    %cst_104 = arith.constant 1.000000e+00 : f32
    %202 = vector.broadcast %cst_104 : f32 to vector<8x128xf32>
    %203 = arith.addf %202, %201 : vector<8x128xf32>
    %204 = arith.divf %202, %203 : vector<8x128xf32>
    %205 = vector.extract_strided_slice %191 {offsets = [0, 256], sizes = [8, 128], strides = [1, 1]} : vector<8x512xf32> to vector<8x128xf32>
    %206 = math.tanh %205 : vector<8x128xf32>
    %207 = vector.extract_strided_slice %191 {offsets = [0, 384], sizes = [8, 128], strides = [1, 1]} : vector<8x512xf32> to vector<8x128xf32>
    %208 = arith.negf %207 : vector<8x128xf32>
    %209 = math.exp %208 : vector<8x128xf32>
    %cst_105 = arith.constant 1.000000e+00 : f32
    %210 = vector.broadcast %cst_105 : f32 to vector<8x128xf32>
    %211 = arith.addf %210, %209 : vector<8x128xf32>
    %212 = arith.divf %210, %211 : vector<8x128xf32>
    %213 = arith.mulf %204, %192 : vector<8x128xf32>
    %214 = arith.mulf %198, %206 : vector<8x128xf32>
    %215 = arith.addf %213, %214 : vector<8x128xf32>
    %216 = math.tanh %215 : vector<8x128xf32>
    %217 = arith.mulf %212, %216 : vector<8x128xf32>
    %c0_106 = arith.constant 0 : index
    %c0_107 = arith.constant 0 : index
    %218 = vector.load %arg17[%c0_106, %c0_107] : memref<8x128xf32, #tpu.memory_space<vmem>>, vector<8x128xf32>
    tpu.vector_store %arg17[%c0_106, %c0_107], %217 {strides = array<i32>} : memref<8x128xf32, #tpu.memory_space<vmem>>, vector<8x128xf32>,
    %c0_108 = arith.constant 0 : index
    %c0_109 = arith.constant 0 : index
    %219 = vector.load %arg18[%c0_108, %c0_109] : memref<8x128xf32, #tpu.memory_space<vmem>>, vector<8x128xf32>
    tpu.vector_store %arg18[%c0_108, %c0_109], %215 {strides = array<i32>} : memref<8x128xf32, #tpu.memory_space<vmem>>, vector<8x128xf32>,
    %220 = arith.index_cast %c2_i32 : i32 to index
    %c0_110 = arith.constant 0 : index
    %c0_111 = arith.constant 0 : index
    %221 = vector.load %arg13[%220, %c0_110, %c0_111] : memref<4x8x128xf32, #tpu.memory_space<vmem>>, vector<1x8x128xf32>
    %222 = vector.shape_cast %221 : vector<1x8x128xf32> to vector<8x128xf32>
    %223 = vector.shape_cast %217 : vector<8x128xf32> to vector<1x8x128xf32>
    tpu.vector_store %arg13[%220, %c0_110, %c0_111], %223 {strides = array<i32>} : memref<4x8x128xf32, #tpu.memory_space<vmem>>, vector<1x8x128xf32>,
    %c3_i32_112 = arith.constant 3 : i32
    %224 = arith.subi %c3_i32_112, %c2_i32 : i32
    %c8_i32_113 = arith.constant 8 : i32
    %225 = arith.muli %224, %c8_i32_113 : i32
    %226 = tpu.assume_multiple %225, 8 : i32
    %227 = arith.index_cast %226 : i32 to index
    %c0_114 = arith.constant 0 : index
    %228 = vector.load %arg16[%227, %c0_114] : memref<32x512xf32, #tpu.memory_space<vmem>>, vector<8x512xf32>
    %c0_115 = arith.constant 0 : index
    %c0_116 = arith.constant 0 : index
    %229 = vector.load %arg19[%c0_115, %c0_116] : memref<8x128xf32, #tpu.memory_space<vmem>>, vector<8x128xf32>
    %cst_117 = arith.constant dense<0.000000e+00> : vector<8x512xf32>
    %230 = tpu.matmul %229, %26, %cst_117 {dimension_numbers = #tpu.dot_dimension_numbers<[1], [0], [0], [1], [0, 0, 1, 1], [], []>} : vector<8x128xf32>, vector<128x512xf32>, vector<8x512xf32> -> vector<8x512xf32>
    %231 = arith.addf %228, %230 : vector<8x512xf32>
    %c0_118 = arith.constant 0 : index
    %c0_119 = arith.constant 0 : index
    %232 = vector.load %arg20[%c0_118, %c0_119] : memref<8x128xf32, #tpu.memory_space<vmem>>, vector<8x128xf32>
    %233 = vector.extract_strided_slice %231 {offsets = [0, 0], sizes = [8, 128], strides = [1, 1]} : vector<8x512xf32> to vector<8x128xf32>
    %234 = arith.negf %233 : vector<8x128xf32>
    %235 = math.exp %234 : vector<8x128xf32>
    %cst_120 = arith.constant 1.000000e+00 : f32
    %236 = vector.broadcast %cst_120 : f32 to vector<8x128xf32>
    %237 = arith.addf %236, %235 : vector<8x128xf32>
    %238 = arith.divf %236, %237 : vector<8x128xf32>
    %239 = vector.extract_strided_slice %231 {offsets = [0, 128], sizes = [8, 128], strides = [1, 1]} : vector<8x512xf32> to vector<8x128xf32>
    %240 = arith.negf %239 : vector<8x128xf32>
    %241 = math.exp %240 : vector<8x128xf32>
    %cst_121 = arith.constant 1.000000e+00 : f32
    %242 = vector.broadcast %cst_121 : f32 to vector<8x128xf32>
    %243 = arith.addf %242, %241 : vector<8x128xf32>
    %244 = arith.divf %242, %243 : vector<8x128xf32>
    %245 = vector.extract_strided_slice %231 {offsets = [0, 256], sizes = [8, 128], strides = [1, 1]} : vector<8x512xf32> to vector<8x128xf32>
    %246 = math.tanh %245 : vector<8x128xf32>
    %247 = vector.extract_strided_slice %231 {offsets = [0, 384], sizes = [8, 128], strides = [1, 1]} : vector<8x512xf32> to vector<8x128xf32>
    %248 = arith.negf %247 : vector<8x128xf32>
    %249 = math.exp %248 : vector<8x128xf32>
    %cst_122 = arith.constant 1.000000e+00 : f32
    %250 = vector.broadcast %cst_122 : f32 to vector<8x128xf32>
    %251 = arith.addf %250, %249 : vector<8x128xf32>
    %252 = arith.divf %250, %251 : vector<8x128xf32>
    %253 = arith.mulf %244, %232 : vector<8x128xf32>
    %254 = arith.mulf %238, %246 : vector<8x128xf32>
    %255 = arith.addf %253, %254 : vector<8x128xf32>
    %256 = math.tanh %255 : vector<8x128xf32>
    %257 = arith.mulf %252, %256 : vector<8x128xf32>
    %c0_123 = arith.constant 0 : index
    %c0_124 = arith.constant 0 : index
    %258 = vector.load %arg19[%c0_123, %c0_124] : memref<8x128xf32, #tpu.memory_space<vmem>>, vector<8x128xf32>
    tpu.vector_store %arg19[%c0_123, %c0_124], %257 {strides = array<i32>} : memref<8x128xf32, #tpu.memory_space<vmem>>, vector<8x128xf32>,
    %c0_125 = arith.constant 0 : index
    %c0_126 = arith.constant 0 : index
    %259 = vector.load %arg20[%c0_125, %c0_126] : memref<8x128xf32, #tpu.memory_space<vmem>>, vector<8x128xf32>
    tpu.vector_store %arg20[%c0_125, %c0_126], %255 {strides = array<i32>} : memref<8x128xf32, #tpu.memory_space<vmem>>, vector<8x128xf32>,
    %260 = arith.index_cast %224 : i32 to index
    %c0_127 = arith.constant 0 : index
    %c0_128 = arith.constant 0 : index
    %261 = vector.load %arg14[%260, %c0_127, %c0_128] : memref<4x8x128xf32, #tpu.memory_space<vmem>>, vector<1x8x128xf32>
    %262 = vector.shape_cast %261 : vector<1x8x128xf32> to vector<8x128xf32>
    %263 = vector.shape_cast %257 : vector<8x128xf32> to vector<1x8x128xf32>
    tpu.vector_store %arg14[%260, %c0_127, %c0_128], %263 {strides = array<i32>} : memref<4x8x128xf32, #tpu.memory_space<vmem>>, vector<1x8x128xf32>,
    %c3_i32_129 = arith.constant 3 : i32
    %c8_i32_130 = arith.constant 8 : i32
    %264 = arith.muli %c3_i32_129, %c8_i32_130 : i32
    %265 = tpu.assume_multiple %264, 8 : i32
    %266 = arith.index_cast %265 : i32 to index
    %c0_131 = arith.constant 0 : index
    %267 = vector.load %arg15[%266, %c0_131] : memref<32x512xf32, #tpu.memory_space<vmem>>, vector<8x512xf32>
    %c0_132 = arith.constant 0 : index
    %c0_133 = arith.constant 0 : index
    %268 = vector.load %arg17[%c0_132, %c0_133] : memref<8x128xf32, #tpu.memory_space<vmem>>, vector<8x128xf32>
    %cst_134 = arith.constant dense<0.000000e+00> : vector<8x512xf32>
    %269 = tpu.matmul %268, %25, %cst_134 {dimension_numbers = #tpu.dot_dimension_numbers<[1], [0], [0], [1], [0, 0, 1, 1], [], []>} : vector<8x128xf32>, vector<128x512xf32>, vector<8x512xf32> -> vector<8x512xf32>
    %270 = arith.addf %267, %269 : vector<8x512xf32>
    %c0_135 = arith.constant 0 : index
    %c0_136 = arith.constant 0 : index
    %271 = vector.load %arg18[%c0_135, %c0_136] : memref<8x128xf32, #tpu.memory_space<vmem>>, vector<8x128xf32>
    %272 = vector.extract_strided_slice %270 {offsets = [0, 0], sizes = [8, 128], strides = [1, 1]} : vector<8x512xf32> to vector<8x128xf32>
    %273 = arith.negf %272 : vector<8x128xf32>
    %274 = math.exp %273 : vector<8x128xf32>
    %cst_137 = arith.constant 1.000000e+00 : f32
    %275 = vector.broadcast %cst_137 : f32 to vector<8x128xf32>
    %276 = arith.addf %275, %274 : vector<8x128xf32>
    %277 = arith.divf %275, %276 : vector<8x128xf32>
    %278 = vector.extract_strided_slice %270 {offsets = [0, 128], sizes = [8, 128], strides = [1, 1]} : vector<8x512xf32> to vector<8x128xf32>
    %279 = arith.negf %278 : vector<8x128xf32>
    %280 = math.exp %279 : vector<8x128xf32>
    %cst_138 = arith.constant 1.000000e+00 : f32
    %281 = vector.broadcast %cst_138 : f32 to vector<8x128xf32>
    %282 = arith.addf %281, %280 : vector<8x128xf32>
    %283 = arith.divf %281, %282 : vector<8x128xf32>
    %284 = vector.extract_strided_slice %270 {offsets = [0, 256], sizes = [8, 128], strides = [1, 1]} : vector<8x512xf32> to vector<8x128xf32>
    %285 = math.tanh %284 : vector<8x128xf32>
    %286 = vector.extract_strided_slice %270 {offsets = [0, 384], sizes = [8, 128], strides = [1, 1]} : vector<8x512xf32> to vector<8x128xf32>
    %287 = arith.negf %286 : vector<8x128xf32>
    %288 = math.exp %287 : vector<8x128xf32>
    %cst_139 = arith.constant 1.000000e+00 : f32
    %289 = vector.broadcast %cst_139 : f32 to vector<8x128xf32>
    %290 = arith.addf %289, %288 : vector<8x128xf32>
    %291 = arith.divf %289, %290 : vector<8x128xf32>
    %292 = arith.mulf %283, %271 : vector<8x128xf32>
    %293 = arith.mulf %277, %285 : vector<8x128xf32>
    %294 = arith.addf %292, %293 : vector<8x128xf32>
    %295 = math.tanh %294 : vector<8x128xf32>
    %296 = arith.mulf %291, %295 : vector<8x128xf32>
    %c0_140 = arith.constant 0 : index
    %c0_141 = arith.constant 0 : index
    %297 = vector.load %arg17[%c0_140, %c0_141] : memref<8x128xf32, #tpu.memory_space<vmem>>, vector<8x128xf32>
    tpu.vector_store %arg17[%c0_140, %c0_141], %296 {strides = array<i32>} : memref<8x128xf32, #tpu.memory_space<vmem>>, vector<8x128xf32>,
    %c0_142 = arith.constant 0 : index
    %c0_143 = arith.constant 0 : index
    %298 = vector.load %arg18[%c0_142, %c0_143] : memref<8x128xf32, #tpu.memory_space<vmem>>, vector<8x128xf32>
    tpu.vector_store %arg18[%c0_142, %c0_143], %294 {strides = array<i32>} : memref<8x128xf32, #tpu.memory_space<vmem>>, vector<8x128xf32>,
    %299 = arith.index_cast %c3_i32_129 : i32 to index
    %c0_144 = arith.constant 0 : index
    %c0_145 = arith.constant 0 : index
    %300 = vector.load %arg13[%299, %c0_144, %c0_145] : memref<4x8x128xf32, #tpu.memory_space<vmem>>, vector<1x8x128xf32>
    %301 = vector.shape_cast %300 : vector<1x8x128xf32> to vector<8x128xf32>
    %302 = vector.shape_cast %296 : vector<8x128xf32> to vector<1x8x128xf32>
    tpu.vector_store %arg13[%299, %c0_144, %c0_145], %302 {strides = array<i32>} : memref<4x8x128xf32, #tpu.memory_space<vmem>>, vector<1x8x128xf32>,
    %c3_i32_146 = arith.constant 3 : i32
    %303 = arith.subi %c3_i32_146, %c3_i32_129 : i32
    %c8_i32_147 = arith.constant 8 : i32
    %304 = arith.muli %303, %c8_i32_147 : i32
    %305 = tpu.assume_multiple %304, 8 : i32
    %306 = arith.index_cast %305 : i32 to index
    %c0_148 = arith.constant 0 : index
    %307 = vector.load %arg16[%306, %c0_148] : memref<32x512xf32, #tpu.memory_space<vmem>>, vector<8x512xf32>
    %c0_149 = arith.constant 0 : index
    %c0_150 = arith.constant 0 : index
    %308 = vector.load %arg19[%c0_149, %c0_150] : memref<8x128xf32, #tpu.memory_space<vmem>>, vector<8x128xf32>
    %cst_151 = arith.constant dense<0.000000e+00> : vector<8x512xf32>
    %309 = tpu.matmul %308, %26, %cst_151 {dimension_numbers = #tpu.dot_dimension_numbers<[1], [0], [0], [1], [0, 0, 1, 1], [], []>} : vector<8x128xf32>, vector<128x512xf32>, vector<8x512xf32> -> vector<8x512xf32>
    %310 = arith.addf %307, %309 : vector<8x512xf32>
    %c0_152 = arith.constant 0 : index
    %c0_153 = arith.constant 0 : index
    %311 = vector.load %arg20[%c0_152, %c0_153] : memref<8x128xf32, #tpu.memory_space<vmem>>, vector<8x128xf32>
    %312 = vector.extract_strided_slice %310 {offsets = [0, 0], sizes = [8, 128], strides = [1, 1]} : vector<8x512xf32> to vector<8x128xf32>
    %313 = arith.negf %312 : vector<8x128xf32>
    %314 = math.exp %313 : vector<8x128xf32>
    %cst_154 = arith.constant 1.000000e+00 : f32
    %315 = vector.broadcast %cst_154 : f32 to vector<8x128xf32>
    %316 = arith.addf %315, %314 : vector<8x128xf32>
    %317 = arith.divf %315, %316 : vector<8x128xf32>
    %318 = vector.extract_strided_slice %310 {offsets = [0, 128], sizes = [8, 128], strides = [1, 1]} : vector<8x512xf32> to vector<8x128xf32>
    %319 = arith.negf %318 : vector<8x128xf32>
    %320 = math.exp %319 : vector<8x128xf32>
    %cst_155 = arith.constant 1.000000e+00 : f32
    %321 = vector.broadcast %cst_155 : f32 to vector<8x128xf32>
    %322 = arith.addf %321, %320 : vector<8x128xf32>
    %323 = arith.divf %321, %322 : vector<8x128xf32>
    %324 = vector.extract_strided_slice %310 {offsets = [0, 256], sizes = [8, 128], strides = [1, 1]} : vector<8x512xf32> to vector<8x128xf32>
    %325 = math.tanh %324 : vector<8x128xf32>
    %326 = vector.extract_strided_slice %310 {offsets = [0, 384], sizes = [8, 128], strides = [1, 1]} : vector<8x512xf32> to vector<8x128xf32>
    %327 = arith.negf %326 : vector<8x128xf32>
    %328 = math.exp %327 : vector<8x128xf32>
    %cst_156 = arith.constant 1.000000e+00 : f32
    %329 = vector.broadcast %cst_156 : f32 to vector<8x128xf32>
    %330 = arith.addf %329, %328 : vector<8x128xf32>
    %331 = arith.divf %329, %330 : vector<8x128xf32>
    %332 = arith.mulf %323, %311 : vector<8x128xf32>
    %333 = arith.mulf %317, %325 : vector<8x128xf32>
    %334 = arith.addf %332, %333 : vector<8x128xf32>
    %335 = math.tanh %334 : vector<8x128xf32>
    %336 = arith.mulf %331, %335 : vector<8x128xf32>
    %c0_157 = arith.constant 0 : index
    %c0_158 = arith.constant 0 : index
    %337 = vector.load %arg19[%c0_157, %c0_158] : memref<8x128xf32, #tpu.memory_space<vmem>>, vector<8x128xf32>
    tpu.vector_store %arg19[%c0_157, %c0_158], %336 {strides = array<i32>} : memref<8x128xf32, #tpu.memory_space<vmem>>, vector<8x128xf32>,
    %c0_159 = arith.constant 0 : index
    %c0_160 = arith.constant 0 : index
    %338 = vector.load %arg20[%c0_159, %c0_160] : memref<8x128xf32, #tpu.memory_space<vmem>>, vector<8x128xf32>
    tpu.vector_store %arg20[%c0_159, %c0_160], %334 {strides = array<i32>} : memref<8x128xf32, #tpu.memory_space<vmem>>, vector<8x128xf32>,
    %339 = arith.index_cast %303 : i32 to index
    %c0_161 = arith.constant 0 : index
    %c0_162 = arith.constant 0 : index
    %340 = vector.load %arg14[%339, %c0_161, %c0_162] : memref<4x8x128xf32, #tpu.memory_space<vmem>>, vector<1x8x128xf32>
    %341 = vector.shape_cast %340 : vector<1x8x128xf32> to vector<8x128xf32>
    %342 = vector.shape_cast %336 : vector<8x128xf32> to vector<1x8x128xf32>
    tpu.vector_store %arg14[%339, %c0_161, %c0_162], %342 {strides = array<i32>} : memref<4x8x128xf32, #tpu.memory_space<vmem>>, vector<1x8x128xf32>,
    %c4_i32 = arith.constant 4 : i32
    return
  }
  func.func @transform_0(%arg0: i32) -> (i32, i32) {
    %c0_i32 = arith.constant 0 : i32
    %c0_i32_0 = arith.constant 0 : i32
    return %arg0, %c0_i32 : i32, i32
  }
  func.func @transform_1(%arg0: i32) -> (i32, i32) {
    %c0_i32 = arith.constant 0 : i32
    %c0_i32_0 = arith.constant 0 : i32
    return %arg0, %c0_i32 : i32, i32
  }
  func.func @transform_2(%arg0: i32) -> (i32, i32) {
    %c1_i32 = arith.constant 1 : i32
    %0 = arith.subi %c1_i32, %arg0 : i32
    %c0_i32 = arith.constant 0 : i32
    %c0_i32_0 = arith.constant 0 : i32
    return %0, %c0_i32 : i32, i32
  }
  func.func @transform_3(%arg0: i32) -> (i32, i32) {
    %c1_i32 = arith.constant 1 : i32
    %0 = arith.subi %c1_i32, %arg0 : i32
    %c0_i32 = arith.constant 0 : i32
    %c0_i32_0 = arith.constant 0 : i32
    return %0, %c0_i32 : i32, i32
  }
  func.func @transform_4(%arg0: i32) -> (i32, i32) {
    %c0_i32 = arith.constant 0 : i32
    %c0_i32_0 = arith.constant 0 : i32
    %c0_i32_1 = arith.constant 0 : i32
    return %c0_i32, %c0_i32_0 : i32, i32
  }
  func.func @transform_5(%arg0: i32) -> (i32, i32) {
    %c0_i32 = arith.constant 0 : i32
    %c0_i32_0 = arith.constant 0 : i32
    %c0_i32_1 = arith.constant 0 : i32
    return %c0_i32, %c0_i32_0 : i32, i32
  }
  func.func @transform_6(%arg0: i32) -> (i32, i32) {
    %c0_i32 = arith.constant 0 : i32
    %c0_i32_0 = arith.constant 0 : i32
    %c0_i32_1 = arith.constant 0 : i32
    return %c0_i32, %c0_i32_0 : i32, i32
  }
  func.func @transform_7(%arg0: i32) -> (i32, i32) {
    %c0_i32 = arith.constant 0 : i32
    %c0_i32_0 = arith.constant 0 : i32
    %c0_i32_1 = arith.constant 0 : i32
    return %c0_i32, %c0_i32_0 : i32, i32
  }
  func.func @transform_8(%arg0: i32) -> (i32, i32) {
    %c0_i32 = arith.constant 0 : i32
    %c0_i32_0 = arith.constant 0 : i32
    %c0_i32_1 = arith.constant 0 : i32
    return %c0_i32, %c0_i32_0 : i32, i32
  }
  func.func @transform_9(%arg0: i32) -> (i32, i32) {
    %c0_i32 = arith.constant 0 : i32
    %c0_i32_0 = arith.constant 0 : i32
    %c0_i32_1 = arith.constant 0 : i32
    return %c0_i32, %c0_i32_0 : i32, i32
  }
  func.func @transform_10(%arg0: i32) -> (i32, i32) {
    %c0_i32 = arith.constant 0 : i32
    %c0_i32_0 = arith.constant 0 : i32
    %c0_i32_1 = arith.constant 0 : i32
    return %c0_i32, %c0_i32_0 : i32, i32
  }
  func.func @transform_11(%arg0: i32) -> (i32, i32) {
    %c0_i32 = arith.constant 0 : i32
    %c0_i32_0 = arith.constant 0 : i32
    %c0_i32_1 = arith.constant 0 : i32
    return %c0_i32, %c0_i32_0 : i32, i32
  }
  func.func @transform_12(%arg0: i32) -> (i32, i32, i32) {
    %c0_i32 = arith.constant 0 : i32
    %c0_i32_0 = arith.constant 0 : i32
    %c0_i32_1 = arith.constant 0 : i32
    return %arg0, %c0_i32, %c0_i32_0 : i32, i32, i32
  }
  func.func @transform_13(%arg0: i32) -> (i32, i32, i32) {
    %c1_i32 = arith.constant 1 : i32
    %0 = arith.subi %c1_i32, %arg0 : i32
    %c0_i32 = arith.constant 0 : i32
    %c0_i32_0 = arith.constant 0 : i32
    %c0_i32_1 = arith.constant 0 : i32
    return %0, %c0_i32, %c0_i32_0 : i32, i32, i32
  }
}

module attributes {stable_mosaic.version = 11 : i64} {
  func.func @kernel(%arg0: i32, %arg1: memref<32x16xf32, #tpu.memory_space<vmem>>, %arg2: memref<32x16xf32, #tpu.memory_space<vmem>>, %arg3: memref<16x512xf32, #tpu.memory_space<vmem>>, %arg4: memref<16x512xf32, #tpu.memory_space<vmem>>, %arg5: memref<128x512xf32, #tpu.memory_space<vmem>>, %arg6: memref<128x512xf32, #tpu.memory_space<vmem>>, %arg7: memref<1x512xf32, #tpu.memory_space<vmem>>, %arg8: memref<1x512xf32, #tpu.memory_space<vmem>>, %arg9: memref<4x8x128xf32, #tpu.memory_space<vmem>>, %arg10: memref<4x8x128xf32, #tpu.memory_space<vmem>>, %arg11: memref<32x512xf32, #tpu.memory_space<vmem>>, %arg12: memref<32x512xf32, #tpu.memory_space<vmem>>, %arg13: memref<8x128xf32, #tpu.memory_space<vmem>>, %arg14: memref<8x128xf32, #tpu.memory_space<vmem>>, %arg15: memref<8x128xf32, #tpu.memory_space<vmem>>, %arg16: memref<8x128xf32, #tpu.memory_space<vmem>>) attributes {dimension_semantics = [#tpu.dimension_semantics<arbitrary>], iteration_bounds = array<i64: 2>, scalar_prefetch = 0 : i64, scratch_operands = 6 : i64, tpu.core_type = #tpu.core_type<tc>, window_params = [{transform_indices = @transform_0, window_bounds = array<i64: 32, 16>}, {transform_indices = @transform_1, window_bounds = array<i64: 32, 16>}, {pipeline_mode = #tpu.pipeline_mode<synchronous>, transform_indices = @transform_2, window_bounds = array<i64: 16, 512>}, {pipeline_mode = #tpu.pipeline_mode<synchronous>, transform_indices = @transform_3, window_bounds = array<i64: 16, 512>}, {pipeline_mode = #tpu.pipeline_mode<synchronous>, transform_indices = @transform_4, window_bounds = array<i64: 128, 512>}, {pipeline_mode = #tpu.pipeline_mode<synchronous>, transform_indices = @transform_5, window_bounds = array<i64: 128, 512>}, {pipeline_mode = #tpu.pipeline_mode<synchronous>, transform_indices = @transform_6, window_bounds = array<i64: 1, 512>}, {pipeline_mode = #tpu.pipeline_mode<synchronous>, transform_indices = @transform_7, window_bounds = array<i64: 1, 512>}, {transform_indices = @transform_8, window_bounds = array<i64: 4, 8, 128>}, {transform_indices = @transform_9, window_bounds = array<i64: 4, 8, 128>}]} {
    %c0_i32 = arith.constant 0 : i32
    %0 = arith.cmpi eq, %arg0, %c0_i32 : i32
    %1 = arith.extui %0 : i1 to i32
    %c0_i32_0 = arith.constant 0 : i32
    %2 = arith.cmpi ne, %1, %c0_i32_0 : i32
    scf.if %2 {
      %cst_153 = arith.constant 0.000000e+00 : f32
      %335 = vector.broadcast %cst_153 : f32 to vector<8x128xf32>
      %c0_154 = arith.constant 0 : index
      %c0_155 = arith.constant 0 : index
      %336 = vector.load %arg13[%c0_154, %c0_155] : memref<8x128xf32, #tpu.memory_space<vmem>>, vector<8x128xf32>
      tpu.vector_store %arg13[%c0_154, %c0_155], %335 {strides = array<i32>} : memref<8x128xf32, #tpu.memory_space<vmem>>, vector<8x128xf32>,
      %cst_156 = arith.constant 0.000000e+00 : f32
      %337 = vector.broadcast %cst_156 : f32 to vector<8x128xf32>
      %c0_157 = arith.constant 0 : index
      %c0_158 = arith.constant 0 : index
      %338 = vector.load %arg14[%c0_157, %c0_158] : memref<8x128xf32, #tpu.memory_space<vmem>>, vector<8x128xf32>
      tpu.vector_store %arg14[%c0_157, %c0_158], %337 {strides = array<i32>} : memref<8x128xf32, #tpu.memory_space<vmem>>, vector<8x128xf32>,
      %cst_159 = arith.constant 0.000000e+00 : f32
      %339 = vector.broadcast %cst_159 : f32 to vector<8x128xf32>
      %c0_160 = arith.constant 0 : index
      %c0_161 = arith.constant 0 : index
      %340 = vector.load %arg15[%c0_160, %c0_161] : memref<8x128xf32, #tpu.memory_space<vmem>>, vector<8x128xf32>
      tpu.vector_store %arg15[%c0_160, %c0_161], %339 {strides = array<i32>} : memref<8x128xf32, #tpu.memory_space<vmem>>, vector<8x128xf32>,
      %cst_162 = arith.constant 0.000000e+00 : f32
      %341 = vector.broadcast %cst_162 : f32 to vector<8x128xf32>
      %c0_163 = arith.constant 0 : index
      %c0_164 = arith.constant 0 : index
      %342 = vector.load %arg16[%c0_163, %c0_164] : memref<8x128xf32, #tpu.memory_space<vmem>>, vector<8x128xf32>
      tpu.vector_store %arg16[%c0_163, %c0_164], %341 {strides = array<i32>} : memref<8x128xf32, #tpu.memory_space<vmem>>, vector<8x128xf32>,
    } else {
    }
    %c0 = arith.constant 0 : index
    %c0_1 = arith.constant 0 : index
    %3 = vector.load %arg1[%c0, %c0_1] : memref<32x16xf32, #tpu.memory_space<vmem>>, vector<32x16xf32>
    %c0_2 = arith.constant 0 : index
    %c0_3 = arith.constant 0 : index
    %4 = vector.load %arg3[%c0_2, %c0_3] : memref<16x512xf32, #tpu.memory_space<vmem>>, vector<16x512xf32>
    %cst = arith.constant dense<0.000000e+00> : vector<32x512xf32>
    %5 = tpu.matmul %3, %4, %cst {dimension_numbers = #tpu.dot_dimension_numbers<[1], [0], [0], [1], [0, 0, 1, 1], [], []>} : vector<32x16xf32>, vector<16x512xf32>, vector<32x512xf32> -> vector<32x512xf32>
    %c0_4 = arith.constant 0 : index
    %c0_5 = arith.constant 0 : index
    %6 = vector.load %arg2[%c0_4, %c0_5] : memref<32x16xf32, #tpu.memory_space<vmem>>, vector<32x16xf32>
    %c0_6 = arith.constant 0 : index
    %c0_7 = arith.constant 0 : index
    %7 = vector.load %arg4[%c0_6, %c0_7] : memref<16x512xf32, #tpu.memory_space<vmem>>, vector<16x512xf32>
    %cst_8 = arith.constant dense<0.000000e+00> : vector<32x512xf32>
    %8 = tpu.matmul %6, %7, %cst_8 {dimension_numbers = #tpu.dot_dimension_numbers<[1], [0], [0], [1], [0, 0, 1, 1], [], []>} : vector<32x16xf32>, vector<16x512xf32>, vector<32x512xf32> -> vector<32x512xf32>
    %c0_9 = arith.constant 0 : index
    %c0_10 = arith.constant 0 : index
    %9 = vector.load %arg7[%c0_9, %c0_10] : memref<1x512xf32, #tpu.memory_space<vmem>>, vector<1x512xf32>
    %10 = vector.broadcast %9 : vector<1x512xf32> to vector<32x512xf32>
    %11 = arith.addf %5, %10 : vector<32x512xf32>
    %c0_11 = arith.constant 0 : index
    %c0_12 = arith.constant 0 : index
    %12 = vector.load %arg11[%c0_11, %c0_12] : memref<32x512xf32, #tpu.memory_space<vmem>>, vector<32x512xf32>
    tpu.vector_store %arg11[%c0_11, %c0_12], %11 {strides = array<i32>} : memref<32x512xf32, #tpu.memory_space<vmem>>, vector<32x512xf32>,
    %c0_13 = arith.constant 0 : index
    %c0_14 = arith.constant 0 : index
    %13 = vector.load %arg8[%c0_13, %c0_14] : memref<1x512xf32, #tpu.memory_space<vmem>>, vector<1x512xf32>
    %14 = vector.broadcast %13 : vector<1x512xf32> to vector<32x512xf32>
    %15 = arith.addf %8, %14 : vector<32x512xf32>
    %c0_15 = arith.constant 0 : index
    %c0_16 = arith.constant 0 : index
    %16 = vector.load %arg12[%c0_15, %c0_16] : memref<32x512xf32, #tpu.memory_space<vmem>>, vector<32x512xf32>
    tpu.vector_store %arg12[%c0_15, %c0_16], %15 {strides = array<i32>} : memref<32x512xf32, #tpu.memory_space<vmem>>, vector<32x512xf32>,
    %c0_17 = arith.constant 0 : index
    %c0_18 = arith.constant 0 : index
    %17 = vector.load %arg5[%c0_17, %c0_18] : memref<128x512xf32, #tpu.memory_space<vmem>>, vector<128x512xf32>
    %c0_19 = arith.constant 0 : index
    %c0_20 = arith.constant 0 : index
    %18 = vector.load %arg6[%c0_19, %c0_20] : memref<128x512xf32, #tpu.memory_space<vmem>>, vector<128x512xf32>
    %c0_i32_21 = arith.constant 0 : i32
    %c8_i32 = arith.constant 8 : i32
    %19 = arith.muli %c0_i32_21, %c8_i32 : i32
    %20 = tpu.assume_multiple %19, 8 : i32
    %21 = arith.index_cast %20 : i32 to index
    %c0_22 = arith.constant 0 : index
    %22 = vector.load %arg11[%21, %c0_22] : memref<32x512xf32, #tpu.memory_space<vmem>>, vector<8x512xf32>
    %c0_23 = arith.constant 0 : index
    %c0_24 = arith.constant 0 : index
    %23 = vector.load %arg13[%c0_23, %c0_24] : memref<8x128xf32, #tpu.memory_space<vmem>>, vector<8x128xf32>
    %cst_25 = arith.constant dense<0.000000e+00> : vector<8x512xf32>
    %24 = tpu.matmul %23, %17, %cst_25 {dimension_numbers = #tpu.dot_dimension_numbers<[1], [0], [0], [1], [0, 0, 1, 1], [], []>} : vector<8x128xf32>, vector<128x512xf32>, vector<8x512xf32> -> vector<8x512xf32>
    %25 = arith.addf %22, %24 : vector<8x512xf32>
    %c0_26 = arith.constant 0 : index
    %c0_27 = arith.constant 0 : index
    %26 = vector.load %arg14[%c0_26, %c0_27] : memref<8x128xf32, #tpu.memory_space<vmem>>, vector<8x128xf32>
    %27 = vector.extract_strided_slice %25 {offsets = [0, 0], sizes = [8, 128], strides = [1, 1]} : vector<8x512xf32> to vector<8x128xf32>
    %28 = arith.negf %27 : vector<8x128xf32>
    %29 = math.exp %28 : vector<8x128xf32>
    %cst_28 = arith.constant 1.000000e+00 : f32
    %30 = vector.broadcast %cst_28 : f32 to vector<8x128xf32>
    %31 = arith.addf %30, %29 : vector<8x128xf32>
    %32 = arith.divf %30, %31 : vector<8x128xf32>
    %33 = vector.extract_strided_slice %25 {offsets = [0, 128], sizes = [8, 128], strides = [1, 1]} : vector<8x512xf32> to vector<8x128xf32>
    %34 = arith.negf %33 : vector<8x128xf32>
    %35 = math.exp %34 : vector<8x128xf32>
    %cst_29 = arith.constant 1.000000e+00 : f32
    %36 = vector.broadcast %cst_29 : f32 to vector<8x128xf32>
    %37 = arith.addf %36, %35 : vector<8x128xf32>
    %38 = arith.divf %36, %37 : vector<8x128xf32>
    %39 = vector.extract_strided_slice %25 {offsets = [0, 256], sizes = [8, 128], strides = [1, 1]} : vector<8x512xf32> to vector<8x128xf32>
    %40 = math.tanh %39 : vector<8x128xf32>
    %41 = vector.extract_strided_slice %25 {offsets = [0, 384], sizes = [8, 128], strides = [1, 1]} : vector<8x512xf32> to vector<8x128xf32>
    %42 = arith.negf %41 : vector<8x128xf32>
    %43 = math.exp %42 : vector<8x128xf32>
    %cst_30 = arith.constant 1.000000e+00 : f32
    %44 = vector.broadcast %cst_30 : f32 to vector<8x128xf32>
    %45 = arith.addf %44, %43 : vector<8x128xf32>
    %46 = arith.divf %44, %45 : vector<8x128xf32>
    %47 = arith.mulf %38, %26 : vector<8x128xf32>
    %48 = arith.mulf %32, %40 : vector<8x128xf32>
    %49 = arith.addf %47, %48 : vector<8x128xf32>
    %50 = math.tanh %49 : vector<8x128xf32>
    %51 = arith.mulf %46, %50 : vector<8x128xf32>
    %c0_31 = arith.constant 0 : index
    %c0_32 = arith.constant 0 : index
    %52 = vector.load %arg13[%c0_31, %c0_32] : memref<8x128xf32, #tpu.memory_space<vmem>>, vector<8x128xf32>
    tpu.vector_store %arg13[%c0_31, %c0_32], %51 {strides = array<i32>} : memref<8x128xf32, #tpu.memory_space<vmem>>, vector<8x128xf32>,
    %c0_33 = arith.constant 0 : index
    %c0_34 = arith.constant 0 : index
    %53 = vector.load %arg14[%c0_33, %c0_34] : memref<8x128xf32, #tpu.memory_space<vmem>>, vector<8x128xf32>
    tpu.vector_store %arg14[%c0_33, %c0_34], %49 {strides = array<i32>} : memref<8x128xf32, #tpu.memory_space<vmem>>, vector<8x128xf32>,
    %54 = arith.index_cast %c0_i32_21 : i32 to index
    %c0_35 = arith.constant 0 : index
    %c0_36 = arith.constant 0 : index
    %55 = vector.load %arg9[%54, %c0_35, %c0_36] : memref<4x8x128xf32, #tpu.memory_space<vmem>>, vector<1x8x128xf32>
    %56 = vector.shape_cast %55 : vector<1x8x128xf32> to vector<8x128xf32>
    %57 = vector.shape_cast %51 : vector<8x128xf32> to vector<1x8x128xf32>
    tpu.vector_store %arg9[%54, %c0_35, %c0_36], %57 {strides = array<i32>} : memref<4x8x128xf32, #tpu.memory_space<vmem>>, vector<1x8x128xf32>,
    %c3_i32 = arith.constant 3 : i32
    %58 = arith.subi %c3_i32, %c0_i32_21 : i32
    %c8_i32_37 = arith.constant 8 : i32
    %59 = arith.muli %58, %c8_i32_37 : i32
    %60 = tpu.assume_multiple %59, 8 : i32
    %61 = arith.index_cast %60 : i32 to index
    %c0_38 = arith.constant 0 : index
    %62 = vector.load %arg12[%61, %c0_38] : memref<32x512xf32, #tpu.memory_space<vmem>>, vector<8x512xf32>
    %c0_39 = arith.constant 0 : index
    %c0_40 = arith.constant 0 : index
    %63 = vector.load %arg15[%c0_39, %c0_40] : memref<8x128xf32, #tpu.memory_space<vmem>>, vector<8x128xf32>
    %cst_41 = arith.constant dense<0.000000e+00> : vector<8x512xf32>
    %64 = tpu.matmul %63, %18, %cst_41 {dimension_numbers = #tpu.dot_dimension_numbers<[1], [0], [0], [1], [0, 0, 1, 1], [], []>} : vector<8x128xf32>, vector<128x512xf32>, vector<8x512xf32> -> vector<8x512xf32>
    %65 = arith.addf %62, %64 : vector<8x512xf32>
    %c0_42 = arith.constant 0 : index
    %c0_43 = arith.constant 0 : index
    %66 = vector.load %arg16[%c0_42, %c0_43] : memref<8x128xf32, #tpu.memory_space<vmem>>, vector<8x128xf32>
    %67 = vector.extract_strided_slice %65 {offsets = [0, 0], sizes = [8, 128], strides = [1, 1]} : vector<8x512xf32> to vector<8x128xf32>
    %68 = arith.negf %67 : vector<8x128xf32>
    %69 = math.exp %68 : vector<8x128xf32>
    %cst_44 = arith.constant 1.000000e+00 : f32
    %70 = vector.broadcast %cst_44 : f32 to vector<8x128xf32>
    %71 = arith.addf %70, %69 : vector<8x128xf32>
    %72 = arith.divf %70, %71 : vector<8x128xf32>
    %73 = vector.extract_strided_slice %65 {offsets = [0, 128], sizes = [8, 128], strides = [1, 1]} : vector<8x512xf32> to vector<8x128xf32>
    %74 = arith.negf %73 : vector<8x128xf32>
    %75 = math.exp %74 : vector<8x128xf32>
    %cst_45 = arith.constant 1.000000e+00 : f32
    %76 = vector.broadcast %cst_45 : f32 to vector<8x128xf32>
    %77 = arith.addf %76, %75 : vector<8x128xf32>
    %78 = arith.divf %76, %77 : vector<8x128xf32>
    %79 = vector.extract_strided_slice %65 {offsets = [0, 256], sizes = [8, 128], strides = [1, 1]} : vector<8x512xf32> to vector<8x128xf32>
    %80 = math.tanh %79 : vector<8x128xf32>
    %81 = vector.extract_strided_slice %65 {offsets = [0, 384], sizes = [8, 128], strides = [1, 1]} : vector<8x512xf32> to vector<8x128xf32>
    %82 = arith.negf %81 : vector<8x128xf32>
    %83 = math.exp %82 : vector<8x128xf32>
    %cst_46 = arith.constant 1.000000e+00 : f32
    %84 = vector.broadcast %cst_46 : f32 to vector<8x128xf32>
    %85 = arith.addf %84, %83 : vector<8x128xf32>
    %86 = arith.divf %84, %85 : vector<8x128xf32>
    %87 = arith.mulf %78, %66 : vector<8x128xf32>
    %88 = arith.mulf %72, %80 : vector<8x128xf32>
    %89 = arith.addf %87, %88 : vector<8x128xf32>
    %90 = math.tanh %89 : vector<8x128xf32>
    %91 = arith.mulf %86, %90 : vector<8x128xf32>
    %c0_47 = arith.constant 0 : index
    %c0_48 = arith.constant 0 : index
    %92 = vector.load %arg15[%c0_47, %c0_48] : memref<8x128xf32, #tpu.memory_space<vmem>>, vector<8x128xf32>
    tpu.vector_store %arg15[%c0_47, %c0_48], %91 {strides = array<i32>} : memref<8x128xf32, #tpu.memory_space<vmem>>, vector<8x128xf32>,
    %c0_49 = arith.constant 0 : index
    %c0_50 = arith.constant 0 : index
    %93 = vector.load %arg16[%c0_49, %c0_50] : memref<8x128xf32, #tpu.memory_space<vmem>>, vector<8x128xf32>
    tpu.vector_store %arg16[%c0_49, %c0_50], %89 {strides = array<i32>} : memref<8x128xf32, #tpu.memory_space<vmem>>, vector<8x128xf32>,
    %94 = arith.index_cast %58 : i32 to index
    %c0_51 = arith.constant 0 : index
    %c0_52 = arith.constant 0 : index
    %95 = vector.load %arg10[%94, %c0_51, %c0_52] : memref<4x8x128xf32, #tpu.memory_space<vmem>>, vector<1x8x128xf32>
    %96 = vector.shape_cast %95 : vector<1x8x128xf32> to vector<8x128xf32>
    %97 = vector.shape_cast %91 : vector<8x128xf32> to vector<1x8x128xf32>
    tpu.vector_store %arg10[%94, %c0_51, %c0_52], %97 {strides = array<i32>} : memref<4x8x128xf32, #tpu.memory_space<vmem>>, vector<1x8x128xf32>,
    %c1_i32 = arith.constant 1 : i32
    %c8_i32_53 = arith.constant 8 : i32
    %98 = arith.muli %c1_i32, %c8_i32_53 : i32
    %99 = tpu.assume_multiple %98, 8 : i32
    %100 = arith.index_cast %99 : i32 to index
    %c0_54 = arith.constant 0 : index
    %101 = vector.load %arg11[%100, %c0_54] : memref<32x512xf32, #tpu.memory_space<vmem>>, vector<8x512xf32>
    %c0_55 = arith.constant 0 : index
    %c0_56 = arith.constant 0 : index
    %102 = vector.load %arg13[%c0_55, %c0_56] : memref<8x128xf32, #tpu.memory_space<vmem>>, vector<8x128xf32>
    %cst_57 = arith.constant dense<0.000000e+00> : vector<8x512xf32>
    %103 = tpu.matmul %102, %17, %cst_57 {dimension_numbers = #tpu.dot_dimension_numbers<[1], [0], [0], [1], [0, 0, 1, 1], [], []>} : vector<8x128xf32>, vector<128x512xf32>, vector<8x512xf32> -> vector<8x512xf32>
    %104 = arith.addf %101, %103 : vector<8x512xf32>
    %c0_58 = arith.constant 0 : index
    %c0_59 = arith.constant 0 : index
    %105 = vector.load %arg14[%c0_58, %c0_59] : memref<8x128xf32, #tpu.memory_space<vmem>>, vector<8x128xf32>
    %106 = vector.extract_strided_slice %104 {offsets = [0, 0], sizes = [8, 128], strides = [1, 1]} : vector<8x512xf32> to vector<8x128xf32>
    %107 = arith.negf %106 : vector<8x128xf32>
    %108 = math.exp %107 : vector<8x128xf32>
    %cst_60 = arith.constant 1.000000e+00 : f32
    %109 = vector.broadcast %cst_60 : f32 to vector<8x128xf32>
    %110 = arith.addf %109, %108 : vector<8x128xf32>
    %111 = arith.divf %109, %110 : vector<8x128xf32>
    %112 = vector.extract_strided_slice %104 {offsets = [0, 128], sizes = [8, 128], strides = [1, 1]} : vector<8x512xf32> to vector<8x128xf32>
    %113 = arith.negf %112 : vector<8x128xf32>
    %114 = math.exp %113 : vector<8x128xf32>
    %cst_61 = arith.constant 1.000000e+00 : f32
    %115 = vector.broadcast %cst_61 : f32 to vector<8x128xf32>
    %116 = arith.addf %115, %114 : vector<8x128xf32>
    %117 = arith.divf %115, %116 : vector<8x128xf32>
    %118 = vector.extract_strided_slice %104 {offsets = [0, 256], sizes = [8, 128], strides = [1, 1]} : vector<8x512xf32> to vector<8x128xf32>
    %119 = math.tanh %118 : vector<8x128xf32>
    %120 = vector.extract_strided_slice %104 {offsets = [0, 384], sizes = [8, 128], strides = [1, 1]} : vector<8x512xf32> to vector<8x128xf32>
    %121 = arith.negf %120 : vector<8x128xf32>
    %122 = math.exp %121 : vector<8x128xf32>
    %cst_62 = arith.constant 1.000000e+00 : f32
    %123 = vector.broadcast %cst_62 : f32 to vector<8x128xf32>
    %124 = arith.addf %123, %122 : vector<8x128xf32>
    %125 = arith.divf %123, %124 : vector<8x128xf32>
    %126 = arith.mulf %117, %105 : vector<8x128xf32>
    %127 = arith.mulf %111, %119 : vector<8x128xf32>
    %128 = arith.addf %126, %127 : vector<8x128xf32>
    %129 = math.tanh %128 : vector<8x128xf32>
    %130 = arith.mulf %125, %129 : vector<8x128xf32>
    %c0_63 = arith.constant 0 : index
    %c0_64 = arith.constant 0 : index
    %131 = vector.load %arg13[%c0_63, %c0_64] : memref<8x128xf32, #tpu.memory_space<vmem>>, vector<8x128xf32>
    tpu.vector_store %arg13[%c0_63, %c0_64], %130 {strides = array<i32>} : memref<8x128xf32, #tpu.memory_space<vmem>>, vector<8x128xf32>,
    %c0_65 = arith.constant 0 : index
    %c0_66 = arith.constant 0 : index
    %132 = vector.load %arg14[%c0_65, %c0_66] : memref<8x128xf32, #tpu.memory_space<vmem>>, vector<8x128xf32>
    tpu.vector_store %arg14[%c0_65, %c0_66], %128 {strides = array<i32>} : memref<8x128xf32, #tpu.memory_space<vmem>>, vector<8x128xf32>,
    %133 = arith.index_cast %c1_i32 : i32 to index
    %c0_67 = arith.constant 0 : index
    %c0_68 = arith.constant 0 : index
    %134 = vector.load %arg9[%133, %c0_67, %c0_68] : memref<4x8x128xf32, #tpu.memory_space<vmem>>, vector<1x8x128xf32>
    %135 = vector.shape_cast %134 : vector<1x8x128xf32> to vector<8x128xf32>
    %136 = vector.shape_cast %130 : vector<8x128xf32> to vector<1x8x128xf32>
    tpu.vector_store %arg9[%133, %c0_67, %c0_68], %136 {strides = array<i32>} : memref<4x8x128xf32, #tpu.memory_space<vmem>>, vector<1x8x128xf32>,
    %c3_i32_69 = arith.constant 3 : i32
    %137 = arith.subi %c3_i32_69, %c1_i32 : i32
    %c8_i32_70 = arith.constant 8 : i32
    %138 = arith.muli %137, %c8_i32_70 : i32
    %139 = tpu.assume_multiple %138, 8 : i32
    %140 = arith.index_cast %139 : i32 to index
    %c0_71 = arith.constant 0 : index
    %141 = vector.load %arg12[%140, %c0_71] : memref<32x512xf32, #tpu.memory_space<vmem>>, vector<8x512xf32>
    %c0_72 = arith.constant 0 : index
    %c0_73 = arith.constant 0 : index
    %142 = vector.load %arg15[%c0_72, %c0_73] : memref<8x128xf32, #tpu.memory_space<vmem>>, vector<8x128xf32>
    %cst_74 = arith.constant dense<0.000000e+00> : vector<8x512xf32>
    %143 = tpu.matmul %142, %18, %cst_74 {dimension_numbers = #tpu.dot_dimension_numbers<[1], [0], [0], [1], [0, 0, 1, 1], [], []>} : vector<8x128xf32>, vector<128x512xf32>, vector<8x512xf32> -> vector<8x512xf32>
    %144 = arith.addf %141, %143 : vector<8x512xf32>
    %c0_75 = arith.constant 0 : index
    %c0_76 = arith.constant 0 : index
    %145 = vector.load %arg16[%c0_75, %c0_76] : memref<8x128xf32, #tpu.memory_space<vmem>>, vector<8x128xf32>
    %146 = vector.extract_strided_slice %144 {offsets = [0, 0], sizes = [8, 128], strides = [1, 1]} : vector<8x512xf32> to vector<8x128xf32>
    %147 = arith.negf %146 : vector<8x128xf32>
    %148 = math.exp %147 : vector<8x128xf32>
    %cst_77 = arith.constant 1.000000e+00 : f32
    %149 = vector.broadcast %cst_77 : f32 to vector<8x128xf32>
    %150 = arith.addf %149, %148 : vector<8x128xf32>
    %151 = arith.divf %149, %150 : vector<8x128xf32>
    %152 = vector.extract_strided_slice %144 {offsets = [0, 128], sizes = [8, 128], strides = [1, 1]} : vector<8x512xf32> to vector<8x128xf32>
    %153 = arith.negf %152 : vector<8x128xf32>
    %154 = math.exp %153 : vector<8x128xf32>
    %cst_78 = arith.constant 1.000000e+00 : f32
    %155 = vector.broadcast %cst_78 : f32 to vector<8x128xf32>
    %156 = arith.addf %155, %154 : vector<8x128xf32>
    %157 = arith.divf %155, %156 : vector<8x128xf32>
    %158 = vector.extract_strided_slice %144 {offsets = [0, 256], sizes = [8, 128], strides = [1, 1]} : vector<8x512xf32> to vector<8x128xf32>
    %159 = math.tanh %158 : vector<8x128xf32>
    %160 = vector.extract_strided_slice %144 {offsets = [0, 384], sizes = [8, 128], strides = [1, 1]} : vector<8x512xf32> to vector<8x128xf32>
    %161 = arith.negf %160 : vector<8x128xf32>
    %162 = math.exp %161 : vector<8x128xf32>
    %cst_79 = arith.constant 1.000000e+00 : f32
    %163 = vector.broadcast %cst_79 : f32 to vector<8x128xf32>
    %164 = arith.addf %163, %162 : vector<8x128xf32>
    %165 = arith.divf %163, %164 : vector<8x128xf32>
    %166 = arith.mulf %157, %145 : vector<8x128xf32>
    %167 = arith.mulf %151, %159 : vector<8x128xf32>
    %168 = arith.addf %166, %167 : vector<8x128xf32>
    %169 = math.tanh %168 : vector<8x128xf32>
    %170 = arith.mulf %165, %169 : vector<8x128xf32>
    %c0_80 = arith.constant 0 : index
    %c0_81 = arith.constant 0 : index
    %171 = vector.load %arg15[%c0_80, %c0_81] : memref<8x128xf32, #tpu.memory_space<vmem>>, vector<8x128xf32>
    tpu.vector_store %arg15[%c0_80, %c0_81], %170 {strides = array<i32>} : memref<8x128xf32, #tpu.memory_space<vmem>>, vector<8x128xf32>,
    %c0_82 = arith.constant 0 : index
    %c0_83 = arith.constant 0 : index
    %172 = vector.load %arg16[%c0_82, %c0_83] : memref<8x128xf32, #tpu.memory_space<vmem>>, vector<8x128xf32>
    tpu.vector_store %arg16[%c0_82, %c0_83], %168 {strides = array<i32>} : memref<8x128xf32, #tpu.memory_space<vmem>>, vector<8x128xf32>,
    %173 = arith.index_cast %137 : i32 to index
    %c0_84 = arith.constant 0 : index
    %c0_85 = arith.constant 0 : index
    %174 = vector.load %arg10[%173, %c0_84, %c0_85] : memref<4x8x128xf32, #tpu.memory_space<vmem>>, vector<1x8x128xf32>
    %175 = vector.shape_cast %174 : vector<1x8x128xf32> to vector<8x128xf32>
    %176 = vector.shape_cast %170 : vector<8x128xf32> to vector<1x8x128xf32>
    tpu.vector_store %arg10[%173, %c0_84, %c0_85], %176 {strides = array<i32>} : memref<4x8x128xf32, #tpu.memory_space<vmem>>, vector<1x8x128xf32>,
    %c2_i32 = arith.constant 2 : i32
    %c8_i32_86 = arith.constant 8 : i32
    %177 = arith.muli %c2_i32, %c8_i32_86 : i32
    %178 = tpu.assume_multiple %177, 8 : i32
    %179 = arith.index_cast %178 : i32 to index
    %c0_87 = arith.constant 0 : index
    %180 = vector.load %arg11[%179, %c0_87] : memref<32x512xf32, #tpu.memory_space<vmem>>, vector<8x512xf32>
    %c0_88 = arith.constant 0 : index
    %c0_89 = arith.constant 0 : index
    %181 = vector.load %arg13[%c0_88, %c0_89] : memref<8x128xf32, #tpu.memory_space<vmem>>, vector<8x128xf32>
    %cst_90 = arith.constant dense<0.000000e+00> : vector<8x512xf32>
    %182 = tpu.matmul %181, %17, %cst_90 {dimension_numbers = #tpu.dot_dimension_numbers<[1], [0], [0], [1], [0, 0, 1, 1], [], []>} : vector<8x128xf32>, vector<128x512xf32>, vector<8x512xf32> -> vector<8x512xf32>
    %183 = arith.addf %180, %182 : vector<8x512xf32>
    %c0_91 = arith.constant 0 : index
    %c0_92 = arith.constant 0 : index
    %184 = vector.load %arg14[%c0_91, %c0_92] : memref<8x128xf32, #tpu.memory_space<vmem>>, vector<8x128xf32>
    %185 = vector.extract_strided_slice %183 {offsets = [0, 0], sizes = [8, 128], strides = [1, 1]} : vector<8x512xf32> to vector<8x128xf32>
    %186 = arith.negf %185 : vector<8x128xf32>
    %187 = math.exp %186 : vector<8x128xf32>
    %cst_93 = arith.constant 1.000000e+00 : f32
    %188 = vector.broadcast %cst_93 : f32 to vector<8x128xf32>
    %189 = arith.addf %188, %187 : vector<8x128xf32>
    %190 = arith.divf %188, %189 : vector<8x128xf32>
    %191 = vector.extract_strided_slice %183 {offsets = [0, 128], sizes = [8, 128], strides = [1, 1]} : vector<8x512xf32> to vector<8x128xf32>
    %192 = arith.negf %191 : vector<8x128xf32>
    %193 = math.exp %192 : vector<8x128xf32>
    %cst_94 = arith.constant 1.000000e+00 : f32
    %194 = vector.broadcast %cst_94 : f32 to vector<8x128xf32>
    %195 = arith.addf %194, %193 : vector<8x128xf32>
    %196 = arith.divf %194, %195 : vector<8x128xf32>
    %197 = vector.extract_strided_slice %183 {offsets = [0, 256], sizes = [8, 128], strides = [1, 1]} : vector<8x512xf32> to vector<8x128xf32>
    %198 = math.tanh %197 : vector<8x128xf32>
    %199 = vector.extract_strided_slice %183 {offsets = [0, 384], sizes = [8, 128], strides = [1, 1]} : vector<8x512xf32> to vector<8x128xf32>
    %200 = arith.negf %199 : vector<8x128xf32>
    %201 = math.exp %200 : vector<8x128xf32>
    %cst_95 = arith.constant 1.000000e+00 : f32
    %202 = vector.broadcast %cst_95 : f32 to vector<8x128xf32>
    %203 = arith.addf %202, %201 : vector<8x128xf32>
    %204 = arith.divf %202, %203 : vector<8x128xf32>
    %205 = arith.mulf %196, %184 : vector<8x128xf32>
    %206 = arith.mulf %190, %198 : vector<8x128xf32>
    %207 = arith.addf %205, %206 : vector<8x128xf32>
    %208 = math.tanh %207 : vector<8x128xf32>
    %209 = arith.mulf %204, %208 : vector<8x128xf32>
    %c0_96 = arith.constant 0 : index
    %c0_97 = arith.constant 0 : index
    %210 = vector.load %arg13[%c0_96, %c0_97] : memref<8x128xf32, #tpu.memory_space<vmem>>, vector<8x128xf32>
    tpu.vector_store %arg13[%c0_96, %c0_97], %209 {strides = array<i32>} : memref<8x128xf32, #tpu.memory_space<vmem>>, vector<8x128xf32>,
    %c0_98 = arith.constant 0 : index
    %c0_99 = arith.constant 0 : index
    %211 = vector.load %arg14[%c0_98, %c0_99] : memref<8x128xf32, #tpu.memory_space<vmem>>, vector<8x128xf32>
    tpu.vector_store %arg14[%c0_98, %c0_99], %207 {strides = array<i32>} : memref<8x128xf32, #tpu.memory_space<vmem>>, vector<8x128xf32>,
    %212 = arith.index_cast %c2_i32 : i32 to index
    %c0_100 = arith.constant 0 : index
    %c0_101 = arith.constant 0 : index
    %213 = vector.load %arg9[%212, %c0_100, %c0_101] : memref<4x8x128xf32, #tpu.memory_space<vmem>>, vector<1x8x128xf32>
    %214 = vector.shape_cast %213 : vector<1x8x128xf32> to vector<8x128xf32>
    %215 = vector.shape_cast %209 : vector<8x128xf32> to vector<1x8x128xf32>
    tpu.vector_store %arg9[%212, %c0_100, %c0_101], %215 {strides = array<i32>} : memref<4x8x128xf32, #tpu.memory_space<vmem>>, vector<1x8x128xf32>,
    %c3_i32_102 = arith.constant 3 : i32
    %216 = arith.subi %c3_i32_102, %c2_i32 : i32
    %c8_i32_103 = arith.constant 8 : i32
    %217 = arith.muli %216, %c8_i32_103 : i32
    %218 = tpu.assume_multiple %217, 8 : i32
    %219 = arith.index_cast %218 : i32 to index
    %c0_104 = arith.constant 0 : index
    %220 = vector.load %arg12[%219, %c0_104] : memref<32x512xf32, #tpu.memory_space<vmem>>, vector<8x512xf32>
    %c0_105 = arith.constant 0 : index
    %c0_106 = arith.constant 0 : index
    %221 = vector.load %arg15[%c0_105, %c0_106] : memref<8x128xf32, #tpu.memory_space<vmem>>, vector<8x128xf32>
    %cst_107 = arith.constant dense<0.000000e+00> : vector<8x512xf32>
    %222 = tpu.matmul %221, %18, %cst_107 {dimension_numbers = #tpu.dot_dimension_numbers<[1], [0], [0], [1], [0, 0, 1, 1], [], []>} : vector<8x128xf32>, vector<128x512xf32>, vector<8x512xf32> -> vector<8x512xf32>
    %223 = arith.addf %220, %222 : vector<8x512xf32>
    %c0_108 = arith.constant 0 : index
    %c0_109 = arith.constant 0 : index
    %224 = vector.load %arg16[%c0_108, %c0_109] : memref<8x128xf32, #tpu.memory_space<vmem>>, vector<8x128xf32>
    %225 = vector.extract_strided_slice %223 {offsets = [0, 0], sizes = [8, 128], strides = [1, 1]} : vector<8x512xf32> to vector<8x128xf32>
    %226 = arith.negf %225 : vector<8x128xf32>
    %227 = math.exp %226 : vector<8x128xf32>
    %cst_110 = arith.constant 1.000000e+00 : f32
    %228 = vector.broadcast %cst_110 : f32 to vector<8x128xf32>
    %229 = arith.addf %228, %227 : vector<8x128xf32>
    %230 = arith.divf %228, %229 : vector<8x128xf32>
    %231 = vector.extract_strided_slice %223 {offsets = [0, 128], sizes = [8, 128], strides = [1, 1]} : vector<8x512xf32> to vector<8x128xf32>
    %232 = arith.negf %231 : vector<8x128xf32>
    %233 = math.exp %232 : vector<8x128xf32>
    %cst_111 = arith.constant 1.000000e+00 : f32
    %234 = vector.broadcast %cst_111 : f32 to vector<8x128xf32>
    %235 = arith.addf %234, %233 : vector<8x128xf32>
    %236 = arith.divf %234, %235 : vector<8x128xf32>
    %237 = vector.extract_strided_slice %223 {offsets = [0, 256], sizes = [8, 128], strides = [1, 1]} : vector<8x512xf32> to vector<8x128xf32>
    %238 = math.tanh %237 : vector<8x128xf32>
    %239 = vector.extract_strided_slice %223 {offsets = [0, 384], sizes = [8, 128], strides = [1, 1]} : vector<8x512xf32> to vector<8x128xf32>
    %240 = arith.negf %239 : vector<8x128xf32>
    %241 = math.exp %240 : vector<8x128xf32>
    %cst_112 = arith.constant 1.000000e+00 : f32
    %242 = vector.broadcast %cst_112 : f32 to vector<8x128xf32>
    %243 = arith.addf %242, %241 : vector<8x128xf32>
    %244 = arith.divf %242, %243 : vector<8x128xf32>
    %245 = arith.mulf %236, %224 : vector<8x128xf32>
    %246 = arith.mulf %230, %238 : vector<8x128xf32>
    %247 = arith.addf %245, %246 : vector<8x128xf32>
    %248 = math.tanh %247 : vector<8x128xf32>
    %249 = arith.mulf %244, %248 : vector<8x128xf32>
    %c0_113 = arith.constant 0 : index
    %c0_114 = arith.constant 0 : index
    %250 = vector.load %arg15[%c0_113, %c0_114] : memref<8x128xf32, #tpu.memory_space<vmem>>, vector<8x128xf32>
    tpu.vector_store %arg15[%c0_113, %c0_114], %249 {strides = array<i32>} : memref<8x128xf32, #tpu.memory_space<vmem>>, vector<8x128xf32>,
    %c0_115 = arith.constant 0 : index
    %c0_116 = arith.constant 0 : index
    %251 = vector.load %arg16[%c0_115, %c0_116] : memref<8x128xf32, #tpu.memory_space<vmem>>, vector<8x128xf32>
    tpu.vector_store %arg16[%c0_115, %c0_116], %247 {strides = array<i32>} : memref<8x128xf32, #tpu.memory_space<vmem>>, vector<8x128xf32>,
    %252 = arith.index_cast %216 : i32 to index
    %c0_117 = arith.constant 0 : index
    %c0_118 = arith.constant 0 : index
    %253 = vector.load %arg10[%252, %c0_117, %c0_118] : memref<4x8x128xf32, #tpu.memory_space<vmem>>, vector<1x8x128xf32>
    %254 = vector.shape_cast %253 : vector<1x8x128xf32> to vector<8x128xf32>
    %255 = vector.shape_cast %249 : vector<8x128xf32> to vector<1x8x128xf32>
    tpu.vector_store %arg10[%252, %c0_117, %c0_118], %255 {strides = array<i32>} : memref<4x8x128xf32, #tpu.memory_space<vmem>>, vector<1x8x128xf32>,
    %c3_i32_119 = arith.constant 3 : i32
    %c8_i32_120 = arith.constant 8 : i32
    %256 = arith.muli %c3_i32_119, %c8_i32_120 : i32
    %257 = tpu.assume_multiple %256, 8 : i32
    %258 = arith.index_cast %257 : i32 to index
    %c0_121 = arith.constant 0 : index
    %259 = vector.load %arg11[%258, %c0_121] : memref<32x512xf32, #tpu.memory_space<vmem>>, vector<8x512xf32>
    %c0_122 = arith.constant 0 : index
    %c0_123 = arith.constant 0 : index
    %260 = vector.load %arg13[%c0_122, %c0_123] : memref<8x128xf32, #tpu.memory_space<vmem>>, vector<8x128xf32>
    %cst_124 = arith.constant dense<0.000000e+00> : vector<8x512xf32>
    %261 = tpu.matmul %260, %17, %cst_124 {dimension_numbers = #tpu.dot_dimension_numbers<[1], [0], [0], [1], [0, 0, 1, 1], [], []>} : vector<8x128xf32>, vector<128x512xf32>, vector<8x512xf32> -> vector<8x512xf32>
    %262 = arith.addf %259, %261 : vector<8x512xf32>
    %c0_125 = arith.constant 0 : index
    %c0_126 = arith.constant 0 : index
    %263 = vector.load %arg14[%c0_125, %c0_126] : memref<8x128xf32, #tpu.memory_space<vmem>>, vector<8x128xf32>
    %264 = vector.extract_strided_slice %262 {offsets = [0, 0], sizes = [8, 128], strides = [1, 1]} : vector<8x512xf32> to vector<8x128xf32>
    %265 = arith.negf %264 : vector<8x128xf32>
    %266 = math.exp %265 : vector<8x128xf32>
    %cst_127 = arith.constant 1.000000e+00 : f32
    %267 = vector.broadcast %cst_127 : f32 to vector<8x128xf32>
    %268 = arith.addf %267, %266 : vector<8x128xf32>
    %269 = arith.divf %267, %268 : vector<8x128xf32>
    %270 = vector.extract_strided_slice %262 {offsets = [0, 128], sizes = [8, 128], strides = [1, 1]} : vector<8x512xf32> to vector<8x128xf32>
    %271 = arith.negf %270 : vector<8x128xf32>
    %272 = math.exp %271 : vector<8x128xf32>
    %cst_128 = arith.constant 1.000000e+00 : f32
    %273 = vector.broadcast %cst_128 : f32 to vector<8x128xf32>
    %274 = arith.addf %273, %272 : vector<8x128xf32>
    %275 = arith.divf %273, %274 : vector<8x128xf32>
    %276 = vector.extract_strided_slice %262 {offsets = [0, 256], sizes = [8, 128], strides = [1, 1]} : vector<8x512xf32> to vector<8x128xf32>
    %277 = math.tanh %276 : vector<8x128xf32>
    %278 = vector.extract_strided_slice %262 {offsets = [0, 384], sizes = [8, 128], strides = [1, 1]} : vector<8x512xf32> to vector<8x128xf32>
    %279 = arith.negf %278 : vector<8x128xf32>
    %280 = math.exp %279 : vector<8x128xf32>
    %cst_129 = arith.constant 1.000000e+00 : f32
    %281 = vector.broadcast %cst_129 : f32 to vector<8x128xf32>
    %282 = arith.addf %281, %280 : vector<8x128xf32>
    %283 = arith.divf %281, %282 : vector<8x128xf32>
    %284 = arith.mulf %275, %263 : vector<8x128xf32>
    %285 = arith.mulf %269, %277 : vector<8x128xf32>
    %286 = arith.addf %284, %285 : vector<8x128xf32>
    %287 = math.tanh %286 : vector<8x128xf32>
    %288 = arith.mulf %283, %287 : vector<8x128xf32>
    %c0_130 = arith.constant 0 : index
    %c0_131 = arith.constant 0 : index
    %289 = vector.load %arg13[%c0_130, %c0_131] : memref<8x128xf32, #tpu.memory_space<vmem>>, vector<8x128xf32>
    tpu.vector_store %arg13[%c0_130, %c0_131], %288 {strides = array<i32>} : memref<8x128xf32, #tpu.memory_space<vmem>>, vector<8x128xf32>,
    %c0_132 = arith.constant 0 : index
    %c0_133 = arith.constant 0 : index
    %290 = vector.load %arg14[%c0_132, %c0_133] : memref<8x128xf32, #tpu.memory_space<vmem>>, vector<8x128xf32>
    tpu.vector_store %arg14[%c0_132, %c0_133], %286 {strides = array<i32>} : memref<8x128xf32, #tpu.memory_space<vmem>>, vector<8x128xf32>,
    %291 = arith.index_cast %c3_i32_119 : i32 to index
    %c0_134 = arith.constant 0 : index
    %c0_135 = arith.constant 0 : index
    %292 = vector.load %arg9[%291, %c0_134, %c0_135] : memref<4x8x128xf32, #tpu.memory_space<vmem>>, vector<1x8x128xf32>
    %293 = vector.shape_cast %292 : vector<1x8x128xf32> to vector<8x128xf32>
    %294 = vector.shape_cast %288 : vector<8x128xf32> to vector<1x8x128xf32>
    tpu.vector_store %arg9[%291, %c0_134, %c0_135], %294 {strides = array<i32>} : memref<4x8x128xf32, #tpu.memory_space<vmem>>, vector<1x8x128xf32>,
    %c3_i32_136 = arith.constant 3 : i32
    %295 = arith.subi %c3_i32_136, %c3_i32_119 : i32
    %c8_i32_137 = arith.constant 8 : i32
    %296 = arith.muli %295, %c8_i32_137 : i32
    %297 = tpu.assume_multiple %296, 8 : i32
    %298 = arith.index_cast %297 : i32 to index
    %c0_138 = arith.constant 0 : index
    %299 = vector.load %arg12[%298, %c0_138] : memref<32x512xf32, #tpu.memory_space<vmem>>, vector<8x512xf32>
    %c0_139 = arith.constant 0 : index
    %c0_140 = arith.constant 0 : index
    %300 = vector.load %arg15[%c0_139, %c0_140] : memref<8x128xf32, #tpu.memory_space<vmem>>, vector<8x128xf32>
    %cst_141 = arith.constant dense<0.000000e+00> : vector<8x512xf32>
    %301 = tpu.matmul %300, %18, %cst_141 {dimension_numbers = #tpu.dot_dimension_numbers<[1], [0], [0], [1], [0, 0, 1, 1], [], []>} : vector<8x128xf32>, vector<128x512xf32>, vector<8x512xf32> -> vector<8x512xf32>
    %302 = arith.addf %299, %301 : vector<8x512xf32>
    %c0_142 = arith.constant 0 : index
    %c0_143 = arith.constant 0 : index
    %303 = vector.load %arg16[%c0_142, %c0_143] : memref<8x128xf32, #tpu.memory_space<vmem>>, vector<8x128xf32>
    %304 = vector.extract_strided_slice %302 {offsets = [0, 0], sizes = [8, 128], strides = [1, 1]} : vector<8x512xf32> to vector<8x128xf32>
    %305 = arith.negf %304 : vector<8x128xf32>
    %306 = math.exp %305 : vector<8x128xf32>
    %cst_144 = arith.constant 1.000000e+00 : f32
    %307 = vector.broadcast %cst_144 : f32 to vector<8x128xf32>
    %308 = arith.addf %307, %306 : vector<8x128xf32>
    %309 = arith.divf %307, %308 : vector<8x128xf32>
    %310 = vector.extract_strided_slice %302 {offsets = [0, 128], sizes = [8, 128], strides = [1, 1]} : vector<8x512xf32> to vector<8x128xf32>
    %311 = arith.negf %310 : vector<8x128xf32>
    %312 = math.exp %311 : vector<8x128xf32>
    %cst_145 = arith.constant 1.000000e+00 : f32
    %313 = vector.broadcast %cst_145 : f32 to vector<8x128xf32>
    %314 = arith.addf %313, %312 : vector<8x128xf32>
    %315 = arith.divf %313, %314 : vector<8x128xf32>
    %316 = vector.extract_strided_slice %302 {offsets = [0, 256], sizes = [8, 128], strides = [1, 1]} : vector<8x512xf32> to vector<8x128xf32>
    %317 = math.tanh %316 : vector<8x128xf32>
    %318 = vector.extract_strided_slice %302 {offsets = [0, 384], sizes = [8, 128], strides = [1, 1]} : vector<8x512xf32> to vector<8x128xf32>
    %319 = arith.negf %318 : vector<8x128xf32>
    %320 = math.exp %319 : vector<8x128xf32>
    %cst_146 = arith.constant 1.000000e+00 : f32
    %321 = vector.broadcast %cst_146 : f32 to vector<8x128xf32>
    %322 = arith.addf %321, %320 : vector<8x128xf32>
    %323 = arith.divf %321, %322 : vector<8x128xf32>
    %324 = arith.mulf %315, %303 : vector<8x128xf32>
    %325 = arith.mulf %309, %317 : vector<8x128xf32>
    %326 = arith.addf %324, %325 : vector<8x128xf32>
    %327 = math.tanh %326 : vector<8x128xf32>
    %328 = arith.mulf %323, %327 : vector<8x128xf32>
    %c0_147 = arith.constant 0 : index
    %c0_148 = arith.constant 0 : index
    %329 = vector.load %arg15[%c0_147, %c0_148] : memref<8x128xf32, #tpu.memory_space<vmem>>, vector<8x128xf32>
    tpu.vector_store %arg15[%c0_147, %c0_148], %328 {strides = array<i32>} : memref<8x128xf32, #tpu.memory_space<vmem>>, vector<8x128xf32>,
    %c0_149 = arith.constant 0 : index
    %c0_150 = arith.constant 0 : index
    %330 = vector.load %arg16[%c0_149, %c0_150] : memref<8x128xf32, #tpu.memory_space<vmem>>, vector<8x128xf32>
    tpu.vector_store %arg16[%c0_149, %c0_150], %326 {strides = array<i32>} : memref<8x128xf32, #tpu.memory_space<vmem>>, vector<8x128xf32>,
    %331 = arith.index_cast %295 : i32 to index
    %c0_151 = arith.constant 0 : index
    %c0_152 = arith.constant 0 : index
    %332 = vector.load %arg10[%331, %c0_151, %c0_152] : memref<4x8x128xf32, #tpu.memory_space<vmem>>, vector<1x8x128xf32>
    %333 = vector.shape_cast %332 : vector<1x8x128xf32> to vector<8x128xf32>
    %334 = vector.shape_cast %328 : vector<8x128xf32> to vector<1x8x128xf32>
    tpu.vector_store %arg10[%331, %c0_151, %c0_152], %334 {strides = array<i32>} : memref<4x8x128xf32, #tpu.memory_space<vmem>>, vector<1x8x128xf32>,
    %c4_i32 = arith.constant 4 : i32
    return
  }
  func.func @transform_0(%arg0: i32) -> (i32, i32) {
    %c0_i32 = arith.constant 0 : i32
    %c0_i32_0 = arith.constant 0 : i32
    return %arg0, %c0_i32 : i32, i32
  }
  func.func @transform_1(%arg0: i32) -> (i32, i32) {
    %c1_i32 = arith.constant 1 : i32
    %0 = arith.subi %c1_i32, %arg0 : i32
    %c0_i32 = arith.constant 0 : i32
    %c0_i32_0 = arith.constant 0 : i32
    return %0, %c0_i32 : i32, i32
  }
  func.func @transform_2(%arg0: i32) -> (i32, i32) {
    %c0_i32 = arith.constant 0 : i32
    %c0_i32_0 = arith.constant 0 : i32
    %c0_i32_1 = arith.constant 0 : i32
    return %c0_i32, %c0_i32_0 : i32, i32
  }
  func.func @transform_3(%arg0: i32) -> (i32, i32) {
    %c0_i32 = arith.constant 0 : i32
    %c0_i32_0 = arith.constant 0 : i32
    %c0_i32_1 = arith.constant 0 : i32
    return %c0_i32, %c0_i32_0 : i32, i32
  }
  func.func @transform_4(%arg0: i32) -> (i32, i32) {
    %c0_i32 = arith.constant 0 : i32
    %c0_i32_0 = arith.constant 0 : i32
    %c0_i32_1 = arith.constant 0 : i32
    return %c0_i32, %c0_i32_0 : i32, i32
  }
  func.func @transform_5(%arg0: i32) -> (i32, i32) {
    %c0_i32 = arith.constant 0 : i32
    %c0_i32_0 = arith.constant 0 : i32
    %c0_i32_1 = arith.constant 0 : i32
    return %c0_i32, %c0_i32_0 : i32, i32
  }
  func.func @transform_6(%arg0: i32) -> (i32, i32) {
    %c0_i32 = arith.constant 0 : i32
    %c0_i32_0 = arith.constant 0 : i32
    %c0_i32_1 = arith.constant 0 : i32
    return %c0_i32, %c0_i32_0 : i32, i32
  }
  func.func @transform_7(%arg0: i32) -> (i32, i32) {
    %c0_i32 = arith.constant 0 : i32
    %c0_i32_0 = arith.constant 0 : i32
    %c0_i32_1 = arith.constant 0 : i32
    return %c0_i32, %c0_i32_0 : i32, i32
  }
  func.func @transform_8(%arg0: i32) -> (i32, i32, i32) {
    %c0_i32 = arith.constant 0 : i32
    %c0_i32_0 = arith.constant 0 : i32
    %c0_i32_1 = arith.constant 0 : i32
    return %arg0, %c0_i32, %c0_i32_0 : i32, i32, i32
  }
  func.func @transform_9(%arg0: i32) -> (i32, i32, i32) {
    %c1_i32 = arith.constant 1 : i32
    %0 = arith.subi %c1_i32, %arg0 : i32
    %c0_i32 = arith.constant 0 : i32
    %c0_i32_0 = arith.constant 0 : i32
    %c0_i32_1 = arith.constant 0 : i32
    return %0, %c0_i32, %c0_i32_0 : i32, i32, i32
  }
}

</mosaic_0001>

<llo_original>
// kernel: blstm_conversion_forward.5
$region0: #{blstm_conversion_forward.5}
  #allocation0 [shape = 'u32[]', space=smem, size = 0x4, offset = 0x4, fixed_abs, tag = 'smem constant byte address 0x4 - core index']
  #allocation1 [shape = 'u32[144,128]{1,0:T(1,128)}', space=vmem, size = 0x12000, scoped, tag = 'internal scratch']
  %s0 = inlined_call_operand.vmem [shape: f32[64,128], index: 0, kind: input, shape index: {}]
  %s1 = inlined_call_operand.vmem [shape: f32[64,128], index: 1, kind: input, shape index: {}]
  %s2 = inlined_call_operand.vmem [shape: f32[128,128], index: 2, kind: input, shape index: {}]
  %s3 = inlined_call_operand.vmem [shape: f32[128,128], index: 3, kind: input, shape index: {}]
  %s4 = inlined_call_operand.vmem [shape: f32[1,128], index: 4, kind: input, shape index: {}]
  %s5 = inlined_call_operand.vmem [shape: f32[64,128], index: 5, kind: output, shape index: {}]
  %s6 = sld [smem:[#allocation0]]
  $region30: #{blstm_conversion_forward.5} parent=0
    _
  %s8 = ssub.s32 1, %s6
  %s9 = scalar_select 0, %s8, %s6
  // Predicated region
  $region2: #{blstm_conversion_forward.5} parent=0 // pred_check
    _
  $region3: #{blstm_conversion_forward.5} parent=0 // pred_check_branch
    %11 = sbr.rel (0) target = $region5
  $region4: #{blstm_conversion_forward.5} parent=0 // pred_region
    _
  $region5: #{blstm_conversion_forward.5} parent=0 // pred_fallthru
    _
  // Predicated region
  $region6: #{blstm_conversion_forward.5} parent=0 // pred_check
    _
  $region7: #{blstm_conversion_forward.5} parent=0 // pred_check_branch
    %13 = sbr.rel (0) target = $region9
  $region8: #{blstm_conversion_forward.5} parent=0 // pred_region
    _
  $region9: #{blstm_conversion_forward.5} parent=0 // pred_fallthru
    _
  // Predicated region
  $region10: #{blstm_conversion_forward.5} parent=0 // pred_check
    _
  $region11: #{blstm_conversion_forward.5} parent=0 // pred_check_branch
    %15 = sbr.rel (0) target = $region13
  $region12: #{blstm_conversion_forward.5} parent=0 // pred_region
    _
  $region13: #{blstm_conversion_forward.5} parent=0 // pred_fallthru
    _
  // Predicated region
  $region14: #{blstm_conversion_forward.5} parent=0 // pred_check
    _
  $region15: #{blstm_conversion_forward.5} parent=0 // pred_check_branch
    %17 = sbr.rel (0) target = $region17
  $region16: #{blstm_conversion_forward.5} parent=0 // pred_region
    _
  $region17: #{blstm_conversion_forward.5} parent=0 // pred_fallthru
    _
  // Predicated region
  $region18: #{blstm_conversion_forward.5} parent=0 // pred_check
    _
  $region19: #{blstm_conversion_forward.5} parent=0 // pred_check_branch
    %19 = sbr.rel (0) target = $region21
  $region20: #{blstm_conversion_forward.5} parent=0 // pred_region
    _
  $region21: #{blstm_conversion_forward.5} parent=0 // pred_fallthru
    _
  %v20 = vld [vmem:[%s0] sm:$0xff]
  %v21 = vld [vmem:[%s0 + $0x8] sm:$0xff]
  %v22 = vld [vmem:[%s0 + $0x10] sm:$0xff]
  %v23 = vld [vmem:[%s0 + $0x18] sm:$0xff]
  %v24 = vld [vmem:[%s0 + $0x20] sm:$0xff]
  %v25 = vld [vmem:[%s0 + $0x28] sm:$0xff]
  %v26 = vld [vmem:[%s0 + $0x30] sm:$0xff]
  %v27 = vld [vmem:[%s0 + $0x38] sm:$0xff]
  %v28 = vld [vmem:[%s2] sm:$0xff]
  %v29 = vld [vmem:[%s2 + $0x8] sm:$0xff]
  %v30 = vld [vmem:[%s2 + $0x10] sm:$0xff]
  %v31 = vld [vmem:[%s2 + $0x18] sm:$0xff]
  %v32 = vld [vmem:[%s2 + $0x20] sm:$0xff]
  %v33 = vld [vmem:[%s2 + $0x28] sm:$0xff]
  %v34 = vld [vmem:[%s2 + $0x30] sm:$0xff]
  %v35 = vld [vmem:[%s2 + $0x38] sm:$0xff]
  %v36 = vld [vmem:[%s2 + $0x40] sm:$0xff]
  %v37 = vld [vmem:[%s2 + $0x48] sm:$0xff]
  %v38 = vld [vmem:[%s2 + $0x50] sm:$0xff]
  %v39 = vld [vmem:[%s2 + $0x58] sm:$0xff]
  %v40 = vld [vmem:[%s2 + $0x60] sm:$0xff]
  %v41 = vld [vmem:[%s2 + $0x68] sm:$0xff]
  %v42 = vld [vmem:[%s2 + $0x70] sm:$0xff]
  %v43 = vld [vmem:[%s2 + $0x78] sm:$0xff]
  %v44 = vld [vmem:[%s1] sm:$0xff]
  %v45 = vld [vmem:[%s1 + $0x8] sm:$0xff]
  %v46 = vld [vmem:[%s1 + $0x10] sm:$0xff]
  %v47 = vld [vmem:[%s1 + $0x18] sm:$0xff]
  %v48 = vld [vmem:[%s1 + $0x20] sm:$0xff]
  %v49 = vld [vmem:[%s1 + $0x28] sm:$0xff]
  %v50 = vld [vmem:[%s1 + $0x30] sm:$0xff]
  %v51 = vld [vmem:[%s1 + $0x38] sm:$0xff]
  %v52 = vld [vmem:[%s3] sm:$0xff]
  %v53 = vld [vmem:[%s3 + $0x8] sm:$0xff]
  %v54 = vld [vmem:[%s3 + $0x10] sm:$0xff]
  %v55 = vld [vmem:[%s3 + $0x18] sm:$0xff]
  %v56 = vld [vmem:[%s3 + $0x20] sm:$0xff]
  %v57 = vld [vmem:[%s3 + $0x28] sm:$0xff]
  %v58 = vld [vmem:[%s3 + $0x30] sm:$0xff]
  %v59 = vld [vmem:[%s3 + $0x38] sm:$0xff]
  %v60 = vld [vmem:[%s3 + $0x40] sm:$0xff]
  %v61 = vld [vmem:[%s3 + $0x48] sm:$0xff]
  %v62 = vld [vmem:[%s3 + $0x50] sm:$0xff]
  %v63 = vld [vmem:[%s3 + $0x58] sm:$0xff]
  %v64 = vld [vmem:[%s3 + $0x60] sm:$0xff]
  %v65 = vld [vmem:[%s3 + $0x68] sm:$0xff]
  %v66 = vld [vmem:[%s3 + $0x70] sm:$0xff]
  %v67 = vld [vmem:[%s3 + $0x78] sm:$0xff]
  %68 = vmatprep.subr.mxu0 0.0
  %69 = vmatpush1.msra.mxu0 %v67
  %70 = vmatprep.subr.mxu0 0.0
  %71 = vmatpush1.msra.mxu0 %v66
  %72 = vmatprep.subr.mxu0 0.0
  %73 = vmatpush1.msra.mxu0 %v65
  %74 = vmatprep.subr.mxu0 0.0
  %75 = vmatpush1.msra.mxu0 %v64
  %76 = vmatprep.subr.mxu0 0.0
  %77 = vmatpush1.msra.mxu0 %v63
  %78 = vmatprep.subr.mxu0 0.0
  %79 = vmatpush1.msra.mxu0 %v62
  %80 = vmatprep.subr.mxu0 0.0
  %81 = vmatpush1.msra.mxu0 %v61
  %82 = vmatprep.subr.mxu0 0.0
  %83 = vmatpush1.msra.mxu0 %v60
  %84 = vmatprep.subr.mxu0 0.0
  %85 = vmatpush1.msra.mxu0 %v59
  %86 = vmatprep.subr.mxu0 0.0
  %87 = vmatpush1.msra.mxu0 %v58
  %88 = vmatprep.subr.mxu0 0.0
  %89 = vmatpush1.msra.mxu0 %v57
  %90 = vmatprep.subr.mxu0 0.0
  %91 = vmatpush1.msra.mxu0 %v56
  %92 = vmatprep.subr.mxu0 0.0
  %93 = vmatpush1.msra.mxu0 %v55
  %94 = vmatprep.subr.mxu0 0.0
  %95 = vmatpush1.msra.mxu0 %v54
  %96 = vmatprep.subr.mxu0 0.0
  %97 = vmatpush1.msra.mxu0 %v53
  %98 = vmatprep.subr.mxu0 0.0
  %99 = vmatpush1.msra.mxu0 %v52
  %100 = vmatprep.subr.mxu0 0.0
  %101 = vmatpush2.msra.mxu0 0.0
  %102 = vmatprep.subr.mxu0 0.0
  %103 = vmatpush2.msra.mxu0 0.0
  %104 = vmatprep.subr.mxu0 0.0
  %105 = vmatpush2.msra.mxu0 0.0
  %106 = vmatprep.subr.mxu0 0.0
  %107 = vmatpush2.msra.mxu0 0.0
  %108 = vmatprep.subr.mxu0 0.0
  %109 = vmatpush2.msra.mxu0 0.0
  %110 = vmatprep.subr.mxu0 0.0
  %111 = vmatpush2.msra.mxu0 0.0
  %112 = vmatprep.subr.mxu0 0.0
  %113 = vmatpush2.msra.mxu0 0.0
  %114 = vmatprep.subr.mxu0 0.0
  %115 = vmatpush2.msra.mxu0 0.0
  %116 = vmatprep.subr.mxu0 0.0
  %117 = vmatpush2.msra.mxu0 0.0
  %118 = vmatprep.subr.mxu0 0.0
  %119 = vmatpush2.msra.mxu0 0.0
  %120 = vmatprep.subr.mxu0 0.0
  %121 = vmatpush2.msra.mxu0 0.0
  %122 = vmatprep.subr.mxu0 0.0
  %123 = vmatpush2.msra.mxu0 0.0
  %124 = vmatprep.subr.mxu0 0.0
  %125 = vmatpush2.msra.mxu0 0.0
  %126 = vmatprep.subr.mxu0 0.0
  %127 = vmatpush2.msra.mxu0 0.0
  %128 = vmatprep.subr.mxu0 0.0
  %129 = vmatpush2.msra.mxu0 0.0
  %130 = vmatprep.subr.mxu0 0.0
  %131 = vmatpush2.msra.mxu0 0.0
  %132 = vmatprep.mubr.f32.mxu0 0.0
  %133 = vmatmul.mubr.f32.gmra.mxu0 %v44
  %v134 = vpop.f32.mrf.mxu0
  %v135 = vadd.f32 0.0, %v134
  %v136 = vpop.f32.mrf.mxu0
  %137 = vmatprep.mubr.f32.mxu0 0.0
  %138 = vmatmul.mubr.f32.gmra.mxu0 %v45
  %v139 = vpop.f32.mrf.mxu0
  %v140 = vadd.f32 0.0, %v139
  %v141 = vpop.f32.mrf.mxu0
  %142 = vmatprep.mubr.f32.mxu0 0.0
  %143 = vmatmul.mubr.f32.gmra.mxu0 %v46
  %v144 = vpop.f32.mrf.mxu0
  %v145 = vadd.f32 0.0, %v144
  %v146 = vpop.f32.mrf.mxu0
  %147 = vmatprep.mubr.f32.mxu0 0.0
  %148 = vmatmul.mubr.f32.gmra.mxu0 %v47
  %v149 = vpop.f32.mrf.mxu0
  %v150 = vadd.f32 0.0, %v149
  %v151 = vpop.f32.mrf.mxu0
  %152 = vmatprep.mubr.f32.mxu0 0.0
  %153 = vmatmul.mubr.f32.gmra.mxu0 %v48
  %v154 = vpop.f32.mrf.mxu0
  %v155 = vadd.f32 0.0, %v154
  %v156 = vpop.f32.mrf.mxu0
  %157 = vmatprep.mubr.f32.mxu0 0.0
  %158 = vmatmul.mubr.f32.gmra.mxu0 %v49
  %v159 = vpop.f32.mrf.mxu0
  %v160 = vadd.f32 0.0, %v159
  %v161 = vpop.f32.mrf.mxu0
  %162 = vmatprep.mubr.f32.mxu0 0.0
  %163 = vmatmul.mubr.f32.gmra.mxu0 %v50
  %v164 = vpop.f32.mrf.mxu0
  %v165 = vadd.f32 0.0, %v164
  %v166 = vpop.f32.mrf.mxu0
  %167 = vmatprep.mubr.f32.mxu0 0.0
  %168 = vmatmul.mubr.f32.gmra.mxu0 %v51
  %v169 = vpop.f32.mrf.mxu0
  %v170 = vadd.f32 0.0, %v169
  %v171 = vpop.f32.mrf.mxu0
  %172 = vdwg.mxu0
  %173 = vmatprep.subr.mxu0 0.0
  %174 = vmatpush1.msra.mxu0 %v43
  %175 = vmatprep.subr.mxu0 0.0
  %176 = vmatpush1.msra.mxu0 %v42
  %177 = vmatprep.subr.mxu0 0.0
  %178 = vmatpush1.msra.mxu0 %v41
  %179 = vmatprep.subr.mxu0 0.0
  %180 = vmatpush1.msra.mxu0 %v40
  %181 = vmatprep.subr.mxu0 0.0
  %182 = vmatpush1.msra.mxu0 %v39
  %183 = vmatprep.subr.mxu0 0.0
  %184 = vmatpush1.msra.mxu0 %v38
  %185 = vmatprep.subr.mxu0 0.0
  %186 = vmatpush1.msra.mxu0 %v37
  %187 = vmatprep.subr.mxu0 0.0
  %188 = vmatpush1.msra.mxu0 %v36
  %189 = vmatprep.subr.mxu0 0.0
  %190 = vmatpush1.msra.mxu0 %v35
  %191 = vmatprep.subr.mxu0 0.0
  %192 = vmatpush1.msra.mxu0 %v34
  %193 = vmatprep.subr.mxu0 0.0
  %194 = vmatpush1.msra.mxu0 %v33
  %195 = vmatprep.subr.mxu0 0.0
  %196 = vmatpush1.msra.mxu0 %v32
  %197 = vmatprep.subr.mxu0 0.0
  %198 = vmatpush1.msra.mxu0 %v31
  %199 = vmatprep.subr.mxu0 0.0
  %200 = vmatpush1.msra.mxu0 %v30
  %201 = vmatprep.subr.mxu0 0.0
  %202 = vmatpush1.msra.mxu0 %v29
  %203 = vmatprep.subr.mxu0 0.0
  %204 = vmatpush1.msra.mxu0 %v28
  %205 = vmatprep.subr.mxu0 0.0
  %206 = vmatpush2.msra.mxu0 0.0
  %207 = vmatprep.subr.mxu0 0.0
  %208 = vmatpush2.msra.mxu0 0.0
  %209 = vmatprep.subr.mxu0 0.0
  %210 = vmatpush2.msra.mxu0 0.0
  %211 = vmatprep.subr.mxu0 0.0
  %212 = vmatpush2.msra.mxu0 0.0
  %213 = vmatprep.subr.mxu0 0.0
  %214 = vmatpush2.msra.mxu0 0.0
  %215 = vmatprep.subr.mxu0 0.0
  %216 = vmatpush2.msra.mxu0 0.0
  %217 = vmatprep.subr.mxu0 0.0
  %218 = vmatpush2.msra.mxu0 0.0
  %219 = vmatprep.subr.mxu0 0.0
  %220 = vmatpush2.msra.mxu0 0.0
  %221 = vmatprep.subr.mxu0 0.0
  %222 = vmatpush2.msra.mxu0 0.0
  %223 = vmatprep.subr.mxu0 0.0
  %224 = vmatpush2.msra.mxu0 0.0
  %225 = vmatprep.subr.mxu0 0.0
  %226 = vmatpush2.msra.mxu0 0.0
  %227 = vmatprep.subr.mxu0 0.0
  %228 = vmatpush2.msra.mxu0 0.0
  %229 = vmatprep.subr.mxu0 0.0
  %230 = vmatpush2.msra.mxu0 0.0
  %231 = vmatprep.subr.mxu0 0.0
  %232 = vmatpush2.msra.mxu0 0.0
  %233 = vmatprep.subr.mxu0 0.0
  %234 = vmatpush2.msra.mxu0 0.0
  %235 = vmatprep.subr.mxu0 0.0
  %236 = vmatpush2.msra.mxu0 0.0
  %237 = vmatprep.mubr.f32.mxu0 0.0
  %238 = vmatmul.mubr.f32.gmra.mxu0 %v20
  %v239 = vpop.f32.mrf.mxu0
  %v240 = vadd.f32 %v135, %v239
  %v241 = vpop.f32.mrf.mxu0
  %242 = vmatprep.mubr.f32.mxu0 0.0
  %243 = vmatmul.mubr.f32.gmra.mxu0 %v21
  %v244 = vpop.f32.mrf.mxu0
  %v245 = vadd.f32 %v140, %v244
  %v246 = vpop.f32.mrf.mxu0
  %247 = vmatprep.mubr.f32.mxu0 0.0
  %248 = vmatmul.mubr.f32.gmra.mxu0 %v22
  %v249 = vpop.f32.mrf.mxu0
  %v250 = vadd.f32 %v145, %v249
  %v251 = vpop.f32.mrf.mxu0
  %252 = vmatprep.mubr.f32.mxu0 0.0
  %253 = vmatmul.mubr.f32.gmra.mxu0 %v23
  %v254 = vpop.f32.mrf.mxu0
  %v255 = vadd.f32 %v150, %v254
  %v256 = vpop.f32.mrf.mxu0
  %257 = vmatprep.mubr.f32.mxu0 0.0
  %258 = vmatmul.mubr.f32.gmra.mxu0 %v24
  %v259 = vpop.f32.mrf.mxu0
  %v260 = vadd.f32 %v155, %v259
  %v261 = vpop.f32.mrf.mxu0
  %262 = vmatprep.mubr.f32.mxu0 0.0
  %263 = vmatmul.mubr.f32.gmra.mxu0 %v25
  %v264 = vpop.f32.mrf.mxu0
  %v265 = vadd.f32 %v160, %v264
  %v266 = vpop.f32.mrf.mxu0
  %267 = vmatprep.mubr.f32.mxu0 0.0
  %268 = vmatmul.mubr.f32.gmra.mxu0 %v26
  %v269 = vpop.f32.mrf.mxu0
  %v270 = vadd.f32 %v165, %v269
  %v271 = vpop.f32.mrf.mxu0
  %272 = vmatprep.mubr.f32.mxu0 0.0
  %273 = vmatmul.mubr.f32.gmra.mxu0 %v27
  %v274 = vpop.f32.mrf.mxu0
  %v275 = vadd.f32 %v170, %v274
  %v276 = vpop.f32.mrf.mxu0
  %277 = vdwg.mxu0
  %v278 = vld [vmem:[%s4] sm:$0x1]
  %v280 = vlaneseq
  %v281 = vshrl.u32 %v280, 7
  %v282 = vsub.s32 0, %v281
  %v283 = vrot.slane %v278, %v282
  %v285 = vadd.f32 %v240, %v283
  %v286 = vadd.f32 %v245, %v283
  %v287 = vadd.f32 %v250, %v283
  %v288 = vadd.f32 %v255, %v283
  %v289 = vadd.f32 %v260, %v283
  %v290 = vadd.f32 %v265, %v283
  %v291 = vadd.f32 %v270, %v283
  %v292 = vadd.f32 %v275, %v283
  %293 = vst [vmem:[%s5] sm:$0xff] %v285
  %294 = vst [vmem:[%s5 + $0x8] sm:$0xff] %v286
  %295 = vst [vmem:[%s5 + $0x10] sm:$0xff] %v287
  %296 = vst [vmem:[%s5 + $0x18] sm:$0xff] %v288
  %297 = vst [vmem:[%s5 + $0x20] sm:$0xff] %v289
  %298 = vst [vmem:[%s5 + $0x28] sm:$0xff] %v290
  %299 = vst [vmem:[%s5 + $0x30] sm:$0xff] %v291
  %300 = vst [vmem:[%s5 + $0x38] sm:$0xff] %v292
  // Predicated region
  $region22: #{blstm_conversion_forward.5} parent=0 // pred_check
    _
  $region23: #{blstm_conversion_forward.5} parent=0 // pred_check_branch
    %302 = sbr.rel (0) target = $region25
  $region24: #{blstm_conversion_forward.5} parent=0 // pred_region
    _
  $region25: #{blstm_conversion_forward.5} parent=0 // pred_fallthru
    _
  // Predicated region
  $region26: #{blstm_conversion_forward.5} parent=0 // pred_check
    _
  $region27: #{blstm_conversion_forward.5} parent=0 // pred_check_branch
    %304 = sbr.rel (0) target = $region29
  $region28: #{blstm_conversion_forward.5} parent=0 // pred_region
    _
  $region29: #{blstm_conversion_forward.5} parent=0 // pred_fallthru
    _

// kernel: blstm_conversion_forward.4
$region0: #{blstm_conversion_forward.4}
  #allocation0 [shape = 'u32[]', space=smem, size = 0x4, offset = 0x4, fixed_abs, tag = 'smem constant byte address 0x4 - core index']
  #allocation1 [shape = 'u32[144,128]{1,0:T(1,128)}', space=vmem, size = 0x12000, scoped, tag = 'internal scratch']
  #allocation2 [shape = 'f32[32,512]{1,0:T(8,128)}', space=vmem, size = 0x10000, scoped, tag = 'scratch operand']
  #allocation3 [shape = 'f32[32,512]{1,0:T(8,128)}', space=vmem, size = 0x10000, scoped, tag = 'scratch operand']
  #allocation4 [shape = 'f32[8,128]{1,0:T(8,128)}', space=vmem, size = 0x1000, scoped, tag = 'scratch operand']
  #allocation5 [shape = 'f32[8,128]{1,0:T(8,128)}', space=vmem, size = 0x1000, scoped, tag = 'scratch operand']
  #allocation6 [shape = 'f32[8,128]{1,0:T(8,128)}', space=vmem, size = 0x1000, scoped, tag = 'scratch operand']
  #allocation7 [shape = 'f32[8,128]{1,0:T(8,128)}', space=vmem, size = 0x1000, scoped, tag = 'scratch operand']
  %s0 = inlined_call_operand.vmem [shape: f32[64,128], index: 0, kind: input, shape index: {}, may-alias: {0,2}]
  %s1 = inlined_call_operand.vmem [shape: f32[64,128], index: 1, kind: input, shape index: {}, may-alias: {1,3}]
  %s2 = inlined_call_operand.vmem [shape: f32[64,128], index: 2, kind: input, shape index: {}, may-alias: {0,2}]
  %s3 = inlined_call_operand.vmem [shape: f32[64,128], index: 3, kind: input, shape index: {}, may-alias: {1,3}]
  %s4 = inlined_call_operand.vmem [shape: f32[128,512], index: 4, kind: input, shape index: {}]
  %s5 = inlined_call_operand.vmem [shape: f32[128,512], index: 5, kind: input, shape index: {}]
  %s6 = inlined_call_operand.hbm [shape: f32[128,512], index: 6, kind: input, shape index: {}]
  %s7 = inlined_call_operand.hbm [shape: f32[128,512], index: 7, kind: input, shape index: {}]
  %s8 = inlined_call_operand.hbm [shape: f32[128,512], index: 8, kind: input, shape index: {}]
  %s9 = inlined_call_operand.hbm [shape: f32[128,512], index: 9, kind: input, shape index: {}]
  %s10 = inlined_call_operand.vmem [shape: f32[1,512], index: 10, kind: input, shape index: {}]
  %s11 = inlined_call_operand.vmem [shape: f32[1,512], index: 11, kind: input, shape index: {}]
  %s12 = inlined_call_operand.vmem [shape: f32[8,8,128], index: 12, kind: output, shape index: {0}]
  %s13 = inlined_call_operand.vmem [shape: f32[8,8,128], index: 13, kind: output, shape index: {1}]
  %14 = xla_tuple %s12, %s13
  %s15 = sld [smem:[#allocation0]]
  $region109: #{blstm_conversion_forward.4} parent=0
    _
  %s17 = ssub.s32 1, %s15
  %s18 = scalar_select 0, %s17, %s15
  $region1: #{blstm_conversion_forward.4} parent=0
    #allocation8 [shape = 'u8[262144]{0}', space=vmem, size = 0x40000, scoped, tag = 'input window, operand 6, single buffered']
    #allocation9 [shape = 's32[2]{0}', space=sflag, size = 0x8, scoped, tag = 'scoped memory for blstm_conversion_forward.4']
    #allocation10 [shape = 'u8[262144]{0}', space=vmem, size = 0x40000, scoped, tag = 'input window, operand 7, single buffered']
    #allocation11 [shape = 's32[1]{0}', space=sflag, size = 0x4, scoped, tag = 'scoped memory for blstm_conversion_forward.4']
    #allocation12 [shape = 'u8[262144]{0}', space=vmem, size = 0x40000, scoped, tag = 'input window, operand 8, single buffered']
    #allocation13 [shape = 'u8[262144]{0}', space=vmem, size = 0x40000, scoped, tag = 'input window, operand 9, single buffered']
    #allocation14 [shape = 's32[1]{0}', space=sflag, size = 0x4, scoped, tag = 'scoped memory for blstm_conversion_forward.4']
    %19 = vsyncpa [#allocation9], 0
    %20 = vsyncpa [#allocation11], 0
    %21 = vsyncpa [#allocation14], 0
    loop: start=0, step=1, limit=4
    $region2: #{blstm_conversion_forward.4} parent=1 // loop_pre_header
      _
    $region3: #{blstm_conversion_forward.4} parent=1 // loop_header
      %s23 = sphi 0, %s27
      %p24 = scmp.ge.s32.totalorder %s23, 4
      %s33 = sphi 0, %s35
      %s36 = sphi 0, %s33
      %s37 = sphi 0, %s36
      %s53 = sphi 0, %s37
      %s59 = sphi 0, %s61
      %s62 = sphi 0, %s59
      %s63 = sphi 0, %s62
      %s79 = sphi 0, %s63
      %s87 = sphi 0, %s89
      %s90 = sphi 0, %s87
      %s91 = sphi 0, %s90
      %s107 = sphi 0, %s91
      %s115 = sphi 0, %s117
      %s118 = sphi 0, %s115
      %s119 = sphi 0, %s118
      %s135 = sphi 0, %s119
      %s139 = sphi 0, %s139
      %s141 = sphi 0, %s139
      %s142 = sphi 0, %s141
      %s156 = sphi 0, %s142
      %s160 = sphi 0, %s160
      %s162 = sphi 0, %s160
      %s163 = sphi 0, %s162
      %s177 = sphi 0, %s163
      %s181 = sphi 0, %s181
      %s183 = sphi 0, %s181
      %s184 = sphi 0, %s183
      %s198 = sphi 0, %s184
      %s202 = sphi 0, %s202
      %s204 = sphi 0, %s202
      %s205 = sphi 0, %s204
      %s219 = sphi 0, %s205
      %s223 = sphi 0, %s223
      %s225 = sphi 0, %s223
      %s226 = sphi 0, %s225
      %s240 = sphi 0, %s226
      %s244 = sphi 0, %s244
      %s246 = sphi 0, %s244
      %s247 = sphi 0, %s246
      %s261 = sphi 0, %s247
      %s265 = sphi 0, %s265
      %s267 = sphi 0, %s265
      %s268 = sphi 0, %s267
      %s282 = sphi 0, %s268
      %s286 = sphi 0, %s286
      %s288 = sphi 0, %s286
      %s289 = sphi 0, %s288
      %s303 = sphi 0, %s289
      %s309 = sphi 0, %s311
      %s312 = sphi 0, %s309
      %s313 = sphi 0, %s312
      %s329 = sphi 0, %s313
      %s337 = sphi 0, %s339
      %s340 = sphi 0, %s337
      %s341 = sphi 0, %s340
      %s357 = sphi 0, %s341
    $region4: #{blstm_conversion_forward.4} parent=1 // loop_header_branch
      %26 = sbr.rel (%p24) target = $region8
    $region5: #{blstm_conversion_forward.4} parent=1 // loop_body
      %s28 = ssub.s32 %s23, 1
      %s29 = ssub.s32 %s23, 2
      %s30 = sadd.s32 %s23, 1
      %s31 = ssub.s32 %s23, %s30
      %p32 = scmp.eq.s32.totalorder %s31, 0
      %s34 = sadd.s32 %s33, 1
      %s35 = scalar_select %p32, %s33, %s34
      %p38 = pneg %p32
      %p39 = scmp.eq.s32.totalorder %s23, 1
      %p40 = por %p38, %p39
      %p41 = scmp.ne.s32.totalorder %s33, %s36
      %p42 = scmp.eq.s32.totalorder %s23, 0
      %p43 = por %p41, %p42
      %p44 = scmp.ne.s32.totalorder %s33, %s36
      %p45 = scmp.eq.s32.totalorder %s28, 1
      %p46 = por %p44, %p45
      %p47 = scmp.ne.s32.totalorder %s36, %s37
      %p48 = scmp.eq.s32.totalorder %s28, 0
      %p49 = por %p47, %p48
      %p50 = scmp.ne.s32.totalorder %s36, %s37
      %p51 = scmp.eq.s32.totalorder %s29, 1
      %p52 = por %p50, %p51
      %p54 = scmp.ne.s32.totalorder %s37, %s53
      %p55 = scmp.eq.s32.totalorder %s29, 0
      %p56 = por %p54, %p55
      %s57 = ssub.s32 %s23, %s30
      %p58 = scmp.eq.s32.totalorder %s57, 0
      %s60 = sadd.s32 %s59, 1
      %s61 = scalar_select %p58, %s59, %s60
      %p64 = pneg %p58
      %p65 = scmp.eq.s32.totalorder %s23, 1
      %p66 = por %p64, %p65
      %p67 = scmp.ne.s32.totalorder %s59, %s62
      %p68 = scmp.eq.s32.totalorder %s23, 0
      %p69 = por %p67, %p68
      %p70 = scmp.ne.s32.totalorder %s59, %s62
      %p71 = scmp.eq.s32.totalorder %s28, 1
      %p72 = por %p70, %p71
      %p73 = scmp.ne.s32.totalorder %s62, %s63
      %p74 = scmp.eq.s32.totalorder %s28, 0
      %p75 = por %p73, %p74
      %p76 = scmp.ne.s32.totalorder %s62, %s63
      %p77 = scmp.eq.s32.totalorder %s29, 1
      %p78 = por %p76, %p77
      %p80 = scmp.ne.s32.totalorder %s63, %s79
      %p81 = scmp.eq.s32.totalorder %s29, 0
      %p82 = por %p80, %p81
      %s83 = ssub.s32 1, %s23
      %s84 = ssub.s32 1, %s30
      %s85 = ssub.s32 %s83, %s84
      %p86 = scmp.eq.s32.totalorder %s85, 0
      %s88 = sadd.s32 %s87, 1
      %s89 = scalar_select %p86, %s87, %s88
      %p92 = pneg %p86
      %p93 = scmp.eq.s32.totalorder %s23, 1
      %p94 = por %p92, %p93
      %p95 = scmp.ne.s32.totalorder %s87, %s90
      %p96 = scmp.eq.s32.totalorder %s23, 0
      %p97 = por %p95, %p96
      %p98 = scmp.ne.s32.totalorder %s87, %s90
      %p99 = scmp.eq.s32.totalorder %s28, 1
      %p100 = por %p98, %p99
      %p101 = scmp.ne.s32.totalorder %s90, %s91
      %p102 = scmp.eq.s32.totalorder %s28, 0
      %p103 = por %p101, %p102
      %p104 = scmp.ne.s32.totalorder %s90, %s91
      %p105 = scmp.eq.s32.totalorder %s29, 1
      %p106 = por %p104, %p105
      %p108 = scmp.ne.s32.totalorder %s91, %s107
      %p109 = scmp.eq.s32.totalorder %s29, 0
      %p110 = por %p108, %p109
      %s111 = ssub.s32 1, %s23
      %s112 = ssub.s32 1, %s30
      %s113 = ssub.s32 %s111, %s112
      %p114 = scmp.eq.s32.totalorder %s113, 0
      %s116 = sadd.s32 %s115, 1
      %s117 = scalar_select %p114, %s115, %s116
      %p120 = pneg %p114
      %p121 = scmp.eq.s32.totalorder %s23, 1
      %p122 = por %p120, %p121
      %p123 = scmp.ne.s32.totalorder %s115, %s118
      %p124 = scmp.eq.s32.totalorder %s23, 0
      %p125 = por %p123, %p124
      %p126 = scmp.ne.s32.totalorder %s115, %s118
      %p127 = scmp.eq.s32.totalorder %s28, 1
      %p128 = por %p126, %p127
      %p129 = scmp.ne.s32.totalorder %s118, %s119
      %p130 = scmp.eq.s32.totalorder %s28, 0
      %p131 = por %p129, %p130
      %p132 = scmp.ne.s32.totalorder %s118, %s119
      %p133 = scmp.eq.s32.totalorder %s29, 1
      %p134 = por %p132, %p133
      %p136 = scmp.ne.s32.totalorder %s119, %s135
      %p137 = scmp.eq.s32.totalorder %s29, 0
      %p138 = por %p136, %p137
      %s140 = sadd.s32 %s139, 1
      %p143 = scmp.eq.s32.totalorder %s23, 1
      %p144 = scmp.ne.s32.totalorder %s139, %s141
      %p145 = scmp.eq.s32.totalorder %s23, 0
      %p146 = por %p144, %p145
      %p147 = scmp.ne.s32.totalorder %s139, %s141
      %p148 = scmp.eq.s32.totalorder %s28, 1
      %p149 = por %p147, %p148
      %p150 = scmp.ne.s32.totalorder %s141, %s142
      %p151 = scmp.eq.s32.totalorder %s28, 0
      %p152 = por %p150, %p151
      %p153 = scmp.ne.s32.totalorder %s141, %s142
      %p154 = scmp.eq.s32.totalorder %s29, 1
      %p155 = por %p153, %p154
      %p157 = scmp.ne.s32.totalorder %s142, %s156
      %p158 = scmp.eq.s32.totalorder %s29, 0
      %p159 = por %p157, %p158
      %s161 = sadd.s32 %s160, 1
      %p164 = scmp.eq.s32.totalorder %s23, 1
      %p165 = scmp.ne.s32.totalorder %s160, %s162
      %p166 = scmp.eq.s32.totalorder %s23, 0
      %p167 = por %p165, %p166
      %p168 = scmp.ne.s32.totalorder %s160, %s162
      %p169 = scmp.eq.s32.totalorder %s28, 1
      %p170 = por %p168, %p169
      %p171 = scmp.ne.s32.totalorder %s162, %s163
      %p172 = scmp.eq.s32.totalorder %s28, 0
      %p173 = por %p171, %p172
      %p174 = scmp.ne.s32.totalorder %s162, %s163
      %p175 = scmp.eq.s32.totalorder %s29, 1
      %p176 = por %p174, %p175
      %p178 = scmp.ne.s32.totalorder %s163, %s177
      %p179 = scmp.eq.s32.totalorder %s29, 0
      %p180 = por %p178, %p179
      %s182 = sadd.s32 %s181, 1
      %p185 = scmp.eq.s32.totalorder %s23, 1
      %p186 = scmp.ne.s32.totalorder %s181, %s183
      %p187 = scmp.eq.s32.totalorder %s23, 0
      %p188 = por %p186, %p187
      %p189 = scmp.ne.s32.totalorder %s181, %s183
      %p190 = scmp.eq.s32.totalorder %s28, 1
      %p191 = por %p189, %p190
      %p192 = scmp.ne.s32.totalorder %s183, %s184
      %p193 = scmp.eq.s32.totalorder %s28, 0
      %p194 = por %p192, %p193
      %p195 = scmp.ne.s32.totalorder %s183, %s184
      %p196 = scmp.eq.s32.totalorder %s29, 1
      %p197 = por %p195, %p196
      %p199 = scmp.ne.s32.totalorder %s184, %s198
      %p200 = scmp.eq.s32.totalorder %s29, 0
      %p201 = por %p199, %p200
      %s203 = sadd.s32 %s202, 1
      %p206 = scmp.eq.s32.totalorder %s23, 1
      %p207 = scmp.ne.s32.totalorder %s202, %s204
      %p208 = scmp.eq.s32.totalorder %s23, 0
      %p209 = por %p207, %p208
      %p210 = scmp.ne.s32.totalorder %s202, %s204
      %p211 = scmp.eq.s32.totalorder %s28, 1
      %p212 = por %p210, %p211
      %p213 = scmp.ne.s32.totalorder %s204, %s205
      %p214 = scmp.eq.s32.totalorder %s28, 0
      %p215 = por %p213, %p214
      %p216 = scmp.ne.s32.totalorder %s204, %s205
      %p217 = scmp.eq.s32.totalorder %s29, 1
      %p218 = por %p216, %p217
      %p220 = scmp.ne.s32.totalorder %s205, %s219
      %p221 = scmp.eq.s32.totalorder %s29, 0
      %p222 = por %p220, %p221
      %s224 = sadd.s32 %s223, 1
      %p227 = scmp.eq.s32.totalorder %s23, 1
      %p228 = scmp.ne.s32.totalorder %s223, %s225
      %p229 = scmp.eq.s32.totalorder %s23, 0
      %p230 = por %p228, %p229
      %p231 = scmp.ne.s32.totalorder %s223, %s225
      %p232 = scmp.eq.s32.totalorder %s28, 1
      %p233 = por %p231, %p232
      %p234 = scmp.ne.s32.totalorder %s225, %s226
      %p235 = scmp.eq.s32.totalorder %s28, 0
      %p236 = por %p234, %p235
      %p237 = scmp.ne.s32.totalorder %s225, %s226
      %p238 = scmp.eq.s32.totalorder %s29, 1
      %p239 = por %p237, %p238
      %p241 = scmp.ne.s32.totalorder %s226, %s240
      %p242 = scmp.eq.s32.totalorder %s29, 0
      %p243 = por %p241, %p242
      %s245 = sadd.s32 %s244, 1
      %p248 = scmp.eq.s32.totalorder %s23, 1
      %p249 = scmp.ne.s32.totalorder %s244, %s246
      %p250 = scmp.eq.s32.totalorder %s23, 0
      %p251 = por %p249, %p250
      %p252 = scmp.ne.s32.totalorder %s244, %s246
      %p253 = scmp.eq.s32.totalorder %s28, 1
      %p254 = por %p252, %p253
      %p255 = scmp.ne.s32.totalorder %s246, %s247
      %p256 = scmp.eq.s32.totalorder %s28, 0
      %p257 = por %p255, %p256
      %p258 = scmp.ne.s32.totalorder %s246, %s247
      %p259 = scmp.eq.s32.totalorder %s29, 1
      %p260 = por %p258, %p259
      %p262 = scmp.ne.s32.totalorder %s247, %s261
      %p263 = scmp.eq.s32.totalorder %s29, 0
      %p264 = por %p262, %p263
      %s266 = sadd.s32 %s265, 1
      %p269 = scmp.eq.s32.totalorder %s23, 1
      %p270 = scmp.ne.s32.totalorder %s265, %s267
      %p271 = scmp.eq.s32.totalorder %s23, 0
      %p272 = por %p270, %p271
      %p273 = scmp.ne.s32.totalorder %s265, %s267
      %p274 = scmp.eq.s32.totalorder %s28, 1
      %p275 = por %p273, %p274
      %p276 = scmp.ne.s32.totalorder %s267, %s268
      %p277 = scmp.eq.s32.totalorder %s28, 0
      %p278 = por %p276, %p277
      %p279 = scmp.ne.s32.totalorder %s267, %s268
      %p280 = scmp.eq.s32.totalorder %s29, 1
      %p281 = por %p279, %p280
      %p283 = scmp.ne.s32.totalorder %s268, %s282
      %p284 = scmp.eq.s32.totalorder %s29, 0
      %p285 = por %p283, %p284
      %s287 = sadd.s32 %s286, 1
      %p290 = scmp.eq.s32.totalorder %s23, 1
      %p291 = scmp.ne.s32.totalorder %s286, %s288
      %p292 = scmp.eq.s32.totalorder %s23, 0
      %p293 = por %p291, %p292
      %p294 = scmp.ne.s32.totalorder %s286, %s288
      %p295 = scmp.eq.s32.totalorder %s28, 1
      %p296 = por %p294, %p295
      %p297 = scmp.ne.s32.totalorder %s288, %s289
      %p298 = scmp.eq.s32.totalorder %s28, 0
      %p299 = por %p297, %p298
      %p300 = scmp.ne.s32.totalorder %s288, %s289
      %p301 = scmp.eq.s32.totalorder %s29, 1
      %p302 = por %p300, %p301
      %p304 = scmp.ne.s32.totalorder %s289, %s303
      %p305 = scmp.eq.s32.totalorder %s29, 0
      %p306 = por %p304, %p305
      %s307 = ssub.s32 %s23, %s30
      %p308 = scmp.eq.s32.totalorder %s307, 0
      %s310 = sadd.s32 %s309, 1
      %s311 = scalar_select %p308, %s309, %s310
      %p314 = pneg %p308
      %p315 = scmp.eq.s32.totalorder %s23, 1
      %p316 = por %p314, %p315
      %p317 = scmp.ne.s32.totalorder %s309, %s312
      %p318 = scmp.eq.s32.totalorder %s23, 0
      %p319 = por %p317, %p318
      %p320 = scmp.ne.s32.totalorder %s309, %s312
      %p321 = scmp.eq.s32.totalorder %s28, 1
      %p322 = por %p320, %p321
      %p323 = scmp.ne.s32.totalorder %s312, %s313
      %p324 = scmp.eq.s32.totalorder %s28, 0
      %p325 = por %p323, %p324
      %p326 = scmp.ne.s32.totalorder %s312, %s313
      %p327 = scmp.eq.s32.totalorder %s29, 1
      %p328 = por %p326, %p327
      %p330 = scmp.ne.s32.totalorder %s313, %s329
      %p331 = scmp.eq.s32.totalorder %s29, 0
      %p332 = por %p330, %p331
      %s333 = ssub.s32 1, %s23
      %s334 = ssub.s32 1, %s30
      %s335 = ssub.s32 %s333, %s334
      %p336 = scmp.eq.s32.totalorder %s335, 0
      %s338 = sadd.s32 %s337, 1
      %s339 = scalar_select %p336, %s337, %s338
      %p342 = pneg %p336
      %p343 = scmp.eq.s32.totalorder %s23, 1
      %p344 = por %p342, %p343
      %p345 = scmp.ne.s32.totalorder %s337, %s340
      %p346 = scmp.eq.s32.totalorder %s23, 0
      %p347 = por %p345, %p346
      %p348 = scmp.ne.s32.totalorder %s337, %s340
      %p349 = scmp.eq.s32.totalorder %s28, 1
      %p350 = por %p348, %p349
      %p351 = scmp.ne.s32.totalorder %s340, %s341
      %p352 = scmp.eq.s32.totalorder %s28, 0
      %p353 = por %p351, %p352
      %p354 = scmp.ne.s32.totalorder %s340, %s341
      %p355 = scmp.eq.s32.totalorder %s29, 1
      %p356 = por %p354, %p355
      %p358 = scmp.ne.s32.totalorder %s341, %s357
      %p359 = scmp.eq.s32.totalorder %s29, 0
      %p360 = por %p358, %p359
      %p361 = scmp.le.s32.totalorder 1, %s23
      %p362 = scmp.lt.s32.totalorder %s23, 3
      %p363 = pnand %p361, %p362
      %p364 = pneg %p363
      // Predicated region
      $region9: #{blstm_conversion_forward.4} parent=5 // pred_check
        _
      $region10: #{blstm_conversion_forward.4} parent=5 // pred_check_branch
        %366 = sbr.rel (%p363) target = $region12
      $region11: #{blstm_conversion_forward.4} parent=5 // pred_region
        %s367 = ssub.s32 %s23, 1
        // Predicated region
        $region13: #{blstm_conversion_forward.4} parent=11 // pred_check
          %p368 = pneg %p152
        $region14: #{blstm_conversion_forward.4} parent=11 // pred_check_branch
          %370 = sbr.rel (%p368) target = $region16
        $region15: #{blstm_conversion_forward.4} parent=11 // pred_region
          _
        $region16: #{blstm_conversion_forward.4} parent=11 // pred_fallthru
          _
        // Predicated region
        $region17: #{blstm_conversion_forward.4} parent=11 // pred_check
          %p371 = pneg %p173
        $region18: #{blstm_conversion_forward.4} parent=11 // pred_check_branch
          %373 = sbr.rel (%p371) target = $region20
        $region19: #{blstm_conversion_forward.4} parent=11 // pred_region
          _
        $region20: #{blstm_conversion_forward.4} parent=11 // pred_fallthru
          _
        // Predicated region
        $region21: #{blstm_conversion_forward.4} parent=11 // pred_check
          %p374 = pneg %p194
        $region22: #{blstm_conversion_forward.4} parent=11 // pred_check_branch
          %376 = sbr.rel (%p374) target = $region24
        $region23: #{blstm_conversion_forward.4} parent=11 // pred_region
          %s378 = ssub.s32 8192, 8192
          %379 = vsyncadd [#allocation9], %s378
          %s380 = sshll.u32 [#allocation8], 4
          %s381 = int_to_ptr.vmem [resolvable:$true] %s380
          %386 = dma.hbm_to_vmem [thread:$0]  %s6, 8192, %s381, [#allocation9], 512, 512, 32
        $region24: #{blstm_conversion_forward.4} parent=11 // pred_fallthru
          _
        // Predicated region
        $region25: #{blstm_conversion_forward.4} parent=11 // pred_check
          %p387 = pneg %p215
        $region26: #{blstm_conversion_forward.4} parent=11 // pred_check_branch
          %389 = sbr.rel (%p387) target = $region28
        $region27: #{blstm_conversion_forward.4} parent=11 // pred_region
          %s391 = ssub.s32 8192, 8192
          %392 = vsyncadd [#allocation11], %s391
          %s393 = sshll.u32 [#allocation10], 4
          %s394 = int_to_ptr.vmem [resolvable:$true] %s393
          %399 = dma.hbm_to_vmem [thread:$0]  %s7, 8192, %s394, [#allocation11], 512, 512, 32
        $region28: #{blstm_conversion_forward.4} parent=11 // pred_fallthru
          _
        // Predicated region
        $region29: #{blstm_conversion_forward.4} parent=11 // pred_check
          %p400 = pneg %p236
        $region30: #{blstm_conversion_forward.4} parent=11 // pred_check_branch
          %402 = sbr.rel (%p400) target = $region32
        $region31: #{blstm_conversion_forward.4} parent=11 // pred_region
          %s404 = ssub.s32 8192, 8192
          %405 = vsyncadd [#allocation11], %s404
          %s406 = sshll.u32 [#allocation12], 4
          %s407 = int_to_ptr.vmem [resolvable:$true] %s406
          %412 = dma.hbm_to_vmem [thread:$0]  %s8, 8192, %s407, [#allocation11], 512, 512, 32
        $region32: #{blstm_conversion_forward.4} parent=11 // pred_fallthru
          _
        // Predicated region
        $region33: #{blstm_conversion_forward.4} parent=11 // pred_check
          %p413 = pneg %p257
        $region34: #{blstm_conversion_forward.4} parent=11 // pred_check_branch
          %415 = sbr.rel (%p413) target = $region36
        $region35: #{blstm_conversion_forward.4} parent=11 // pred_region
          %s417 = ssub.s32 8192, 8192
          %418 = vsyncadd [#allocation14], %s417
          %s419 = sshll.u32 [#allocation13], 4
          %s420 = int_to_ptr.vmem [resolvable:$true] %s419
          %425 = dma.hbm_to_vmem [thread:$0]  %s9, 8192, %s420, [#allocation14], 512, 512, 32
        $region36: #{blstm_conversion_forward.4} parent=11 // pred_fallthru
          _
        // Predicated region
        $region37: #{blstm_conversion_forward.4} parent=11 // pred_check
          %p426 = pneg %p278
        $region38: #{blstm_conversion_forward.4} parent=11 // pred_check_branch
          %428 = sbr.rel (%p426) target = $region40
        $region39: #{blstm_conversion_forward.4} parent=11 // pred_region
          _
        $region40: #{blstm_conversion_forward.4} parent=11 // pred_fallthru
          _
        // Predicated region
        $region41: #{blstm_conversion_forward.4} parent=11 // pred_check
          %p429 = pneg %p299
        $region42: #{blstm_conversion_forward.4} parent=11 // pred_check_branch
          %431 = sbr.rel (%p429) target = $region44
        $region43: #{blstm_conversion_forward.4} parent=11 // pred_region
          _
        $region44: #{blstm_conversion_forward.4} parent=11 // pred_fallthru
          _
      $region12: #{blstm_conversion_forward.4} parent=5 // pred_fallthru
        _
      %p432 = scmp.lt.s32.totalorder %s23, 2
      // Predicated region
      $region45: #{blstm_conversion_forward.4} parent=5 // pred_check
        %p433 = pneg %p432
      $region46: #{blstm_conversion_forward.4} parent=5 // pred_check_branch
        %435 = sbr.rel (%p433) target = $region48
      $region47: #{blstm_conversion_forward.4} parent=5 // pred_region
        // Predicated region
        $region49: #{blstm_conversion_forward.4} parent=47 // pred_check
          %p436 = pneg %p43
        $region50: #{blstm_conversion_forward.4} parent=47 // pred_check_branch
          %438 = sbr.rel (%p436) target = $region52
        $region51: #{blstm_conversion_forward.4} parent=47 // pred_region
          %s439 = smul.u32 4, %s23
          %p440 = scmp.lt.s32.totalorder %s439, 7
          %s441 = scalar_select %p440, %s439, 7
          %s442 = smul.addr %s441, 8
          %s443 = scalar_lea.vmem %s0, %s442
          %s444 = smul.u32 4, %s23
        $region52: #{blstm_conversion_forward.4} parent=47 // pred_fallthru
          _
        // Predicated region
        $region53: #{blstm_conversion_forward.4} parent=47 // pred_check
          %p445 = pneg %p69
        $region54: #{blstm_conversion_forward.4} parent=47 // pred_check_branch
          %447 = sbr.rel (%p445) target = $region56
        $region55: #{blstm_conversion_forward.4} parent=47 // pred_region
          %s448 = smul.u32 4, %s23
          %p449 = scmp.lt.s32.totalorder %s448, 7
          %s450 = scalar_select %p449, %s448, 7
          %s451 = smul.addr %s450, 8
          %s452 = scalar_lea.vmem %s1, %s451
          %s453 = smul.u32 4, %s23
        $region56: #{blstm_conversion_forward.4} parent=47 // pred_fallthru
          _
        // Predicated region
        $region57: #{blstm_conversion_forward.4} parent=47 // pred_check
          %p454 = pneg %p97
        $region58: #{blstm_conversion_forward.4} parent=47 // pred_check_branch
          %456 = sbr.rel (%p454) target = $region60
        $region59: #{blstm_conversion_forward.4} parent=47 // pred_region
          %s457 = ssub.s32 1, %s23
          %s458 = smul.u32 4, %s457
          %p459 = scmp.lt.s32.totalorder %s458, 7
          %s460 = scalar_select %p459, %s458, 7
          %s461 = smul.addr %s460, 8
          %s462 = scalar_lea.vmem %s2, %s461
          %s463 = ssub.s32 1, %s23
          %s464 = smul.u32 4, %s463
        $region60: #{blstm_conversion_forward.4} parent=47 // pred_fallthru
          _
        // Predicated region
        $region61: #{blstm_conversion_forward.4} parent=47 // pred_check
          %p465 = pneg %p125
        $region62: #{blstm_conversion_forward.4} parent=47 // pred_check_branch
          %467 = sbr.rel (%p465) target = $region64
        $region63: #{blstm_conversion_forward.4} parent=47 // pred_region
          %s468 = ssub.s32 1, %s23
          %s469 = smul.u32 4, %s468
          %p470 = scmp.lt.s32.totalorder %s469, 7
          %s471 = scalar_select %p470, %s469, 7
          %s472 = smul.addr %s471, 8
          %s473 = scalar_lea.vmem %s3, %s472
          %s474 = ssub.s32 1, %s23
          %s475 = smul.u32 4, %s474
        $region64: #{blstm_conversion_forward.4} parent=47 // pred_fallthru
          _
      $region48: #{blstm_conversion_forward.4} parent=5 // pred_fallthru
        _
      %p476 = scmp.le.s32.totalorder 1, %s23
      %p477 = scmp.lt.s32.totalorder %s23, 3
      %p478 = pnand %p476, %p477
      %p479 = pneg %p478
      // Predicated region
      $region65: #{blstm_conversion_forward.4} parent=5 // pred_check
        _
      $region66: #{blstm_conversion_forward.4} parent=5 // pred_check_branch
        %481 = sbr.rel (%p478) target = $region68
      $region67: #{blstm_conversion_forward.4} parent=5 // pred_region
        %s482 = ssub.s32 %s23, 1
        // Predicated region
        $region69: #{blstm_conversion_forward.4} parent=67 // pred_check
          %p483 = pneg %p194
        $region70: #{blstm_conversion_forward.4} parent=67 // pred_check_branch
          %485 = sbr.rel (%p483) target = $region72
        $region71: #{blstm_conversion_forward.4} parent=67 // pred_region
          %486 = dma.done [#allocation9], 8192
        $region72: #{blstm_conversion_forward.4} parent=67 // pred_fallthru
          _
        // Predicated region
        $region73: #{blstm_conversion_forward.4} parent=67 // pred_check
          %p487 = pneg %p215
        $region74: #{blstm_conversion_forward.4} parent=67 // pred_check_branch
          %489 = sbr.rel (%p487) target = $region76
        $region75: #{blstm_conversion_forward.4} parent=67 // pred_region
          %490 = dma.done [#allocation11], 8192
        $region76: #{blstm_conversion_forward.4} parent=67 // pred_fallthru
          _
        // Predicated region
        $region77: #{blstm_conversion_forward.4} parent=67 // pred_check
          %p491 = pneg %p236
        $region78: #{blstm_conversion_forward.4} parent=67 // pred_check_branch
          %493 = sbr.rel (%p491) target = $region80
        $region79: #{blstm_conversion_forward.4} parent=67 // pred_region
          %494 = dma.done [#allocation11], 8192
        $region80: #{blstm_conversion_forward.4} parent=67 // pred_fallthru
          _
        // Predicated region
        $region81: #{blstm_conversion_forward.4} parent=67 // pred_check
          %p495 = pneg %p257
        $region82: #{blstm_conversion_forward.4} parent=67 // pred_check_branch
          %497 = sbr.rel (%p495) target = $region84
        $region83: #{blstm_conversion_forward.4} parent=67 // pred_region
          %498 = dma.done [#allocation14], 8192
        $region84: #{blstm_conversion_forward.4} parent=67 // pred_fallthru
          _
        %s499 = smul.u32 4, %s28
        %p500 = scmp.lt.s32.totalorder %s499, 7
        %s501 = scalar_select %p500, %s499, 7
        %s502 = smul.addr %s501, 8
        %s503 = scalar_lea.vmem %s0, %s502
        %p504 = pneg %p49
        %p505 = pneg %p46
        %s506 = smul.u32 4, %s28
        %p507 = scmp.lt.s32.totalorder %s506, 7
        %s508 = scalar_select %p507, %s506, 7
        %s509 = smul.addr %s508, 8
        %s510 = scalar_lea.vmem %s1, %s509
        %p511 = pneg %p75
        %p512 = pneg %p72
        %s513 = ssub.s32 1, %s28
        %s514 = smul.u32 4, %s513
        %p515 = scmp.lt.s32.totalorder %s514, 7
        %s516 = scalar_select %p515, %s514, 7
        %s517 = smul.addr %s516, 8
        %s518 = scalar_lea.vmem %s2, %s517
        %p519 = pneg %p103
        %p520 = pneg %p100
        %s521 = ssub.s32 1, %s28
        %s522 = smul.u32 4, %s521
        %p523 = scmp.lt.s32.totalorder %s522, 7
        %s524 = scalar_select %p523, %s522, 7
        %s525 = smul.addr %s524, 8
        %s526 = scalar_lea.vmem %s3, %s525
        %p527 = pneg %p131
        %p528 = pneg %p128
        %p529 = pneg %p152
        %p530 = pneg %p149
        %p531 = pneg %p173
        %p532 = pneg %p170
        %p533 = pneg %p194
        %p534 = pneg %p191
        %p535 = pneg %p215
        %p536 = pneg %p212
        %p537 = pneg %p236
        %p538 = pneg %p233
        %p539 = pneg %p257
        %p540 = pneg %p254
        %p541 = pneg %p278
        %p542 = pneg %p275
        %p543 = pneg %p299
        %p544 = pneg %p296
        %p545 = pneg %p325
        %p546 = pneg %p322
        %s547 = smul.u32 4, %s28
        %p548 = scmp.lt.s32.totalorder %s547, 7
        %s549 = scalar_select %p548, %s547, 7
        %s550 = smul.addr %s549, 8
        %s551 = scalar_lea.vmem %s12, %s550
        %p552 = pneg %p353
        %p553 = pneg %p350
        %s554 = ssub.s32 1, %s28
        %s555 = smul.u32 4, %s554
        %p556 = scmp.lt.s32.totalorder %s555, 7
        %s557 = scalar_select %p556, %s555, 7
        %s558 = smul.addr %s557, 8
        %s559 = scalar_lea.vmem %s13, %s558
        %s560 = smul.u32 4, %s28
        %p561 = scmp.lt.s32.totalorder %s560, 7
        %s562 = scalar_select %p561, %s560, 7
        %s563 = smul.addr %s562, 8
        %s564 = scalar_lea.vmem %s0, %s563
        %s565 = smul.u32 4, %s28
        %s566 = smul.u32 4, %s28
        %p567 = scmp.lt.s32.totalorder %s566, 7
        %s568 = scalar_select %p567, %s566, 7
        %s569 = smul.addr %s568, 8
        %s570 = scalar_lea.vmem %s1, %s569
        %s571 = smul.u32 4, %s28
        %s572 = ssub.s32 1, %s28
        %s573 = smul.u32 4, %s572
        %p574 = scmp.lt.s32.totalorder %s573, 7
        %s575 = scalar_select %p574, %s573, 7
        %s576 = smul.addr %s575, 8
        %s577 = scalar_lea.vmem %s2, %s576
        %s578 = ssub.s32 1, %s28
        %s579 = smul.u32 4, %s578
        %s580 = ssub.s32 1, %s28
        %s581 = smul.u32 4, %s580
        %p582 = scmp.lt.s32.totalorder %s581, 7
        %s583 = scalar_select %p582, %s581, 7
        %s584 = smul.addr %s583, 8
        %s585 = scalar_lea.vmem %s3, %s584
        %s586 = ssub.s32 1, %s28
        %s587 = smul.u32 4, %s586
        %s588 = smul.u32 4, %s28
        %p589 = scmp.lt.s32.totalorder %s588, 7
        %s590 = scalar_select %p589, %s588, 7
        %s591 = smul.addr %s590, 8
        %s592 = scalar_lea.vmem %s12, %s591
        %s593 = smul.u32 4, %s28
        %s594 = ssub.s32 1, %s28
        %s595 = smul.u32 4, %s594
        %p596 = scmp.lt.s32.totalorder %s595, 7
        %s597 = scalar_select %p596, %s595, 7
        %s598 = smul.addr %s597, 8
        %s599 = scalar_lea.vmem %s13, %s598
        %s600 = ssub.s32 1, %s28
        %s601 = smul.u32 4, %s600
        %p602 = scmp.eq.s32.totalorder %s28, 0
        // Predicated region
        $region85: #{blstm_conversion_forward.4} parent=67 // pred_check
          %p603 = pneg %p602
        $region86: #{blstm_conversion_forward.4} parent=67 // pred_check_branch
          %605 = sbr.rel (%p603) target = $region88
        $region87: #{blstm_conversion_forward.4} parent=67 // pred_region
          %606 = vst [vmem:[#allocation4] sm:$0xff] 0.0
          %607 = vst [vmem:[#allocation5] sm:$0xff] 0.0
          %608 = vst [vmem:[#allocation6] sm:$0xff] 0.0
          %609 = vst [vmem:[#allocation7] sm:$0xff] 0.0
        $region88: #{blstm_conversion_forward.4} parent=67 // pred_fallthru
          _
        %v610 = vld [vmem:[%s564] sm:$0xff]
        %v611 = vld [vmem:[%s564 + $0x8] sm:$0xff]
        %v612 = vld [vmem:[%s564 + $0x10] sm:$0xff]
        %v613 = vld [vmem:[%s564 + $0x18] sm:$0xff]
        %v614 = vld [vmem:[%s4] sm:$0xff]
        %v615 = vld [vmem:[%s4 + $0x8] sm:$0xff]
        %v616 = vld [vmem:[%s4 + $0x10] sm:$0xff]
        %v617 = vld [vmem:[%s4 + $0x18] sm:$0xff]
        %v618 = vld [vmem:[%s4 + $0x20] sm:$0xff]
        %v619 = vld [vmem:[%s4 + $0x28] sm:$0xff]
        %v620 = vld [vmem:[%s4 + $0x30] sm:$0xff]
        %v621 = vld [vmem:[%s4 + $0x38] sm:$0xff]
        %v622 = vld [vmem:[%s4 + $0x40] sm:$0xff]
        %v623 = vld [vmem:[%s4 + $0x48] sm:$0xff]
        %v624 = vld [vmem:[%s4 + $0x50] sm:$0xff]
        %v625 = vld [vmem:[%s4 + $0x58] sm:$0xff]
        %v626 = vld [vmem:[%s4 + $0x60] sm:$0xff]
        %v627 = vld [vmem:[%s4 + $0x68] sm:$0xff]
        %v628 = vld [vmem:[%s4 + $0x70] sm:$0xff]
        %v629 = vld [vmem:[%s4 + $0x78] sm:$0xff]
        %v630 = vld [vmem:[%s4 + $0x80] sm:$0xff]
        %v631 = vld [vmem:[%s4 + $0x88] sm:$0xff]
        %v632 = vld [vmem:[%s4 + $0x90] sm:$0xff]
        %v633 = vld [vmem:[%s4 + $0x98] sm:$0xff]
        %v634 = vld [vmem:[%s4 + $0xa0] sm:$0xff]
        %v635 = vld [vmem:[%s4 + $0xa8] sm:$0xff]
        %v636 = vld [vmem:[%s4 + $0xb0] sm:$0xff]
        %v637 = vld [vmem:[%s4 + $0xb8] sm:$0xff]
        %v638 = vld [vmem:[%s4 + $0xc0] sm:$0xff]
        %v639 = vld [vmem:[%s4 + $0xc8] sm:$0xff]
        %v640 = vld [vmem:[%s4 + $0xd0] sm:$0xff]
        %v641 = vld [vmem:[%s4 + $0xd8] sm:$0xff]
        %v642 = vld [vmem:[%s4 + $0xe0] sm:$0xff]
        %v643 = vld [vmem:[%s4 + $0xe8] sm:$0xff]
        %v644 = vld [vmem:[%s4 + $0xf0] sm:$0xff]
        %v645 = vld [vmem:[%s4 + $0xf8] sm:$0xff]
        %v646 = vld [vmem:[%s4 + $0x100] sm:$0xff]
        %v647 = vld [vmem:[%s4 + $0x108] sm:$0xff]
        %v648 = vld [vmem:[%s4 + $0x110] sm:$0xff]
        %v649 = vld [vmem:[%s4 + $0x118] sm:$0xff]
        %v650 = vld [vmem:[%s4 + $0x120] sm:$0xff]
        %v651 = vld [vmem:[%s4 + $0x128] sm:$0xff]
        %v652 = vld [vmem:[%s4 + $0x130] sm:$0xff]
        %v653 = vld [vmem:[%s4 + $0x138] sm:$0xff]
        %v654 = vld [vmem:[%s4 + $0x140] sm:$0xff]
        %v655 = vld [vmem:[%s4 + $0x148] sm:$0xff]
        %v656 = vld [vmem:[%s4 + $0x150] sm:$0xff]
        %v657 = vld [vmem:[%s4 + $0x158] sm:$0xff]
        %v658 = vld [vmem:[%s4 + $0x160] sm:$0xff]
        %v659 = vld [vmem:[%s4 + $0x168] sm:$0xff]
        %v660 = vld [vmem:[%s4 + $0x170] sm:$0xff]
        %v661 = vld [vmem:[%s4 + $0x178] sm:$0xff]
        %v662 = vld [vmem:[%s4 + $0x180] sm:$0xff]
        %v663 = vld [vmem:[%s4 + $0x188] sm:$0xff]
        %v664 = vld [vmem:[%s4 + $0x190] sm:$0xff]
        %v665 = vld [vmem:[%s4 + $0x198] sm:$0xff]
        %v666 = vld [vmem:[%s4 + $0x1a0] sm:$0xff]
        %v667 = vld [vmem:[%s4 + $0x1a8] sm:$0xff]
        %v668 = vld [vmem:[%s4 + $0x1b0] sm:$0xff]
        %v669 = vld [vmem:[%s4 + $0x1b8] sm:$0xff]
        %v670 = vld [vmem:[%s4 + $0x1c0] sm:$0xff]
        %v671 = vld [vmem:[%s4 + $0x1c8] sm:$0xff]
        %v672 = vld [vmem:[%s4 + $0x1d0] sm:$0xff]
        %v673 = vld [vmem:[%s4 + $0x1d8] sm:$0xff]
        %v674 = vld [vmem:[%s4 + $0x1e0] sm:$0xff]
        %v675 = vld [vmem:[%s4 + $0x1e8] sm:$0xff]
        %v676 = vld [vmem:[%s4 + $0x1f0] sm:$0xff]
        %v677 = vld [vmem:[%s4 + $0x1f8] sm:$0xff]
        %v678 = vld [vmem:[%s577] sm:$0xff]
        %v679 = vld [vmem:[%s577 + $0x8] sm:$0xff]
        %v680 = vld [vmem:[%s577 + $0x10] sm:$0xff]
        %v681 = vld [vmem:[%s577 + $0x18] sm:$0xff]
        %v682 = vld [vmem:[#allocation8] sm:$0xff]
        %v683 = vld [vmem:[#allocation8 + $0x8] sm:$0xff]
        %v684 = vld [vmem:[#allocation8 + $0x10] sm:$0xff]
        %v685 = vld [vmem:[#allocation8 + $0x18] sm:$0xff]
        %v686 = vld [vmem:[#allocation8 + $0x20] sm:$0xff]
        %v687 = vld [vmem:[#allocation8 + $0x28] sm:$0xff]
        %v688 = vld [vmem:[#allocation8 + $0x30] sm:$0xff]
        %v689 = vld [vmem:[#allocation8 + $0x38] sm:$0xff]
        %v690 = vld [vmem:[#allocation8 + $0x40] sm:$0xff]
        %v691 = vld [vmem:[#allocation8 + $0x48] sm:$0xff]
        %v692 = vld [vmem:[#allocation8 + $0x50] sm:$0xff]
        %v693 = vld [vmem:[#allocation8 + $0x58] sm:$0xff]
        %v694 = vld [vmem:[#allocation8 + $0x60] sm:$0xff]
        %v695 = vld [vmem:[#allocation8 + $0x68] sm:$0xff]
        %v696 = vld [vmem:[#allocation8 + $0x70] sm:$0xff]
        %v697 = vld [vmem:[#allocation8 + $0x78] sm:$0xff]
        %v698 = vld [vmem:[#allocation8 + $0x80] sm:$0xff]
        %v699 = vld [vmem:[#allocation8 + $0x88] sm:$0xff]
        %v700 = vld [vmem:[#allocation8 + $0x90] sm:$0xff]
        %v701 = vld [vmem:[#allocation8 + $0x98] sm:$0xff]
        %v702 = vld [vmem:[#allocation8 + $0xa0] sm:$0xff]
        %v703 = vld [vmem:[#allocation8 + $0xa8] sm:$0xff]
        %v704 = vld [vmem:[#allocation8 + $0xb0] sm:$0xff]
        %v705 = vld [vmem:[#allocation8 + $0xb8] sm:$0xff]
        %v706 = vld [vmem:[#allocation8 + $0xc0] sm:$0xff]
        %v707 = vld [vmem:[#allocation8 + $0xc8] sm:$0xff]
        %v708 = vld [vmem:[#allocation8 + $0xd0] sm:$0xff]
        %v709 = vld [vmem:[#allocation8 + $0xd8] sm:$0xff]
        %v710 = vld [vmem:[#allocation8 + $0xe0] sm:$0xff]
        %v711 = vld [vmem:[#allocation8 + $0xe8] sm:$0xff]
        %v712 = vld [vmem:[#allocation8 + $0xf0] sm:$0xff]
        %v713 = vld [vmem:[#allocation8 + $0xf8] sm:$0xff]
        %v714 = vld [vmem:[#allocation8 + $0x100] sm:$0xff]
        %v715 = vld [vmem:[#allocation8 + $0x108] sm:$0xff]
        %v716 = vld [vmem:[#allocation8 + $0x110] sm:$0xff]
        %v717 = vld [vmem:[#allocation8 + $0x118] sm:$0xff]
        %v718 = vld [vmem:[#allocation8 + $0x120] sm:$0xff]
        %v719 = vld [vmem:[#allocation8 + $0x128] sm:$0xff]
        %v720 = vld [vmem:[#allocation8 + $0x130] sm:$0xff]
        %v721 = vld [vmem:[#allocation8 + $0x138] sm:$0xff]
        %v722 = vld [vmem:[#allocation8 + $0x140] sm:$0xff]
        %v723 = vld [vmem:[#allocation8 + $0x148] sm:$0xff]
        %v724 = vld [vmem:[#allocation8 + $0x150] sm:$0xff]
        %v725 = vld [vmem:[#allocation8 + $0x158] sm:$0xff]
        %v726 = vld [vmem:[#allocation8 + $0x160] sm:$0xff]
        %v727 = vld [vmem:[#allocation8 + $0x168] sm:$0xff]
        %v728 = vld [vmem:[#allocation8 + $0x170] sm:$0xff]
        %v729 = vld [vmem:[#allocation8 + $0x178] sm:$0xff]
        %v730 = vld [vmem:[#allocation8 + $0x180] sm:$0xff]
        %v731 = vld [vmem:[#allocation8 + $0x188] sm:$0xff]
        %v732 = vld [vmem:[#allocation8 + $0x190] sm:$0xff]
        %v733 = vld [vmem:[#allocation8 + $0x198] sm:$0xff]
        %v734 = vld [vmem:[#allocation8 + $0x1a0] sm:$0xff]
        %v735 = vld [vmem:[#allocation8 + $0x1a8] sm:$0xff]
        %v736 = vld [vmem:[#allocation8 + $0x1b0] sm:$0xff]
        %v737 = vld [vmem:[#allocation8 + $0x1b8] sm:$0xff]
        %v738 = vld [vmem:[#allocation8 + $0x1c0] sm:$0xff]
        %v739 = vld [vmem:[#allocation8 + $0x1c8] sm:$0xff]
        %v740 = vld [vmem:[#allocation8 + $0x1d0] sm:$0xff]
        %v741 = vld [vmem:[#allocation8 + $0x1d8] sm:$0xff]
        %v742 = vld [vmem:[#allocation8 + $0x1e0] sm:$0xff]
        %v743 = vld [vmem:[#allocation8 + $0x1e8] sm:$0xff]
        %v744 = vld [vmem:[#allocation8 + $0x1f0] sm:$0xff]
        %v745 = vld [vmem:[#allocation8 + $0x1f8] sm:$0xff]
        %v746 = vld [vmem:[%s570] sm:$0xff]
        %v747 = vld [vmem:[%s570 + $0x8] sm:$0xff]
        %v748 = vld [vmem:[%s570 + $0x10] sm:$0xff]
        %v749 = vld [vmem:[%s570 + $0x18] sm:$0xff]
        %v750 = vld [vmem:[%s5] sm:$0xff]
        %v751 = vld [vmem:[%s5 + $0x8] sm:$0xff]
        %v752 = vld [vmem:[%s5 + $0x10] sm:$0xff]
        %v753 = vld [vmem:[%s5 + $0x18] sm:$0xff]
        %v754 = vld [vmem:[%s5 + $0x20] sm:$0xff]
        %v755 = vld [vmem:[%s5 + $0x28] sm:$0xff]
        %v756 = vld [vmem:[%s5 + $0x30] sm:$0xff]
        %v757 = vld [vmem:[%s5 + $0x38] sm:$0xff]
        %v758 = vld [vmem:[%s5 + $0x40] sm:$0xff]
        %v759 = vld [vmem:[%s5 + $0x48] sm:$0xff]
        %v760 = vld [vmem:[%s5 + $0x50] sm:$0xff]
        %v761 = vld [vmem:[%s5 + $0x58] sm:$0xff]
        %v762 = vld [vmem:[%s5 + $0x60] sm:$0xff]
        %v763 = vld [vmem:[%s5 + $0x68] sm:$0xff]
        %v764 = vld [vmem:[%s5 + $0x70] sm:$0xff]
        %v765 = vld [vmem:[%s5 + $0x78] sm:$0xff]
        %v766 = vld [vmem:[%s5 + $0x80] sm:$0xff]
        %v767 = vld [vmem:[%s5 + $0x88] sm:$0xff]
        %v768 = vld [vmem:[%s5 + $0x90] sm:$0xff]
        %v769 = vld [vmem:[%s5 + $0x98] sm:$0xff]
        %v770 = vld [vmem:[%s5 + $0xa0] sm:$0xff]
        %v771 = vld [vmem:[%s5 + $0xa8] sm:$0xff]
        %v772 = vld [vmem:[%s5 + $0xb0] sm:$0xff]
        %v773 = vld [vmem:[%s5 + $0xb8] sm:$0xff]
        %v774 = vld [vmem:[%s5 + $0xc0] sm:$0xff]
        %v775 = vld [vmem:[%s5 + $0xc8] sm:$0xff]
        %v776 = vld [vmem:[%s5 + $0xd0] sm:$0xff]
        %v777 = vld [vmem:[%s5 + $0xd8] sm:$0xff]
        %v778 = vld [vmem:[%s5 + $0xe0] sm:$0xff]
        %v779 = vld [vmem:[%s5 + $0xe8] sm:$0xff]
        %v780 = vld [vmem:[%s5 + $0xf0] sm:$0xff]
        %v781 = vld [vmem:[%s5 + $0xf8] sm:$0xff]
        %v782 = vld [vmem:[%s5 + $0x100] sm:$0xff]
        %v783 = vld [vmem:[%s5 + $0x108] sm:$0xff]
        %v784 = vld [vmem:[%s5 + $0x110] sm:$0xff]
        %v785 = vld [vmem:[%s5 + $0x118] sm:$0xff]
        %v786 = vld [vmem:[%s5 + $0x120] sm:$0xff]
        %v787 = vld [vmem:[%s5 + $0x128] sm:$0xff]
        %v788 = vld [vmem:[%s5 + $0x130] sm:$0xff]
        %v789 = vld [vmem:[%s5 + $0x138] sm:$0xff]
        %v790 = vld [vmem:[%s5 + $0x140] sm:$0xff]
        %v791 = vld [vmem:[%s5 + $0x148] sm:$0xff]
        %v792 = vld [vmem:[%s5 + $0x150] sm:$0xff]
        %v793 = vld [vmem:[%s5 + $0x158] sm:$0xff]
        %v794 = vld [vmem:[%s5 + $0x160] sm:$0xff]
        %v795 = vld [vmem:[%s5 + $0x168] sm:$0xff]
        %v796 = vld [vmem:[%s5 + $0x170] sm:$0xff]
        %v797 = vld [vmem:[%s5 + $0x178] sm:$0xff]
        %v798 = vld [vmem:[%s5 + $0x180] sm:$0xff]
        %v799 = vld [vmem:[%s5 + $0x188] sm:$0xff]
        %v800 = vld [vmem:[%s5 + $0x190] sm:$0xff]
        %v801 = vld [vmem:[%s5 + $0x198] sm:$0xff]
        %v802 = vld [vmem:[%s5 + $0x1a0] sm:$0xff]
        %v803 = vld [vmem:[%s5 + $0x1a8] sm:$0xff]
        %v804 = vld [vmem:[%s5 + $0x1b0] sm:$0xff]
        %v805 = vld [vmem:[%s5 + $0x1b8] sm:$0xff]
        %v806 = vld [vmem:[%s5 + $0x1c0] sm:$0xff]
        %v807 = vld [vmem:[%s5 + $0x1c8] sm:$0xff]
        %v808 = vld [vmem:[%s5 + $0x1d0] sm:$0xff]
        %v809 = vld [vmem:[%s5 + $0x1d8] sm:$0xff]
        %v810 = vld [vmem:[%s5 + $0x1e0] sm:$0xff]
        %v811 = vld [vmem:[%s5 + $0x1e8] sm:$0xff]
        %v812 = vld [vmem:[%s5 + $0x1f0] sm:$0xff]
        %v813 = vld [vmem:[%s5 + $0x1f8] sm:$0xff]
        %814 = vmatprep.subr.mxu0 %v811
        %815 = vmatpush1.msra.mxu0 %v810
        %816 = vmatprep.subr.mxu0 %v807
        %817 = vmatpush1.msra.mxu0 %v806
        %818 = vmatprep.subr.mxu0 %v803
        %819 = vmatpush1.msra.mxu0 %v802
        %820 = vmatprep.subr.mxu0 %v799
        %821 = vmatpush1.msra.mxu0 %v798
        %822 = vmatprep.subr.mxu0 %v795
        %823 = vmatpush1.msra.mxu0 %v794
        %824 = vmatprep.subr.mxu0 %v791
        %825 = vmatpush1.msra.mxu0 %v790
        %826 = vmatprep.subr.mxu0 %v787
        %827 = vmatpush1.msra.mxu0 %v786
        %828 = vmatprep.subr.mxu0 %v783
        %829 = vmatpush1.msra.mxu0 %v782
        %830 = vmatprep.subr.mxu0 %v779
        %831 = vmatpush1.msra.mxu0 %v778
        %832 = vmatprep.subr.mxu0 %v775
        %833 = vmatpush1.msra.mxu0 %v774
        %834 = vmatprep.subr.mxu0 %v771
        %835 = vmatpush1.msra.mxu0 %v770
        %836 = vmatprep.subr.mxu0 %v767
        %837 = vmatpush1.msra.mxu0 %v766
        %838 = vmatprep.subr.mxu0 %v763
        %839 = vmatpush1.msra.mxu0 %v762
        %840 = vmatprep.subr.mxu0 %v759
        %841 = vmatpush1.msra.mxu0 %v758
        %842 = vmatprep.subr.mxu0 %v755
        %843 = vmatpush1.msra.mxu0 %v754
        %844 = vmatprep.subr.mxu0 %v751
        %845 = vmatpush1.msra.mxu0 %v750
        %846 = vmatprep.subr.mxu0 0.0
        %847 = vmatpush2.msra.mxu0 0.0
        %848 = vmatprep.subr.mxu0 0.0
        %849 = vmatpush2.msra.mxu0 0.0
        %850 = vmatprep.subr.mxu0 0.0
        %851 = vmatpush2.msra.mxu0 0.0
        %852 = vmatprep.subr.mxu0 0.0
        %853 = vmatpush2.msra.mxu0 0.0
        %854 = vmatprep.subr.mxu0 0.0
        %855 = vmatpush2.msra.mxu0 0.0
        %856 = vmatprep.subr.mxu0 0.0
        %857 = vmatpush2.msra.mxu0 0.0
        %858 = vmatprep.subr.mxu0 0.0
        %859 = vmatpush2.msra.mxu0 0.0
        %860 = vmatprep.subr.mxu0 0.0
        %861 = vmatpush2.msra.mxu0 0.0
        %862 = vmatprep.subr.mxu0 0.0
        %863 = vmatpush2.msra.mxu0 0.0
        %864 = vmatprep.subr.mxu0 0.0
        %865 = vmatpush2.msra.mxu0 0.0
        %866 = vmatprep.subr.mxu0 0.0
        %867 = vmatpush2.msra.mxu0 0.0
        %868 = vmatprep.subr.mxu0 0.0
        %869 = vmatpush2.msra.mxu0 0.0
        %870 = vmatprep.subr.mxu0 0.0
        %871 = vmatpush2.msra.mxu0 0.0
        %872 = vmatprep.subr.mxu0 0.0
        %873 = vmatpush2.msra.mxu0 0.0
        %874 = vmatprep.subr.mxu0 0.0
        %875 = vmatpush2.msra.mxu0 0.0
        %876 = vmatprep.subr.mxu0 0.0
        %877 = vmatpush2.msra.mxu0 0.0
        %878 = vmatprep.mubr.f32.mxu0 0.0
        %879 = vmatmul.mubr.f32.gmra.mxu0 %v746
        %v880 = vpop.f32.mrf.mxu0
        %v881 = vadd.f32 0.0, %v880
        %v882 = vpop.f32.mrf.mxu0
        %v883 = vadd.f32 0.0, %v882
        %884 = vmatprep.mubr.f32.mxu0 0.0
        %885 = vmatmul.mubr.f32.gmra.mxu0 %v747
        %v886 = vpop.f32.mrf.mxu0
        %v887 = vadd.f32 0.0, %v886
        %v888 = vpop.f32.mrf.mxu0
        %v889 = vadd.f32 0.0, %v888
        %890 = vmatprep.mubr.f32.mxu0 0.0
        %891 = vmatmul.mubr.f32.gmra.mxu0 %v748
        %v892 = vpop.f32.mrf.mxu0
        %v893 = vadd.f32 0.0, %v892
        %v894 = vpop.f32.mrf.mxu0
        %v895 = vadd.f32 0.0, %v894
        %896 = vmatprep.mubr.f32.mxu0 0.0
        %897 = vmatmul.mubr.f32.gmra.mxu0 %v749
        %v898 = vpop.f32.mrf.mxu0
        %v899 = vadd.f32 0.0, %v898
        %v900 = vpop.f32.mrf.mxu0
        %v901 = vadd.f32 0.0, %v900
        %902 = vdwg.mxu0
        %903 = vmatprep.subr.mxu0 %v813
        %904 = vmatpush1.msra.mxu0 %v812
        %905 = vmatprep.subr.mxu0 %v809
        %906 = vmatpush1.msra.mxu0 %v808
        %907 = vmatprep.subr.mxu0 %v805
        %908 = vmatpush1.msra.mxu0 %v804
        %909 = vmatprep.subr.mxu0 %v801
        %910 = vmatpush1.msra.mxu0 %v800
        %911 = vmatprep.subr.mxu0 %v797
        %912 = vmatpush1.msra.mxu0 %v796
        %913 = vmatprep.subr.mxu0 %v793
        %914 = vmatpush1.msra.mxu0 %v792
        %915 = vmatprep.subr.mxu0 %v789
        %916 = vmatpush1.msra.mxu0 %v788
        %917 = vmatprep.subr.mxu0 %v785
        %918 = vmatpush1.msra.mxu0 %v784
        %919 = vmatprep.subr.mxu0 %v781
        %920 = vmatpush1.msra.mxu0 %v780
        %921 = vmatprep.subr.mxu0 %v777
        %922 = vmatpush1.msra.mxu0 %v776
        %923 = vmatprep.subr.mxu0 %v773
        %924 = vmatpush1.msra.mxu0 %v772
        %925 = vmatprep.subr.mxu0 %v769
        %926 = vmatpush1.msra.mxu0 %v768
        %927 = vmatprep.subr.mxu0 %v765
        %928 = vmatpush1.msra.mxu0 %v764
        %929 = vmatprep.subr.mxu0 %v761
        %930 = vmatpush1.msra.mxu0 %v760
        %931 = vmatprep.subr.mxu0 %v757
        %932 = vmatpush1.msra.mxu0 %v756
        %933 = vmatprep.subr.mxu0 %v753
        %934 = vmatpush1.msra.mxu0 %v752
        %935 = vmatprep.subr.mxu0 0.0
        %936 = vmatpush2.msra.mxu0 0.0
        %937 = vmatprep.subr.mxu0 0.0
        %938 = vmatpush2.msra.mxu0 0.0
        %939 = vmatprep.subr.mxu0 0.0
        %940 = vmatpush2.msra.mxu0 0.0
        %941 = vmatprep.subr.mxu0 0.0
        %942 = vmatpush2.msra.mxu0 0.0
        %943 = vmatprep.subr.mxu0 0.0
        %944 = vmatpush2.msra.mxu0 0.0
        %945 = vmatprep.subr.mxu0 0.0
        %946 = vmatpush2.msra.mxu0 0.0
        %947 = vmatprep.subr.mxu0 0.0
        %948 = vmatpush2.msra.mxu0 0.0
        %949 = vmatprep.subr.mxu0 0.0
        %950 = vmatpush2.msra.mxu0 0.0
        %951 = vmatprep.subr.mxu0 0.0
        %952 = vmatpush2.msra.mxu0 0.0
        %953 = vmatprep.subr.mxu0 0.0
        %954 = vmatpush2.msra.mxu0 0.0
        %955 = vmatprep.subr.mxu0 0.0
        %956 = vmatpush2.msra.mxu0 0.0
        %957 = vmatprep.subr.mxu0 0.0
        %958 = vmatpush2.msra.mxu0 0.0
        %959 = vmatprep.subr.mxu0 0.0
        %960 = vmatpush2.msra.mxu0 0.0
        %961 = vmatprep.subr.mxu0 0.0
        %962 = vmatpush2.msra.mxu0 0.0
        %963 = vmatprep.subr.mxu0 0.0
        %964 = vmatpush2.msra.mxu0 0.0
        %965 = vmatprep.subr.mxu0 0.0
        %966 = vmatpush2.msra.mxu0 0.0
        %967 = vmatprep.mubr.f32.mxu0 0.0
        %968 = vmatmul.mubr.f32.gmra.mxu0 %v746
        %v969 = vpop.f32.mrf.mxu0
        %v970 = vadd.f32 0.0, %v969
        %v971 = vpop.f32.mrf.mxu0
        %v972 = vadd.f32 0.0, %v971
        %973 = vmatprep.mubr.f32.mxu0 0.0
        %974 = vmatmul.mubr.f32.gmra.mxu0 %v747
        %v975 = vpop.f32.mrf.mxu0
        %v976 = vadd.f32 0.0, %v975
        %v977 = vpop.f32.mrf.mxu0
        %v978 = vadd.f32 0.0, %v977
        %979 = vmatprep.mubr.f32.mxu0 0.0
        %980 = vmatmul.mubr.f32.gmra.mxu0 %v748
        %v981 = vpop.f32.mrf.mxu0
        %v982 = vadd.f32 0.0, %v981
        %v983 = vpop.f32.mrf.mxu0
        %v984 = vadd.f32 0.0, %v983
        %985 = vmatprep.mubr.f32.mxu0 0.0
        %986 = vmatmul.mubr.f32.gmra.mxu0 %v749
        %v987 = vpop.f32.mrf.mxu0
        %v988 = vadd.f32 0.0, %v987
        %v989 = vpop.f32.mrf.mxu0
        %v990 = vadd.f32 0.0, %v989
        %991 = vdwg.mxu0
        %992 = vmatprep.subr.mxu0 %v675
        %993 = vmatpush1.msra.mxu0 %v674
        %994 = vmatprep.subr.mxu0 %v671
        %995 = vmatpush1.msra.mxu0 %v670
        %996 = vmatprep.subr.mxu0 %v667
        %997 = vmatpush1.msra.mxu0 %v666
        %998 = vmatprep.subr.mxu0 %v663
        %999 = vmatpush1.msra.mxu0 %v662
        %1000 = vmatprep.subr.mxu0 %v659
        %1001 = vmatpush1.msra.mxu0 %v658
        %1002 = vmatprep.subr.mxu0 %v655
        %1003 = vmatpush1.msra.mxu0 %v654
        %1004 = vmatprep.subr.mxu0 %v651
        %1005 = vmatpush1.msra.mxu0 %v650
        %1006 = vmatprep.subr.mxu0 %v647
        %1007 = vmatpush1.msra.mxu0 %v646
        %1008 = vmatprep.subr.mxu0 %v643
        %1009 = vmatpush1.msra.mxu0 %v642
        %1010 = vmatprep.subr.mxu0 %v639
        %1011 = vmatpush1.msra.mxu0 %v638
        %1012 = vmatprep.subr.mxu0 %v635
        %1013 = vmatpush1.msra.mxu0 %v634
        %1014 = vmatprep.subr.mxu0 %v631
        %1015 = vmatpush1.msra.mxu0 %v630
        %1016 = vmatprep.subr.mxu0 %v627
        %1017 = vmatpush1.msra.mxu0 %v626
        %1018 = vmatprep.subr.mxu0 %v623
        %1019 = vmatpush1.msra.mxu0 %v622
        %1020 = vmatprep.subr.mxu0 %v619
        %1021 = vmatpush1.msra.mxu0 %v618
        %1022 = vmatprep.subr.mxu0 %v615
        %1023 = vmatpush1.msra.mxu0 %v614
        %1024 = vmatprep.subr.mxu0 0.0
        %1025 = vmatpush2.msra.mxu0 0.0
        %1026 = vmatprep.subr.mxu0 0.0
        %1027 = vmatpush2.msra.mxu0 0.0
        %1028 = vmatprep.subr.mxu0 0.0
        %1029 = vmatpush2.msra.mxu0 0.0
        %1030 = vmatprep.subr.mxu0 0.0
        %1031 = vmatpush2.msra.mxu0 0.0
        %1032 = vmatprep.subr.mxu0 0.0
        %1033 = vmatpush2.msra.mxu0 0.0
        %1034 = vmatprep.subr.mxu0 0.0
        %1035 = vmatpush2.msra.mxu0 0.0
        %1036 = vmatprep.subr.mxu0 0.0
        %1037 = vmatpush2.msra.mxu0 0.0
        %1038 = vmatprep.subr.mxu0 0.0
        %1039 = vmatpush2.msra.mxu0 0.0
        %1040 = vmatprep.subr.mxu0 0.0
        %1041 = vmatpush2.msra.mxu0 0.0
        %1042 = vmatprep.subr.mxu0 0.0
        %1043 = vmatpush2.msra.mxu0 0.0
        %1044 = vmatprep.subr.mxu0 0.0
        %1045 = vmatpush2.msra.mxu0 0.0
        %1046 = vmatprep.subr.mxu0 0.0
        %1047 = vmatpush2.msra.mxu0 0.0
        %1048 = vmatprep.subr.mxu0 0.0
        %1049 = vmatpush2.msra.mxu0 0.0
        %1050 = vmatprep.subr.mxu0 0.0
        %1051 = vmatpush2.msra.mxu0 0.0
        %1052 = vmatprep.subr.mxu0 0.0
        %1053 = vmatpush2.msra.mxu0 0.0
        %1054 = vmatprep.subr.mxu0 0.0
        %1055 = vmatpush2.msra.mxu0 0.0
        %1056 = vmatprep.mubr.f32.mxu0 0.0
        %1057 = vmatmul.mubr.f32.gmra.mxu0 %v610
        %v1058 = vpop.f32.mrf.mxu0
        %v1059 = vadd.f32 %v881, %v1058
        %v1060 = vpop.f32.mrf.mxu0
        %v1061 = vadd.f32 %v883, %v1060
        %1062 = vmatprep.mubr.f32.mxu0 0.0
        %1063 = vmatmul.mubr.f32.gmra.mxu0 %v611
        %v1064 = vpop.f32.mrf.mxu0
        %v1065 = vadd.f32 %v887, %v1064
        %v1066 = vpop.f32.mrf.mxu0
        %v1067 = vadd.f32 %v889, %v1066
        %1068 = vmatprep.mubr.f32.mxu0 0.0
        %1069 = vmatmul.mubr.f32.gmra.mxu0 %v612
        %v1070 = vpop.f32.mrf.mxu0
        %v1071 = vadd.f32 %v893, %v1070
        %v1072 = vpop.f32.mrf.mxu0
        %v1073 = vadd.f32 %v895, %v1072
        %1074 = vmatprep.mubr.f32.mxu0 0.0
        %1075 = vmatmul.mubr.f32.gmra.mxu0 %v613
        %v1076 = vpop.f32.mrf.mxu0
        %v1077 = vadd.f32 %v899, %v1076
        %v1078 = vpop.f32.mrf.mxu0
        %v1079 = vadd.f32 %v901, %v1078
        %1080 = vdwg.mxu0
        %1081 = vmatprep.subr.mxu0 %v677
        %1082 = vmatpush1.msra.mxu0 %v676
        %1083 = vmatprep.subr.mxu0 %v673
        %1084 = vmatpush1.msra.mxu0 %v672
        %1085 = vmatprep.subr.mxu0 %v669
        %1086 = vmatpush1.msra.mxu0 %v668
        %1087 = vmatprep.subr.mxu0 %v665
        %1088 = vmatpush1.msra.mxu0 %v664
        %1089 = vmatprep.subr.mxu0 %v661
        %1090 = vmatpush1.msra.mxu0 %v660
        %1091 = vmatprep.subr.mxu0 %v657
        %1092 = vmatpush1.msra.mxu0 %v656
        %1093 = vmatprep.subr.mxu0 %v653
        %1094 = vmatpush1.msra.mxu0 %v652
        %1095 = vmatprep.subr.mxu0 %v649
        %1096 = vmatpush1.msra.mxu0 %v648
        %1097 = vmatprep.subr.mxu0 %v645
        %1098 = vmatpush1.msra.mxu0 %v644
        %1099 = vmatprep.subr.mxu0 %v641
        %1100 = vmatpush1.msra.mxu0 %v640
        %1101 = vmatprep.subr.mxu0 %v637
        %1102 = vmatpush1.msra.mxu0 %v636
        %1103 = vmatprep.subr.mxu0 %v633
        %1104 = vmatpush1.msra.mxu0 %v632
        %1105 = vmatprep.subr.mxu0 %v629
        %1106 = vmatpush1.msra.mxu0 %v628
        %1107 = vmatprep.subr.mxu0 %v625
        %1108 = vmatpush1.msra.mxu0 %v624
        %1109 = vmatprep.subr.mxu0 %v621
        %1110 = vmatpush1.msra.mxu0 %v620
        %1111 = vmatprep.subr.mxu0 %v617
        %1112 = vmatpush1.msra.mxu0 %v616
        %1113 = vmatprep.subr.mxu0 0.0
        %1114 = vmatpush2.msra.mxu0 0.0
        %1115 = vmatprep.subr.mxu0 0.0
        %1116 = vmatpush2.msra.mxu0 0.0
        %1117 = vmatprep.subr.mxu0 0.0
        %1118 = vmatpush2.msra.mxu0 0.0
        %1119 = vmatprep.subr.mxu0 0.0
        %1120 = vmatpush2.msra.mxu0 0.0
        %1121 = vmatprep.subr.mxu0 0.0
        %1122 = vmatpush2.msra.mxu0 0.0
        %1123 = vmatprep.subr.mxu0 0.0
        %1124 = vmatpush2.msra.mxu0 0.0
        %1125 = vmatprep.subr.mxu0 0.0
        %1126 = vmatpush2.msra.mxu0 0.0
        %1127 = vmatprep.subr.mxu0 0.0
        %1128 = vmatpush2.msra.mxu0 0.0
        %1129 = vmatprep.subr.mxu0 0.0
        %1130 = vmatpush2.msra.mxu0 0.0
        %1131 = vmatprep.subr.mxu0 0.0
        %1132 = vmatpush2.msra.mxu0 0.0
        %1133 = vmatprep.subr.mxu0 0.0
        %1134 = vmatpush2.msra.mxu0 0.0
        %1135 = vmatprep.subr.mxu0 0.0
        %1136 = vmatpush2.msra.mxu0 0.0
        %1137 = vmatprep.subr.mxu0 0.0
        %1138 = vmatpush2.msra.mxu0 0.0
        %1139 = vmatprep.subr.mxu0 0.0
        %1140 = vmatpush2.msra.mxu0 0.0
        %1141 = vmatprep.subr.mxu0 0.0
        %1142 = vmatpush2.msra.mxu0 0.0
        %1143 = vmatprep.subr.mxu0 0.0
        %1144 = vmatpush2.msra.mxu0 0.0
        %1145 = vmatprep.mubr.f32.mxu0 0.0
        %1146 = vmatmul.mubr.f32.gmra.mxu0 %v610
        %v1147 = vpop.f32.mrf.mxu0
        %v1148 = vadd.f32 %v970, %v1147
        %v1149 = vpop.f32.mrf.mxu0
        %v1150 = vadd.f32 %v972, %v1149
        %1151 = vmatprep.mubr.f32.mxu0 0.0
        %1152 = vmatmul.mubr.f32.gmra.mxu0 %v611
        %v1153 = vpop.f32.mrf.mxu0
        %v1154 = vadd.f32 %v976, %v1153
        %v1155 = vpop.f32.mrf.mxu0
        %v1156 = vadd.f32 %v978, %v1155
        %1157 = vmatprep.mubr.f32.mxu0 0.0
        %1158 = vmatmul.mubr.f32.gmra.mxu0 %v612
        %v1159 = vpop.f32.mrf.mxu0
        %v1160 = vadd.f32 %v982, %v1159
        %v1161 = vpop.f32.mrf.mxu0
        %v1162 = vadd.f32 %v984, %v1161
        %1163 = vmatprep.mubr.f32.mxu0 0.0
        %1164 = vmatmul.mubr.f32.gmra.mxu0 %v613
        %v1165 = vpop.f32.mrf.mxu0
        %v1166 = vadd.f32 %v988, %v1165
        %v1167 = vpop.f32.mrf.mxu0
        %v1168 = vadd.f32 %v990, %v1167
        %1169 = vdwg.mxu0
        %v1170 = vld [vmem:[%s585] sm:$0xff]
        %v1171 = vld [vmem:[%s585 + $0x8] sm:$0xff]
        %v1172 = vld [vmem:[%s585 + $0x10] sm:$0xff]
        %v1173 = vld [vmem:[%s585 + $0x18] sm:$0xff]
        %v1174 = vld [vmem:[#allocation10] sm:$0xff]
        %v1175 = vld [vmem:[#allocation10 + $0x8] sm:$0xff]
        %v1176 = vld [vmem:[#allocation10 + $0x10] sm:$0xff]
        %v1177 = vld [vmem:[#allocation10 + $0x18] sm:$0xff]
        %v1178 = vld [vmem:[#allocation10 + $0x20] sm:$0xff]
        %v1179 = vld [vmem:[#allocation10 + $0x28] sm:$0xff]
        %v1180 = vld [vmem:[#allocation10 + $0x30] sm:$0xff]
        %v1181 = vld [vmem:[#allocation10 + $0x38] sm:$0xff]
        %v1182 = vld [vmem:[#allocation10 + $0x40] sm:$0xff]
        %v1183 = vld [vmem:[#allocation10 + $0x48] sm:$0xff]
        %v1184 = vld [vmem:[#allocation10 + $0x50] sm:$0xff]
        %v1185 = vld [vmem:[#allocation10 + $0x58] sm:$0xff]
        %v1186 = vld [vmem:[#allocation10 + $0x60] sm:$0xff]
        %v1187 = vld [vmem:[#allocation10 + $0x68] sm:$0xff]
        %v1188 = vld [vmem:[#allocation10 + $0x70] sm:$0xff]
        %v1189 = vld [vmem:[#allocation10 + $0x78] sm:$0xff]
        %v1190 = vld [vmem:[#allocation10 + $0x80] sm:$0xff]
        %v1191 = vld [vmem:[#allocation10 + $0x88] sm:$0xff]
        %v1192 = vld [vmem:[#allocation10 + $0x90] sm:$0xff]
        %v1193 = vld [vmem:[#allocation10 + $0x98] sm:$0xff]
        %v1194 = vld [vmem:[#allocation10 + $0xa0] sm:$0xff]
        %v1195 = vld [vmem:[#allocation10 + $0xa8] sm:$0xff]
        %v1196 = vld [vmem:[#allocation10 + $0xb0] sm:$0xff]
        %v1197 = vld [vmem:[#allocation10 + $0xb8] sm:$0xff]
        %v1198 = vld [vmem:[#allocation10 + $0xc0] sm:$0xff]
        %v1199 = vld [vmem:[#allocation10 + $0xc8] sm:$0xff]
        %v1200 = vld [vmem:[#allocation10 + $0xd0] sm:$0xff]
        %v1201 = vld [vmem:[#allocation10 + $0xd8] sm:$0xff]
        %v1202 = vld [vmem:[#allocation10 + $0xe0] sm:$0xff]
        %v1203 = vld [vmem:[#allocation10 + $0xe8] sm:$0xff]
        %v1204 = vld [vmem:[#allocation10 + $0xf0] sm:$0xff]
        %v1205 = vld [vmem:[#allocation10 + $0xf8] sm:$0xff]
        %v1206 = vld [vmem:[#allocation10 + $0x100] sm:$0xff]
        %v1207 = vld [vmem:[#allocation10 + $0x108] sm:$0xff]
        %v1208 = vld [vmem:[#allocation10 + $0x110] sm:$0xff]
        %v1209 = vld [vmem:[#allocation10 + $0x118] sm:$0xff]
        %v1210 = vld [vmem:[#allocation10 + $0x120] sm:$0xff]
        %v1211 = vld [vmem:[#allocation10 + $0x128] sm:$0xff]
        %v1212 = vld [vmem:[#allocation10 + $0x130] sm:$0xff]
        %v1213 = vld [vmem:[#allocation10 + $0x138] sm:$0xff]
        %v1214 = vld [vmem:[#allocation10 + $0x140] sm:$0xff]
        %v1215 = vld [vmem:[#allocation10 + $0x148] sm:$0xff]
        %v1216 = vld [vmem:[#allocation10 + $0x150] sm:$0xff]
        %v1217 = vld [vmem:[#allocation10 + $0x158] sm:$0xff]
        %v1218 = vld [vmem:[#allocation10 + $0x160] sm:$0xff]
        %v1219 = vld [vmem:[#allocation10 + $0x168] sm:$0xff]
        %v1220 = vld [vmem:[#allocation10 + $0x170] sm:$0xff]
        %v1221 = vld [vmem:[#allocation10 + $0x178] sm:$0xff]
        %v1222 = vld [vmem:[#allocation10 + $0x180] sm:$0xff]
        %v1223 = vld [vmem:[#allocation10 + $0x188] sm:$0xff]
        %v1224 = vld [vmem:[#allocation10 + $0x190] sm:$0xff]
        %v1225 = vld [vmem:[#allocation10 + $0x198] sm:$0xff]
        %v1226 = vld [vmem:[#allocation10 + $0x1a0] sm:$0xff]
        %v1227 = vld [vmem:[#allocation10 + $0x1a8] sm:$0xff]
        %v1228 = vld [vmem:[#allocation10 + $0x1b0] sm:$0xff]
        %v1229 = vld [vmem:[#allocation10 + $0x1b8] sm:$0xff]
        %v1230 = vld [vmem:[#allocation10 + $0x1c0] sm:$0xff]
        %v1231 = vld [vmem:[#allocation10 + $0x1c8] sm:$0xff]
        %v1232 = vld [vmem:[#allocation10 + $0x1d0] sm:$0xff]
        %v1233 = vld [vmem:[#allocation10 + $0x1d8] sm:$0xff]
        %v1234 = vld [vmem:[#allocation10 + $0x1e0] sm:$0xff]
        %v1235 = vld [vmem:[#allocation10 + $0x1e8] sm:$0xff]
        %v1236 = vld [vmem:[#allocation10 + $0x1f0] sm:$0xff]
        %v1237 = vld [vmem:[#allocation10 + $0x1f8] sm:$0xff]
        %1238 = vmatprep.subr.mxu0 %v1235
        %1239 = vmatpush1.msra.mxu0 %v1234
        %1240 = vmatprep.subr.mxu0 %v1231
        %1241 = vmatpush1.msra.mxu0 %v1230
        %1242 = vmatprep.subr.mxu0 %v1227
        %1243 = vmatpush1.msra.mxu0 %v1226
        %1244 = vmatprep.subr.mxu0 %v1223
        %1245 = vmatpush1.msra.mxu0 %v1222
        %1246 = vmatprep.subr.mxu0 %v1219
        %1247 = vmatpush1.msra.mxu0 %v1218
        %1248 = vmatprep.subr.mxu0 %v1215
        %1249 = vmatpush1.msra.mxu0 %v1214
        %1250 = vmatprep.subr.mxu0 %v1211
        %1251 = vmatpush1.msra.mxu0 %v1210
        %1252 = vmatprep.subr.mxu0 %v1207
        %1253 = vmatpush1.msra.mxu0 %v1206
        %1254 = vmatprep.subr.mxu0 %v1203
        %1255 = vmatpush1.msra.mxu0 %v1202
        %1256 = vmatprep.subr.mxu0 %v1199
        %1257 = vmatpush1.msra.mxu0 %v1198
        %1258 = vmatprep.subr.mxu0 %v1195
        %1259 = vmatpush1.msra.mxu0 %v1194
        %1260 = vmatprep.subr.mxu0 %v1191
        %1261 = vmatpush1.msra.mxu0 %v1190
        %1262 = vmatprep.subr.mxu0 %v1187
        %1263 = vmatpush1.msra.mxu0 %v1186
        %1264 = vmatprep.subr.mxu0 %v1183
        %1265 = vmatpush1.msra.mxu0 %v1182
        %1266 = vmatprep.subr.mxu0 %v1179
        %1267 = vmatpush1.msra.mxu0 %v1178
        %1268 = vmatprep.subr.mxu0 %v1175
        %1269 = vmatpush1.msra.mxu0 %v1174
        %1270 = vmatprep.subr.mxu0 0.0
        %1271 = vmatpush2.msra.mxu0 0.0
        %1272 = vmatprep.subr.mxu0 0.0
        %1273 = vmatpush2.msra.mxu0 0.0
        %1274 = vmatprep.subr.mxu0 0.0
        %1275 = vmatpush2.msra.mxu0 0.0
        %1276 = vmatprep.subr.mxu0 0.0
        %1277 = vmatpush2.msra.mxu0 0.0
        %1278 = vmatprep.subr.mxu0 0.0
        %1279 = vmatpush2.msra.mxu0 0.0
        %1280 = vmatprep.subr.mxu0 0.0
        %1281 = vmatpush2.msra.mxu0 0.0
        %1282 = vmatprep.subr.mxu0 0.0
        %1283 = vmatpush2.msra.mxu0 0.0
        %1284 = vmatprep.subr.mxu0 0.0
        %1285 = vmatpush2.msra.mxu0 0.0
        %1286 = vmatprep.subr.mxu0 0.0
        %1287 = vmatpush2.msra.mxu0 0.0
        %1288 = vmatprep.subr.mxu0 0.0
        %1289 = vmatpush2.msra.mxu0 0.0
        %1290 = vmatprep.subr.mxu0 0.0
        %1291 = vmatpush2.msra.mxu0 0.0
        %1292 = vmatprep.subr.mxu0 0.0
        %1293 = vmatpush2.msra.mxu0 0.0
        %1294 = vmatprep.subr.mxu0 0.0
        %1295 = vmatpush2.msra.mxu0 0.0
        %1296 = vmatprep.subr.mxu0 0.0
        %1297 = vmatpush2.msra.mxu0 0.0
        %1298 = vmatprep.subr.mxu0 0.0
        %1299 = vmatpush2.msra.mxu0 0.0
        %1300 = vmatprep.subr.mxu0 0.0
        %1301 = vmatpush2.msra.mxu0 0.0
        %1302 = vmatprep.mubr.f32.mxu0 0.0
        %1303 = vmatmul.mubr.f32.gmra.mxu0 %v1170
        %v1304 = vpop.f32.mrf.mxu0
        %v1305 = vadd.f32 0.0, %v1304
        %v1306 = vpop.f32.mrf.mxu0
        %v1307 = vadd.f32 0.0, %v1306
        %1308 = vmatprep.mubr.f32.mxu0 0.0
        %1309 = vmatmul.mubr.f32.gmra.mxu0 %v1171
        %v1310 = vpop.f32.mrf.mxu0
        %v1311 = vadd.f32 0.0, %v1310
        %v1312 = vpop.f32.mrf.mxu0
        %v1313 = vadd.f32 0.0, %v1312
        %1314 = vmatprep.mubr.f32.mxu0 0.0
        %1315 = vmatmul.mubr.f32.gmra.mxu0 %v1172
        %v1316 = vpop.f32.mrf.mxu0
        %v1317 = vadd.f32 0.0, %v1316
        %v1318 = vpop.f32.mrf.mxu0
        %v1319 = vadd.f32 0.0, %v1318
        %1320 = vmatprep.mubr.f32.mxu0 0.0
        %1321 = vmatmul.mubr.f32.gmra.mxu0 %v1173
        %v1322 = vpop.f32.mrf.mxu0
        %v1323 = vadd.f32 0.0, %v1322
        %v1324 = vpop.f32.mrf.mxu0
        %v1325 = vadd.f32 0.0, %v1324
        %1326 = vdwg.mxu0
        %1327 = vmatprep.subr.mxu0 %v1237
        %1328 = vmatpush1.msra.mxu0 %v1236
        %1329 = vmatprep.subr.mxu0 %v1233
        %1330 = vmatpush1.msra.mxu0 %v1232
        %1331 = vmatprep.subr.mxu0 %v1229
        %1332 = vmatpush1.msra.mxu0 %v1228
        %1333 = vmatprep.subr.mxu0 %v1225
        %1334 = vmatpush1.msra.mxu0 %v1224
        %1335 = vmatprep.subr.mxu0 %v1221
        %1336 = vmatpush1.msra.mxu0 %v1220
        %1337 = vmatprep.subr.mxu0 %v1217
        %1338 = vmatpush1.msra.mxu0 %v1216
        %1339 = vmatprep.subr.mxu0 %v1213
        %1340 = vmatpush1.msra.mxu0 %v1212
        %1341 = vmatprep.subr.mxu0 %v1209
        %1342 = vmatpush1.msra.mxu0 %v1208
        %1343 = vmatprep.subr.mxu0 %v1205
        %1344 = vmatpush1.msra.mxu0 %v1204
        %1345 = vmatprep.subr.mxu0 %v1201
        %1346 = vmatpush1.msra.mxu0 %v1200
        %1347 = vmatprep.subr.mxu0 %v1197
        %1348 = vmatpush1.msra.mxu0 %v1196
        %1349 = vmatprep.subr.mxu0 %v1193
        %1350 = vmatpush1.msra.mxu0 %v1192
        %1351 = vmatprep.subr.mxu0 %v1189
        %1352 = vmatpush1.msra.mxu0 %v1188
        %1353 = vmatprep.subr.mxu0 %v1185
        %1354 = vmatpush1.msra.mxu0 %v1184
        %1355 = vmatprep.subr.mxu0 %v1181
        %1356 = vmatpush1.msra.mxu0 %v1180
        %1357 = vmatprep.subr.mxu0 %v1177
        %1358 = vmatpush1.msra.mxu0 %v1176
        %1359 = vmatprep.subr.mxu0 0.0
        %1360 = vmatpush2.msra.mxu0 0.0
        %1361 = vmatprep.subr.mxu0 0.0
        %1362 = vmatpush2.msra.mxu0 0.0
        %1363 = vmatprep.subr.mxu0 0.0
        %1364 = vmatpush2.msra.mxu0 0.0
        %1365 = vmatprep.subr.mxu0 0.0
        %1366 = vmatpush2.msra.mxu0 0.0
        %1367 = vmatprep.subr.mxu0 0.0
        %1368 = vmatpush2.msra.mxu0 0.0
        %1369 = vmatprep.subr.mxu0 0.0
        %1370 = vmatpush2.msra.mxu0 0.0
        %1371 = vmatprep.subr.mxu0 0.0
        %1372 = vmatpush2.msra.mxu0 0.0
        %1373 = vmatprep.subr.mxu0 0.0
        %1374 = vmatpush2.msra.mxu0 0.0
        %1375 = vmatprep.subr.mxu0 0.0
        %1376 = vmatpush2.msra.mxu0 0.0
        %1377 = vmatprep.subr.mxu0 0.0
        %1378 = vmatpush2.msra.mxu0 0.0
        %1379 = vmatprep.subr.mxu0 0.0
        %1380 = vmatpush2.msra.mxu0 0.0
        %1381 = vmatprep.subr.mxu0 0.0
        %1382 = vmatpush2.msra.mxu0 0.0
        %1383 = vmatprep.subr.mxu0 0.0
        %1384 = vmatpush2.msra.mxu0 0.0
        %1385 = vmatprep.subr.mxu0 0.0
        %1386 = vmatpush2.msra.mxu0 0.0
        %1387 = vmatprep.subr.mxu0 0.0
        %1388 = vmatpush2.msra.mxu0 0.0
        %1389 = vmatprep.subr.mxu0 0.0
        %1390 = vmatpush2.msra.mxu0 0.0
        %1391 = vmatprep.mubr.f32.mxu0 0.0
        %1392 = vmatmul.mubr.f32.gmra.mxu0 %v1170
        %v1393 = vpop.f32.mrf.mxu0
        %v1394 = vadd.f32 0.0, %v1393
        %v1395 = vpop.f32.mrf.mxu0
        %v1396 = vadd.f32 0.0, %v1395
        %1397 = vmatprep.mubr.f32.mxu0 0.0
        %1398 = vmatmul.mubr.f32.gmra.mxu0 %v1171
        %v1399 = vpop.f32.mrf.mxu0
        %v1400 = vadd.f32 0.0, %v1399
        %v1401 = vpop.f32.mrf.mxu0
        %v1402 = vadd.f32 0.0, %v1401
        %1403 = vmatprep.mubr.f32.mxu0 0.0
        %1404 = vmatmul.mubr.f32.gmra.mxu0 %v1172
        %v1405 = vpop.f32.mrf.mxu0
        %v1406 = vadd.f32 0.0, %v1405
        %v1407 = vpop.f32.mrf.mxu0
        %v1408 = vadd.f32 0.0, %v1407
        %1409 = vmatprep.mubr.f32.mxu0 0.0
        %1410 = vmatmul.mubr.f32.gmra.mxu0 %v1173
        %v1411 = vpop.f32.mrf.mxu0
        %v1412 = vadd.f32 0.0, %v1411
        %v1413 = vpop.f32.mrf.mxu0
        %v1414 = vadd.f32 0.0, %v1413
        %1415 = vdwg.mxu0
        %1416 = vmatprep.subr.mxu0 %v743
        %1417 = vmatpush1.msra.mxu0 %v742
        %1418 = vmatprep.subr.mxu0 %v739
        %1419 = vmatpush1.msra.mxu0 %v738
        %1420 = vmatprep.subr.mxu0 %v735
        %1421 = vmatpush1.msra.mxu0 %v734
        %1422 = vmatprep.subr.mxu0 %v731
        %1423 = vmatpush1.msra.mxu0 %v730
        %1424 = vmatprep.subr.mxu0 %v727
        %1425 = vmatpush1.msra.mxu0 %v726
        %1426 = vmatprep.subr.mxu0 %v723
        %1427 = vmatpush1.msra.mxu0 %v722
        %1428 = vmatprep.subr.mxu0 %v719
        %1429 = vmatpush1.msra.mxu0 %v718
        %1430 = vmatprep.subr.mxu0 %v715
        %1431 = vmatpush1.msra.mxu0 %v714
        %1432 = vmatprep.subr.mxu0 %v711
        %1433 = vmatpush1.msra.mxu0 %v710
        %1434 = vmatprep.subr.mxu0 %v707
        %1435 = vmatpush1.msra.mxu0 %v706
        %1436 = vmatprep.subr.mxu0 %v703
        %1437 = vmatpush1.msra.mxu0 %v702
        %1438 = vmatprep.subr.mxu0 %v699
        %1439 = vmatpush1.msra.mxu0 %v698
        %1440 = vmatprep.subr.mxu0 %v695
        %1441 = vmatpush1.msra.mxu0 %v694
        %1442 = vmatprep.subr.mxu0 %v691
        %1443 = vmatpush1.msra.mxu0 %v690
        %1444 = vmatprep.subr.mxu0 %v687
        %1445 = vmatpush1.msra.mxu0 %v686
        %1446 = vmatprep.subr.mxu0 %v683
        %1447 = vmatpush1.msra.mxu0 %v682
        %1448 = vmatprep.subr.mxu0 0.0
        %1449 = vmatpush2.msra.mxu0 0.0
        %1450 = vmatprep.subr.mxu0 0.0
        %1451 = vmatpush2.msra.mxu0 0.0
        %1452 = vmatprep.subr.mxu0 0.0
        %1453 = vmatpush2.msra.mxu0 0.0
        %1454 = vmatprep.subr.mxu0 0.0
        %1455 = vmatpush2.msra.mxu0 0.0
        %1456 = vmatprep.subr.mxu0 0.0
        %1457 = vmatpush2.msra.mxu0 0.0
        %1458 = vmatprep.subr.mxu0 0.0
        %1459 = vmatpush2.msra.mxu0 0.0
        %1460 = vmatprep.subr.mxu0 0.0
        %1461 = vmatpush2.msra.mxu0 0.0
        %1462 = vmatprep.subr.mxu0 0.0
        %1463 = vmatpush2.msra.mxu0 0.0
        %1464 = vmatprep.subr.mxu0 0.0
        %1465 = vmatpush2.msra.mxu0 0.0
        %1466 = vmatprep.subr.mxu0 0.0
        %1467 = vmatpush2.msra.mxu0 0.0
        %1468 = vmatprep.subr.mxu0 0.0
        %1469 = vmatpush2.msra.mxu0 0.0
        %1470 = vmatprep.subr.mxu0 0.0
        %1471 = vmatpush2.msra.mxu0 0.0
        %1472 = vmatprep.subr.mxu0 0.0
        %1473 = vmatpush2.msra.mxu0 0.0
        %1474 = vmatprep.subr.mxu0 0.0
        %1475 = vmatpush2.msra.mxu0 0.0
        %1476 = vmatprep.subr.mxu0 0.0
        %1477 = vmatpush2.msra.mxu0 0.0
        %1478 = vmatprep.subr.mxu0 0.0
        %1479 = vmatpush2.msra.mxu0 0.0
        %1480 = vmatprep.mubr.f32.mxu0 0.0
        %1481 = vmatmul.mubr.f32.gmra.mxu0 %v678
        %v1482 = vpop.f32.mrf.mxu0
        %v1483 = vadd.f32 %v1305, %v1482
        %v1484 = vpop.f32.mrf.mxu0
        %v1485 = vadd.f32 %v1307, %v1484
        %1486 = vmatprep.mubr.f32.mxu0 0.0
        %1487 = vmatmul.mubr.f32.gmra.mxu0 %v679
        %v1488 = vpop.f32.mrf.mxu0
        %v1489 = vadd.f32 %v1311, %v1488
        %v1490 = vpop.f32.mrf.mxu0
        %v1491 = vadd.f32 %v1313, %v1490
        %1492 = vmatprep.mubr.f32.mxu0 0.0
        %1493 = vmatmul.mubr.f32.gmra.mxu0 %v680
        %v1494 = vpop.f32.mrf.mxu0
        %v1495 = vadd.f32 %v1317, %v1494
        %v1496 = vpop.f32.mrf.mxu0
        %v1497 = vadd.f32 %v1319, %v1496
        %1498 = vmatprep.mubr.f32.mxu0 0.0
        %1499 = vmatmul.mubr.f32.gmra.mxu0 %v681
        %v1500 = vpop.f32.mrf.mxu0
        %v1501 = vadd.f32 %v1323, %v1500
        %v1502 = vpop.f32.mrf.mxu0
        %v1503 = vadd.f32 %v1325, %v1502
        %1504 = vdwg.mxu0
        %1505 = vmatprep.subr.mxu0 %v745
        %1506 = vmatpush1.msra.mxu0 %v744
        %1507 = vmatprep.subr.mxu0 %v741
        %1508 = vmatpush1.msra.mxu0 %v740
        %1509 = vmatprep.subr.mxu0 %v737
        %1510 = vmatpush1.msra.mxu0 %v736
        %1511 = vmatprep.subr.mxu0 %v733
        %1512 = vmatpush1.msra.mxu0 %v732
        %1513 = vmatprep.subr.mxu0 %v729
        %1514 = vmatpush1.msra.mxu0 %v728
        %1515 = vmatprep.subr.mxu0 %v725
        %1516 = vmatpush1.msra.mxu0 %v724
        %1517 = vmatprep.subr.mxu0 %v721
        %1518 = vmatpush1.msra.mxu0 %v720
        %1519 = vmatprep.subr.mxu0 %v717
        %1520 = vmatpush1.msra.mxu0 %v716
        %1521 = vmatprep.subr.mxu0 %v713
        %1522 = vmatpush1.msra.mxu0 %v712
        %1523 = vmatprep.subr.mxu0 %v709
        %1524 = vmatpush1.msra.mxu0 %v708
        %1525 = vmatprep.subr.mxu0 %v705
        %1526 = vmatpush1.msra.mxu0 %v704
        %1527 = vmatprep.subr.mxu0 %v701
        %1528 = vmatpush1.msra.mxu0 %v700
        %1529 = vmatprep.subr.mxu0 %v697
        %1530 = vmatpush1.msra.mxu0 %v696
        %1531 = vmatprep.subr.mxu0 %v693
        %1532 = vmatpush1.msra.mxu0 %v692
        %1533 = vmatprep.subr.mxu0 %v689
        %1534 = vmatpush1.msra.mxu0 %v688
        %1535 = vmatprep.subr.mxu0 %v685
        %1536 = vmatpush1.msra.mxu0 %v684
        %1537 = vmatprep.subr.mxu0 0.0
        %1538 = vmatpush2.msra.mxu0 0.0
        %1539 = vmatprep.subr.mxu0 0.0
        %1540 = vmatpush2.msra.mxu0 0.0
        %1541 = vmatprep.subr.mxu0 0.0
        %1542 = vmatpush2.msra.mxu0 0.0
        %1543 = vmatprep.subr.mxu0 0.0
        %1544 = vmatpush2.msra.mxu0 0.0
        %1545 = vmatprep.subr.mxu0 0.0
        %1546 = vmatpush2.msra.mxu0 0.0
        %1547 = vmatprep.subr.mxu0 0.0
        %1548 = vmatpush2.msra.mxu0 0.0
        %1549 = vmatprep.subr.mxu0 0.0
        %1550 = vmatpush2.msra.mxu0 0.0
        %1551 = vmatprep.subr.mxu0 0.0
        %1552 = vmatpush2.msra.mxu0 0.0
        %1553 = vmatprep.subr.mxu0 0.0
        %1554 = vmatpush2.msra.mxu0 0.0
        %1555 = vmatprep.subr.mxu0 0.0
        %1556 = vmatpush2.msra.mxu0 0.0
        %1557 = vmatprep.subr.mxu0 0.0
        %1558 = vmatpush2.msra.mxu0 0.0
        %1559 = vmatprep.subr.mxu0 0.0
        %1560 = vmatpush2.msra.mxu0 0.0
        %1561 = vmatprep.subr.mxu0 0.0
        %1562 = vmatpush2.msra.mxu0 0.0
        %1563 = vmatprep.subr.mxu0 0.0
        %1564 = vmatpush2.msra.mxu0 0.0
        %1565 = vmatprep.subr.mxu0 0.0
        %1566 = vmatpush2.msra.mxu0 0.0
        %1567 = vmatprep.subr.mxu0 0.0
        %1568 = vmatpush2.msra.mxu0 0.0
        %1569 = vmatprep.mubr.f32.mxu0 0.0
        %1570 = vmatmul.mubr.f32.gmra.mxu0 %v678
        %v1571 = vpop.f32.mrf.mxu0
        %v1572 = vadd.f32 %v1394, %v1571
        %v1573 = vpop.f32.mrf.mxu0
        %v1574 = vadd.f32 %v1396, %v1573
        %1575 = vmatprep.mubr.f32.mxu0 0.0
        %1576 = vmatmul.mubr.f32.gmra.mxu0 %v679
        %v1577 = vpop.f32.mrf.mxu0
        %v1578 = vadd.f32 %v1400, %v1577
        %v1579 = vpop.f32.mrf.mxu0
        %v1580 = vadd.f32 %v1402, %v1579
        %1581 = vmatprep.mubr.f32.mxu0 0.0
        %1582 = vmatmul.mubr.f32.gmra.mxu0 %v680
        %v1583 = vpop.f32.mrf.mxu0
        %v1584 = vadd.f32 %v1406, %v1583
        %v1585 = vpop.f32.mrf.mxu0
        %v1586 = vadd.f32 %v1408, %v1585
        %1587 = vmatprep.mubr.f32.mxu0 0.0
        %1588 = vmatmul.mubr.f32.gmra.mxu0 %v681
        %v1589 = vpop.f32.mrf.mxu0
        %v1590 = vadd.f32 %v1412, %v1589
        %v1591 = vpop.f32.mrf.mxu0
        %v1592 = vadd.f32 %v1414, %v1591
        %1593 = vdwg.mxu0
        %v1594 = vld [vmem:[%s10] sm:$0xf]
        %v1596 = vlaneseq
        %v1597 = vshrl.u32 %v1596, 7
        %v1598 = vsub.s32 0, %v1597
        %v1599 = vrot.slane %v1594, %v1598
        %v1600 = vlaneseq
        %v1601 = vshrl.u32 %v1600, 7
        %v1602 = vsub.s32 1, %v1601
        %v1603 = vrot.slane %v1594, %v1602
        %v1604 = vlaneseq
        %v1605 = vshrl.u32 %v1604, 7
        %v1606 = vsub.s32 2, %v1605
        %v1607 = vrot.slane %v1594, %v1606
        %v1608 = vlaneseq
        %v1609 = vshrl.u32 %v1608, 7
        %v1610 = vsub.s32 3, %v1609
        %v1611 = vrot.slane %v1594, %v1610
        %v1616 = vadd.f32 %v1059, %v1599
        %v1617 = vadd.f32 %v1061, %v1603
        %v1618 = vadd.f32 %v1148, %v1607
        %v1619 = vadd.f32 %v1150, %v1611
        %v1620 = vadd.f32 %v1065, %v1599
        %v1621 = vadd.f32 %v1067, %v1603
        %v1622 = vadd.f32 %v1154, %v1607
        %v1623 = vadd.f32 %v1156, %v1611
        %v1624 = vadd.f32 %v1071, %v1599
        %v1625 = vadd.f32 %v1073, %v1603
        %v1626 = vadd.f32 %v1160, %v1607
        %v1627 = vadd.f32 %v1162, %v1611
        %v1628 = vadd.f32 %v1077, %v1599
        %v1629 = vadd.f32 %v1079, %v1603
        %v1630 = vadd.f32 %v1166, %v1607
        %v1631 = vadd.f32 %v1168, %v1611
        %1632 = vst [vmem:[#allocation2] sm:$0xff] %v1616
        %1633 = vst [vmem:[#allocation2 + $0x8] sm:$0xff] %v1617
        %1634 = vst [vmem:[#allocation2 + $0x10] sm:$0xff] %v1618
        %1635 = vst [vmem:[#allocation2 + $0x18] sm:$0xff] %v1619
        %1636 = vst [vmem:[#allocation2 + $0x20] sm:$0xff] %v1620
        %1637 = vst [vmem:[#allocation2 + $0x28] sm:$0xff] %v1621
        %1638 = vst [vmem:[#allocation2 + $0x30] sm:$0xff] %v1622
        %1639 = vst [vmem:[#allocation2 + $0x38] sm:$0xff] %v1623
        %1640 = vst [vmem:[#allocation2 + $0x40] sm:$0xff] %v1624
        %1641 = vst [vmem:[#allocation2 + $0x48] sm:$0xff] %v1625
        %1642 = vst [vmem:[#allocation2 + $0x50] sm:$0xff] %v1626
        %1643 = vst [vmem:[#allocation2 + $0x58] sm:$0xff] %v1627
        %1644 = vst [vmem:[#allocation2 + $0x60] sm:$0xff] %v1628
        %1645 = vst [vmem:[#allocation2 + $0x68] sm:$0xff] %v1629
        %1646 = vst [vmem:[#allocation2 + $0x70] sm:$0xff] %v1630
        %1647 = vst [vmem:[#allocation2 + $0x78] sm:$0xff] %v1631
        %v1648 = vld [vmem:[%s11] sm:$0xf]
        %v1650 = vlaneseq
        %v1651 = vshrl.u32 %v1650, 7
        %v1652 = vsub.s32 0, %v1651
        %v1653 = vrot.slane %v1648, %v1652
        %v1654 = vlaneseq
        %v1655 = vshrl.u32 %v1654, 7
        %v1656 = vsub.s32 1, %v1655
        %v1657 = vrot.slane %v1648, %v1656
        %v1658 = vlaneseq
        %v1659 = vshrl.u32 %v1658, 7
        %v1660 = vsub.s32 2, %v1659
        %v1661 = vrot.slane %v1648, %v1660
        %v1662 = vlaneseq
        %v1663 = vshrl.u32 %v1662, 7
        %v1664 = vsub.s32 3, %v1663
        %v1665 = vrot.slane %v1648, %v1664
        %v1670 = vadd.f32 %v1483, %v1653
        %v1671 = vadd.f32 %v1485, %v1657
        %v1672 = vadd.f32 %v1572, %v1661
        %v1673 = vadd.f32 %v1574, %v1665
        %v1674 = vadd.f32 %v1489, %v1653
        %v1675 = vadd.f32 %v1491, %v1657
        %v1676 = vadd.f32 %v1578, %v1661
        %v1677 = vadd.f32 %v1580, %v1665
        %v1678 = vadd.f32 %v1495, %v1653
        %v1679 = vadd.f32 %v1497, %v1657
        %v1680 = vadd.f32 %v1584, %v1661
        %v1681 = vadd.f32 %v1586, %v1665
        %v1682 = vadd.f32 %v1501, %v1653
        %v1683 = vadd.f32 %v1503, %v1657
        %v1684 = vadd.f32 %v1590, %v1661
        %v1685 = vadd.f32 %v1592, %v1665
        %1686 = vst [vmem:[#allocation3] sm:$0xff] %v1670
        %1687 = vst [vmem:[#allocation3 + $0x8] sm:$0xff] %v1671
        %1688 = vst [vmem:[#allocation3 + $0x10] sm:$0xff] %v1672
        %1689 = vst [vmem:[#allocation3 + $0x18] sm:$0xff] %v1673
        %1690 = vst [vmem:[#allocation3 + $0x20] sm:$0xff] %v1674
        %1691 = vst [vmem:[#allocation3 + $0x28] sm:$0xff] %v1675
        %1692 = vst [vmem:[#allocation3 + $0x30] sm:$0xff] %v1676
        %1693 = vst [vmem:[#allocation3 + $0x38] sm:$0xff] %v1677
        %1694 = vst [vmem:[#allocation3 + $0x40] sm:$0xff] %v1678
        %1695 = vst [vmem:[#allocation3 + $0x48] sm:$0xff] %v1679
        %1696 = vst [vmem:[#allocation3 + $0x50] sm:$0xff] %v1680
        %1697 = vst [vmem:[#allocation3 + $0x58] sm:$0xff] %v1681
        %1698 = vst [vmem:[#allocation3 + $0x60] sm:$0xff] %v1682
        %1699 = vst [vmem:[#allocation3 + $0x68] sm:$0xff] %v1683
        %1700 = vst [vmem:[#allocation3 + $0x70] sm:$0xff] %v1684
        %1701 = vst [vmem:[#allocation3 + $0x78] sm:$0xff] %v1685
        %v1702 = vld [vmem:[#allocation12] sm:$0xff]
        %v1703 = vld [vmem:[#allocation12 + $0x8] sm:$0xff]
        %v1704 = vld [vmem:[#allocation12 + $0x10] sm:$0xff]
        %v1705 = vld [vmem:[#allocation12 + $0x18] sm:$0xff]
        %v1706 = vld [vmem:[#allocation12 + $0x20] sm:$0xff]
        %v1707 = vld [vmem:[#allocation12 + $0x28] sm:$0xff]
        %v1708 = vld [vmem:[#allocation12 + $0x30] sm:$0xff]
        %v1709 = vld [vmem:[#allocation12 + $0x38] sm:$0xff]
        %v1710 = vld [vmem:[#allocation12 + $0x40] sm:$0xff]
        %v1711 = vld [vmem:[#allocation12 + $0x48] sm:$0xff]
        %v1712 = vld [vmem:[#allocation12 + $0x50] sm:$0xff]
        %v1713 = vld [vmem:[#allocation12 + $0x58] sm:$0xff]
        %v1714 = vld [vmem:[#allocation12 + $0x60] sm:$0xff]
        %v1715 = vld [vmem:[#allocation12 + $0x68] sm:$0xff]
        %v1716 = vld [vmem:[#allocation12 + $0x70] sm:$0xff]
        %v1717 = vld [vmem:[#allocation12 + $0x78] sm:$0xff]
        %v1718 = vld [vmem:[#allocation12 + $0x80] sm:$0xff]
        %v1719 = vld [vmem:[#allocation12 + $0x88] sm:$0xff]
        %v1720 = vld [vmem:[#allocation12 + $0x90] sm:$0xff]
        %v1721 = vld [vmem:[#allocation12 + $0x98] sm:$0xff]
        %v1722 = vld [vmem:[#allocation12 + $0xa0] sm:$0xff]
        %v1723 = vld [vmem:[#allocation12 + $0xa8] sm:$0xff]
        %v1724 = vld [vmem:[#allocation12 + $0xb0] sm:$0xff]
        %v1725 = vld [vmem:[#allocation12 + $0xb8] sm:$0xff]
        %v1726 = vld [vmem:[#allocation12 + $0xc0] sm:$0xff]
        %v1727 = vld [vmem:[#allocation12 + $0xc8] sm:$0xff]
        %v1728 = vld [vmem:[#allocation12 + $0xd0] sm:$0xff]
        %v1729 = vld [vmem:[#allocation12 + $0xd8] sm:$0xff]
        %v1730 = vld [vmem:[#allocation12 + $0xe0] sm:$0xff]
        %v1731 = vld [vmem:[#allocation12 + $0xe8] sm:$0xff]
        %v1732 = vld [vmem:[#allocation12 + $0xf0] sm:$0xff]
        %v1733 = vld [vmem:[#allocation12 + $0xf8] sm:$0xff]
        %v1734 = vld [vmem:[#allocation12 + $0x100] sm:$0xff]
        %v1735 = vld [vmem:[#allocation12 + $0x108] sm:$0xff]
        %v1736 = vld [vmem:[#allocation12 + $0x110] sm:$0xff]
        %v1737 = vld [vmem:[#allocation12 + $0x118] sm:$0xff]
        %v1738 = vld [vmem:[#allocation12 + $0x120] sm:$0xff]
        %v1739 = vld [vmem:[#allocation12 + $0x128] sm:$0xff]
        %v1740 = vld [vmem:[#allocation12 + $0x130] sm:$0xff]
        %v1741 = vld [vmem:[#allocation12 + $0x138] sm:$0xff]
        %v1742 = vld [vmem:[#allocation12 + $0x140] sm:$0xff]
        %v1743 = vld [vmem:[#allocation12 + $0x148] sm:$0xff]
        %v1744 = vld [vmem:[#allocation12 + $0x150] sm:$0xff]
        %v1745 = vld [vmem:[#allocation12 + $0x158] sm:$0xff]
        %v1746 = vld [vmem:[#allocation12 + $0x160] sm:$0xff]
        %v1747 = vld [vmem:[#allocation12 + $0x168] sm:$0xff]
        %v1748 = vld [vmem:[#allocation12 + $0x170] sm:$0xff]
        %v1749 = vld [vmem:[#allocation12 + $0x178] sm:$0xff]
        %v1750 = vld [vmem:[#allocation12 + $0x180] sm:$0xff]
        %v1751 = vld [vmem:[#allocation12 + $0x188] sm:$0xff]
        %v1752 = vld [vmem:[#allocation12 + $0x190] sm:$0xff]
        %v1753 = vld [vmem:[#allocation12 + $0x198] sm:$0xff]
        %v1754 = vld [vmem:[#allocation12 + $0x1a0] sm:$0xff]
        %v1755 = vld [vmem:[#allocation12 + $0x1a8] sm:$0xff]
        %v1756 = vld [vmem:[#allocation12 + $0x1b0] sm:$0xff]
        %v1757 = vld [vmem:[#allocation12 + $0x1b8] sm:$0xff]
        %v1758 = vld [vmem:[#allocation12 + $0x1c0] sm:$0xff]
        %v1759 = vld [vmem:[#allocation12 + $0x1c8] sm:$0xff]
        %v1760 = vld [vmem:[#allocation12 + $0x1d0] sm:$0xff]
        %v1761 = vld [vmem:[#allocation12 + $0x1d8] sm:$0xff]
        %v1762 = vld [vmem:[#allocation12 + $0x1e0] sm:$0xff]
        %v1763 = vld [vmem:[#allocation12 + $0x1e8] sm:$0xff]
        %v1764 = vld [vmem:[#allocation12 + $0x1f0] sm:$0xff]
        %v1765 = vld [vmem:[#allocation12 + $0x1f8] sm:$0xff]
        %v1766 = vld [vmem:[#allocation13] sm:$0xff]
        %v1767 = vld [vmem:[#allocation13 + $0x8] sm:$0xff]
        %v1768 = vld [vmem:[#allocation13 + $0x10] sm:$0xff]
        %v1769 = vld [vmem:[#allocation13 + $0x18] sm:$0xff]
        %v1770 = vld [vmem:[#allocation13 + $0x20] sm:$0xff]
        %v1771 = vld [vmem:[#allocation13 + $0x28] sm:$0xff]
        %v1772 = vld [vmem:[#allocation13 + $0x30] sm:$0xff]
        %v1773 = vld [vmem:[#allocation13 + $0x38] sm:$0xff]
        %v1774 = vld [vmem:[#allocation13 + $0x40] sm:$0xff]
        %v1775 = vld [vmem:[#allocation13 + $0x48] sm:$0xff]
        %v1776 = vld [vmem:[#allocation13 + $0x50] sm:$0xff]
        %v1777 = vld [vmem:[#allocation13 + $0x58] sm:$0xff]
        %v1778 = vld [vmem:[#allocation13 + $0x60] sm:$0xff]
        %v1779 = vld [vmem:[#allocation13 + $0x68] sm:$0xff]
        %v1780 = vld [vmem:[#allocation13 + $0x70] sm:$0xff]
        %v1781 = vld [vmem:[#allocation13 + $0x78] sm:$0xff]
        %v1782 = vld [vmem:[#allocation13 + $0x80] sm:$0xff]
        %v1783 = vld [vmem:[#allocation13 + $0x88] sm:$0xff]
        %v1784 = vld [vmem:[#allocation13 + $0x90] sm:$0xff]
        %v1785 = vld [vmem:[#allocation13 + $0x98] sm:$0xff]
        %v1786 = vld [vmem:[#allocation13 + $0xa0] sm:$0xff]
        %v1787 = vld [vmem:[#allocation13 + $0xa8] sm:$0xff]
        %v1788 = vld [vmem:[#allocation13 + $0xb0] sm:$0xff]
        %v1789 = vld [vmem:[#allocation13 + $0xb8] sm:$0xff]
        %v1790 = vld [vmem:[#allocation13 + $0xc0] sm:$0xff]
        %v1791 = vld [vmem:[#allocation13 + $0xc8] sm:$0xff]
        %v1792 = vld [vmem:[#allocation13 + $0xd0] sm:$0xff]
        %v1793 = vld [vmem:[#allocation13 + $0xd8] sm:$0xff]
        %v1794 = vld [vmem:[#allocation13 + $0xe0] sm:$0xff]
        %v1795 = vld [vmem:[#allocation13 + $0xe8] sm:$0xff]
        %v1796 = vld [vmem:[#allocation13 + $0xf0] sm:$0xff]
        %v1797 = vld [vmem:[#allocation13 + $0xf8] sm:$0xff]
        %v1798 = vld [vmem:[#allocation13 + $0x100] sm:$0xff]
        %v1799 = vld [vmem:[#allocation13 + $0x108] sm:$0xff]
        %v1800 = vld [vmem:[#allocation13 + $0x110] sm:$0xff]
        %v1801 = vld [vmem:[#allocation13 + $0x118] sm:$0xff]
        %v1802 = vld [vmem:[#allocation13 + $0x120] sm:$0xff]
        %v1803 = vld [vmem:[#allocation13 + $0x128] sm:$0xff]
        %v1804 = vld [vmem:[#allocation13 + $0x130] sm:$0xff]
        %v1805 = vld [vmem:[#allocation13 + $0x138] sm:$0xff]
        %v1806 = vld [vmem:[#allocation13 + $0x140] sm:$0xff]
        %v1807 = vld [vmem:[#allocation13 + $0x148] sm:$0xff]
        %v1808 = vld [vmem:[#allocation13 + $0x150] sm:$0xff]
        %v1809 = vld [vmem:[#allocation13 + $0x158] sm:$0xff]
        %v1810 = vld [vmem:[#allocation13 + $0x160] sm:$0xff]
        %v1811 = vld [vmem:[#allocation13 + $0x168] sm:$0xff]
        %v1812 = vld [vmem:[#allocation13 + $0x170] sm:$0xff]
        %v1813 = vld [vmem:[#allocation13 + $0x178] sm:$0xff]
        %v1814 = vld [vmem:[#allocation13 + $0x180] sm:$0xff]
        %v1815 = vld [vmem:[#allocation13 + $0x188] sm:$0xff]
        %v1816 = vld [vmem:[#allocation13 + $0x190] sm:$0xff]
        %v1817 = vld [vmem:[#allocation13 + $0x198] sm:$0xff]
        %v1818 = vld [vmem:[#allocation13 + $0x1a0] sm:$0xff]
        %v1819 = vld [vmem:[#allocation13 + $0x1a8] sm:$0xff]
        %v1820 = vld [vmem:[#allocation13 + $0x1b0] sm:$0xff]
        %v1821 = vld [vmem:[#allocation13 + $0x1b8] sm:$0xff]
        %v1822 = vld [vmem:[#allocation13 + $0x1c0] sm:$0xff]
        %v1823 = vld [vmem:[#allocation13 + $0x1c8] sm:$0xff]
        %v1824 = vld [vmem:[#allocation13 + $0x1d0] sm:$0xff]
        %v1825 = vld [vmem:[#allocation13 + $0x1d8] sm:$0xff]
        %v1826 = vld [vmem:[#allocation13 + $0x1e0] sm:$0xff]
        %v1827 = vld [vmem:[#allocation13 + $0x1e8] sm:$0xff]
        %v1828 = vld [vmem:[#allocation13 + $0x1f0] sm:$0xff]
        %v1829 = vld [vmem:[#allocation13 + $0x1f8] sm:$0xff]
        %s1830 = smul.u32 0, 4
        %s1831 = smul.addr %s1830, 8
        %s1832 = scalar_lea.vmem [#allocation2], %s1831
        %v1833 = vld [vmem:[%s1832] sm:$0xff]
        %v1834 = vld [vmem:[%s1832 + $0x8] sm:$0xff]
        %v1835 = vld [vmem:[%s1832 + $0x10] sm:$0xff]
        %v1836 = vld [vmem:[%s1832 + $0x18] sm:$0xff]
        %v1837 = vld [vmem:[#allocation4] sm:$0xff]
        %1838 = vmatprep.subr.mxu0 %v1763
        %1839 = vmatpush1.msra.mxu0 %v1762
        %1840 = vmatprep.subr.mxu0 %v1759
        %1841 = vmatpush1.msra.mxu0 %v1758
        %1842 = vmatprep.subr.mxu0 %v1755
        %1843 = vmatpush1.msra.mxu0 %v1754
        %1844 = vmatprep.subr.mxu0 %v1751
        %1845 = vmatpush1.msra.mxu0 %v1750
        %1846 = vmatprep.subr.mxu0 %v1747
        %1847 = vmatpush1.msra.mxu0 %v1746
        %1848 = vmatprep.subr.mxu0 %v1743
        %1849 = vmatpush1.msra.mxu0 %v1742
        %1850 = vmatprep.subr.mxu0 %v1739
        %1851 = vmatpush1.msra.mxu0 %v1738
        %1852 = vmatprep.subr.mxu0 %v1735
        %1853 = vmatpush1.msra.mxu0 %v1734
        %1854 = vmatprep.subr.mxu0 %v1731
        %1855 = vmatpush1.msra.mxu0 %v1730
        %1856 = vmatprep.subr.mxu0 %v1727
        %1857 = vmatpush1.msra.mxu0 %v1726
        %1858 = vmatprep.subr.mxu0 %v1723
        %1859 = vmatpush1.msra.mxu0 %v1722
        %1860 = vmatprep.subr.mxu0 %v1719
        %1861 = vmatpush1.msra.mxu0 %v1718
        %1862 = vmatprep.subr.mxu0 %v1715
        %1863 = vmatpush1.msra.mxu0 %v1714
        %1864 = vmatprep.subr.mxu0 %v1711
        %1865 = vmatpush1.msra.mxu0 %v1710
        %1866 = vmatprep.subr.mxu0 %v1707
        %1867 = vmatpush1.msra.mxu0 %v1706
        %1868 = vmatprep.subr.mxu0 %v1703
        %1869 = vmatpush1.msra.mxu0 %v1702
        %1870 = vmatprep.subr.mxu0 0.0
        %1871 = vmatpush2.msra.mxu0 0.0
        %1872 = vmatprep.subr.mxu0 0.0
        %1873 = vmatpush2.msra.mxu0 0.0
        %1874 = vmatprep.subr.mxu0 0.0
        %1875 = vmatpush2.msra.mxu0 0.0
        %1876 = vmatprep.subr.mxu0 0.0
        %1877 = vmatpush2.msra.mxu0 0.0
        %1878 = vmatprep.subr.mxu0 0.0
        %1879 = vmatpush2.msra.mxu0 0.0
        %1880 = vmatprep.subr.mxu0 0.0
        %1881 = vmatpush2.msra.mxu0 0.0
        %1882 = vmatprep.subr.mxu0 0.0
        %1883 = vmatpush2.msra.mxu0 0.0
        %1884 = vmatprep.subr.mxu0 0.0
        %1885 = vmatpush2.msra.mxu0 0.0
        %1886 = vmatprep.subr.mxu0 0.0
        %1887 = vmatpush2.msra.mxu0 0.0
        %1888 = vmatprep.subr.mxu0 0.0
        %1889 = vmatpush2.msra.mxu0 0.0
        %1890 = vmatprep.subr.mxu0 0.0
        %1891 = vmatpush2.msra.mxu0 0.0
        %1892 = vmatprep.subr.mxu0 0.0
        %1893 = vmatpush2.msra.mxu0 0.0
        %1894 = vmatprep.subr.mxu0 0.0
        %1895 = vmatpush2.msra.mxu0 0.0
        %1896 = vmatprep.subr.mxu0 0.0
        %1897 = vmatpush2.msra.mxu0 0.0
        %1898 = vmatprep.subr.mxu0 0.0
        %1899 = vmatpush2.msra.mxu0 0.0
        %1900 = vmatprep.subr.mxu0 0.0
        %1901 = vmatpush2.msra.mxu0 0.0
        %1902 = vmatprep.mubr.f32.mxu0 0.0
        %1903 = vmatmul.mubr.f32.gmra.mxu0 %v1837
        %v1904 = vpop.f32.mrf.mxu0
        %v1905 = vadd.f32 0.0, %v1904
        %v1906 = vpop.f32.mrf.mxu0
        %v1907 = vadd.f32 0.0, %v1906
        %1908 = vdwg.mxu0
        %1909 = vmatprep.subr.mxu0 %v1765
        %1910 = vmatpush1.msra.mxu0 %v1764
        %1911 = vmatprep.subr.mxu0 %v1761
        %1912 = vmatpush1.msra.mxu0 %v1760
        %1913 = vmatprep.subr.mxu0 %v1757
        %1914 = vmatpush1.msra.mxu0 %v1756
        %1915 = vmatprep.subr.mxu0 %v1753
        %1916 = vmatpush1.msra.mxu0 %v1752
        %1917 = vmatprep.subr.mxu0 %v1749
        %1918 = vmatpush1.msra.mxu0 %v1748
        %1919 = vmatprep.subr.mxu0 %v1745
        %1920 = vmatpush1.msra.mxu0 %v1744
        %1921 = vmatprep.subr.mxu0 %v1741
        %1922 = vmatpush1.msra.mxu0 %v1740
        %1923 = vmatprep.subr.mxu0 %v1737
        %1924 = vmatpush1.msra.mxu0 %v1736
        %1925 = vmatprep.subr.mxu0 %v1733
        %1926 = vmatpush1.msra.mxu0 %v1732
        %1927 = vmatprep.subr.mxu0 %v1729
        %1928 = vmatpush1.msra.mxu0 %v1728
        %1929 = vmatprep.subr.mxu0 %v1725
        %1930 = vmatpush1.msra.mxu0 %v1724
        %1931 = vmatprep.subr.mxu0 %v1721
        %1932 = vmatpush1.msra.mxu0 %v1720
        %1933 = vmatprep.subr.mxu0 %v1717
        %1934 = vmatpush1.msra.mxu0 %v1716
        %1935 = vmatprep.subr.mxu0 %v1713
        %1936 = vmatpush1.msra.mxu0 %v1712
        %1937 = vmatprep.subr.mxu0 %v1709
        %1938 = vmatpush1.msra.mxu0 %v1708
        %1939 = vmatprep.subr.mxu0 %v1705
        %1940 = vmatpush1.msra.mxu0 %v1704
        %1941 = vmatprep.subr.mxu0 0.0
        %1942 = vmatpush2.msra.mxu0 0.0
        %1943 = vmatprep.subr.mxu0 0.0
        %1944 = vmatpush2.msra.mxu0 0.0
        %1945 = vmatprep.subr.mxu0 0.0
        %1946 = vmatpush2.msra.mxu0 0.0
        %1947 = vmatprep.subr.mxu0 0.0
        %1948 = vmatpush2.msra.mxu0 0.0
        %1949 = vmatprep.subr.mxu0 0.0
        %1950 = vmatpush2.msra.mxu0 0.0
        %1951 = vmatprep.subr.mxu0 0.0
        %1952 = vmatpush2.msra.mxu0 0.0
        %1953 = vmatprep.subr.mxu0 0.0
        %1954 = vmatpush2.msra.mxu0 0.0
        %1955 = vmatprep.subr.mxu0 0.0
        %1956 = vmatpush2.msra.mxu0 0.0
        %1957 = vmatprep.subr.mxu0 0.0
        %1958 = vmatpush2.msra.mxu0 0.0
        %1959 = vmatprep.subr.mxu0 0.0
        %1960 = vmatpush2.msra.mxu0 0.0
        %1961 = vmatprep.subr.mxu0 0.0
        %1962 = vmatpush2.msra.mxu0 0.0
        %1963 = vmatprep.subr.mxu0 0.0
        %1964 = vmatpush2.msra.mxu0 0.0
        %1965 = vmatprep.subr.mxu0 0.0
        %1966 = vmatpush2.msra.mxu0 0.0
        %1967 = vmatprep.subr.mxu0 0.0
        %1968 = vmatpush2.msra.mxu0 0.0
        %1969 = vmatprep.subr.mxu0 0.0
        %1970 = vmatpush2.msra.mxu0 0.0
        %1971 = vmatprep.subr.mxu0 0.0
        %1972 = vmatpush2.msra.mxu0 0.0
        %1973 = vmatprep.mubr.f32.mxu0 0.0
        %1974 = vmatmul.mubr.f32.gmra.mxu0 %v1837
        %v1975 = vpop.f32.mrf.mxu0
        %v1976 = vadd.f32 0.0, %v1975
        %v1977 = vpop.f32.mrf.mxu0
        %v1978 = vadd.f32 0.0, %v1977
        %1979 = vdwg.mxu0
        %v1980 = vadd.f32 %v1833, %v1905
        %v1981 = vadd.f32 %v1834, %v1907
        %v1982 = vadd.f32 %v1835, %v1976
        %v1983 = vadd.f32 %v1836, %v1978
        %v1984 = vld [vmem:[#allocation5] sm:$0xff]
        %v1985 = vxor.u32 %v1980, 2147483648
        %v1986 = vmul.f32 %v1985, 1.442695
        %v1987 = vpow.pop %v1986
        %v1988 = vadd.f32 %v1987, 1.0
        %v1989 = vrcp.pop %v1988
        %v1990 = vmul.f32 1.0, %v1989
        %v1991 = vxor.u32 %v1981, 2147483648
        %v1992 = vmul.f32 %v1991, 1.442695
        %v1993 = vpow.pop %v1992
        %v1994 = vadd.f32 %v1993, 1.0
        %v1995 = vrcp.pop %v1994
        %v1996 = vmul.f32 1.0, %v1995
        %v1997 = vtanh.pop %v1982
        %v1998 = vxor.u32 %v1983, 2147483648
        %v1999 = vmul.f32 %v1998, 1.442695
        %v2000 = vpow.pop %v1999
        %v2001 = vadd.f32 %v2000, 1.0
        %v2002 = vrcp.pop %v2001
        %v2003 = vmul.f32 1.0, %v2002
        %v2004 = vmul.f32 %v1996, %v1984
        %v2005 = vmul.f32 %v1990, %v1997
        %v2006 = vadd.f32 %v2004, %v2005
        %v2007 = vtanh.pop %v2006
        %v2008 = vmul.f32 %v2003, %v2007
        %2009 = vst [vmem:[#allocation4] sm:$0xff] %v2008
        %2010 = vst [vmem:[#allocation5] sm:$0xff] %v2006
        %2011 = vst [vmem:[%s592] sm:$0xff] %v2008
        %s2012 = smul.u32 3, 4
        %s2013 = smul.addr %s2012, 8
        %s2014 = scalar_lea.vmem [#allocation3], %s2013
        %v2015 = vld [vmem:[%s2014] sm:$0xff]
        %v2016 = vld [vmem:[%s2014 + $0x8] sm:$0xff]
        %v2017 = vld [vmem:[%s2014 + $0x10] sm:$0xff]
        %v2018 = vld [vmem:[%s2014 + $0x18] sm:$0xff]
        %v2019 = vld [vmem:[#allocation6] sm:$0xff]
        %2020 = vmatprep.subr.mxu0 %v1827
        %2021 = vmatpush1.msra.mxu0 %v1826
        %2022 = vmatprep.subr.mxu0 %v1823
        %2023 = vmatpush1.msra.mxu0 %v1822
        %2024 = vmatprep.subr.mxu0 %v1819
        %2025 = vmatpush1.msra.mxu0 %v1818
        %2026 = vmatprep.subr.mxu0 %v1815
        %2027 = vmatpush1.msra.mxu0 %v1814
        %2028 = vmatprep.subr.mxu0 %v1811
        %2029 = vmatpush1.msra.mxu0 %v1810
        %2030 = vmatprep.subr.mxu0 %v1807
        %2031 = vmatpush1.msra.mxu0 %v1806
        %2032 = vmatprep.subr.mxu0 %v1803
        %2033 = vmatpush1.msra.mxu0 %v1802
        %2034 = vmatprep.subr.mxu0 %v1799
        %2035 = vmatpush1.msra.mxu0 %v1798
        %2036 = vmatprep.subr.mxu0 %v1795
        %2037 = vmatpush1.msra.mxu0 %v1794
        %2038 = vmatprep.subr.mxu0 %v1791
        %2039 = vmatpush1.msra.mxu0 %v1790
        %2040 = vmatprep.subr.mxu0 %v1787
        %2041 = vmatpush1.msra.mxu0 %v1786
        %2042 = vmatprep.subr.mxu0 %v1783
        %2043 = vmatpush1.msra.mxu0 %v1782
        %2044 = vmatprep.subr.mxu0 %v1779
        %2045 = vmatpush1.msra.mxu0 %v1778
        %2046 = vmatprep.subr.mxu0 %v1775
        %2047 = vmatpush1.msra.mxu0 %v1774
        %2048 = vmatprep.subr.mxu0 %v1771
        %2049 = vmatpush1.msra.mxu0 %v1770
        %2050 = vmatprep.subr.mxu0 %v1767
        %2051 = vmatpush1.msra.mxu0 %v1766
        %2052 = vmatprep.subr.mxu0 0.0
        %2053 = vmatpush2.msra.mxu0 0.0
        %2054 = vmatprep.subr.mxu0 0.0
        %2055 = vmatpush2.msra.mxu0 0.0
        %2056 = vmatprep.subr.mxu0 0.0
        %2057 = vmatpush2.msra.mxu0 0.0
        %2058 = vmatprep.subr.mxu0 0.0
        %2059 = vmatpush2.msra.mxu0 0.0
        %2060 = vmatprep.subr.mxu0 0.0
        %2061 = vmatpush2.msra.mxu0 0.0
        %2062 = vmatprep.subr.mxu0 0.0
        %2063 = vmatpush2.msra.mxu0 0.0
        %2064 = vmatprep.subr.mxu0 0.0
        %2065 = vmatpush2.msra.mxu0 0.0
        %2066 = vmatprep.subr.mxu0 0.0
        %2067 = vmatpush2.msra.mxu0 0.0
        %2068 = vmatprep.subr.mxu0 0.0
        %2069 = vmatpush2.msra.mxu0 0.0
        %2070 = vmatprep.subr.mxu0 0.0
        %2071 = vmatpush2.msra.mxu0 0.0
        %2072 = vmatprep.subr.mxu0 0.0
        %2073 = vmatpush2.msra.mxu0 0.0
        %2074 = vmatprep.subr.mxu0 0.0
        %2075 = vmatpush2.msra.mxu0 0.0
        %2076 = vmatprep.subr.mxu0 0.0
        %2077 = vmatpush2.msra.mxu0 0.0
        %2078 = vmatprep.subr.mxu0 0.0
        %2079 = vmatpush2.msra.mxu0 0.0
        %2080 = vmatprep.subr.mxu0 0.0
        %2081 = vmatpush2.msra.mxu0 0.0
        %2082 = vmatprep.subr.mxu0 0.0
        %2083 = vmatpush2.msra.mxu0 0.0
        %2084 = vmatprep.mubr.f32.mxu0 0.0
        %2085 = vmatmul.mubr.f32.gmra.mxu0 %v2019
        %v2086 = vpop.f32.mrf.mxu0
        %v2087 = vadd.f32 0.0, %v2086
        %v2088 = vpop.f32.mrf.mxu0
        %v2089 = vadd.f32 0.0, %v2088
        %2090 = vdwg.mxu0
        %2091 = vmatprep.subr.mxu0 %v1829
        %2092 = vmatpush1.msra.mxu0 %v1828
        %2093 = vmatprep.subr.mxu0 %v1825
        %2094 = vmatpush1.msra.mxu0 %v1824
        %2095 = vmatprep.subr.mxu0 %v1821
        %2096 = vmatpush1.msra.mxu0 %v1820
        %2097 = vmatprep.subr.mxu0 %v1817
        %2098 = vmatpush1.msra.mxu0 %v1816
        %2099 = vmatprep.subr.mxu0 %v1813
        %2100 = vmatpush1.msra.mxu0 %v1812
        %2101 = vmatprep.subr.mxu0 %v1809
        %2102 = vmatpush1.msra.mxu0 %v1808
        %2103 = vmatprep.subr.mxu0 %v1805
        %2104 = vmatpush1.msra.mxu0 %v1804
        %2105 = vmatprep.subr.mxu0 %v1801
        %2106 = vmatpush1.msra.mxu0 %v1800
        %2107 = vmatprep.subr.mxu0 %v1797
        %2108 = vmatpush1.msra.mxu0 %v1796
        %2109 = vmatprep.subr.mxu0 %v1793
        %2110 = vmatpush1.msra.mxu0 %v1792
        %2111 = vmatprep.subr.mxu0 %v1789
        %2112 = vmatpush1.msra.mxu0 %v1788
        %2113 = vmatprep.subr.mxu0 %v1785
        %2114 = vmatpush1.msra.mxu0 %v1784
        %2115 = vmatprep.subr.mxu0 %v1781
        %2116 = vmatpush1.msra.mxu0 %v1780
        %2117 = vmatprep.subr.mxu0 %v1777
        %2118 = vmatpush1.msra.mxu0 %v1776
        %2119 = vmatprep.subr.mxu0 %v1773
        %2120 = vmatpush1.msra.mxu0 %v1772
        %2121 = vmatprep.subr.mxu0 %v1769
        %2122 = vmatpush1.msra.mxu0 %v1768
        %2123 = vmatprep.subr.mxu0 0.0
        %2124 = vmatpush2.msra.mxu0 0.0
        %2125 = vmatprep.subr.mxu0 0.0
        %2126 = vmatpush2.msra.mxu0 0.0
        %2127 = vmatprep.subr.mxu0 0.0
        %2128 = vmatpush2.msra.mxu0 0.0
        %2129 = vmatprep.subr.mxu0 0.0
        %2130 = vmatpush2.msra.mxu0 0.0
        %2131 = vmatprep.subr.mxu0 0.0
        %2132 = vmatpush2.msra.mxu0 0.0
        %2133 = vmatprep.subr.mxu0 0.0
        %2134 = vmatpush2.msra.mxu0 0.0
        %2135 = vmatprep.subr.mxu0 0.0
        %2136 = vmatpush2.msra.mxu0 0.0
        %2137 = vmatprep.subr.mxu0 0.0
        %2138 = vmatpush2.msra.mxu0 0.0
        %2139 = vmatprep.subr.mxu0 0.0
        %2140 = vmatpush2.msra.mxu0 0.0
        %2141 = vmatprep.subr.mxu0 0.0
        %2142 = vmatpush2.msra.mxu0 0.0
        %2143 = vmatprep.subr.mxu0 0.0
        %2144 = vmatpush2.msra.mxu0 0.0
        %2145 = vmatprep.subr.mxu0 0.0
        %2146 = vmatpush2.msra.mxu0 0.0
        %2147 = vmatprep.subr.mxu0 0.0
        %2148 = vmatpush2.msra.mxu0 0.0
        %2149 = vmatprep.subr.mxu0 0.0
        %2150 = vmatpush2.msra.mxu0 0.0
        %2151 = vmatprep.subr.mxu0 0.0
        %2152 = vmatpush2.msra.mxu0 0.0
        %2153 = vmatprep.subr.mxu0 0.0
        %2154 = vmatpush2.msra.mxu0 0.0
        %2155 = vmatprep.mubr.f32.mxu0 0.0
        %2156 = vmatmul.mubr.f32.gmra.mxu0 %v2019
        %v2157 = vpop.f32.mrf.mxu0
        %v2158 = vadd.f32 0.0, %v2157
        %v2159 = vpop.f32.mrf.mxu0
        %v2160 = vadd.f32 0.0, %v2159
        %2161 = vdwg.mxu0
        %v2162 = vadd.f32 %v2015, %v2087
        %v2163 = vadd.f32 %v2016, %v2089
        %v2164 = vadd.f32 %v2017, %v2158
        %v2165 = vadd.f32 %v2018, %v2160
        %v2166 = vld [vmem:[#allocation7] sm:$0xff]
        %v2167 = vxor.u32 %v2162, 2147483648
        %v2168 = vmul.f32 %v2167, 1.442695
        %v2169 = vpow.pop %v2168
        %v2170 = vadd.f32 %v2169, 1.0
        %v2171 = vrcp.pop %v2170
        %v2172 = vmul.f32 1.0, %v2171
        %v2173 = vxor.u32 %v2163, 2147483648
        %v2174 = vmul.f32 %v2173, 1.442695
        %v2175 = vpow.pop %v2174
        %v2176 = vadd.f32 %v2175, 1.0
        %v2177 = vrcp.pop %v2176
        %v2178 = vmul.f32 1.0, %v2177
        %v2179 = vtanh.pop %v2164
        %v2180 = vxor.u32 %v2165, 2147483648
        %v2181 = vmul.f32 %v2180, 1.442695
        %v2182 = vpow.pop %v2181
        %v2183 = vadd.f32 %v2182, 1.0
        %v2184 = vrcp.pop %v2183
        %v2185 = vmul.f32 1.0, %v2184
        %v2186 = vmul.f32 %v2178, %v2166
        %v2187 = vmul.f32 %v2172, %v2179
        %v2188 = vadd.f32 %v2186, %v2187
        %v2189 = vtanh.pop %v2188
        %v2190 = vmul.f32 %v2185, %v2189
        %2191 = vst [vmem:[#allocation6] sm:$0xff] %v2190
        %2192 = vst [vmem:[#allocation7] sm:$0xff] %v2188
        %s2193 = scalar_lea.vmem %s599, 24
        %2194 = vst [vmem:[%s2193] sm:$0xff] %v2190
        %s2195 = smul.u32 1, 4
        %s2196 = smul.addr %s2195, 8
        %s2197 = scalar_lea.vmem [#allocation2], %s2196
        %v2198 = vld [vmem:[%s2197] sm:$0xff]
        %v2199 = vld [vmem:[%s2197 + $0x8] sm:$0xff]
        %v2200 = vld [vmem:[%s2197 + $0x10] sm:$0xff]
        %v2201 = vld [vmem:[%s2197 + $0x18] sm:$0xff]
        %v2202 = vld [vmem:[#allocation4] sm:$0xff]
        %2203 = vmatprep.subr.mxu0 %v1763
        %2204 = vmatpush1.msra.mxu0 %v1762
        %2205 = vmatprep.subr.mxu0 %v1759
        %2206 = vmatpush1.msra.mxu0 %v1758
        %2207 = vmatprep.subr.mxu0 %v1755
        %2208 = vmatpush1.msra.mxu0 %v1754
        %2209 = vmatprep.subr.mxu0 %v1751
        %2210 = vmatpush1.msra.mxu0 %v1750
        %2211 = vmatprep.subr.mxu0 %v1747
        %2212 = vmatpush1.msra.mxu0 %v1746
        %2213 = vmatprep.subr.mxu0 %v1743
        %2214 = vmatpush1.msra.mxu0 %v1742
        %2215 = vmatprep.subr.mxu0 %v1739
        %2216 = vmatpush1.msra.mxu0 %v1738
        %2217 = vmatprep.subr.mxu0 %v1735
        %2218 = vmatpush1.msra.mxu0 %v1734
        %2219 = vmatprep.subr.mxu0 %v1731
        %2220 = vmatpush1.msra.mxu0 %v1730
        %2221 = vmatprep.subr.mxu0 %v1727
        %2222 = vmatpush1.msra.mxu0 %v1726
        %2223 = vmatprep.subr.mxu0 %v1723
        %2224 = vmatpush1.msra.mxu0 %v1722
        %2225 = vmatprep.subr.mxu0 %v1719
        %2226 = vmatpush1.msra.mxu0 %v1718
        %2227 = vmatprep.subr.mxu0 %v1715
        %2228 = vmatpush1.msra.mxu0 %v1714
        %2229 = vmatprep.subr.mxu0 %v1711
        %2230 = vmatpush1.msra.mxu0 %v1710
        %2231 = vmatprep.subr.mxu0 %v1707
        %2232 = vmatpush1.msra.mxu0 %v1706
        %2233 = vmatprep.subr.mxu0 %v1703
        %2234 = vmatpush1.msra.mxu0 %v1702
        %2235 = vmatprep.subr.mxu0 0.0
        %2236 = vmatpush2.msra.mxu0 0.0
        %2237 = vmatprep.subr.mxu0 0.0
        %2238 = vmatpush2.msra.mxu0 0.0
        %2239 = vmatprep.subr.mxu0 0.0
        %2240 = vmatpush2.msra.mxu0 0.0
        %2241 = vmatprep.subr.mxu0 0.0
        %2242 = vmatpush2.msra.mxu0 0.0
        %2243 = vmatprep.subr.mxu0 0.0
        %2244 = vmatpush2.msra.mxu0 0.0
        %2245 = vmatprep.subr.mxu0 0.0
        %2246 = vmatpush2.msra.mxu0 0.0
        %2247 = vmatprep.subr.mxu0 0.0
        %2248 = vmatpush2.msra.mxu0 0.0
        %2249 = vmatprep.subr.mxu0 0.0
        %2250 = vmatpush2.msra.mxu0 0.0
        %2251 = vmatprep.subr.mxu0 0.0
        %2252 = vmatpush2.msra.mxu0 0.0
        %2253 = vmatprep.subr.mxu0 0.0
        %2254 = vmatpush2.msra.mxu0 0.0
        %2255 = vmatprep.subr.mxu0 0.0
        %2256 = vmatpush2.msra.mxu0 0.0
        %2257 = vmatprep.subr.mxu0 0.0
        %2258 = vmatpush2.msra.mxu0 0.0
        %2259 = vmatprep.subr.mxu0 0.0
        %2260 = vmatpush2.msra.mxu0 0.0
        %2261 = vmatprep.subr.mxu0 0.0
        %2262 = vmatpush2.msra.mxu0 0.0
        %2263 = vmatprep.subr.mxu0 0.0
        %2264 = vmatpush2.msra.mxu0 0.0
        %2265 = vmatprep.subr.mxu0 0.0
        %2266 = vmatpush2.msra.mxu0 0.0
        %2267 = vmatprep.mubr.f32.mxu0 0.0
        %2268 = vmatmul.mubr.f32.gmra.mxu0 %v2202
        %v2269 = vpop.f32.mrf.mxu0
        %v2270 = vadd.f32 0.0, %v2269
        %v2271 = vpop.f32.mrf.mxu0
        %v2272 = vadd.f32 0.0, %v2271
        %2273 = vdwg.mxu0
        %2274 = vmatprep.subr.mxu0 %v1765
        %2275 = vmatpush1.msra.mxu0 %v1764
        %2276 = vmatprep.subr.mxu0 %v1761
        %2277 = vmatpush1.msra.mxu0 %v1760
        %2278 = vmatprep.subr.mxu0 %v1757
        %2279 = vmatpush1.msra.mxu0 %v1756
        %2280 = vmatprep.subr.mxu0 %v1753
        %2281 = vmatpush1.msra.mxu0 %v1752
        %2282 = vmatprep.subr.mxu0 %v1749
        %2283 = vmatpush1.msra.mxu0 %v1748
        %2284 = vmatprep.subr.mxu0 %v1745
        %2285 = vmatpush1.msra.mxu0 %v1744
        %2286 = vmatprep.subr.mxu0 %v1741
        %2287 = vmatpush1.msra.mxu0 %v1740
        %2288 = vmatprep.subr.mxu0 %v1737
        %2289 = vmatpush1.msra.mxu0 %v1736
        %2290 = vmatprep.subr.mxu0 %v1733
        %2291 = vmatpush1.msra.mxu0 %v1732
        %2292 = vmatprep.subr.mxu0 %v1729
        %2293 = vmatpush1.msra.mxu0 %v1728
        %2294 = vmatprep.subr.mxu0 %v1725
        %2295 = vmatpush1.msra.mxu0 %v1724
        %2296 = vmatprep.subr.mxu0 %v1721
        %2297 = vmatpush1.msra.mxu0 %v1720
        %2298 = vmatprep.subr.mxu0 %v1717
        %2299 = vmatpush1.msra.mxu0 %v1716
        %2300 = vmatprep.subr.mxu0 %v1713
        %2301 = vmatpush1.msra.mxu0 %v1712
        %2302 = vmatprep.subr.mxu0 %v1709
        %2303 = vmatpush1.msra.mxu0 %v1708
        %2304 = vmatprep.subr.mxu0 %v1705
        %2305 = vmatpush1.msra.mxu0 %v1704
        %2306 = vmatprep.subr.mxu0 0.0
        %2307 = vmatpush2.msra.mxu0 0.0
        %2308 = vmatprep.subr.mxu0 0.0
        %2309 = vmatpush2.msra.mxu0 0.0
        %2310 = vmatprep.subr.mxu0 0.0
        %2311 = vmatpush2.msra.mxu0 0.0
        %2312 = vmatprep.subr.mxu0 0.0
        %2313 = vmatpush2.msra.mxu0 0.0
        %2314 = vmatprep.subr.mxu0 0.0
        %2315 = vmatpush2.msra.mxu0 0.0
        %2316 = vmatprep.subr.mxu0 0.0
        %2317 = vmatpush2.msra.mxu0 0.0
        %2318 = vmatprep.subr.mxu0 0.0
        %2319 = vmatpush2.msra.mxu0 0.0
        %2320 = vmatprep.subr.mxu0 0.0
        %2321 = vmatpush2.msra.mxu0 0.0
        %2322 = vmatprep.subr.mxu0 0.0
        %2323 = vmatpush2.msra.mxu0 0.0
        %2324 = vmatprep.subr.mxu0 0.0
        %2325 = vmatpush2.msra.mxu0 0.0
        %2326 = vmatprep.subr.mxu0 0.0
        %2327 = vmatpush2.msra.mxu0 0.0
        %2328 = vmatprep.subr.mxu0 0.0
        %2329 = vmatpush2.msra.mxu0 0.0
        %2330 = vmatprep.subr.mxu0 0.0
        %2331 = vmatpush2.msra.mxu0 0.0
        %2332 = vmatprep.subr.mxu0 0.0
        %2333 = vmatpush2.msra.mxu0 0.0
        %2334 = vmatprep.subr.mxu0 0.0
        %2335 = vmatpush2.msra.mxu0 0.0
        %2336 = vmatprep.subr.mxu0 0.0
        %2337 = vmatpush2.msra.mxu0 0.0
        %2338 = vmatprep.mubr.f32.mxu0 0.0
        %2339 = vmatmul.mubr.f32.gmra.mxu0 %v2202
        %v2340 = vpop.f32.mrf.mxu0
        %v2341 = vadd.f32 0.0, %v2340
        %v2342 = vpop.f32.mrf.mxu0
        %v2343 = vadd.f32 0.0, %v2342
        %2344 = vdwg.mxu0
        %v2345 = vadd.f32 %v2198, %v2270
        %v2346 = vadd.f32 %v2199, %v2272
        %v2347 = vadd.f32 %v2200, %v2341
        %v2348 = vadd.f32 %v2201, %v2343
        %v2349 = vld [vmem:[#allocation5] sm:$0xff]
        %v2350 = vxor.u32 %v2345, 2147483648
        %v2351 = vmul.f32 %v2350, 1.442695
        %v2352 = vpow.pop %v2351
        %v2353 = vadd.f32 %v2352, 1.0
        %v2354 = vrcp.pop %v2353
        %v2355 = vmul.f32 1.0, %v2354
        %v2356 = vxor.u32 %v2346, 2147483648
        %v2357 = vmul.f32 %v2356, 1.442695
        %v2358 = vpow.pop %v2357
        %v2359 = vadd.f32 %v2358, 1.0
        %v2360 = vrcp.pop %v2359
        %v2361 = vmul.f32 1.0, %v2360
        %v2362 = vtanh.pop %v2347
        %v2363 = vxor.u32 %v2348, 2147483648
        %v2364 = vmul.f32 %v2363, 1.442695
        %v2365 = vpow.pop %v2364
        %v2366 = vadd.f32 %v2365, 1.0
        %v2367 = vrcp.pop %v2366
        %v2368 = vmul.f32 1.0, %v2367
        %v2369 = vmul.f32 %v2361, %v2349
        %v2370 = vmul.f32 %v2355, %v2362
        %v2371 = vadd.f32 %v2369, %v2370
        %v2372 = vtanh.pop %v2371
        %v2373 = vmul.f32 %v2368, %v2372
        %2374 = vst [vmem:[#allocation4] sm:$0xff] %v2373
        %2375 = vst [vmem:[#allocation5] sm:$0xff] %v2371
        %s2376 = scalar_lea.vmem %s592, 8
        %2377 = vst [vmem:[%s2376] sm:$0xff] %v2373
        %s2378 = smul.u32 2, 4
        %s2379 = smul.addr %s2378, 8
        %s2380 = scalar_lea.vmem [#allocation3], %s2379
        %v2381 = vld [vmem:[%s2380] sm:$0xff]
        %v2382 = vld [vmem:[%s2380 + $0x8] sm:$0xff]
        %v2383 = vld [vmem:[%s2380 + $0x10] sm:$0xff]
        %v2384 = vld [vmem:[%s2380 + $0x18] sm:$0xff]
        %v2385 = vld [vmem:[#allocation6] sm:$0xff]
        %2386 = vmatprep.subr.mxu0 %v1827
        %2387 = vmatpush1.msra.mxu0 %v1826
        %2388 = vmatprep.subr.mxu0 %v1823
        %2389 = vmatpush1.msra.mxu0 %v1822
        %2390 = vmatprep.subr.mxu0 %v1819
        %2391 = vmatpush1.msra.mxu0 %v1818
        %2392 = vmatprep.subr.mxu0 %v1815
        %2393 = vmatpush1.msra.mxu0 %v1814
        %2394 = vmatprep.subr.mxu0 %v1811
        %2395 = vmatpush1.msra.mxu0 %v1810
        %2396 = vmatprep.subr.mxu0 %v1807
        %2397 = vmatpush1.msra.mxu0 %v1806
        %2398 = vmatprep.subr.mxu0 %v1803
        %2399 = vmatpush1.msra.mxu0 %v1802
        %2400 = vmatprep.subr.mxu0 %v1799
        %2401 = vmatpush1.msra.mxu0 %v1798
        %2402 = vmatprep.subr.mxu0 %v1795
        %2403 = vmatpush1.msra.mxu0 %v1794
        %2404 = vmatprep.subr.mxu0 %v1791
        %2405 = vmatpush1.msra.mxu0 %v1790
        %2406 = vmatprep.subr.mxu0 %v1787
        %2407 = vmatpush1.msra.mxu0 %v1786
        %2408 = vmatprep.subr.mxu0 %v1783
        %2409 = vmatpush1.msra.mxu0 %v1782
        %2410 = vmatprep.subr.mxu0 %v1779
        %2411 = vmatpush1.msra.mxu0 %v1778
        %2412 = vmatprep.subr.mxu0 %v1775
        %2413 = vmatpush1.msra.mxu0 %v1774
        %2414 = vmatprep.subr.mxu0 %v1771
        %2415 = vmatpush1.msra.mxu0 %v1770
        %2416 = vmatprep.subr.mxu0 %v1767
        %2417 = vmatpush1.msra.mxu0 %v1766
        %2418 = vmatprep.subr.mxu0 0.0
        %2419 = vmatpush2.msra.mxu0 0.0
        %2420 = vmatprep.subr.mxu0 0.0
        %2421 = vmatpush2.msra.mxu0 0.0
        %2422 = vmatprep.subr.mxu0 0.0
        %2423 = vmatpush2.msra.mxu0 0.0
        %2424 = vmatprep.subr.mxu0 0.0
        %2425 = vmatpush2.msra.mxu0 0.0
        %2426 = vmatprep.subr.mxu0 0.0
        %2427 = vmatpush2.msra.mxu0 0.0
        %2428 = vmatprep.subr.mxu0 0.0
        %2429 = vmatpush2.msra.mxu0 0.0
        %2430 = vmatprep.subr.mxu0 0.0
        %2431 = vmatpush2.msra.mxu0 0.0
        %2432 = vmatprep.subr.mxu0 0.0
        %2433 = vmatpush2.msra.mxu0 0.0
        %2434 = vmatprep.subr.mxu0 0.0
        %2435 = vmatpush2.msra.mxu0 0.0
        %2436 = vmatprep.subr.mxu0 0.0
        %2437 = vmatpush2.msra.mxu0 0.0
        %2438 = vmatprep.subr.mxu0 0.0
        %2439 = vmatpush2.msra.mxu0 0.0
        %2440 = vmatprep.subr.mxu0 0.0
        %2441 = vmatpush2.msra.mxu0 0.0
        %2442 = vmatprep.subr.mxu0 0.0
        %2443 = vmatpush2.msra.mxu0 0.0
        %2444 = vmatprep.subr.mxu0 0.0
        %2445 = vmatpush2.msra.mxu0 0.0
        %2446 = vmatprep.subr.mxu0 0.0
        %2447 = vmatpush2.msra.mxu0 0.0
        %2448 = vmatprep.subr.mxu0 0.0
        %2449 = vmatpush2.msra.mxu0 0.0
        %2450 = vmatprep.mubr.f32.mxu0 0.0
        %2451 = vmatmul.mubr.f32.gmra.mxu0 %v2385
        %v2452 = vpop.f32.mrf.mxu0
        %v2453 = vadd.f32 0.0, %v2452
        %v2454 = vpop.f32.mrf.mxu0
        %v2455 = vadd.f32 0.0, %v2454
        %2456 = vdwg.mxu0
        %2457 = vmatprep.subr.mxu0 %v1829
        %2458 = vmatpush1.msra.mxu0 %v1828
        %2459 = vmatprep.subr.mxu0 %v1825
        %2460 = vmatpush1.msra.mxu0 %v1824
        %2461 = vmatprep.subr.mxu0 %v1821
        %2462 = vmatpush1.msra.mxu0 %v1820
        %2463 = vmatprep.subr.mxu0 %v1817
        %2464 = vmatpush1.msra.mxu0 %v1816
        %2465 = vmatprep.subr.mxu0 %v1813
        %2466 = vmatpush1.msra.mxu0 %v1812
        %2467 = vmatprep.subr.mxu0 %v1809
        %2468 = vmatpush1.msra.mxu0 %v1808
        %2469 = vmatprep.subr.mxu0 %v1805
        %2470 = vmatpush1.msra.mxu0 %v1804
        %2471 = vmatprep.subr.mxu0 %v1801
        %2472 = vmatpush1.msra.mxu0 %v1800
        %2473 = vmatprep.subr.mxu0 %v1797
        %2474 = vmatpush1.msra.mxu0 %v1796
        %2475 = vmatprep.subr.mxu0 %v1793
        %2476 = vmatpush1.msra.mxu0 %v1792
        %2477 = vmatprep.subr.mxu0 %v1789
        %2478 = vmatpush1.msra.mxu0 %v1788
        %2479 = vmatprep.subr.mxu0 %v1785
        %2480 = vmatpush1.msra.mxu0 %v1784
        %2481 = vmatprep.subr.mxu0 %v1781
        %2482 = vmatpush1.msra.mxu0 %v1780
        %2483 = vmatprep.subr.mxu0 %v1777
        %2484 = vmatpush1.msra.mxu0 %v1776
        %2485 = vmatprep.subr.mxu0 %v1773
        %2486 = vmatpush1.msra.mxu0 %v1772
        %2487 = vmatprep.subr.mxu0 %v1769
        %2488 = vmatpush1.msra.mxu0 %v1768
        %2489 = vmatprep.subr.mxu0 0.0
        %2490 = vmatpush2.msra.mxu0 0.0
        %2491 = vmatprep.subr.mxu0 0.0
        %2492 = vmatpush2.msra.mxu0 0.0
        %2493 = vmatprep.subr.mxu0 0.0
        %2494 = vmatpush2.msra.mxu0 0.0
        %2495 = vmatprep.subr.mxu0 0.0
        %2496 = vmatpush2.msra.mxu0 0.0
        %2497 = vmatprep.subr.mxu0 0.0
        %2498 = vmatpush2.msra.mxu0 0.0
        %2499 = vmatprep.subr.mxu0 0.0
        %2500 = vmatpush2.msra.mxu0 0.0
        %2501 = vmatprep.subr.mxu0 0.0
        %2502 = vmatpush2.msra.mxu0 0.0
        %2503 = vmatprep.subr.mxu0 0.0
        %2504 = vmatpush2.msra.mxu0 0.0
        %2505 = vmatprep.subr.mxu0 0.0
        %2506 = vmatpush2.msra.mxu0 0.0
        %2507 = vmatprep.subr.mxu0 0.0
        %2508 = vmatpush2.msra.mxu0 0.0
        %2509 = vmatprep.subr.mxu0 0.0
        %2510 = vmatpush2.msra.mxu0 0.0
        %2511 = vmatprep.subr.mxu0 0.0
        %2512 = vmatpush2.msra.mxu0 0.0
        %2513 = vmatprep.subr.mxu0 0.0
        %2514 = vmatpush2.msra.mxu0 0.0
        %2515 = vmatprep.subr.mxu0 0.0
        %2516 = vmatpush2.msra.mxu0 0.0
        %2517 = vmatprep.subr.mxu0 0.0
        %2518 = vmatpush2.msra.mxu0 0.0
        %2519 = vmatprep.subr.mxu0 0.0
        %2520 = vmatpush2.msra.mxu0 0.0
        %2521 = vmatprep.mubr.f32.mxu0 0.0
        %2522 = vmatmul.mubr.f32.gmra.mxu0 %v2385
        %v2523 = vpop.f32.mrf.mxu0
        %v2524 = vadd.f32 0.0, %v2523
        %v2525 = vpop.f32.mrf.mxu0
        %v2526 = vadd.f32 0.0, %v2525
        %2527 = vdwg.mxu0
        %v2528 = vadd.f32 %v2381, %v2453
        %v2529 = vadd.f32 %v2382, %v2455
        %v2530 = vadd.f32 %v2383, %v2524
        %v2531 = vadd.f32 %v2384, %v2526
        %v2532 = vld [vmem:[#allocation7] sm:$0xff]
        %v2533 = vxor.u32 %v2528, 2147483648
        %v2534 = vmul.f32 %v2533, 1.442695
        %v2535 = vpow.pop %v2534
        %v2536 = vadd.f32 %v2535, 1.0
        %v2537 = vrcp.pop %v2536
        %v2538 = vmul.f32 1.0, %v2537
        %v2539 = vxor.u32 %v2529, 2147483648
        %v2540 = vmul.f32 %v2539, 1.442695
        %v2541 = vpow.pop %v2540
        %v2542 = vadd.f32 %v2541, 1.0
        %v2543 = vrcp.pop %v2542
        %v2544 = vmul.f32 1.0, %v2543
        %v2545 = vtanh.pop %v2530
        %v2546 = vxor.u32 %v2531, 2147483648
        %v2547 = vmul.f32 %v2546, 1.442695
        %v2548 = vpow.pop %v2547
        %v2549 = vadd.f32 %v2548, 1.0
        %v2550 = vrcp.pop %v2549
        %v2551 = vmul.f32 1.0, %v2550
        %v2552 = vmul.f32 %v2544, %v2532
        %v2553 = vmul.f32 %v2538, %v2545
        %v2554 = vadd.f32 %v2552, %v2553
        %v2555 = vtanh.pop %v2554
        %v2556 = vmul.f32 %v2551, %v2555
        %2557 = vst [vmem:[#allocation6] sm:$0xff] %v2556
        %2558 = vst [vmem:[#allocation7] sm:$0xff] %v2554
        %s2559 = scalar_lea.vmem %s599, 16
        %2560 = vst [vmem:[%s2559] sm:$0xff] %v2556
        %s2561 = smul.addr %s2378, 8
        %s2562 = scalar_lea.vmem [#allocation2], %s2561
        %v2563 = vld [vmem:[%s2562] sm:$0xff]
        %v2564 = vld [vmem:[%s2562 + $0x8] sm:$0xff]
        %v2565 = vld [vmem:[%s2562 + $0x10] sm:$0xff]
        %v2566 = vld [vmem:[%s2562 + $0x18] sm:$0xff]
        %v2567 = vld [vmem:[#allocation4] sm:$0xff]
        %2568 = vmatprep.subr.mxu0 %v1763
        %2569 = vmatpush1.msra.mxu0 %v1762
        %2570 = vmatprep.subr.mxu0 %v1759
        %2571 = vmatpush1.msra.mxu0 %v1758
        %2572 = vmatprep.subr.mxu0 %v1755
        %2573 = vmatpush1.msra.mxu0 %v1754
        %2574 = vmatprep.subr.mxu0 %v1751
        %2575 = vmatpush1.msra.mxu0 %v1750
        %2576 = vmatprep.subr.mxu0 %v1747
        %2577 = vmatpush1.msra.mxu0 %v1746
        %2578 = vmatprep.subr.mxu0 %v1743
        %2579 = vmatpush1.msra.mxu0 %v1742
        %2580 = vmatprep.subr.mxu0 %v1739
        %2581 = vmatpush1.msra.mxu0 %v1738
        %2582 = vmatprep.subr.mxu0 %v1735
        %2583 = vmatpush1.msra.mxu0 %v1734
        %2584 = vmatprep.subr.mxu0 %v1731
        %2585 = vmatpush1.msra.mxu0 %v1730
        %2586 = vmatprep.subr.mxu0 %v1727
        %2587 = vmatpush1.msra.mxu0 %v1726
        %2588 = vmatprep.subr.mxu0 %v1723
        %2589 = vmatpush1.msra.mxu0 %v1722
        %2590 = vmatprep.subr.mxu0 %v1719
        %2591 = vmatpush1.msra.mxu0 %v1718
        %2592 = vmatprep.subr.mxu0 %v1715
        %2593 = vmatpush1.msra.mxu0 %v1714
        %2594 = vmatprep.subr.mxu0 %v1711
        %2595 = vmatpush1.msra.mxu0 %v1710
        %2596 = vmatprep.subr.mxu0 %v1707
        %2597 = vmatpush1.msra.mxu0 %v1706
        %2598 = vmatprep.subr.mxu0 %v1703
        %2599 = vmatpush1.msra.mxu0 %v1702
        %2600 = vmatprep.subr.mxu0 0.0
        %2601 = vmatpush2.msra.mxu0 0.0
        %2602 = vmatprep.subr.mxu0 0.0
        %2603 = vmatpush2.msra.mxu0 0.0
        %2604 = vmatprep.subr.mxu0 0.0
        %2605 = vmatpush2.msra.mxu0 0.0
        %2606 = vmatprep.subr.mxu0 0.0
        %2607 = vmatpush2.msra.mxu0 0.0
        %2608 = vmatprep.subr.mxu0 0.0
        %2609 = vmatpush2.msra.mxu0 0.0
        %2610 = vmatprep.subr.mxu0 0.0
        %2611 = vmatpush2.msra.mxu0 0.0
        %2612 = vmatprep.subr.mxu0 0.0
        %2613 = vmatpush2.msra.mxu0 0.0
        %2614 = vmatprep.subr.mxu0 0.0
        %2615 = vmatpush2.msra.mxu0 0.0
        %2616 = vmatprep.subr.mxu0 0.0
        %2617 = vmatpush2.msra.mxu0 0.0
        %2618 = vmatprep.subr.mxu0 0.0
        %2619 = vmatpush2.msra.mxu0 0.0
        %2620 = vmatprep.subr.mxu0 0.0
        %2621 = vmatpush2.msra.mxu0 0.0
        %2622 = vmatprep.subr.mxu0 0.0
        %2623 = vmatpush2.msra.mxu0 0.0
        %2624 = vmatprep.subr.mxu0 0.0
        %2625 = vmatpush2.msra.mxu0 0.0
        %2626 = vmatprep.subr.mxu0 0.0
        %2627 = vmatpush2.msra.mxu0 0.0
        %2628 = vmatprep.subr.mxu0 0.0
        %2629 = vmatpush2.msra.mxu0 0.0
        %2630 = vmatprep.subr.mxu0 0.0
        %2631 = vmatpush2.msra.mxu0 0.0
        %2632 = vmatprep.mubr.f32.mxu0 0.0
        %2633 = vmatmul.mubr.f32.gmra.mxu0 %v2567
        %v2634 = vpop.f32.mrf.mxu0
        %v2635 = vadd.f32 0.0, %v2634
        %v2636 = vpop.f32.mrf.mxu0
        %v2637 = vadd.f32 0.0, %v2636
        %2638 = vdwg.mxu0
        %2639 = vmatprep.subr.mxu0 %v1765
        %2640 = vmatpush1.msra.mxu0 %v1764
        %2641 = vmatprep.subr.mxu0 %v1761
        %2642 = vmatpush1.msra.mxu0 %v1760
        %2643 = vmatprep.subr.mxu0 %v1757
        %2644 = vmatpush1.msra.mxu0 %v1756
        %2645 = vmatprep.subr.mxu0 %v1753
        %2646 = vmatpush1.msra.mxu0 %v1752
        %2647 = vmatprep.subr.mxu0 %v1749
        %2648 = vmatpush1.msra.mxu0 %v1748
        %2649 = vmatprep.subr.mxu0 %v1745
        %2650 = vmatpush1.msra.mxu0 %v1744
        %2651 = vmatprep.subr.mxu0 %v1741
        %2652 = vmatpush1.msra.mxu0 %v1740
        %2653 = vmatprep.subr.mxu0 %v1737
        %2654 = vmatpush1.msra.mxu0 %v1736
        %2655 = vmatprep.subr.mxu0 %v1733
        %2656 = vmatpush1.msra.mxu0 %v1732
        %2657 = vmatprep.subr.mxu0 %v1729
        %2658 = vmatpush1.msra.mxu0 %v1728
        %2659 = vmatprep.subr.mxu0 %v1725
        %2660 = vmatpush1.msra.mxu0 %v1724
        %2661 = vmatprep.subr.mxu0 %v1721
        %2662 = vmatpush1.msra.mxu0 %v1720
        %2663 = vmatprep.subr.mxu0 %v1717
        %2664 = vmatpush1.msra.mxu0 %v1716
        %2665 = vmatprep.subr.mxu0 %v1713
        %2666 = vmatpush1.msra.mxu0 %v1712
        %2667 = vmatprep.subr.mxu0 %v1709
        %2668 = vmatpush1.msra.mxu0 %v1708
        %2669 = vmatprep.subr.mxu0 %v1705
        %2670 = vmatpush1.msra.mxu0 %v1704
        %2671 = vmatprep.subr.mxu0 0.0
        %2672 = vmatpush2.msra.mxu0 0.0
        %2673 = vmatprep.subr.mxu0 0.0
        %2674 = vmatpush2.msra.mxu0 0.0
        %2675 = vmatprep.subr.mxu0 0.0
        %2676 = vmatpush2.msra.mxu0 0.0
        %2677 = vmatprep.subr.mxu0 0.0
        %2678 = vmatpush2.msra.mxu0 0.0
        %2679 = vmatprep.subr.mxu0 0.0
        %2680 = vmatpush2.msra.mxu0 0.0
        %2681 = vmatprep.subr.mxu0 0.0
        %2682 = vmatpush2.msra.mxu0 0.0
        %2683 = vmatprep.subr.mxu0 0.0
        %2684 = vmatpush2.msra.mxu0 0.0
        %2685 = vmatprep.subr.mxu0 0.0
        %2686 = vmatpush2.msra.mxu0 0.0
        %2687 = vmatprep.subr.mxu0 0.0
        %2688 = vmatpush2.msra.mxu0 0.0
        %2689 = vmatprep.subr.mxu0 0.0
        %2690 = vmatpush2.msra.mxu0 0.0
        %2691 = vmatprep.subr.mxu0 0.0
        %2692 = vmatpush2.msra.mxu0 0.0
        %2693 = vmatprep.subr.mxu0 0.0
        %2694 = vmatpush2.msra.mxu0 0.0
        %2695 = vmatprep.subr.mxu0 0.0
        %2696 = vmatpush2.msra.mxu0 0.0
        %2697 = vmatprep.subr.mxu0 0.0
        %2698 = vmatpush2.msra.mxu0 0.0
        %2699 = vmatprep.subr.mxu0 0.0
        %2700 = vmatpush2.msra.mxu0 0.0
        %2701 = vmatprep.subr.mxu0 0.0
        %2702 = vmatpush2.msra.mxu0 0.0
        %2703 = vmatprep.mubr.f32.mxu0 0.0
        %2704 = vmatmul.mubr.f32.gmra.mxu0 %v2567
        %v2705 = vpop.f32.mrf.mxu0
        %v2706 = vadd.f32 0.0, %v2705
        %v2707 = vpop.f32.mrf.mxu0
        %v2708 = vadd.f32 0.0, %v2707
        %2709 = vdwg.mxu0
        %v2710 = vadd.f32 %v2563, %v2635
        %v2711 = vadd.f32 %v2564, %v2637
        %v2712 = vadd.f32 %v2565, %v2706
        %v2713 = vadd.f32 %v2566, %v2708
        %v2714 = vld [vmem:[#allocation5] sm:$0xff]
        %v2715 = vxor.u32 %v2710, 2147483648
        %v2716 = vmul.f32 %v2715, 1.442695
        %v2717 = vpow.pop %v2716
        %v2718 = vadd.f32 %v2717, 1.0
        %v2719 = vrcp.pop %v2718
        %v2720 = vmul.f32 1.0, %v2719
        %v2721 = vxor.u32 %v2711, 2147483648
        %v2722 = vmul.f32 %v2721, 1.442695
        %v2723 = vpow.pop %v2722
        %v2724 = vadd.f32 %v2723, 1.0
        %v2725 = vrcp.pop %v2724
        %v2726 = vmul.f32 1.0, %v2725
        %v2727 = vtanh.pop %v2712
        %v2728 = vxor.u32 %v2713, 2147483648
        %v2729 = vmul.f32 %v2728, 1.442695
        %v2730 = vpow.pop %v2729
        %v2731 = vadd.f32 %v2730, 1.0
        %v2732 = vrcp.pop %v2731
        %v2733 = vmul.f32 1.0, %v2732
        %v2734 = vmul.f32 %v2726, %v2714
        %v2735 = vmul.f32 %v2720, %v2727
        %v2736 = vadd.f32 %v2734, %v2735
        %v2737 = vtanh.pop %v2736
        %v2738 = vmul.f32 %v2733, %v2737
        %2739 = vst [vmem:[#allocation4] sm:$0xff] %v2738
        %2740 = vst [vmem:[#allocation5] sm:$0xff] %v2736
        %s2741 = scalar_lea.vmem %s592, 16
        %2742 = vst [vmem:[%s2741] sm:$0xff] %v2738
        %s2743 = smul.addr %s2195, 8
        %s2744 = scalar_lea.vmem [#allocation3], %s2743
        %v2745 = vld [vmem:[%s2744] sm:$0xff]
        %v2746 = vld [vmem:[%s2744 + $0x8] sm:$0xff]
        %v2747 = vld [vmem:[%s2744 + $0x10] sm:$0xff]
        %v2748 = vld [vmem:[%s2744 + $0x18] sm:$0xff]
        %v2749 = vld [vmem:[#allocation6] sm:$0xff]
        %2750 = vmatprep.subr.mxu0 %v1827
        %2751 = vmatpush1.msra.mxu0 %v1826
        %2752 = vmatprep.subr.mxu0 %v1823
        %2753 = vmatpush1.msra.mxu0 %v1822
        %2754 = vmatprep.subr.mxu0 %v1819
        %2755 = vmatpush1.msra.mxu0 %v1818
        %2756 = vmatprep.subr.mxu0 %v1815
        %2757 = vmatpush1.msra.mxu0 %v1814
        %2758 = vmatprep.subr.mxu0 %v1811
        %2759 = vmatpush1.msra.mxu0 %v1810
        %2760 = vmatprep.subr.mxu0 %v1807
        %2761 = vmatpush1.msra.mxu0 %v1806
        %2762 = vmatprep.subr.mxu0 %v1803
        %2763 = vmatpush1.msra.mxu0 %v1802
        %2764 = vmatprep.subr.mxu0 %v1799
        %2765 = vmatpush1.msra.mxu0 %v1798
        %2766 = vmatprep.subr.mxu0 %v1795
        %2767 = vmatpush1.msra.mxu0 %v1794
        %2768 = vmatprep.subr.mxu0 %v1791
        %2769 = vmatpush1.msra.mxu0 %v1790
        %2770 = vmatprep.subr.mxu0 %v1787
        %2771 = vmatpush1.msra.mxu0 %v1786
        %2772 = vmatprep.subr.mxu0 %v1783
        %2773 = vmatpush1.msra.mxu0 %v1782
        %2774 = vmatprep.subr.mxu0 %v1779
        %2775 = vmatpush1.msra.mxu0 %v1778
        %2776 = vmatprep.subr.mxu0 %v1775
        %2777 = vmatpush1.msra.mxu0 %v1774
        %2778 = vmatprep.subr.mxu0 %v1771
        %2779 = vmatpush1.msra.mxu0 %v1770
        %2780 = vmatprep.subr.mxu0 %v1767
        %2781 = vmatpush1.msra.mxu0 %v1766
        %2782 = vmatprep.subr.mxu0 0.0
        %2783 = vmatpush2.msra.mxu0 0.0
        %2784 = vmatprep.subr.mxu0 0.0
        %2785 = vmatpush2.msra.mxu0 0.0
        %2786 = vmatprep.subr.mxu0 0.0
        %2787 = vmatpush2.msra.mxu0 0.0
        %2788 = vmatprep.subr.mxu0 0.0
        %2789 = vmatpush2.msra.mxu0 0.0
        %2790 = vmatprep.subr.mxu0 0.0
        %2791 = vmatpush2.msra.mxu0 0.0
        %2792 = vmatprep.subr.mxu0 0.0
        %2793 = vmatpush2.msra.mxu0 0.0
        %2794 = vmatprep.subr.mxu0 0.0
        %2795 = vmatpush2.msra.mxu0 0.0
        %2796 = vmatprep.subr.mxu0 0.0
        %2797 = vmatpush2.msra.mxu0 0.0
        %2798 = vmatprep.subr.mxu0 0.0
        %2799 = vmatpush2.msra.mxu0 0.0
        %2800 = vmatprep.subr.mxu0 0.0
        %2801 = vmatpush2.msra.mxu0 0.0
        %2802 = vmatprep.subr.mxu0 0.0
        %2803 = vmatpush2.msra.mxu0 0.0
        %2804 = vmatprep.subr.mxu0 0.0
        %2805 = vmatpush2.msra.mxu0 0.0
        %2806 = vmatprep.subr.mxu0 0.0
        %2807 = vmatpush2.msra.mxu0 0.0
        %2808 = vmatprep.subr.mxu0 0.0
        %2809 = vmatpush2.msra.mxu0 0.0
        %2810 = vmatprep.subr.mxu0 0.0
        %2811 = vmatpush2.msra.mxu0 0.0
        %2812 = vmatprep.subr.mxu0 0.0
        %2813 = vmatpush2.msra.mxu0 0.0
        %2814 = vmatprep.mubr.f32.mxu0 0.0
        %2815 = vmatmul.mubr.f32.gmra.mxu0 %v2749
        %v2816 = vpop.f32.mrf.mxu0
        %v2817 = vadd.f32 0.0, %v2816
        %v2818 = vpop.f32.mrf.mxu0
        %v2819 = vadd.f32 0.0, %v2818
        %2820 = vdwg.mxu0
        %2821 = vmatprep.subr.mxu0 %v1829
        %2822 = vmatpush1.msra.mxu0 %v1828
        %2823 = vmatprep.subr.mxu0 %v1825
        %2824 = vmatpush1.msra.mxu0 %v1824
        %2825 = vmatprep.subr.mxu0 %v1821
        %2826 = vmatpush1.msra.mxu0 %v1820
        %2827 = vmatprep.subr.mxu0 %v1817
        %2828 = vmatpush1.msra.mxu0 %v1816
        %2829 = vmatprep.subr.mxu0 %v1813
        %2830 = vmatpush1.msra.mxu0 %v1812
        %2831 = vmatprep.subr.mxu0 %v1809
        %2832 = vmatpush1.msra.mxu0 %v1808
        %2833 = vmatprep.subr.mxu0 %v1805
        %2834 = vmatpush1.msra.mxu0 %v1804
        %2835 = vmatprep.subr.mxu0 %v1801
        %2836 = vmatpush1.msra.mxu0 %v1800
        %2837 = vmatprep.subr.mxu0 %v1797
        %2838 = vmatpush1.msra.mxu0 %v1796
        %2839 = vmatprep.subr.mxu0 %v1793
        %2840 = vmatpush1.msra.mxu0 %v1792
        %2841 = vmatprep.subr.mxu0 %v1789
        %2842 = vmatpush1.msra.mxu0 %v1788
        %2843 = vmatprep.subr.mxu0 %v1785
        %2844 = vmatpush1.msra.mxu0 %v1784
        %2845 = vmatprep.subr.mxu0 %v1781
        %2846 = vmatpush1.msra.mxu0 %v1780
        %2847 = vmatprep.subr.mxu0 %v1777
        %2848 = vmatpush1.msra.mxu0 %v1776
        %2849 = vmatprep.subr.mxu0 %v1773
        %2850 = vmatpush1.msra.mxu0 %v1772
        %2851 = vmatprep.subr.mxu0 %v1769
        %2852 = vmatpush1.msra.mxu0 %v1768
        %2853 = vmatprep.subr.mxu0 0.0
        %2854 = vmatpush2.msra.mxu0 0.0
        %2855 = vmatprep.subr.mxu0 0.0
        %2856 = vmatpush2.msra.mxu0 0.0
        %2857 = vmatprep.subr.mxu0 0.0
        %2858 = vmatpush2.msra.mxu0 0.0
        %2859 = vmatprep.subr.mxu0 0.0
        %2860 = vmatpush2.msra.mxu0 0.0
        %2861 = vmatprep.subr.mxu0 0.0
        %2862 = vmatpush2.msra.mxu0 0.0
        %2863 = vmatprep.subr.mxu0 0.0
        %2864 = vmatpush2.msra.mxu0 0.0
        %2865 = vmatprep.subr.mxu0 0.0
        %2866 = vmatpush2.msra.mxu0 0.0
        %2867 = vmatprep.subr.mxu0 0.0
        %2868 = vmatpush2.msra.mxu0 0.0
        %2869 = vmatprep.subr.mxu0 0.0
        %2870 = vmatpush2.msra.mxu0 0.0
        %2871 = vmatprep.subr.mxu0 0.0
        %2872 = vmatpush2.msra.mxu0 0.0
        %2873 = vmatprep.subr.mxu0 0.0
        %2874 = vmatpush2.msra.mxu0 0.0
        %2875 = vmatprep.subr.mxu0 0.0
        %2876 = vmatpush2.msra.mxu0 0.0
        %2877 = vmatprep.subr.mxu0 0.0
        %2878 = vmatpush2.msra.mxu0 0.0
        %2879 = vmatprep.subr.mxu0 0.0
        %2880 = vmatpush2.msra.mxu0 0.0
        %2881 = vmatprep.subr.mxu0 0.0
        %2882 = vmatpush2.msra.mxu0 0.0
        %2883 = vmatprep.subr.mxu0 0.0
        %2884 = vmatpush2.msra.mxu0 0.0
        %2885 = vmatprep.mubr.f32.mxu0 0.0
        %2886 = vmatmul.mubr.f32.gmra.mxu0 %v2749
        %v2887 = vpop.f32.mrf.mxu0
        %v2888 = vadd.f32 0.0, %v2887
        %v2889 = vpop.f32.mrf.mxu0
        %v2890 = vadd.f32 0.0, %v2889
        %2891 = vdwg.mxu0
        %v2892 = vadd.f32 %v2745, %v2817
        %v2893 = vadd.f32 %v2746, %v2819
        %v2894 = vadd.f32 %v2747, %v2888
        %v2895 = vadd.f32 %v2748, %v2890
        %v2896 = vld [vmem:[#allocation7] sm:$0xff]
        %v2897 = vxor.u32 %v2892, 2147483648
        %v2898 = vmul.f32 %v2897, 1.442695
        %v2899 = vpow.pop %v2898
        %v2900 = vadd.f32 %v2899, 1.0
        %v2901 = vrcp.pop %v2900
        %v2902 = vmul.f32 1.0, %v2901
        %v2903 = vxor.u32 %v2893, 2147483648
        %v2904 = vmul.f32 %v2903, 1.442695
        %v2905 = vpow.pop %v2904
        %v2906 = vadd.f32 %v2905, 1.0
        %v2907 = vrcp.pop %v2906
        %v2908 = vmul.f32 1.0, %v2907
        %v2909 = vtanh.pop %v2894
        %v2910 = vxor.u32 %v2895, 2147483648
        %v2911 = vmul.f32 %v2910, 1.442695
        %v2912 = vpow.pop %v2911
        %v2913 = vadd.f32 %v2912, 1.0
        %v2914 = vrcp.pop %v2913
        %v2915 = vmul.f32 1.0, %v2914
        %v2916 = vmul.f32 %v2908, %v2896
        %v2917 = vmul.f32 %v2902, %v2909
        %v2918 = vadd.f32 %v2916, %v2917
        %v2919 = vtanh.pop %v2918
        %v2920 = vmul.f32 %v2915, %v2919
        %2921 = vst [vmem:[#allocation6] sm:$0xff] %v2920
        %2922 = vst [vmem:[#allocation7] sm:$0xff] %v2918
        %s2923 = scalar_lea.vmem %s599, 8
        %2924 = vst [vmem:[%s2923] sm:$0xff] %v2920
        %s2925 = smul.addr %s2012, 8
        %s2926 = scalar_lea.vmem [#allocation2], %s2925
        %v2927 = vld [vmem:[%s2926] sm:$0xff]
        %v2928 = vld [vmem:[%s2926 + $0x8] sm:$0xff]
        %v2929 = vld [vmem:[%s2926 + $0x10] sm:$0xff]
        %v2930 = vld [vmem:[%s2926 + $0x18] sm:$0xff]
        %v2931 = vld [vmem:[#allocation4] sm:$0xff]
        %2932 = vmatprep.subr.mxu0 %v1763
        %2933 = vmatpush1.msra.mxu0 %v1762
        %2934 = vmatprep.subr.mxu0 %v1759
        %2935 = vmatpush1.msra.mxu0 %v1758
        %2936 = vmatprep.subr.mxu0 %v1755
        %2937 = vmatpush1.msra.mxu0 %v1754
        %2938 = vmatprep.subr.mxu0 %v1751
        %2939 = vmatpush1.msra.mxu0 %v1750
        %2940 = vmatprep.subr.mxu0 %v1747
        %2941 = vmatpush1.msra.mxu0 %v1746
        %2942 = vmatprep.subr.mxu0 %v1743
        %2943 = vmatpush1.msra.mxu0 %v1742
        %2944 = vmatprep.subr.mxu0 %v1739
        %2945 = vmatpush1.msra.mxu0 %v1738
        %2946 = vmatprep.subr.mxu0 %v1735
        %2947 = vmatpush1.msra.mxu0 %v1734
        %2948 = vmatprep.subr.mxu0 %v1731
        %2949 = vmatpush1.msra.mxu0 %v1730
        %2950 = vmatprep.subr.mxu0 %v1727
        %2951 = vmatpush1.msra.mxu0 %v1726
        %2952 = vmatprep.subr.mxu0 %v1723
        %2953 = vmatpush1.msra.mxu0 %v1722
        %2954 = vmatprep.subr.mxu0 %v1719
        %2955 = vmatpush1.msra.mxu0 %v1718
        %2956 = vmatprep.subr.mxu0 %v1715
        %2957 = vmatpush1.msra.mxu0 %v1714
        %2958 = vmatprep.subr.mxu0 %v1711
        %2959 = vmatpush1.msra.mxu0 %v1710
        %2960 = vmatprep.subr.mxu0 %v1707
        %2961 = vmatpush1.msra.mxu0 %v1706
        %2962 = vmatprep.subr.mxu0 %v1703
        %2963 = vmatpush1.msra.mxu0 %v1702
        %2964 = vmatprep.subr.mxu0 0.0
        %2965 = vmatpush2.msra.mxu0 0.0
        %2966 = vmatprep.subr.mxu0 0.0
        %2967 = vmatpush2.msra.mxu0 0.0
        %2968 = vmatprep.subr.mxu0 0.0
        %2969 = vmatpush2.msra.mxu0 0.0
        %2970 = vmatprep.subr.mxu0 0.0
        %2971 = vmatpush2.msra.mxu0 0.0
        %2972 = vmatprep.subr.mxu0 0.0
        %2973 = vmatpush2.msra.mxu0 0.0
        %2974 = vmatprep.subr.mxu0 0.0
        %2975 = vmatpush2.msra.mxu0 0.0
        %2976 = vmatprep.subr.mxu0 0.0
        %2977 = vmatpush2.msra.mxu0 0.0
        %2978 = vmatprep.subr.mxu0 0.0
        %2979 = vmatpush2.msra.mxu0 0.0
        %2980 = vmatprep.subr.mxu0 0.0
        %2981 = vmatpush2.msra.mxu0 0.0
        %2982 = vmatprep.subr.mxu0 0.0
        %2983 = vmatpush2.msra.mxu0 0.0
        %2984 = vmatprep.subr.mxu0 0.0
        %2985 = vmatpush2.msra.mxu0 0.0
        %2986 = vmatprep.subr.mxu0 0.0
        %2987 = vmatpush2.msra.mxu0 0.0
        %2988 = vmatprep.subr.mxu0 0.0
        %2989 = vmatpush2.msra.mxu0 0.0
        %2990 = vmatprep.subr.mxu0 0.0
        %2991 = vmatpush2.msra.mxu0 0.0
        %2992 = vmatprep.subr.mxu0 0.0
        %2993 = vmatpush2.msra.mxu0 0.0
        %2994 = vmatprep.subr.mxu0 0.0
        %2995 = vmatpush2.msra.mxu0 0.0
        %2996 = vmatprep.mubr.f32.mxu0 0.0
        %2997 = vmatmul.mubr.f32.gmra.mxu0 %v2931
        %v2998 = vpop.f32.mrf.mxu0
        %v2999 = vadd.f32 0.0, %v2998
        %v3000 = vpop.f32.mrf.mxu0
        %v3001 = vadd.f32 0.0, %v3000
        %3002 = vdwg.mxu0
        %3003 = vmatprep.subr.mxu0 %v1765
        %3004 = vmatpush1.msra.mxu0 %v1764
        %3005 = vmatprep.subr.mxu0 %v1761
        %3006 = vmatpush1.msra.mxu0 %v1760
        %3007 = vmatprep.subr.mxu0 %v1757
        %3008 = vmatpush1.msra.mxu0 %v1756
        %3009 = vmatprep.subr.mxu0 %v1753
        %3010 = vmatpush1.msra.mxu0 %v1752
        %3011 = vmatprep.subr.mxu0 %v1749
        %3012 = vmatpush1.msra.mxu0 %v1748
        %3013 = vmatprep.subr.mxu0 %v1745
        %3014 = vmatpush1.msra.mxu0 %v1744
        %3015 = vmatprep.subr.mxu0 %v1741
        %3016 = vmatpush1.msra.mxu0 %v1740
        %3017 = vmatprep.subr.mxu0 %v1737
        %3018 = vmatpush1.msra.mxu0 %v1736
        %3019 = vmatprep.subr.mxu0 %v1733
        %3020 = vmatpush1.msra.mxu0 %v1732
        %3021 = vmatprep.subr.mxu0 %v1729
        %3022 = vmatpush1.msra.mxu0 %v1728
        %3023 = vmatprep.subr.mxu0 %v1725
        %3024 = vmatpush1.msra.mxu0 %v1724
        %3025 = vmatprep.subr.mxu0 %v1721
        %3026 = vmatpush1.msra.mxu0 %v1720
        %3027 = vmatprep.subr.mxu0 %v1717
        %3028 = vmatpush1.msra.mxu0 %v1716
        %3029 = vmatprep.subr.mxu0 %v1713
        %3030 = vmatpush1.msra.mxu0 %v1712
        %3031 = vmatprep.subr.mxu0 %v1709
        %3032 = vmatpush1.msra.mxu0 %v1708
        %3033 = vmatprep.subr.mxu0 %v1705
        %3034 = vmatpush1.msra.mxu0 %v1704
        %3035 = vmatprep.subr.mxu0 0.0
        %3036 = vmatpush2.msra.mxu0 0.0
        %3037 = vmatprep.subr.mxu0 0.0
        %3038 = vmatpush2.msra.mxu0 0.0
        %3039 = vmatprep.subr.mxu0 0.0
        %3040 = vmatpush2.msra.mxu0 0.0
        %3041 = vmatprep.subr.mxu0 0.0
        %3042 = vmatpush2.msra.mxu0 0.0
        %3043 = vmatprep.subr.mxu0 0.0
        %3044 = vmatpush2.msra.mxu0 0.0
        %3045 = vmatprep.subr.mxu0 0.0
        %3046 = vmatpush2.msra.mxu0 0.0
        %3047 = vmatprep.subr.mxu0 0.0
        %3048 = vmatpush2.msra.mxu0 0.0
        %3049 = vmatprep.subr.mxu0 0.0
        %3050 = vmatpush2.msra.mxu0 0.0
        %3051 = vmatprep.subr.mxu0 0.0
        %3052 = vmatpush2.msra.mxu0 0.0
        %3053 = vmatprep.subr.mxu0 0.0
        %3054 = vmatpush2.msra.mxu0 0.0
        %3055 = vmatprep.subr.mxu0 0.0
        %3056 = vmatpush2.msra.mxu0 0.0
        %3057 = vmatprep.subr.mxu0 0.0
        %3058 = vmatpush2.msra.mxu0 0.0
        %3059 = vmatprep.subr.mxu0 0.0
        %3060 = vmatpush2.msra.mxu0 0.0
        %3061 = vmatprep.subr.mxu0 0.0
        %3062 = vmatpush2.msra.mxu0 0.0
        %3063 = vmatprep.subr.mxu0 0.0
        %3064 = vmatpush2.msra.mxu0 0.0
        %3065 = vmatprep.subr.mxu0 0.0
        %3066 = vmatpush2.msra.mxu0 0.0
        %3067 = vmatprep.mubr.f32.mxu0 0.0
        %3068 = vmatmul.mubr.f32.gmra.mxu0 %v2931
        %v3069 = vpop.f32.mrf.mxu0
        %v3070 = vadd.f32 0.0, %v3069
        %v3071 = vpop.f32.mrf.mxu0
        %v3072 = vadd.f32 0.0, %v3071
        %3073 = vdwg.mxu0
        %v3074 = vadd.f32 %v2927, %v2999
        %v3075 = vadd.f32 %v2928, %v3001
        %v3076 = vadd.f32 %v2929, %v3070
        %v3077 = vadd.f32 %v2930, %v3072
        %v3078 = vld [vmem:[#allocation5] sm:$0xff]
        %v3079 = vxor.u32 %v3074, 2147483648
        %v3080 = vmul.f32 %v3079, 1.442695
        %v3081 = vpow.pop %v3080
        %v3082 = vadd.f32 %v3081, 1.0
        %v3083 = vrcp.pop %v3082
        %v3084 = vmul.f32 1.0, %v3083
        %v3085 = vxor.u32 %v3075, 2147483648
        %v3086 = vmul.f32 %v3085, 1.442695
        %v3087 = vpow.pop %v3086
        %v3088 = vadd.f32 %v3087, 1.0
        %v3089 = vrcp.pop %v3088
        %v3090 = vmul.f32 1.0, %v3089
        %v3091 = vtanh.pop %v3076
        %v3092 = vxor.u32 %v3077, 2147483648
        %v3093 = vmul.f32 %v3092, 1.442695
        %v3094 = vpow.pop %v3093
        %v3095 = vadd.f32 %v3094, 1.0
        %v3096 = vrcp.pop %v3095
        %v3097 = vmul.f32 1.0, %v3096
        %v3098 = vmul.f32 %v3090, %v3078
        %v3099 = vmul.f32 %v3084, %v3091
        %v3100 = vadd.f32 %v3098, %v3099
        %v3101 = vtanh.pop %v3100
        %v3102 = vmul.f32 %v3097, %v3101
        %3103 = vst [vmem:[#allocation4] sm:$0xff] %v3102
        %3104 = vst [vmem:[#allocation5] sm:$0xff] %v3100
        %s3105 = scalar_lea.vmem %s592, 24
        %3106 = vst [vmem:[%s3105] sm:$0xff] %v3102
        %s3107 = smul.addr %s1830, 8
        %s3108 = scalar_lea.vmem [#allocation3], %s3107
        %v3109 = vld [vmem:[%s3108] sm:$0xff]
        %v3110 = vld [vmem:[%s3108 + $0x8] sm:$0xff]
        %v3111 = vld [vmem:[%s3108 + $0x10] sm:$0xff]
        %v3112 = vld [vmem:[%s3108 + $0x18] sm:$0xff]
        %v3113 = vld [vmem:[#allocation6] sm:$0xff]
        %3114 = vmatprep.subr.mxu0 %v1827
        %3115 = vmatpush1.msra.mxu0 %v1826
        %3116 = vmatprep.subr.mxu0 %v1823
        %3117 = vmatpush1.msra.mxu0 %v1822
        %3118 = vmatprep.subr.mxu0 %v1819
        %3119 = vmatpush1.msra.mxu0 %v1818
        %3120 = vmatprep.subr.mxu0 %v1815
        %3121 = vmatpush1.msra.mxu0 %v1814
        %3122 = vmatprep.subr.mxu0 %v1811
        %3123 = vmatpush1.msra.mxu0 %v1810
        %3124 = vmatprep.subr.mxu0 %v1807
        %3125 = vmatpush1.msra.mxu0 %v1806
        %3126 = vmatprep.subr.mxu0 %v1803
        %3127 = vmatpush1.msra.mxu0 %v1802
        %3128 = vmatprep.subr.mxu0 %v1799
        %3129 = vmatpush1.msra.mxu0 %v1798
        %3130 = vmatprep.subr.mxu0 %v1795
        %3131 = vmatpush1.msra.mxu0 %v1794
        %3132 = vmatprep.subr.mxu0 %v1791
        %3133 = vmatpush1.msra.mxu0 %v1790
        %3134 = vmatprep.subr.mxu0 %v1787
        %3135 = vmatpush1.msra.mxu0 %v1786
        %3136 = vmatprep.subr.mxu0 %v1783
        %3137 = vmatpush1.msra.mxu0 %v1782
        %3138 = vmatprep.subr.mxu0 %v1779
        %3139 = vmatpush1.msra.mxu0 %v1778
        %3140 = vmatprep.subr.mxu0 %v1775
        %3141 = vmatpush1.msra.mxu0 %v1774
        %3142 = vmatprep.subr.mxu0 %v1771
        %3143 = vmatpush1.msra.mxu0 %v1770
        %3144 = vmatprep.subr.mxu0 %v1767
        %3145 = vmatpush1.msra.mxu0 %v1766
        %3146 = vmatprep.subr.mxu0 0.0
        %3147 = vmatpush2.msra.mxu0 0.0
        %3148 = vmatprep.subr.mxu0 0.0
        %3149 = vmatpush2.msra.mxu0 0.0
        %3150 = vmatprep.subr.mxu0 0.0
        %3151 = vmatpush2.msra.mxu0 0.0
        %3152 = vmatprep.subr.mxu0 0.0
        %3153 = vmatpush2.msra.mxu0 0.0
        %3154 = vmatprep.subr.mxu0 0.0
        %3155 = vmatpush2.msra.mxu0 0.0
        %3156 = vmatprep.subr.mxu0 0.0
        %3157 = vmatpush2.msra.mxu0 0.0
        %3158 = vmatprep.subr.mxu0 0.0
        %3159 = vmatpush2.msra.mxu0 0.0
        %3160 = vmatprep.subr.mxu0 0.0
        %3161 = vmatpush2.msra.mxu0 0.0
        %3162 = vmatprep.subr.mxu0 0.0
        %3163 = vmatpush2.msra.mxu0 0.0
        %3164 = vmatprep.subr.mxu0 0.0
        %3165 = vmatpush2.msra.mxu0 0.0
        %3166 = vmatprep.subr.mxu0 0.0
        %3167 = vmatpush2.msra.mxu0 0.0
        %3168 = vmatprep.subr.mxu0 0.0
        %3169 = vmatpush2.msra.mxu0 0.0
        %3170 = vmatprep.subr.mxu0 0.0
        %3171 = vmatpush2.msra.mxu0 0.0
        %3172 = vmatprep.subr.mxu0 0.0
        %3173 = vmatpush2.msra.mxu0 0.0
        %3174 = vmatprep.subr.mxu0 0.0
        %3175 = vmatpush2.msra.mxu0 0.0
        %3176 = vmatprep.subr.mxu0 0.0
        %3177 = vmatpush2.msra.mxu0 0.0
        %3178 = vmatprep.mubr.f32.mxu0 0.0
        %3179 = vmatmul.mubr.f32.gmra.mxu0 %v3113
        %v3180 = vpop.f32.mrf.mxu0
        %v3181 = vadd.f32 0.0, %v3180
        %v3182 = vpop.f32.mrf.mxu0
        %v3183 = vadd.f32 0.0, %v3182
        %3184 = vdwg.mxu0
        %3185 = vmatprep.subr.mxu0 %v1829
        %3186 = vmatpush1.msra.mxu0 %v1828
        %3187 = vmatprep.subr.mxu0 %v1825
        %3188 = vmatpush1.msra.mxu0 %v1824
        %3189 = vmatprep.subr.mxu0 %v1821
        %3190 = vmatpush1.msra.mxu0 %v1820
        %3191 = vmatprep.subr.mxu0 %v1817
        %3192 = vmatpush1.msra.mxu0 %v1816
        %3193 = vmatprep.subr.mxu0 %v1813
        %3194 = vmatpush1.msra.mxu0 %v1812
        %3195 = vmatprep.subr.mxu0 %v1809
        %3196 = vmatpush1.msra.mxu0 %v1808
        %3197 = vmatprep.subr.mxu0 %v1805
        %3198 = vmatpush1.msra.mxu0 %v1804
        %3199 = vmatprep.subr.mxu0 %v1801
        %3200 = vmatpush1.msra.mxu0 %v1800
        %3201 = vmatprep.subr.mxu0 %v1797
        %3202 = vmatpush1.msra.mxu0 %v1796
        %3203 = vmatprep.subr.mxu0 %v1793
        %3204 = vmatpush1.msra.mxu0 %v1792
        %3205 = vmatprep.subr.mxu0 %v1789
        %3206 = vmatpush1.msra.mxu0 %v1788
        %3207 = vmatprep.subr.mxu0 %v1785
        %3208 = vmatpush1.msra.mxu0 %v1784
        %3209 = vmatprep.subr.mxu0 %v1781
        %3210 = vmatpush1.msra.mxu0 %v1780
        %3211 = vmatprep.subr.mxu0 %v1777
        %3212 = vmatpush1.msra.mxu0 %v1776
        %3213 = vmatprep.subr.mxu0 %v1773
        %3214 = vmatpush1.msra.mxu0 %v1772
        %3215 = vmatprep.subr.mxu0 %v1769
        %3216 = vmatpush1.msra.mxu0 %v1768
        %3217 = vmatprep.subr.mxu0 0.0
        %3218 = vmatpush2.msra.mxu0 0.0
        %3219 = vmatprep.subr.mxu0 0.0
        %3220 = vmatpush2.msra.mxu0 0.0
        %3221 = vmatprep.subr.mxu0 0.0
        %3222 = vmatpush2.msra.mxu0 0.0
        %3223 = vmatprep.subr.mxu0 0.0
        %3224 = vmatpush2.msra.mxu0 0.0
        %3225 = vmatprep.subr.mxu0 0.0
        %3226 = vmatpush2.msra.mxu0 0.0
        %3227 = vmatprep.subr.mxu0 0.0
        %3228 = vmatpush2.msra.mxu0 0.0
        %3229 = vmatprep.subr.mxu0 0.0
        %3230 = vmatpush2.msra.mxu0 0.0
        %3231 = vmatprep.subr.mxu0 0.0
        %3232 = vmatpush2.msra.mxu0 0.0
        %3233 = vmatprep.subr.mxu0 0.0
        %3234 = vmatpush2.msra.mxu0 0.0
        %3235 = vmatprep.subr.mxu0 0.0
        %3236 = vmatpush2.msra.mxu0 0.0
        %3237 = vmatprep.subr.mxu0 0.0
        %3238 = vmatpush2.msra.mxu0 0.0
        %3239 = vmatprep.subr.mxu0 0.0
        %3240 = vmatpush2.msra.mxu0 0.0
        %3241 = vmatprep.subr.mxu0 0.0
        %3242 = vmatpush2.msra.mxu0 0.0
        %3243 = vmatprep.subr.mxu0 0.0
        %3244 = vmatpush2.msra.mxu0 0.0
        %3245 = vmatprep.subr.mxu0 0.0
        %3246 = vmatpush2.msra.mxu0 0.0
        %3247 = vmatprep.subr.mxu0 0.0
        %3248 = vmatpush2.msra.mxu0 0.0
        %3249 = vmatprep.mubr.f32.mxu0 0.0
        %3250 = vmatmul.mubr.f32.gmra.mxu0 %v3113
        %v3251 = vpop.f32.mrf.mxu0
        %v3252 = vadd.f32 0.0, %v3251
        %v3253 = vpop.f32.mrf.mxu0
        %v3254 = vadd.f32 0.0, %v3253
        %3255 = vdwg.mxu0
        %v3256 = vadd.f32 %v3109, %v3181
        %v3257 = vadd.f32 %v3110, %v3183
        %v3258 = vadd.f32 %v3111, %v3252
        %v3259 = vadd.f32 %v3112, %v3254
        %v3260 = vld [vmem:[#allocation7] sm:$0xff]
        %v3261 = vxor.u32 %v3256, 2147483648
        %v3262 = vmul.f32 %v3261, 1.442695
        %v3263 = vpow.pop %v3262
        %v3264 = vadd.f32 %v3263, 1.0
        %v3265 = vrcp.pop %v3264
        %v3266 = vmul.f32 1.0, %v3265
        %v3267 = vxor.u32 %v3257, 2147483648
        %v3268 = vmul.f32 %v3267, 1.442695
        %v3269 = vpow.pop %v3268
        %v3270 = vadd.f32 %v3269, 1.0
        %v3271 = vrcp.pop %v3270
        %v3272 = vmul.f32 1.0, %v3271
        %v3273 = vtanh.pop %v3258
        %v3274 = vxor.u32 %v3259, 2147483648
        %v3275 = vmul.f32 %v3274, 1.442695
        %v3276 = vpow.pop %v3275
        %v3277 = vadd.f32 %v3276, 1.0
        %v3278 = vrcp.pop %v3277
        %v3279 = vmul.f32 1.0, %v3278
        %v3280 = vmul.f32 %v3272, %v3260
        %v3281 = vmul.f32 %v3266, %v3273
        %v3282 = vadd.f32 %v3280, %v3281
        %v3283 = vtanh.pop %v3282
        %v3284 = vmul.f32 %v3279, %v3283
        %3285 = vst [vmem:[#allocation6] sm:$0xff] %v3284
        %3286 = vst [vmem:[#allocation7] sm:$0xff] %v3282
        %3287 = vst [vmem:[%s599] sm:$0xff] %v3284
        %s3288 = smul.u32 4, %s28
        %p3289 = scmp.lt.s32.totalorder %s3288, 7
        %s3290 = scalar_select %p3289, %s3288, 7
        %s3291 = smul.addr %s3290, 8
        %s3292 = scalar_lea.vmem %s12, %s3291
        %s3293 = ssub.s32 1, %s28
        %s3294 = smul.u32 4, %s3293
        %p3295 = scmp.lt.s32.totalorder %s3294, 7
        %s3296 = scalar_select %p3295, %s3294, 7
        %s3297 = smul.addr %s3296, 8
        %s3298 = scalar_lea.vmem %s13, %s3297
        // Predicated region
        $region89: #{blstm_conversion_forward.4} parent=67 // pred_check
          %p3299 = pneg %p322
        $region90: #{blstm_conversion_forward.4} parent=67 // pred_check_branch
          %3301 = sbr.rel (%p3299) target = $region92
        $region91: #{blstm_conversion_forward.4} parent=67 // pred_region
          %s3302 = smul.u32 4, %s28
        $region92: #{blstm_conversion_forward.4} parent=67 // pred_fallthru
          _
        // Predicated region
        $region93: #{blstm_conversion_forward.4} parent=67 // pred_check
          %p3303 = pneg %p350
        $region94: #{blstm_conversion_forward.4} parent=67 // pred_check_branch
          %3305 = sbr.rel (%p3303) target = $region96
        $region95: #{blstm_conversion_forward.4} parent=67 // pred_region
          %s3306 = ssub.s32 1, %s28
          %s3307 = smul.u32 4, %s3306
        $region96: #{blstm_conversion_forward.4} parent=67 // pred_fallthru
          _
      $region68: #{blstm_conversion_forward.4} parent=5 // pred_fallthru
        _
      %p3308 = scmp.le.s32.totalorder 2, %s23
      // Predicated region
      $region97: #{blstm_conversion_forward.4} parent=5 // pred_check
        %p3309 = pneg %p3308
      $region98: #{blstm_conversion_forward.4} parent=5 // pred_check_branch
        %3311 = sbr.rel (%p3309) target = $region100
      $region99: #{blstm_conversion_forward.4} parent=5 // pred_region
        %s3312 = ssub.s32 %s23, 2
        // Predicated region
        $region101: #{blstm_conversion_forward.4} parent=99 // pred_check
          %p3313 = pneg %p328
        $region102: #{blstm_conversion_forward.4} parent=99 // pred_check_branch
          %3315 = sbr.rel (%p3313) target = $region104
        $region103: #{blstm_conversion_forward.4} parent=99 // pred_region
          %s3316 = smul.u32 4, %s29
          %p3317 = scmp.lt.s32.totalorder %s3316, 7
          %s3318 = scalar_select %p3317, %s3316, 7
          %s3319 = smul.addr %s3318, 8
          %s3320 = scalar_lea.vmem %s12, %s3319
        $region104: #{blstm_conversion_forward.4} parent=99 // pred_fallthru
          _
        // Predicated region
        $region105: #{blstm_conversion_forward.4} parent=99 // pred_check
          %p3321 = pneg %p356
        $region106: #{blstm_conversion_forward.4} parent=99 // pred_check_branch
          %3323 = sbr.rel (%p3321) target = $region108
        $region107: #{blstm_conversion_forward.4} parent=99 // pred_region
          %s3324 = ssub.s32 1, %s29
          %s3325 = smul.u32 4, %s3324
          %p3326 = scmp.lt.s32.totalorder %s3325, 7
          %s3327 = scalar_select %p3326, %s3325, 7
          %s3328 = smul.addr %s3327, 8
          %s3329 = scalar_lea.vmem %s13, %s3328
        $region108: #{blstm_conversion_forward.4} parent=99 // pred_fallthru
          _
      $region100: #{blstm_conversion_forward.4} parent=5 // pred_fallthru
        _
    $region6: #{blstm_conversion_forward.4} parent=1 // loop_footer
      %s27 = sadd.s32 1, %s23
    $region7: #{blstm_conversion_forward.4} parent=1 // loop_footer_branch
      %22 = sbr.rel target = $region3
    $region8: #{blstm_conversion_forward.4} parent=1 // loop_exit
      _
    %3330 = vsyncpa [#allocation9], 1
    %s3331 = scalar_lea.sflag [#allocation9], 1
    %3332 = vsyncpa %s3331, 1
    %3333 = vsyncpa [#allocation11], 1
    %3334 = vsyncpa [#allocation14], 1

// kernel: blstm_conversion_forward.3
$region0: #{blstm_conversion_forward.3}
  #allocation0 [shape = 'u32[]', space=smem, size = 0x4, offset = 0x4, fixed_abs, tag = 'smem constant byte address 0x4 - core index']
  #allocation1 [shape = 'u32[144,128]{1,0:T(1,128)}', space=vmem, size = 0x12000, scoped, tag = 'internal scratch']
  #allocation2 [shape = 'f32[32,512]{1,0:T(8,128)}', space=vmem, size = 0x10000, scoped, tag = 'scratch operand']
  #allocation3 [shape = 'f32[32,512]{1,0:T(8,128)}', space=vmem, size = 0x10000, scoped, tag = 'scratch operand']
  #allocation4 [shape = 'f32[8,128]{1,0:T(8,128)}', space=vmem, size = 0x1000, scoped, tag = 'scratch operand']
  #allocation5 [shape = 'f32[8,128]{1,0:T(8,128)}', space=vmem, size = 0x1000, scoped, tag = 'scratch operand']
  #allocation6 [shape = 'f32[8,128]{1,0:T(8,128)}', space=vmem, size = 0x1000, scoped, tag = 'scratch operand']
  #allocation7 [shape = 'f32[8,128]{1,0:T(8,128)}', space=vmem, size = 0x1000, scoped, tag = 'scratch operand']
  %s0 = inlined_call_operand.vmem [shape: f32[64,16], index: 0, kind: input, shape index: {}, may-alias: {0,1}]
  %s1 = inlined_call_operand.vmem [shape: f32[64,16], index: 1, kind: input, shape index: {}, may-alias: {0,1}]
  %s2 = inlined_call_operand.vmem [shape: f32[16,512], index: 2, kind: input, shape index: {}]
  %s3 = inlined_call_operand.hbm [shape: f32[16,512], index: 3, kind: input, shape index: {}]
  %s4 = inlined_call_operand.hbm [shape: f32[128,512], index: 4, kind: input, shape index: {}]
  %s5 = inlined_call_operand.hbm [shape: f32[128,512], index: 5, kind: input, shape index: {}]
  %s6 = inlined_call_operand.vmem [shape: f32[1,512], index: 6, kind: input, shape index: {}]
  %s7 = inlined_call_operand.vmem [shape: f32[1,512], index: 7, kind: input, shape index: {}]
  %s8 = inlined_call_operand.vmem [shape: f32[8,8,128], index: 8, kind: output, shape index: {0}]
  %s9 = inlined_call_operand.vmem [shape: f32[8,8,128], index: 9, kind: output, shape index: {1}]
  %10 = xla_tuple %s8, %s9
  %s11 = sld [smem:[#allocation0]]
  $region89: #{blstm_conversion_forward.3} parent=0
    _
  %s13 = ssub.s32 1, %s11
  %s14 = scalar_select 0, %s13, %s11
  $region1: #{blstm_conversion_forward.3} parent=0
    #allocation8 [shape = 'u8[32768]{0}', space=vmem, size = 0x8000, scoped, tag = 'input window, operand 3, single buffered']
    #allocation9 [shape = 's32[2]{0}', space=sflag, size = 0x8, scoped, tag = 'scoped memory for blstm_conversion_forward.3']
    #allocation10 [shape = 'u8[262144]{0}', space=vmem, size = 0x40000, scoped, tag = 'input window, operand 4, single buffered']
    #allocation11 [shape = 's32[1]{0}', space=sflag, size = 0x4, scoped, tag = 'scoped memory for blstm_conversion_forward.3']
    #allocation12 [shape = 'u8[262144]{0}', space=vmem, size = 0x40000, scoped, tag = 'input window, operand 5, single buffered']
    %15 = vsyncpa [#allocation9], 0
    %16 = vsyncpa [#allocation11], 0
    loop: start=0, step=1, limit=4
    $region2: #{blstm_conversion_forward.3} parent=1 // loop_pre_header
      _
    $region3: #{blstm_conversion_forward.3} parent=1 // loop_header
      %s18 = sphi 0, %s22
      %p19 = scmp.ge.s32.totalorder %s18, 4
      %s28 = sphi 0, %s30
      %s31 = sphi 0, %s28
      %s32 = sphi 0, %s31
      %s48 = sphi 0, %s32
      %s56 = sphi 0, %s58
      %s59 = sphi 0, %s56
      %s60 = sphi 0, %s59
      %s76 = sphi 0, %s60
      %s80 = sphi 0, %s80
      %s82 = sphi 0, %s80
      %s83 = sphi 0, %s82
      %s97 = sphi 0, %s83
      %s101 = sphi 0, %s101
      %s103 = sphi 0, %s101
      %s104 = sphi 0, %s103
      %s118 = sphi 0, %s104
      %s122 = sphi 0, %s122
      %s124 = sphi 0, %s122
      %s125 = sphi 0, %s124
      %s139 = sphi 0, %s125
      %s143 = sphi 0, %s143
      %s145 = sphi 0, %s143
      %s146 = sphi 0, %s145
      %s160 = sphi 0, %s146
      %s164 = sphi 0, %s164
      %s166 = sphi 0, %s164
      %s167 = sphi 0, %s166
      %s181 = sphi 0, %s167
      %s185 = sphi 0, %s185
      %s187 = sphi 0, %s185
      %s188 = sphi 0, %s187
      %s202 = sphi 0, %s188
      %s208 = sphi 0, %s210
      %s211 = sphi 0, %s208
      %s212 = sphi 0, %s211
      %s228 = sphi 0, %s212
      %s236 = sphi 0, %s238
      %s239 = sphi 0, %s236
      %s240 = sphi 0, %s239
      %s256 = sphi 0, %s240
    $region4: #{blstm_conversion_forward.3} parent=1 // loop_header_branch
      %21 = sbr.rel (%p19) target = $region8
    $region5: #{blstm_conversion_forward.3} parent=1 // loop_body
      %s23 = ssub.s32 %s18, 1
      %s24 = ssub.s32 %s18, 2
      %s25 = sadd.s32 %s18, 1
      %s26 = ssub.s32 %s18, %s25
      %p27 = scmp.eq.s32.totalorder %s26, 0
      %s29 = sadd.s32 %s28, 1
      %s30 = scalar_select %p27, %s28, %s29
      %p33 = pneg %p27
      %p34 = scmp.eq.s32.totalorder %s18, 1
      %p35 = por %p33, %p34
      %p36 = scmp.ne.s32.totalorder %s28, %s31
      %p37 = scmp.eq.s32.totalorder %s18, 0
      %p38 = por %p36, %p37
      %p39 = scmp.ne.s32.totalorder %s28, %s31
      %p40 = scmp.eq.s32.totalorder %s23, 1
      %p41 = por %p39, %p40
      %p42 = scmp.ne.s32.totalorder %s31, %s32
      %p43 = scmp.eq.s32.totalorder %s23, 0
      %p44 = por %p42, %p43
      %p45 = scmp.ne.s32.totalorder %s31, %s32
      %p46 = scmp.eq.s32.totalorder %s24, 1
      %p47 = por %p45, %p46
      %p49 = scmp.ne.s32.totalorder %s32, %s48
      %p50 = scmp.eq.s32.totalorder %s24, 0
      %p51 = por %p49, %p50
      %s52 = ssub.s32 1, %s18
      %s53 = ssub.s32 1, %s25
      %s54 = ssub.s32 %s52, %s53
      %p55 = scmp.eq.s32.totalorder %s54, 0
      %s57 = sadd.s32 %s56, 1
      %s58 = scalar_select %p55, %s56, %s57
      %p61 = pneg %p55
      %p62 = scmp.eq.s32.totalorder %s18, 1
      %p63 = por %p61, %p62
      %p64 = scmp.ne.s32.totalorder %s56, %s59
      %p65 = scmp.eq.s32.totalorder %s18, 0
      %p66 = por %p64, %p65
      %p67 = scmp.ne.s32.totalorder %s56, %s59
      %p68 = scmp.eq.s32.totalorder %s23, 1
      %p69 = por %p67, %p68
      %p70 = scmp.ne.s32.totalorder %s59, %s60
      %p71 = scmp.eq.s32.totalorder %s23, 0
      %p72 = por %p70, %p71
      %p73 = scmp.ne.s32.totalorder %s59, %s60
      %p74 = scmp.eq.s32.totalorder %s24, 1
      %p75 = por %p73, %p74
      %p77 = scmp.ne.s32.totalorder %s60, %s76
      %p78 = scmp.eq.s32.totalorder %s24, 0
      %p79 = por %p77, %p78
      %s81 = sadd.s32 %s80, 1
      %p84 = scmp.eq.s32.totalorder %s18, 1
      %p85 = scmp.ne.s32.totalorder %s80, %s82
      %p86 = scmp.eq.s32.totalorder %s18, 0
      %p87 = por %p85, %p86
      %p88 = scmp.ne.s32.totalorder %s80, %s82
      %p89 = scmp.eq.s32.totalorder %s23, 1
      %p90 = por %p88, %p89
      %p91 = scmp.ne.s32.totalorder %s82, %s83
      %p92 = scmp.eq.s32.totalorder %s23, 0
      %p93 = por %p91, %p92
      %p94 = scmp.ne.s32.totalorder %s82, %s83
      %p95 = scmp.eq.s32.totalorder %s24, 1
      %p96 = por %p94, %p95
      %p98 = scmp.ne.s32.totalorder %s83, %s97
      %p99 = scmp.eq.s32.totalorder %s24, 0
      %p100 = por %p98, %p99
      %s102 = sadd.s32 %s101, 1
      %p105 = scmp.eq.s32.totalorder %s18, 1
      %p106 = scmp.ne.s32.totalorder %s101, %s103
      %p107 = scmp.eq.s32.totalorder %s18, 0
      %p108 = por %p106, %p107
      %p109 = scmp.ne.s32.totalorder %s101, %s103
      %p110 = scmp.eq.s32.totalorder %s23, 1
      %p111 = por %p109, %p110
      %p112 = scmp.ne.s32.totalorder %s103, %s104
      %p113 = scmp.eq.s32.totalorder %s23, 0
      %p114 = por %p112, %p113
      %p115 = scmp.ne.s32.totalorder %s103, %s104
      %p116 = scmp.eq.s32.totalorder %s24, 1
      %p117 = por %p115, %p116
      %p119 = scmp.ne.s32.totalorder %s104, %s118
      %p120 = scmp.eq.s32.totalorder %s24, 0
      %p121 = por %p119, %p120
      %s123 = sadd.s32 %s122, 1
      %p126 = scmp.eq.s32.totalorder %s18, 1
      %p127 = scmp.ne.s32.totalorder %s122, %s124
      %p128 = scmp.eq.s32.totalorder %s18, 0
      %p129 = por %p127, %p128
      %p130 = scmp.ne.s32.totalorder %s122, %s124
      %p131 = scmp.eq.s32.totalorder %s23, 1
      %p132 = por %p130, %p131
      %p133 = scmp.ne.s32.totalorder %s124, %s125
      %p134 = scmp.eq.s32.totalorder %s23, 0
      %p135 = por %p133, %p134
      %p136 = scmp.ne.s32.totalorder %s124, %s125
      %p137 = scmp.eq.s32.totalorder %s24, 1
      %p138 = por %p136, %p137
      %p140 = scmp.ne.s32.totalorder %s125, %s139
      %p141 = scmp.eq.s32.totalorder %s24, 0
      %p142 = por %p140, %p141
      %s144 = sadd.s32 %s143, 1
      %p147 = scmp.eq.s32.totalorder %s18, 1
      %p148 = scmp.ne.s32.totalorder %s143, %s145
      %p149 = scmp.eq.s32.totalorder %s18, 0
      %p150 = por %p148, %p149
      %p151 = scmp.ne.s32.totalorder %s143, %s145
      %p152 = scmp.eq.s32.totalorder %s23, 1
      %p153 = por %p151, %p152
      %p154 = scmp.ne.s32.totalorder %s145, %s146
      %p155 = scmp.eq.s32.totalorder %s23, 0
      %p156 = por %p154, %p155
      %p157 = scmp.ne.s32.totalorder %s145, %s146
      %p158 = scmp.eq.s32.totalorder %s24, 1
      %p159 = por %p157, %p158
      %p161 = scmp.ne.s32.totalorder %s146, %s160
      %p162 = scmp.eq.s32.totalorder %s24, 0
      %p163 = por %p161, %p162
      %s165 = sadd.s32 %s164, 1
      %p168 = scmp.eq.s32.totalorder %s18, 1
      %p169 = scmp.ne.s32.totalorder %s164, %s166
      %p170 = scmp.eq.s32.totalorder %s18, 0
      %p171 = por %p169, %p170
      %p172 = scmp.ne.s32.totalorder %s164, %s166
      %p173 = scmp.eq.s32.totalorder %s23, 1
      %p174 = por %p172, %p173
      %p175 = scmp.ne.s32.totalorder %s166, %s167
      %p176 = scmp.eq.s32.totalorder %s23, 0
      %p177 = por %p175, %p176
      %p178 = scmp.ne.s32.totalorder %s166, %s167
      %p179 = scmp.eq.s32.totalorder %s24, 1
      %p180 = por %p178, %p179
      %p182 = scmp.ne.s32.totalorder %s167, %s181
      %p183 = scmp.eq.s32.totalorder %s24, 0
      %p184 = por %p182, %p183
      %s186 = sadd.s32 %s185, 1
      %p189 = scmp.eq.s32.totalorder %s18, 1
      %p190 = scmp.ne.s32.totalorder %s185, %s187
      %p191 = scmp.eq.s32.totalorder %s18, 0
      %p192 = por %p190, %p191
      %p193 = scmp.ne.s32.totalorder %s185, %s187
      %p194 = scmp.eq.s32.totalorder %s23, 1
      %p195 = por %p193, %p194
      %p196 = scmp.ne.s32.totalorder %s187, %s188
      %p197 = scmp.eq.s32.totalorder %s23, 0
      %p198 = por %p196, %p197
      %p199 = scmp.ne.s32.totalorder %s187, %s188
      %p200 = scmp.eq.s32.totalorder %s24, 1
      %p201 = por %p199, %p200
      %p203 = scmp.ne.s32.totalorder %s188, %s202
      %p204 = scmp.eq.s32.totalorder %s24, 0
      %p205 = por %p203, %p204
      %s206 = ssub.s32 %s18, %s25
      %p207 = scmp.eq.s32.totalorder %s206, 0
      %s209 = sadd.s32 %s208, 1
      %s210 = scalar_select %p207, %s208, %s209
      %p213 = pneg %p207
      %p214 = scmp.eq.s32.totalorder %s18, 1
      %p215 = por %p213, %p214
      %p216 = scmp.ne.s32.totalorder %s208, %s211
      %p217 = scmp.eq.s32.totalorder %s18, 0
      %p218 = por %p216, %p217
      %p219 = scmp.ne.s32.totalorder %s208, %s211
      %p220 = scmp.eq.s32.totalorder %s23, 1
      %p221 = por %p219, %p220
      %p222 = scmp.ne.s32.totalorder %s211, %s212
      %p223 = scmp.eq.s32.totalorder %s23, 0
      %p224 = por %p222, %p223
      %p225 = scmp.ne.s32.totalorder %s211, %s212
      %p226 = scmp.eq.s32.totalorder %s24, 1
      %p227 = por %p225, %p226
      %p229 = scmp.ne.s32.totalorder %s212, %s228
      %p230 = scmp.eq.s32.totalorder %s24, 0
      %p231 = por %p229, %p230
      %s232 = ssub.s32 1, %s18
      %s233 = ssub.s32 1, %s25
      %s234 = ssub.s32 %s232, %s233
      %p235 = scmp.eq.s32.totalorder %s234, 0
      %s237 = sadd.s32 %s236, 1
      %s238 = scalar_select %p235, %s236, %s237
      %p241 = pneg %p235
      %p242 = scmp.eq.s32.totalorder %s18, 1
      %p243 = por %p241, %p242
      %p244 = scmp.ne.s32.totalorder %s236, %s239
      %p245 = scmp.eq.s32.totalorder %s18, 0
      %p246 = por %p244, %p245
      %p247 = scmp.ne.s32.totalorder %s236, %s239
      %p248 = scmp.eq.s32.totalorder %s23, 1
      %p249 = por %p247, %p248
      %p250 = scmp.ne.s32.totalorder %s239, %s240
      %p251 = scmp.eq.s32.totalorder %s23, 0
      %p252 = por %p250, %p251
      %p253 = scmp.ne.s32.totalorder %s239, %s240
      %p254 = scmp.eq.s32.totalorder %s24, 1
      %p255 = por %p253, %p254
      %p257 = scmp.ne.s32.totalorder %s240, %s256
      %p258 = scmp.eq.s32.totalorder %s24, 0
      %p259 = por %p257, %p258
      %p260 = scmp.le.s32.totalorder 1, %s18
      %p261 = scmp.lt.s32.totalorder %s18, 3
      %p262 = pnand %p260, %p261
      %p263 = pneg %p262
      // Predicated region
      $region9: #{blstm_conversion_forward.3} parent=5 // pred_check
        _
      $region10: #{blstm_conversion_forward.3} parent=5 // pred_check_branch
        %265 = sbr.rel (%p262) target = $region12
      $region11: #{blstm_conversion_forward.3} parent=5 // pred_region
        %s266 = ssub.s32 %s18, 1
        // Predicated region
        $region13: #{blstm_conversion_forward.3} parent=11 // pred_check
          %p267 = pneg %p93
        $region14: #{blstm_conversion_forward.3} parent=11 // pred_check_branch
          %269 = sbr.rel (%p267) target = $region16
        $region15: #{blstm_conversion_forward.3} parent=11 // pred_region
          _
        $region16: #{blstm_conversion_forward.3} parent=11 // pred_fallthru
          _
        // Predicated region
        $region17: #{blstm_conversion_forward.3} parent=11 // pred_check
          %p270 = pneg %p114
        $region18: #{blstm_conversion_forward.3} parent=11 // pred_check_branch
          %272 = sbr.rel (%p270) target = $region20
        $region19: #{blstm_conversion_forward.3} parent=11 // pred_region
          %s274 = ssub.s32 1024, 1024
          %275 = vsyncadd [#allocation9], %s274
          %s276 = sshll.u32 [#allocation8], 4
          %s277 = int_to_ptr.vmem [resolvable:$true] %s276
          %282 = dma.hbm_to_vmem [thread:$0]  %s3, 1024, %s277, [#allocation9], 512, 512, 32
        $region20: #{blstm_conversion_forward.3} parent=11 // pred_fallthru
          _
        // Predicated region
        $region21: #{blstm_conversion_forward.3} parent=11 // pred_check
          %p283 = pneg %p135
        $region22: #{blstm_conversion_forward.3} parent=11 // pred_check_branch
          %285 = sbr.rel (%p283) target = $region24
        $region23: #{blstm_conversion_forward.3} parent=11 // pred_region
          %s287 = ssub.s32 8192, 8192
          %288 = vsyncadd [#allocation11], %s287
          %s289 = sshll.u32 [#allocation10], 4
          %s290 = int_to_ptr.vmem [resolvable:$true] %s289
          %295 = dma.hbm_to_vmem [thread:$0]  %s4, 8192, %s290, [#allocation11], 512, 512, 32
        $region24: #{blstm_conversion_forward.3} parent=11 // pred_fallthru
          _
        // Predicated region
        $region25: #{blstm_conversion_forward.3} parent=11 // pred_check
          %p296 = pneg %p156
        $region26: #{blstm_conversion_forward.3} parent=11 // pred_check_branch
          %298 = sbr.rel (%p296) target = $region28
        $region27: #{blstm_conversion_forward.3} parent=11 // pred_region
          %s300 = ssub.s32 8192, 8192
          %301 = vsyncadd [#allocation11], %s300
          %s302 = sshll.u32 [#allocation12], 4
          %s303 = int_to_ptr.vmem [resolvable:$true] %s302
          %308 = dma.hbm_to_vmem [thread:$0]  %s5, 8192, %s303, [#allocation11], 512, 512, 32
        $region28: #{blstm_conversion_forward.3} parent=11 // pred_fallthru
          _
        // Predicated region
        $region29: #{blstm_conversion_forward.3} parent=11 // pred_check
          %p309 = pneg %p177
        $region30: #{blstm_conversion_forward.3} parent=11 // pred_check_branch
          %311 = sbr.rel (%p309) target = $region32
        $region31: #{blstm_conversion_forward.3} parent=11 // pred_region
          _
        $region32: #{blstm_conversion_forward.3} parent=11 // pred_fallthru
          _
        // Predicated region
        $region33: #{blstm_conversion_forward.3} parent=11 // pred_check
          %p312 = pneg %p198
        $region34: #{blstm_conversion_forward.3} parent=11 // pred_check_branch
          %314 = sbr.rel (%p312) target = $region36
        $region35: #{blstm_conversion_forward.3} parent=11 // pred_region
          _
        $region36: #{blstm_conversion_forward.3} parent=11 // pred_fallthru
          _
      $region12: #{blstm_conversion_forward.3} parent=5 // pred_fallthru
        _
      %p315 = scmp.lt.s32.totalorder %s18, 2
      // Predicated region
      $region37: #{blstm_conversion_forward.3} parent=5 // pred_check
        %p316 = pneg %p315
      $region38: #{blstm_conversion_forward.3} parent=5 // pred_check_branch
        %318 = sbr.rel (%p316) target = $region40
      $region39: #{blstm_conversion_forward.3} parent=5 // pred_region
        // Predicated region
        $region41: #{blstm_conversion_forward.3} parent=39 // pred_check
          %p319 = pneg %p38
        $region42: #{blstm_conversion_forward.3} parent=39 // pred_check_branch
          %321 = sbr.rel (%p319) target = $region44
        $region43: #{blstm_conversion_forward.3} parent=39 // pred_region
          %s322 = smul.u32 4, %s18
          %p323 = scmp.lt.s32.totalorder %s322, 7
          %s324 = scalar_select %p323, %s322, 7
          %s325 = smul.addr %s324, 8
          %s326 = scalar_lea.vmem %s0, %s325
          %s327 = smul.u32 4, %s18
        $region44: #{blstm_conversion_forward.3} parent=39 // pred_fallthru
          _
        // Predicated region
        $region45: #{blstm_conversion_forward.3} parent=39 // pred_check
          %p328 = pneg %p66
        $region46: #{blstm_conversion_forward.3} parent=39 // pred_check_branch
          %330 = sbr.rel (%p328) target = $region48
        $region47: #{blstm_conversion_forward.3} parent=39 // pred_region
          %s331 = ssub.s32 1, %s18
          %s332 = smul.u32 4, %s331
          %p333 = scmp.lt.s32.totalorder %s332, 7
          %s334 = scalar_select %p333, %s332, 7
          %s335 = smul.addr %s334, 8
          %s336 = scalar_lea.vmem %s1, %s335
          %s337 = ssub.s32 1, %s18
          %s338 = smul.u32 4, %s337
        $region48: #{blstm_conversion_forward.3} parent=39 // pred_fallthru
          _
      $region40: #{blstm_conversion_forward.3} parent=5 // pred_fallthru
        _
      %p339 = scmp.le.s32.totalorder 1, %s18
      %p340 = scmp.lt.s32.totalorder %s18, 3
      %p341 = pnand %p339, %p340
      %p342 = pneg %p341
      // Predicated region
      $region49: #{blstm_conversion_forward.3} parent=5 // pred_check
        _
      $region50: #{blstm_conversion_forward.3} parent=5 // pred_check_branch
        %344 = sbr.rel (%p341) target = $region52
      $region51: #{blstm_conversion_forward.3} parent=5 // pred_region
        %s345 = ssub.s32 %s18, 1
        // Predicated region
        $region53: #{blstm_conversion_forward.3} parent=51 // pred_check
          %p346 = pneg %p114
        $region54: #{blstm_conversion_forward.3} parent=51 // pred_check_branch
          %348 = sbr.rel (%p346) target = $region56
        $region55: #{blstm_conversion_forward.3} parent=51 // pred_region
          %349 = dma.done [#allocation9], 1024
        $region56: #{blstm_conversion_forward.3} parent=51 // pred_fallthru
          _
        // Predicated region
        $region57: #{blstm_conversion_forward.3} parent=51 // pred_check
          %p350 = pneg %p135
        $region58: #{blstm_conversion_forward.3} parent=51 // pred_check_branch
          %352 = sbr.rel (%p350) target = $region60
        $region59: #{blstm_conversion_forward.3} parent=51 // pred_region
          %353 = dma.done [#allocation11], 8192
        $region60: #{blstm_conversion_forward.3} parent=51 // pred_fallthru
          _
        // Predicated region
        $region61: #{blstm_conversion_forward.3} parent=51 // pred_check
          %p354 = pneg %p156
        $region62: #{blstm_conversion_forward.3} parent=51 // pred_check_branch
          %356 = sbr.rel (%p354) target = $region64
        $region63: #{blstm_conversion_forward.3} parent=51 // pred_region
          %357 = dma.done [#allocation11], 8192
        $region64: #{blstm_conversion_forward.3} parent=51 // pred_fallthru
          _
        %s358 = smul.u32 4, %s23
        %p359 = scmp.lt.s32.totalorder %s358, 7
        %s360 = scalar_select %p359, %s358, 7
        %s361 = smul.addr %s360, 8
        %s362 = scalar_lea.vmem %s0, %s361
        %p363 = pneg %p44
        %p364 = pneg %p41
        %s365 = ssub.s32 1, %s23
        %s366 = smul.u32 4, %s365
        %p367 = scmp.lt.s32.totalorder %s366, 7
        %s368 = scalar_select %p367, %s366, 7
        %s369 = smul.addr %s368, 8
        %s370 = scalar_lea.vmem %s1, %s369
        %p371 = pneg %p72
        %p372 = pneg %p69
        %p373 = pneg %p93
        %p374 = pneg %p90
        %p375 = pneg %p114
        %p376 = pneg %p111
        %p377 = pneg %p135
        %p378 = pneg %p132
        %p379 = pneg %p156
        %p380 = pneg %p153
        %p381 = pneg %p177
        %p382 = pneg %p174
        %p383 = pneg %p198
        %p384 = pneg %p195
        %p385 = pneg %p224
        %p386 = pneg %p221
        %s387 = smul.u32 4, %s23
        %p388 = scmp.lt.s32.totalorder %s387, 7
        %s389 = scalar_select %p388, %s387, 7
        %s390 = smul.addr %s389, 8
        %s391 = scalar_lea.vmem %s8, %s390
        %p392 = pneg %p252
        %p393 = pneg %p249
        %s394 = ssub.s32 1, %s23
        %s395 = smul.u32 4, %s394
        %p396 = scmp.lt.s32.totalorder %s395, 7
        %s397 = scalar_select %p396, %s395, 7
        %s398 = smul.addr %s397, 8
        %s399 = scalar_lea.vmem %s9, %s398
        %s400 = smul.u32 4, %s23
        %p401 = scmp.lt.s32.totalorder %s400, 7
        %s402 = scalar_select %p401, %s400, 7
        %s403 = smul.addr %s402, 8
        %s404 = scalar_lea.vmem %s0, %s403
        %s405 = smul.u32 4, %s23
        %s406 = ssub.s32 1, %s23
        %s407 = smul.u32 4, %s406
        %p408 = scmp.lt.s32.totalorder %s407, 7
        %s409 = scalar_select %p408, %s407, 7
        %s410 = smul.addr %s409, 8
        %s411 = scalar_lea.vmem %s1, %s410
        %s412 = ssub.s32 1, %s23
        %s413 = smul.u32 4, %s412
        %s414 = smul.u32 4, %s23
        %p415 = scmp.lt.s32.totalorder %s414, 7
        %s416 = scalar_select %p415, %s414, 7
        %s417 = smul.addr %s416, 8
        %s418 = scalar_lea.vmem %s8, %s417
        %s419 = smul.u32 4, %s23
        %s420 = ssub.s32 1, %s23
        %s421 = smul.u32 4, %s420
        %p422 = scmp.lt.s32.totalorder %s421, 7
        %s423 = scalar_select %p422, %s421, 7
        %s424 = smul.addr %s423, 8
        %s425 = scalar_lea.vmem %s9, %s424
        %s426 = ssub.s32 1, %s23
        %s427 = smul.u32 4, %s426
        %p428 = scmp.eq.s32.totalorder %s23, 0
        // Predicated region
        $region65: #{blstm_conversion_forward.3} parent=51 // pred_check
          %p429 = pneg %p428
        $region66: #{blstm_conversion_forward.3} parent=51 // pred_check_branch
          %431 = sbr.rel (%p429) target = $region68
        $region67: #{blstm_conversion_forward.3} parent=51 // pred_region
          %432 = vst [vmem:[#allocation4] sm:$0xff] 0.0
          %433 = vst [vmem:[#allocation5] sm:$0xff] 0.0
          %434 = vst [vmem:[#allocation6] sm:$0xff] 0.0
          %435 = vst [vmem:[#allocation7] sm:$0xff] 0.0
        $region68: #{blstm_conversion_forward.3} parent=51 // pred_fallthru
          _
        %v436 = vld [vmem:[%s404] sm:$0xff]
        %v437 = vld [vmem:[%s404 + $0x8] sm:$0xff]
        %v438 = vld [vmem:[%s404 + $0x10] sm:$0xff]
        %v439 = vld [vmem:[%s404 + $0x18] sm:$0xff]
        %v440 = vld [vmem:[%s2] sm:$0xff]
        %v441 = vld [vmem:[%s2 + $0x8] sm:$0xff]
        %v442 = vld [vmem:[%s2 + $0x10] sm:$0xff]
        %v443 = vld [vmem:[%s2 + $0x18] sm:$0xff]
        %v444 = vld [vmem:[%s2 + $0x20] sm:$0xff]
        %v445 = vld [vmem:[%s2 + $0x28] sm:$0xff]
        %v446 = vld [vmem:[%s2 + $0x30] sm:$0xff]
        %v447 = vld [vmem:[%s2 + $0x38] sm:$0xff]
        %v448 = vld [vmem:[%s411] sm:$0xff]
        %v449 = vld [vmem:[%s411 + $0x8] sm:$0xff]
        %v450 = vld [vmem:[%s411 + $0x10] sm:$0xff]
        %v451 = vld [vmem:[%s411 + $0x18] sm:$0xff]
        %v452 = vld [vmem:[#allocation8] sm:$0xff]
        %v453 = vld [vmem:[#allocation8 + $0x8] sm:$0xff]
        %v454 = vld [vmem:[#allocation8 + $0x10] sm:$0xff]
        %v455 = vld [vmem:[#allocation8 + $0x18] sm:$0xff]
        %v456 = vld [vmem:[#allocation8 + $0x20] sm:$0xff]
        %v457 = vld [vmem:[#allocation8 + $0x28] sm:$0xff]
        %v458 = vld [vmem:[#allocation8 + $0x30] sm:$0xff]
        %v459 = vld [vmem:[#allocation8 + $0x38] sm:$0xff]
        %v460 = vld [vmem:[%s6] sm:$0xf]
        %v462 = vlaneseq
        %v463 = vshrl.u32 %v462, 7
        %v464 = vsub.s32 0, %v463
        %v465 = vrot.slane %v460, %v464
        %v466 = vlaneseq
        %v467 = vshrl.u32 %v466, 7
        %v468 = vsub.s32 1, %v467
        %v469 = vrot.slane %v460, %v468
        %v470 = vlaneseq
        %v471 = vshrl.u32 %v470, 7
        %v472 = vsub.s32 2, %v471
        %v473 = vrot.slane %v460, %v472
        %v474 = vlaneseq
        %v475 = vshrl.u32 %v474, 7
        %v476 = vsub.s32 3, %v475
        %v477 = vrot.slane %v460, %v476
        %vm482 = vcmask 130048
        %v484 = vsel %vm482, %v436, 0
        %v487 = vsel %vm482, %v437, 0
        %v490 = vsel %vm482, %v438, 0
        %v493 = vsel %vm482, %v439, 0
        %495 = vmatprep.subr.mxu0 0.0
        %496 = vmatpush1.msra.mxu0 0.0
        %497 = vmatprep.subr.mxu0 0.0
        %498 = vmatpush1.msra.mxu0 0.0
        %499 = vmatprep.subr.mxu0 0.0
        %500 = vmatpush1.msra.mxu0 0.0
        %501 = vmatprep.subr.mxu0 0.0
        %502 = vmatpush1.msra.mxu0 0.0
        %503 = vmatprep.subr.mxu0 0.0
        %504 = vmatpush1.msra.mxu0 0.0
        %505 = vmatprep.subr.mxu0 0.0
        %506 = vmatpush1.msra.mxu0 0.0
        %507 = vmatprep.subr.mxu0 0.0
        %508 = vmatpush1.msra.mxu0 0.0
        %509 = vmatprep.subr.mxu0 0.0
        %510 = vmatpush1.msra.mxu0 0.0
        %511 = vmatprep.subr.mxu0 0.0
        %512 = vmatpush1.msra.mxu0 0.0
        %513 = vmatprep.subr.mxu0 0.0
        %514 = vmatpush1.msra.mxu0 0.0
        %515 = vmatprep.subr.mxu0 0.0
        %516 = vmatpush1.msra.mxu0 0.0
        %517 = vmatprep.subr.mxu0 0.0
        %518 = vmatpush1.msra.mxu0 0.0
        %519 = vmatprep.subr.mxu0 0.0
        %520 = vmatpush1.msra.mxu0 0.0
        %521 = vmatprep.subr.mxu0 0.0
        %522 = vmatpush1.msra.mxu0 0.0
        %523 = vmatprep.subr.mxu0 %v445
        %524 = vmatpush1.msra.mxu0 %v444
        %525 = vmatprep.subr.mxu0 %v441
        %526 = vmatpush1.msra.mxu0 %v440
        %527 = vmatprep.subr.mxu0 0.0
        %528 = vmatpush2.msra.mxu0 0.0
        %529 = vmatprep.subr.mxu0 0.0
        %530 = vmatpush2.msra.mxu0 0.0
        %531 = vmatprep.subr.mxu0 0.0
        %532 = vmatpush2.msra.mxu0 0.0
        %533 = vmatprep.subr.mxu0 0.0
        %534 = vmatpush2.msra.mxu0 0.0
        %535 = vmatprep.subr.mxu0 0.0
        %536 = vmatpush2.msra.mxu0 0.0
        %537 = vmatprep.subr.mxu0 0.0
        %538 = vmatpush2.msra.mxu0 0.0
        %539 = vmatprep.subr.mxu0 0.0
        %540 = vmatpush2.msra.mxu0 0.0
        %541 = vmatprep.subr.mxu0 0.0
        %542 = vmatpush2.msra.mxu0 0.0
        %543 = vmatprep.subr.mxu0 0.0
        %544 = vmatpush2.msra.mxu0 0.0
        %545 = vmatprep.subr.mxu0 0.0
        %546 = vmatpush2.msra.mxu0 0.0
        %547 = vmatprep.subr.mxu0 0.0
        %548 = vmatpush2.msra.mxu0 0.0
        %549 = vmatprep.subr.mxu0 0.0
        %550 = vmatpush2.msra.mxu0 0.0
        %551 = vmatprep.subr.mxu0 0.0
        %552 = vmatpush2.msra.mxu0 0.0
        %553 = vmatprep.subr.mxu0 0.0
        %554 = vmatpush2.msra.mxu0 0.0
        %555 = vmatprep.subr.mxu0 0.0
        %556 = vmatpush2.msra.mxu0 0.0
        %557 = vmatprep.subr.mxu0 0.0
        %558 = vmatpush2.msra.mxu0 0.0
        %559 = vmatprep.mubr.f32.mxu0 0.0
        %560 = vmatmul.mubr.f32.gmra.mxu0 %v484
        %v561 = vpop.f32.mrf.mxu0
        %v562 = vadd.f32 %v465, %v561
        %v563 = vpop.f32.mrf.mxu0
        %v564 = vadd.f32 %v469, %v563
        %565 = vmatprep.mubr.f32.mxu0 0.0
        %566 = vmatmul.mubr.f32.gmra.mxu0 %v487
        %v567 = vpop.f32.mrf.mxu0
        %v568 = vadd.f32 %v465, %v567
        %v569 = vpop.f32.mrf.mxu0
        %v570 = vadd.f32 %v469, %v569
        %571 = vmatprep.mubr.f32.mxu0 0.0
        %572 = vmatmul.mubr.f32.gmra.mxu0 %v490
        %v573 = vpop.f32.mrf.mxu0
        %v574 = vadd.f32 %v465, %v573
        %v575 = vpop.f32.mrf.mxu0
        %v576 = vadd.f32 %v469, %v575
        %577 = vmatprep.mubr.f32.mxu0 0.0
        %578 = vmatmul.mubr.f32.gmra.mxu0 %v493
        %v579 = vpop.f32.mrf.mxu0
        %v580 = vadd.f32 %v465, %v579
        %v581 = vpop.f32.mrf.mxu0
        %v582 = vadd.f32 %v469, %v581
        %583 = vdwg.mxu0
        %584 = vmatprep.subr.mxu0 0.0
        %585 = vmatpush1.msra.mxu0 0.0
        %586 = vmatprep.subr.mxu0 0.0
        %587 = vmatpush1.msra.mxu0 0.0
        %588 = vmatprep.subr.mxu0 0.0
        %589 = vmatpush1.msra.mxu0 0.0
        %590 = vmatprep.subr.mxu0 0.0
        %591 = vmatpush1.msra.mxu0 0.0
        %592 = vmatprep.subr.mxu0 0.0
        %593 = vmatpush1.msra.mxu0 0.0
        %594 = vmatprep.subr.mxu0 0.0
        %595 = vmatpush1.msra.mxu0 0.0
        %596 = vmatprep.subr.mxu0 0.0
        %597 = vmatpush1.msra.mxu0 0.0
        %598 = vmatprep.subr.mxu0 0.0
        %599 = vmatpush1.msra.mxu0 0.0
        %600 = vmatprep.subr.mxu0 0.0
        %601 = vmatpush1.msra.mxu0 0.0
        %602 = vmatprep.subr.mxu0 0.0
        %603 = vmatpush1.msra.mxu0 0.0
        %604 = vmatprep.subr.mxu0 0.0
        %605 = vmatpush1.msra.mxu0 0.0
        %606 = vmatprep.subr.mxu0 0.0
        %607 = vmatpush1.msra.mxu0 0.0
        %608 = vmatprep.subr.mxu0 0.0
        %609 = vmatpush1.msra.mxu0 0.0
        %610 = vmatprep.subr.mxu0 0.0
        %611 = vmatpush1.msra.mxu0 0.0
        %612 = vmatprep.subr.mxu0 %v447
        %613 = vmatpush1.msra.mxu0 %v446
        %614 = vmatprep.subr.mxu0 %v443
        %615 = vmatpush1.msra.mxu0 %v442
        %616 = vmatprep.subr.mxu0 0.0
        %617 = vmatpush2.msra.mxu0 0.0
        %618 = vmatprep.subr.mxu0 0.0
        %619 = vmatpush2.msra.mxu0 0.0
        %620 = vmatprep.subr.mxu0 0.0
        %621 = vmatpush2.msra.mxu0 0.0
        %622 = vmatprep.subr.mxu0 0.0
        %623 = vmatpush2.msra.mxu0 0.0
        %624 = vmatprep.subr.mxu0 0.0
        %625 = vmatpush2.msra.mxu0 0.0
        %626 = vmatprep.subr.mxu0 0.0
        %627 = vmatpush2.msra.mxu0 0.0
        %628 = vmatprep.subr.mxu0 0.0
        %629 = vmatpush2.msra.mxu0 0.0
        %630 = vmatprep.subr.mxu0 0.0
        %631 = vmatpush2.msra.mxu0 0.0
        %632 = vmatprep.subr.mxu0 0.0
        %633 = vmatpush2.msra.mxu0 0.0
        %634 = vmatprep.subr.mxu0 0.0
        %635 = vmatpush2.msra.mxu0 0.0
        %636 = vmatprep.subr.mxu0 0.0
        %637 = vmatpush2.msra.mxu0 0.0
        %638 = vmatprep.subr.mxu0 0.0
        %639 = vmatpush2.msra.mxu0 0.0
        %640 = vmatprep.subr.mxu0 0.0
        %641 = vmatpush2.msra.mxu0 0.0
        %642 = vmatprep.subr.mxu0 0.0
        %643 = vmatpush2.msra.mxu0 0.0
        %644 = vmatprep.subr.mxu0 0.0
        %645 = vmatpush2.msra.mxu0 0.0
        %646 = vmatprep.subr.mxu0 0.0
        %647 = vmatpush2.msra.mxu0 0.0
        %648 = vmatprep.mubr.f32.mxu0 0.0
        %649 = vmatmul.mubr.f32.gmra.mxu0 %v484
        %v650 = vpop.f32.mrf.mxu0
        %v651 = vadd.f32 %v473, %v650
        %v652 = vpop.f32.mrf.mxu0
        %v653 = vadd.f32 %v477, %v652
        %654 = vmatprep.mubr.f32.mxu0 0.0
        %655 = vmatmul.mubr.f32.gmra.mxu0 %v487
        %v656 = vpop.f32.mrf.mxu0
        %v657 = vadd.f32 %v473, %v656
        %v658 = vpop.f32.mrf.mxu0
        %v659 = vadd.f32 %v477, %v658
        %660 = vmatprep.mubr.f32.mxu0 0.0
        %661 = vmatmul.mubr.f32.gmra.mxu0 %v490
        %v662 = vpop.f32.mrf.mxu0
        %v663 = vadd.f32 %v473, %v662
        %v664 = vpop.f32.mrf.mxu0
        %v665 = vadd.f32 %v477, %v664
        %666 = vmatprep.mubr.f32.mxu0 0.0
        %667 = vmatmul.mubr.f32.gmra.mxu0 %v493
        %v668 = vpop.f32.mrf.mxu0
        %v669 = vadd.f32 %v473, %v668
        %v670 = vpop.f32.mrf.mxu0
        %v671 = vadd.f32 %v477, %v670
        %672 = vdwg.mxu0
        %673 = vst [vmem:[#allocation2] sm:$0xff] %v562
        %674 = vst [vmem:[#allocation2 + $0x8] sm:$0xff] %v564
        %675 = vst [vmem:[#allocation2 + $0x10] sm:$0xff] %v651
        %676 = vst [vmem:[#allocation2 + $0x18] sm:$0xff] %v653
        %677 = vst [vmem:[#allocation2 + $0x20] sm:$0xff] %v568
        %678 = vst [vmem:[#allocation2 + $0x28] sm:$0xff] %v570
        %679 = vst [vmem:[#allocation2 + $0x30] sm:$0xff] %v657
        %680 = vst [vmem:[#allocation2 + $0x38] sm:$0xff] %v659
        %681 = vst [vmem:[#allocation2 + $0x40] sm:$0xff] %v574
        %682 = vst [vmem:[#allocation2 + $0x48] sm:$0xff] %v576
        %683 = vst [vmem:[#allocation2 + $0x50] sm:$0xff] %v663
        %684 = vst [vmem:[#allocation2 + $0x58] sm:$0xff] %v665
        %685 = vst [vmem:[#allocation2 + $0x60] sm:$0xff] %v580
        %686 = vst [vmem:[#allocation2 + $0x68] sm:$0xff] %v582
        %687 = vst [vmem:[#allocation2 + $0x70] sm:$0xff] %v669
        %688 = vst [vmem:[#allocation2 + $0x78] sm:$0xff] %v671
        %v689 = vld [vmem:[%s7] sm:$0xf]
        %v691 = vlaneseq
        %v692 = vshrl.u32 %v691, 7
        %v693 = vsub.s32 0, %v692
        %v694 = vrot.slane %v689, %v693
        %v695 = vlaneseq
        %v696 = vshrl.u32 %v695, 7
        %v697 = vsub.s32 1, %v696
        %v698 = vrot.slane %v689, %v697
        %v699 = vlaneseq
        %v700 = vshrl.u32 %v699, 7
        %v701 = vsub.s32 2, %v700
        %v702 = vrot.slane %v689, %v701
        %v703 = vlaneseq
        %v704 = vshrl.u32 %v703, 7
        %v705 = vsub.s32 3, %v704
        %v706 = vrot.slane %v689, %v705
        %v712 = vsel %vm482, %v448, 0
        %v715 = vsel %vm482, %v449, 0
        %v718 = vsel %vm482, %v450, 0
        %v721 = vsel %vm482, %v451, 0
        %723 = vmatprep.subr.mxu0 0.0
        %724 = vmatpush1.msra.mxu0 0.0
        %725 = vmatprep.subr.mxu0 0.0
        %726 = vmatpush1.msra.mxu0 0.0
        %727 = vmatprep.subr.mxu0 0.0
        %728 = vmatpush1.msra.mxu0 0.0
        %729 = vmatprep.subr.mxu0 0.0
        %730 = vmatpush1.msra.mxu0 0.0
        %731 = vmatprep.subr.mxu0 0.0
        %732 = vmatpush1.msra.mxu0 0.0
        %733 = vmatprep.subr.mxu0 0.0
        %734 = vmatpush1.msra.mxu0 0.0
        %735 = vmatprep.subr.mxu0 0.0
        %736 = vmatpush1.msra.mxu0 0.0
        %737 = vmatprep.subr.mxu0 0.0
        %738 = vmatpush1.msra.mxu0 0.0
        %739 = vmatprep.subr.mxu0 0.0
        %740 = vmatpush1.msra.mxu0 0.0
        %741 = vmatprep.subr.mxu0 0.0
        %742 = vmatpush1.msra.mxu0 0.0
        %743 = vmatprep.subr.mxu0 0.0
        %744 = vmatpush1.msra.mxu0 0.0
        %745 = vmatprep.subr.mxu0 0.0
        %746 = vmatpush1.msra.mxu0 0.0
        %747 = vmatprep.subr.mxu0 0.0
        %748 = vmatpush1.msra.mxu0 0.0
        %749 = vmatprep.subr.mxu0 0.0
        %750 = vmatpush1.msra.mxu0 0.0
        %751 = vmatprep.subr.mxu0 %v457
        %752 = vmatpush1.msra.mxu0 %v456
        %753 = vmatprep.subr.mxu0 %v453
        %754 = vmatpush1.msra.mxu0 %v452
        %755 = vmatprep.subr.mxu0 0.0
        %756 = vmatpush2.msra.mxu0 0.0
        %757 = vmatprep.subr.mxu0 0.0
        %758 = vmatpush2.msra.mxu0 0.0
        %759 = vmatprep.subr.mxu0 0.0
        %760 = vmatpush2.msra.mxu0 0.0
        %761 = vmatprep.subr.mxu0 0.0
        %762 = vmatpush2.msra.mxu0 0.0
        %763 = vmatprep.subr.mxu0 0.0
        %764 = vmatpush2.msra.mxu0 0.0
        %765 = vmatprep.subr.mxu0 0.0
        %766 = vmatpush2.msra.mxu0 0.0
        %767 = vmatprep.subr.mxu0 0.0
        %768 = vmatpush2.msra.mxu0 0.0
        %769 = vmatprep.subr.mxu0 0.0
        %770 = vmatpush2.msra.mxu0 0.0
        %771 = vmatprep.subr.mxu0 0.0
        %772 = vmatpush2.msra.mxu0 0.0
        %773 = vmatprep.subr.mxu0 0.0
        %774 = vmatpush2.msra.mxu0 0.0
        %775 = vmatprep.subr.mxu0 0.0
        %776 = vmatpush2.msra.mxu0 0.0
        %777 = vmatprep.subr.mxu0 0.0
        %778 = vmatpush2.msra.mxu0 0.0
        %779 = vmatprep.subr.mxu0 0.0
        %780 = vmatpush2.msra.mxu0 0.0
        %781 = vmatprep.subr.mxu0 0.0
        %782 = vmatpush2.msra.mxu0 0.0
        %783 = vmatprep.subr.mxu0 0.0
        %784 = vmatpush2.msra.mxu0 0.0
        %785 = vmatprep.subr.mxu0 0.0
        %786 = vmatpush2.msra.mxu0 0.0
        %787 = vmatprep.mubr.f32.mxu0 0.0
        %788 = vmatmul.mubr.f32.gmra.mxu0 %v712
        %v789 = vpop.f32.mrf.mxu0
        %v790 = vadd.f32 %v694, %v789
        %v791 = vpop.f32.mrf.mxu0
        %v792 = vadd.f32 %v698, %v791
        %793 = vmatprep.mubr.f32.mxu0 0.0
        %794 = vmatmul.mubr.f32.gmra.mxu0 %v715
        %v795 = vpop.f32.mrf.mxu0
        %v796 = vadd.f32 %v694, %v795
        %v797 = vpop.f32.mrf.mxu0
        %v798 = vadd.f32 %v698, %v797
        %799 = vmatprep.mubr.f32.mxu0 0.0
        %800 = vmatmul.mubr.f32.gmra.mxu0 %v718
        %v801 = vpop.f32.mrf.mxu0
        %v802 = vadd.f32 %v694, %v801
        %v803 = vpop.f32.mrf.mxu0
        %v804 = vadd.f32 %v698, %v803
        %805 = vmatprep.mubr.f32.mxu0 0.0
        %806 = vmatmul.mubr.f32.gmra.mxu0 %v721
        %v807 = vpop.f32.mrf.mxu0
        %v808 = vadd.f32 %v694, %v807
        %v809 = vpop.f32.mrf.mxu0
        %v810 = vadd.f32 %v698, %v809
        %811 = vdwg.mxu0
        %812 = vmatprep.subr.mxu0 0.0
        %813 = vmatpush1.msra.mxu0 0.0
        %814 = vmatprep.subr.mxu0 0.0
        %815 = vmatpush1.msra.mxu0 0.0
        %816 = vmatprep.subr.mxu0 0.0
        %817 = vmatpush1.msra.mxu0 0.0
        %818 = vmatprep.subr.mxu0 0.0
        %819 = vmatpush1.msra.mxu0 0.0
        %820 = vmatprep.subr.mxu0 0.0
        %821 = vmatpush1.msra.mxu0 0.0
        %822 = vmatprep.subr.mxu0 0.0
        %823 = vmatpush1.msra.mxu0 0.0
        %824 = vmatprep.subr.mxu0 0.0
        %825 = vmatpush1.msra.mxu0 0.0
        %826 = vmatprep.subr.mxu0 0.0
        %827 = vmatpush1.msra.mxu0 0.0
        %828 = vmatprep.subr.mxu0 0.0
        %829 = vmatpush1.msra.mxu0 0.0
        %830 = vmatprep.subr.mxu0 0.0
        %831 = vmatpush1.msra.mxu0 0.0
        %832 = vmatprep.subr.mxu0 0.0
        %833 = vmatpush1.msra.mxu0 0.0
        %834 = vmatprep.subr.mxu0 0.0
        %835 = vmatpush1.msra.mxu0 0.0
        %836 = vmatprep.subr.mxu0 0.0
        %837 = vmatpush1.msra.mxu0 0.0
        %838 = vmatprep.subr.mxu0 0.0
        %839 = vmatpush1.msra.mxu0 0.0
        %840 = vmatprep.subr.mxu0 %v459
        %841 = vmatpush1.msra.mxu0 %v458
        %842 = vmatprep.subr.mxu0 %v455
        %843 = vmatpush1.msra.mxu0 %v454
        %844 = vmatprep.subr.mxu0 0.0
        %845 = vmatpush2.msra.mxu0 0.0
        %846 = vmatprep.subr.mxu0 0.0
        %847 = vmatpush2.msra.mxu0 0.0
        %848 = vmatprep.subr.mxu0 0.0
        %849 = vmatpush2.msra.mxu0 0.0
        %850 = vmatprep.subr.mxu0 0.0
        %851 = vmatpush2.msra.mxu0 0.0
        %852 = vmatprep.subr.mxu0 0.0
        %853 = vmatpush2.msra.mxu0 0.0
        %854 = vmatprep.subr.mxu0 0.0
        %855 = vmatpush2.msra.mxu0 0.0
        %856 = vmatprep.subr.mxu0 0.0
        %857 = vmatpush2.msra.mxu0 0.0
        %858 = vmatprep.subr.mxu0 0.0
        %859 = vmatpush2.msra.mxu0 0.0
        %860 = vmatprep.subr.mxu0 0.0
        %861 = vmatpush2.msra.mxu0 0.0
        %862 = vmatprep.subr.mxu0 0.0
        %863 = vmatpush2.msra.mxu0 0.0
        %864 = vmatprep.subr.mxu0 0.0
        %865 = vmatpush2.msra.mxu0 0.0
        %866 = vmatprep.subr.mxu0 0.0
        %867 = vmatpush2.msra.mxu0 0.0
        %868 = vmatprep.subr.mxu0 0.0
        %869 = vmatpush2.msra.mxu0 0.0
        %870 = vmatprep.subr.mxu0 0.0
        %871 = vmatpush2.msra.mxu0 0.0
        %872 = vmatprep.subr.mxu0 0.0
        %873 = vmatpush2.msra.mxu0 0.0
        %874 = vmatprep.subr.mxu0 0.0
        %875 = vmatpush2.msra.mxu0 0.0
        %876 = vmatprep.mubr.f32.mxu0 0.0
        %877 = vmatmul.mubr.f32.gmra.mxu0 %v712
        %v878 = vpop.f32.mrf.mxu0
        %v879 = vadd.f32 %v702, %v878
        %v880 = vpop.f32.mrf.mxu0
        %v881 = vadd.f32 %v706, %v880
        %882 = vmatprep.mubr.f32.mxu0 0.0
        %883 = vmatmul.mubr.f32.gmra.mxu0 %v715
        %v884 = vpop.f32.mrf.mxu0
        %v885 = vadd.f32 %v702, %v884
        %v886 = vpop.f32.mrf.mxu0
        %v887 = vadd.f32 %v706, %v886
        %888 = vmatprep.mubr.f32.mxu0 0.0
        %889 = vmatmul.mubr.f32.gmra.mxu0 %v718
        %v890 = vpop.f32.mrf.mxu0
        %v891 = vadd.f32 %v702, %v890
        %v892 = vpop.f32.mrf.mxu0
        %v893 = vadd.f32 %v706, %v892
        %894 = vmatprep.mubr.f32.mxu0 0.0
        %895 = vmatmul.mubr.f32.gmra.mxu0 %v721
        %v896 = vpop.f32.mrf.mxu0
        %v897 = vadd.f32 %v702, %v896
        %v898 = vpop.f32.mrf.mxu0
        %v899 = vadd.f32 %v706, %v898
        %900 = vdwg.mxu0
        %901 = vst [vmem:[#allocation3] sm:$0xff] %v790
        %902 = vst [vmem:[#allocation3 + $0x8] sm:$0xff] %v792
        %903 = vst [vmem:[#allocation3 + $0x10] sm:$0xff] %v879
        %904 = vst [vmem:[#allocation3 + $0x18] sm:$0xff] %v881
        %905 = vst [vmem:[#allocation3 + $0x20] sm:$0xff] %v796
        %906 = vst [vmem:[#allocation3 + $0x28] sm:$0xff] %v798
        %907 = vst [vmem:[#allocation3 + $0x30] sm:$0xff] %v885
        %908 = vst [vmem:[#allocation3 + $0x38] sm:$0xff] %v887
        %909 = vst [vmem:[#allocation3 + $0x40] sm:$0xff] %v802
        %910 = vst [vmem:[#allocation3 + $0x48] sm:$0xff] %v804
        %911 = vst [vmem:[#allocation3 + $0x50] sm:$0xff] %v891
        %912 = vst [vmem:[#allocation3 + $0x58] sm:$0xff] %v893
        %913 = vst [vmem:[#allocation3 + $0x60] sm:$0xff] %v808
        %914 = vst [vmem:[#allocation3 + $0x68] sm:$0xff] %v810
        %915 = vst [vmem:[#allocation3 + $0x70] sm:$0xff] %v897
        %916 = vst [vmem:[#allocation3 + $0x78] sm:$0xff] %v899
        %v917 = vld [vmem:[#allocation10] sm:$0xff]
        %v918 = vld [vmem:[#allocation10 + $0x8] sm:$0xff]
        %v919 = vld [vmem:[#allocation10 + $0x10] sm:$0xff]
        %v920 = vld [vmem:[#allocation10 + $0x18] sm:$0xff]
        %v921 = vld [vmem:[#allocation10 + $0x20] sm:$0xff]
        %v922 = vld [vmem:[#allocation10 + $0x28] sm:$0xff]
        %v923 = vld [vmem:[#allocation10 + $0x30] sm:$0xff]
        %v924 = vld [vmem:[#allocation10 + $0x38] sm:$0xff]
        %v925 = vld [vmem:[#allocation10 + $0x40] sm:$0xff]
        %v926 = vld [vmem:[#allocation10 + $0x48] sm:$0xff]
        %v927 = vld [vmem:[#allocation10 + $0x50] sm:$0xff]
        %v928 = vld [vmem:[#allocation10 + $0x58] sm:$0xff]
        %v929 = vld [vmem:[#allocation10 + $0x60] sm:$0xff]
        %v930 = vld [vmem:[#allocation10 + $0x68] sm:$0xff]
        %v931 = vld [vmem:[#allocation10 + $0x70] sm:$0xff]
        %v932 = vld [vmem:[#allocation10 + $0x78] sm:$0xff]
        %v933 = vld [vmem:[#allocation10 + $0x80] sm:$0xff]
        %v934 = vld [vmem:[#allocation10 + $0x88] sm:$0xff]
        %v935 = vld [vmem:[#allocation10 + $0x90] sm:$0xff]
        %v936 = vld [vmem:[#allocation10 + $0x98] sm:$0xff]
        %v937 = vld [vmem:[#allocation10 + $0xa0] sm:$0xff]
        %v938 = vld [vmem:[#allocation10 + $0xa8] sm:$0xff]
        %v939 = vld [vmem:[#allocation10 + $0xb0] sm:$0xff]
        %v940 = vld [vmem:[#allocation10 + $0xb8] sm:$0xff]
        %v941 = vld [vmem:[#allocation10 + $0xc0] sm:$0xff]
        %v942 = vld [vmem:[#allocation10 + $0xc8] sm:$0xff]
        %v943 = vld [vmem:[#allocation10 + $0xd0] sm:$0xff]
        %v944 = vld [vmem:[#allocation10 + $0xd8] sm:$0xff]
        %v945 = vld [vmem:[#allocation10 + $0xe0] sm:$0xff]
        %v946 = vld [vmem:[#allocation10 + $0xe8] sm:$0xff]
        %v947 = vld [vmem:[#allocation10 + $0xf0] sm:$0xff]
        %v948 = vld [vmem:[#allocation10 + $0xf8] sm:$0xff]
        %v949 = vld [vmem:[#allocation10 + $0x100] sm:$0xff]
        %v950 = vld [vmem:[#allocation10 + $0x108] sm:$0xff]
        %v951 = vld [vmem:[#allocation10 + $0x110] sm:$0xff]
        %v952 = vld [vmem:[#allocation10 + $0x118] sm:$0xff]
        %v953 = vld [vmem:[#allocation10 + $0x120] sm:$0xff]
        %v954 = vld [vmem:[#allocation10 + $0x128] sm:$0xff]
        %v955 = vld [vmem:[#allocation10 + $0x130] sm:$0xff]
        %v956 = vld [vmem:[#allocation10 + $0x138] sm:$0xff]
        %v957 = vld [vmem:[#allocation10 + $0x140] sm:$0xff]
        %v958 = vld [vmem:[#allocation10 + $0x148] sm:$0xff]
        %v959 = vld [vmem:[#allocation10 + $0x150] sm:$0xff]
        %v960 = vld [vmem:[#allocation10 + $0x158] sm:$0xff]
        %v961 = vld [vmem:[#allocation10 + $0x160] sm:$0xff]
        %v962 = vld [vmem:[#allocation10 + $0x168] sm:$0xff]
        %v963 = vld [vmem:[#allocation10 + $0x170] sm:$0xff]
        %v964 = vld [vmem:[#allocation10 + $0x178] sm:$0xff]
        %v965 = vld [vmem:[#allocation10 + $0x180] sm:$0xff]
        %v966 = vld [vmem:[#allocation10 + $0x188] sm:$0xff]
        %v967 = vld [vmem:[#allocation10 + $0x190] sm:$0xff]
        %v968 = vld [vmem:[#allocation10 + $0x198] sm:$0xff]
        %v969 = vld [vmem:[#allocation10 + $0x1a0] sm:$0xff]
        %v970 = vld [vmem:[#allocation10 + $0x1a8] sm:$0xff]
        %v971 = vld [vmem:[#allocation10 + $0x1b0] sm:$0xff]
        %v972 = vld [vmem:[#allocation10 + $0x1b8] sm:$0xff]
        %v973 = vld [vmem:[#allocation10 + $0x1c0] sm:$0xff]
        %v974 = vld [vmem:[#allocation10 + $0x1c8] sm:$0xff]
        %v975 = vld [vmem:[#allocation10 + $0x1d0] sm:$0xff]
        %v976 = vld [vmem:[#allocation10 + $0x1d8] sm:$0xff]
        %v977 = vld [vmem:[#allocation10 + $0x1e0] sm:$0xff]
        %v978 = vld [vmem:[#allocation10 + $0x1e8] sm:$0xff]
        %v979 = vld [vmem:[#allocation10 + $0x1f0] sm:$0xff]
        %v980 = vld [vmem:[#allocation10 + $0x1f8] sm:$0xff]
        %v981 = vld [vmem:[#allocation12] sm:$0xff]
        %v982 = vld [vmem:[#allocation12 + $0x8] sm:$0xff]
        %v983 = vld [vmem:[#allocation12 + $0x10] sm:$0xff]
        %v984 = vld [vmem:[#allocation12 + $0x18] sm:$0xff]
        %v985 = vld [vmem:[#allocation12 + $0x20] sm:$0xff]
        %v986 = vld [vmem:[#allocation12 + $0x28] sm:$0xff]
        %v987 = vld [vmem:[#allocation12 + $0x30] sm:$0xff]
        %v988 = vld [vmem:[#allocation12 + $0x38] sm:$0xff]
        %v989 = vld [vmem:[#allocation12 + $0x40] sm:$0xff]
        %v990 = vld [vmem:[#allocation12 + $0x48] sm:$0xff]
        %v991 = vld [vmem:[#allocation12 + $0x50] sm:$0xff]
        %v992 = vld [vmem:[#allocation12 + $0x58] sm:$0xff]
        %v993 = vld [vmem:[#allocation12 + $0x60] sm:$0xff]
        %v994 = vld [vmem:[#allocation12 + $0x68] sm:$0xff]
        %v995 = vld [vmem:[#allocation12 + $0x70] sm:$0xff]
        %v996 = vld [vmem:[#allocation12 + $0x78] sm:$0xff]
        %v997 = vld [vmem:[#allocation12 + $0x80] sm:$0xff]
        %v998 = vld [vmem:[#allocation12 + $0x88] sm:$0xff]
        %v999 = vld [vmem:[#allocation12 + $0x90] sm:$0xff]
        %v1000 = vld [vmem:[#allocation12 + $0x98] sm:$0xff]
        %v1001 = vld [vmem:[#allocation12 + $0xa0] sm:$0xff]
        %v1002 = vld [vmem:[#allocation12 + $0xa8] sm:$0xff]
        %v1003 = vld [vmem:[#allocation12 + $0xb0] sm:$0xff]
        %v1004 = vld [vmem:[#allocation12 + $0xb8] sm:$0xff]
        %v1005 = vld [vmem:[#allocation12 + $0xc0] sm:$0xff]
        %v1006 = vld [vmem:[#allocation12 + $0xc8] sm:$0xff]
        %v1007 = vld [vmem:[#allocation12 + $0xd0] sm:$0xff]
        %v1008 = vld [vmem:[#allocation12 + $0xd8] sm:$0xff]
        %v1009 = vld [vmem:[#allocation12 + $0xe0] sm:$0xff]
        %v1010 = vld [vmem:[#allocation12 + $0xe8] sm:$0xff]
        %v1011 = vld [vmem:[#allocation12 + $0xf0] sm:$0xff]
        %v1012 = vld [vmem:[#allocation12 + $0xf8] sm:$0xff]
        %v1013 = vld [vmem:[#allocation12 + $0x100] sm:$0xff]
        %v1014 = vld [vmem:[#allocation12 + $0x108] sm:$0xff]
        %v1015 = vld [vmem:[#allocation12 + $0x110] sm:$0xff]
        %v1016 = vld [vmem:[#allocation12 + $0x118] sm:$0xff]
        %v1017 = vld [vmem:[#allocation12 + $0x120] sm:$0xff]
        %v1018 = vld [vmem:[#allocation12 + $0x128] sm:$0xff]
        %v1019 = vld [vmem:[#allocation12 + $0x130] sm:$0xff]
        %v1020 = vld [vmem:[#allocation12 + $0x138] sm:$0xff]
        %v1021 = vld [vmem:[#allocation12 + $0x140] sm:$0xff]
        %v1022 = vld [vmem:[#allocation12 + $0x148] sm:$0xff]
        %v1023 = vld [vmem:[#allocation12 + $0x150] sm:$0xff]
        %v1024 = vld [vmem:[#allocation12 + $0x158] sm:$0xff]
        %v1025 = vld [vmem:[#allocation12 + $0x160] sm:$0xff]
        %v1026 = vld [vmem:[#allocation12 + $0x168] sm:$0xff]
        %v1027 = vld [vmem:[#allocation12 + $0x170] sm:$0xff]
        %v1028 = vld [vmem:[#allocation12 + $0x178] sm:$0xff]
        %v1029 = vld [vmem:[#allocation12 + $0x180] sm:$0xff]
        %v1030 = vld [vmem:[#allocation12 + $0x188] sm:$0xff]
        %v1031 = vld [vmem:[#allocation12 + $0x190] sm:$0xff]
        %v1032 = vld [vmem:[#allocation12 + $0x198] sm:$0xff]
        %v1033 = vld [vmem:[#allocation12 + $0x1a0] sm:$0xff]
        %v1034 = vld [vmem:[#allocation12 + $0x1a8] sm:$0xff]
        %v1035 = vld [vmem:[#allocation12 + $0x1b0] sm:$0xff]
        %v1036 = vld [vmem:[#allocation12 + $0x1b8] sm:$0xff]
        %v1037 = vld [vmem:[#allocation12 + $0x1c0] sm:$0xff]
        %v1038 = vld [vmem:[#allocation12 + $0x1c8] sm:$0xff]
        %v1039 = vld [vmem:[#allocation12 + $0x1d0] sm:$0xff]
        %v1040 = vld [vmem:[#allocation12 + $0x1d8] sm:$0xff]
        %v1041 = vld [vmem:[#allocation12 + $0x1e0] sm:$0xff]
        %v1042 = vld [vmem:[#allocation12 + $0x1e8] sm:$0xff]
        %v1043 = vld [vmem:[#allocation12 + $0x1f0] sm:$0xff]
        %v1044 = vld [vmem:[#allocation12 + $0x1f8] sm:$0xff]
        %s1045 = smul.u32 0, 4
        %s1046 = smul.addr %s1045, 8
        %s1047 = scalar_lea.vmem [#allocation2], %s1046
        %v1048 = vld [vmem:[%s1047] sm:$0xff]
        %v1049 = vld [vmem:[%s1047 + $0x8] sm:$0xff]
        %v1050 = vld [vmem:[%s1047 + $0x10] sm:$0xff]
        %v1051 = vld [vmem:[%s1047 + $0x18] sm:$0xff]
        %v1052 = vld [vmem:[#allocation4] sm:$0xff]
        %1053 = vmatprep.subr.mxu0 %v978
        %1054 = vmatpush1.msra.mxu0 %v977
        %1055 = vmatprep.subr.mxu0 %v974
        %1056 = vmatpush1.msra.mxu0 %v973
        %1057 = vmatprep.subr.mxu0 %v970
        %1058 = vmatpush1.msra.mxu0 %v969
        %1059 = vmatprep.subr.mxu0 %v966
        %1060 = vmatpush1.msra.mxu0 %v965
        %1061 = vmatprep.subr.mxu0 %v962
        %1062 = vmatpush1.msra.mxu0 %v961
        %1063 = vmatprep.subr.mxu0 %v958
        %1064 = vmatpush1.msra.mxu0 %v957
        %1065 = vmatprep.subr.mxu0 %v954
        %1066 = vmatpush1.msra.mxu0 %v953
        %1067 = vmatprep.subr.mxu0 %v950
        %1068 = vmatpush1.msra.mxu0 %v949
        %1069 = vmatprep.subr.mxu0 %v946
        %1070 = vmatpush1.msra.mxu0 %v945
        %1071 = vmatprep.subr.mxu0 %v942
        %1072 = vmatpush1.msra.mxu0 %v941
        %1073 = vmatprep.subr.mxu0 %v938
        %1074 = vmatpush1.msra.mxu0 %v937
        %1075 = vmatprep.subr.mxu0 %v934
        %1076 = vmatpush1.msra.mxu0 %v933
        %1077 = vmatprep.subr.mxu0 %v930
        %1078 = vmatpush1.msra.mxu0 %v929
        %1079 = vmatprep.subr.mxu0 %v926
        %1080 = vmatpush1.msra.mxu0 %v925
        %1081 = vmatprep.subr.mxu0 %v922
        %1082 = vmatpush1.msra.mxu0 %v921
        %1083 = vmatprep.subr.mxu0 %v918
        %1084 = vmatpush1.msra.mxu0 %v917
        %1085 = vmatprep.subr.mxu0 0.0
        %1086 = vmatpush2.msra.mxu0 0.0
        %1087 = vmatprep.subr.mxu0 0.0
        %1088 = vmatpush2.msra.mxu0 0.0
        %1089 = vmatprep.subr.mxu0 0.0
        %1090 = vmatpush2.msra.mxu0 0.0
        %1091 = vmatprep.subr.mxu0 0.0
        %1092 = vmatpush2.msra.mxu0 0.0
        %1093 = vmatprep.subr.mxu0 0.0
        %1094 = vmatpush2.msra.mxu0 0.0
        %1095 = vmatprep.subr.mxu0 0.0
        %1096 = vmatpush2.msra.mxu0 0.0
        %1097 = vmatprep.subr.mxu0 0.0
        %1098 = vmatpush2.msra.mxu0 0.0
        %1099 = vmatprep.subr.mxu0 0.0
        %1100 = vmatpush2.msra.mxu0 0.0
        %1101 = vmatprep.subr.mxu0 0.0
        %1102 = vmatpush2.msra.mxu0 0.0
        %1103 = vmatprep.subr.mxu0 0.0
        %1104 = vmatpush2.msra.mxu0 0.0
        %1105 = vmatprep.subr.mxu0 0.0
        %1106 = vmatpush2.msra.mxu0 0.0
        %1107 = vmatprep.subr.mxu0 0.0
        %1108 = vmatpush2.msra.mxu0 0.0
        %1109 = vmatprep.subr.mxu0 0.0
        %1110 = vmatpush2.msra.mxu0 0.0
        %1111 = vmatprep.subr.mxu0 0.0
        %1112 = vmatpush2.msra.mxu0 0.0
        %1113 = vmatprep.subr.mxu0 0.0
        %1114 = vmatpush2.msra.mxu0 0.0
        %1115 = vmatprep.subr.mxu0 0.0
        %1116 = vmatpush2.msra.mxu0 0.0
        %1117 = vmatprep.mubr.f32.mxu0 0.0
        %1118 = vmatmul.mubr.f32.gmra.mxu0 %v1052
        %v1119 = vpop.f32.mrf.mxu0
        %v1120 = vadd.f32 0.0, %v1119
        %v1121 = vpop.f32.mrf.mxu0
        %v1122 = vadd.f32 0.0, %v1121
        %1123 = vdwg.mxu0
        %1124 = vmatprep.subr.mxu0 %v980
        %1125 = vmatpush1.msra.mxu0 %v979
        %1126 = vmatprep.subr.mxu0 %v976
        %1127 = vmatpush1.msra.mxu0 %v975
        %1128 = vmatprep.subr.mxu0 %v972
        %1129 = vmatpush1.msra.mxu0 %v971
        %1130 = vmatprep.subr.mxu0 %v968
        %1131 = vmatpush1.msra.mxu0 %v967
        %1132 = vmatprep.subr.mxu0 %v964
        %1133 = vmatpush1.msra.mxu0 %v963
        %1134 = vmatprep.subr.mxu0 %v960
        %1135 = vmatpush1.msra.mxu0 %v959
        %1136 = vmatprep.subr.mxu0 %v956
        %1137 = vmatpush1.msra.mxu0 %v955
        %1138 = vmatprep.subr.mxu0 %v952
        %1139 = vmatpush1.msra.mxu0 %v951
        %1140 = vmatprep.subr.mxu0 %v948
        %1141 = vmatpush1.msra.mxu0 %v947
        %1142 = vmatprep.subr.mxu0 %v944
        %1143 = vmatpush1.msra.mxu0 %v943
        %1144 = vmatprep.subr.mxu0 %v940
        %1145 = vmatpush1.msra.mxu0 %v939
        %1146 = vmatprep.subr.mxu0 %v936
        %1147 = vmatpush1.msra.mxu0 %v935
        %1148 = vmatprep.subr.mxu0 %v932
        %1149 = vmatpush1.msra.mxu0 %v931
        %1150 = vmatprep.subr.mxu0 %v928
        %1151 = vmatpush1.msra.mxu0 %v927
        %1152 = vmatprep.subr.mxu0 %v924
        %1153 = vmatpush1.msra.mxu0 %v923
        %1154 = vmatprep.subr.mxu0 %v920
        %1155 = vmatpush1.msra.mxu0 %v919
        %1156 = vmatprep.subr.mxu0 0.0
        %1157 = vmatpush2.msra.mxu0 0.0
        %1158 = vmatprep.subr.mxu0 0.0
        %1159 = vmatpush2.msra.mxu0 0.0
        %1160 = vmatprep.subr.mxu0 0.0
        %1161 = vmatpush2.msra.mxu0 0.0
        %1162 = vmatprep.subr.mxu0 0.0
        %1163 = vmatpush2.msra.mxu0 0.0
        %1164 = vmatprep.subr.mxu0 0.0
        %1165 = vmatpush2.msra.mxu0 0.0
        %1166 = vmatprep.subr.mxu0 0.0
        %1167 = vmatpush2.msra.mxu0 0.0
        %1168 = vmatprep.subr.mxu0 0.0
        %1169 = vmatpush2.msra.mxu0 0.0
        %1170 = vmatprep.subr.mxu0 0.0
        %1171 = vmatpush2.msra.mxu0 0.0
        %1172 = vmatprep.subr.mxu0 0.0
        %1173 = vmatpush2.msra.mxu0 0.0
        %1174 = vmatprep.subr.mxu0 0.0
        %1175 = vmatpush2.msra.mxu0 0.0
        %1176 = vmatprep.subr.mxu0 0.0
        %1177 = vmatpush2.msra.mxu0 0.0
        %1178 = vmatprep.subr.mxu0 0.0
        %1179 = vmatpush2.msra.mxu0 0.0
        %1180 = vmatprep.subr.mxu0 0.0
        %1181 = vmatpush2.msra.mxu0 0.0
        %1182 = vmatprep.subr.mxu0 0.0
        %1183 = vmatpush2.msra.mxu0 0.0
        %1184 = vmatprep.subr.mxu0 0.0
        %1185 = vmatpush2.msra.mxu0 0.0
        %1186 = vmatprep.subr.mxu0 0.0
        %1187 = vmatpush2.msra.mxu0 0.0
        %1188 = vmatprep.mubr.f32.mxu0 0.0
        %1189 = vmatmul.mubr.f32.gmra.mxu0 %v1052
        %v1190 = vpop.f32.mrf.mxu0
        %v1191 = vadd.f32 0.0, %v1190
        %v1192 = vpop.f32.mrf.mxu0
        %v1193 = vadd.f32 0.0, %v1192
        %1194 = vdwg.mxu0
        %v1195 = vadd.f32 %v1048, %v1120
        %v1196 = vadd.f32 %v1049, %v1122
        %v1197 = vadd.f32 %v1050, %v1191
        %v1198 = vadd.f32 %v1051, %v1193
        %v1199 = vld [vmem:[#allocation5] sm:$0xff]
        %v1200 = vxor.u32 %v1195, 2147483648
        %v1201 = vmul.f32 %v1200, 1.442695
        %v1202 = vpow.pop %v1201
        %v1203 = vadd.f32 %v1202, 1.0
        %v1204 = vrcp.pop %v1203
        %v1205 = vmul.f32 1.0, %v1204
        %v1206 = vxor.u32 %v1196, 2147483648
        %v1207 = vmul.f32 %v1206, 1.442695
        %v1208 = vpow.pop %v1207
        %v1209 = vadd.f32 %v1208, 1.0
        %v1210 = vrcp.pop %v1209
        %v1211 = vmul.f32 1.0, %v1210
        %v1212 = vtanh.pop %v1197
        %v1213 = vxor.u32 %v1198, 2147483648
        %v1214 = vmul.f32 %v1213, 1.442695
        %v1215 = vpow.pop %v1214
        %v1216 = vadd.f32 %v1215, 1.0
        %v1217 = vrcp.pop %v1216
        %v1218 = vmul.f32 1.0, %v1217
        %v1219 = vmul.f32 %v1211, %v1199
        %v1220 = vmul.f32 %v1205, %v1212
        %v1221 = vadd.f32 %v1219, %v1220
        %v1222 = vtanh.pop %v1221
        %v1223 = vmul.f32 %v1218, %v1222
        %1224 = vst [vmem:[#allocation4] sm:$0xff] %v1223
        %1225 = vst [vmem:[#allocation5] sm:$0xff] %v1221
        %1226 = vst [vmem:[%s418] sm:$0xff] %v1223
        %s1227 = smul.u32 3, 4
        %s1228 = smul.addr %s1227, 8
        %s1229 = scalar_lea.vmem [#allocation3], %s1228
        %v1230 = vld [vmem:[%s1229] sm:$0xff]
        %v1231 = vld [vmem:[%s1229 + $0x8] sm:$0xff]
        %v1232 = vld [vmem:[%s1229 + $0x10] sm:$0xff]
        %v1233 = vld [vmem:[%s1229 + $0x18] sm:$0xff]
        %v1234 = vld [vmem:[#allocation6] sm:$0xff]
        %1235 = vmatprep.subr.mxu0 %v1042
        %1236 = vmatpush1.msra.mxu0 %v1041
        %1237 = vmatprep.subr.mxu0 %v1038
        %1238 = vmatpush1.msra.mxu0 %v1037
        %1239 = vmatprep.subr.mxu0 %v1034
        %1240 = vmatpush1.msra.mxu0 %v1033
        %1241 = vmatprep.subr.mxu0 %v1030
        %1242 = vmatpush1.msra.mxu0 %v1029
        %1243 = vmatprep.subr.mxu0 %v1026
        %1244 = vmatpush1.msra.mxu0 %v1025
        %1245 = vmatprep.subr.mxu0 %v1022
        %1246 = vmatpush1.msra.mxu0 %v1021
        %1247 = vmatprep.subr.mxu0 %v1018
        %1248 = vmatpush1.msra.mxu0 %v1017
        %1249 = vmatprep.subr.mxu0 %v1014
        %1250 = vmatpush1.msra.mxu0 %v1013
        %1251 = vmatprep.subr.mxu0 %v1010
        %1252 = vmatpush1.msra.mxu0 %v1009
        %1253 = vmatprep.subr.mxu0 %v1006
        %1254 = vmatpush1.msra.mxu0 %v1005
        %1255 = vmatprep.subr.mxu0 %v1002
        %1256 = vmatpush1.msra.mxu0 %v1001
        %1257 = vmatprep.subr.mxu0 %v998
        %1258 = vmatpush1.msra.mxu0 %v997
        %1259 = vmatprep.subr.mxu0 %v994
        %1260 = vmatpush1.msra.mxu0 %v993
        %1261 = vmatprep.subr.mxu0 %v990
        %1262 = vmatpush1.msra.mxu0 %v989
        %1263 = vmatprep.subr.mxu0 %v986
        %1264 = vmatpush1.msra.mxu0 %v985
        %1265 = vmatprep.subr.mxu0 %v982
        %1266 = vmatpush1.msra.mxu0 %v981
        %1267 = vmatprep.subr.mxu0 0.0
        %1268 = vmatpush2.msra.mxu0 0.0
        %1269 = vmatprep.subr.mxu0 0.0
        %1270 = vmatpush2.msra.mxu0 0.0
        %1271 = vmatprep.subr.mxu0 0.0
        %1272 = vmatpush2.msra.mxu0 0.0
        %1273 = vmatprep.subr.mxu0 0.0
        %1274 = vmatpush2.msra.mxu0 0.0
        %1275 = vmatprep.subr.mxu0 0.0
        %1276 = vmatpush2.msra.mxu0 0.0
        %1277 = vmatprep.subr.mxu0 0.0
        %1278 = vmatpush2.msra.mxu0 0.0
        %1279 = vmatprep.subr.mxu0 0.0
        %1280 = vmatpush2.msra.mxu0 0.0
        %1281 = vmatprep.subr.mxu0 0.0
        %1282 = vmatpush2.msra.mxu0 0.0
        %1283 = vmatprep.subr.mxu0 0.0
        %1284 = vmatpush2.msra.mxu0 0.0
        %1285 = vmatprep.subr.mxu0 0.0
        %1286 = vmatpush2.msra.mxu0 0.0
        %1287 = vmatprep.subr.mxu0 0.0
        %1288 = vmatpush2.msra.mxu0 0.0
        %1289 = vmatprep.subr.mxu0 0.0
        %1290 = vmatpush2.msra.mxu0 0.0
        %1291 = vmatprep.subr.mxu0 0.0
        %1292 = vmatpush2.msra.mxu0 0.0
        %1293 = vmatprep.subr.mxu0 0.0
        %1294 = vmatpush2.msra.mxu0 0.0
        %1295 = vmatprep.subr.mxu0 0.0
        %1296 = vmatpush2.msra.mxu0 0.0
        %1297 = vmatprep.subr.mxu0 0.0
        %1298 = vmatpush2.msra.mxu0 0.0
        %1299 = vmatprep.mubr.f32.mxu0 0.0
        %1300 = vmatmul.mubr.f32.gmra.mxu0 %v1234
        %v1301 = vpop.f32.mrf.mxu0
        %v1302 = vadd.f32 0.0, %v1301
        %v1303 = vpop.f32.mrf.mxu0
        %v1304 = vadd.f32 0.0, %v1303
        %1305 = vdwg.mxu0
        %1306 = vmatprep.subr.mxu0 %v1044
        %1307 = vmatpush1.msra.mxu0 %v1043
        %1308 = vmatprep.subr.mxu0 %v1040
        %1309 = vmatpush1.msra.mxu0 %v1039
        %1310 = vmatprep.subr.mxu0 %v1036
        %1311 = vmatpush1.msra.mxu0 %v1035
        %1312 = vmatprep.subr.mxu0 %v1032
        %1313 = vmatpush1.msra.mxu0 %v1031
        %1314 = vmatprep.subr.mxu0 %v1028
        %1315 = vmatpush1.msra.mxu0 %v1027
        %1316 = vmatprep.subr.mxu0 %v1024
        %1317 = vmatpush1.msra.mxu0 %v1023
        %1318 = vmatprep.subr.mxu0 %v1020
        %1319 = vmatpush1.msra.mxu0 %v1019
        %1320 = vmatprep.subr.mxu0 %v1016
        %1321 = vmatpush1.msra.mxu0 %v1015
        %1322 = vmatprep.subr.mxu0 %v1012
        %1323 = vmatpush1.msra.mxu0 %v1011
        %1324 = vmatprep.subr.mxu0 %v1008
        %1325 = vmatpush1.msra.mxu0 %v1007
        %1326 = vmatprep.subr.mxu0 %v1004
        %1327 = vmatpush1.msra.mxu0 %v1003
        %1328 = vmatprep.subr.mxu0 %v1000
        %1329 = vmatpush1.msra.mxu0 %v999
        %1330 = vmatprep.subr.mxu0 %v996
        %1331 = vmatpush1.msra.mxu0 %v995
        %1332 = vmatprep.subr.mxu0 %v992
        %1333 = vmatpush1.msra.mxu0 %v991
        %1334 = vmatprep.subr.mxu0 %v988
        %1335 = vmatpush1.msra.mxu0 %v987
        %1336 = vmatprep.subr.mxu0 %v984
        %1337 = vmatpush1.msra.mxu0 %v983
        %1338 = vmatprep.subr.mxu0 0.0
        %1339 = vmatpush2.msra.mxu0 0.0
        %1340 = vmatprep.subr.mxu0 0.0
        %1341 = vmatpush2.msra.mxu0 0.0
        %1342 = vmatprep.subr.mxu0 0.0
        %1343 = vmatpush2.msra.mxu0 0.0
        %1344 = vmatprep.subr.mxu0 0.0
        %1345 = vmatpush2.msra.mxu0 0.0
        %1346 = vmatprep.subr.mxu0 0.0
        %1347 = vmatpush2.msra.mxu0 0.0
        %1348 = vmatprep.subr.mxu0 0.0
        %1349 = vmatpush2.msra.mxu0 0.0
        %1350 = vmatprep.subr.mxu0 0.0
        %1351 = vmatpush2.msra.mxu0 0.0
        %1352 = vmatprep.subr.mxu0 0.0
        %1353 = vmatpush2.msra.mxu0 0.0
        %1354 = vmatprep.subr.mxu0 0.0
        %1355 = vmatpush2.msra.mxu0 0.0
        %1356 = vmatprep.subr.mxu0 0.0
        %1357 = vmatpush2.msra.mxu0 0.0
        %1358 = vmatprep.subr.mxu0 0.0
        %1359 = vmatpush2.msra.mxu0 0.0
        %1360 = vmatprep.subr.mxu0 0.0
        %1361 = vmatpush2.msra.mxu0 0.0
        %1362 = vmatprep.subr.mxu0 0.0
        %1363 = vmatpush2.msra.mxu0 0.0
        %1364 = vmatprep.subr.mxu0 0.0
        %1365 = vmatpush2.msra.mxu0 0.0
        %1366 = vmatprep.subr.mxu0 0.0
        %1367 = vmatpush2.msra.mxu0 0.0
        %1368 = vmatprep.subr.mxu0 0.0
        %1369 = vmatpush2.msra.mxu0 0.0
        %1370 = vmatprep.mubr.f32.mxu0 0.0
        %1371 = vmatmul.mubr.f32.gmra.mxu0 %v1234
        %v1372 = vpop.f32.mrf.mxu0
        %v1373 = vadd.f32 0.0, %v1372
        %v1374 = vpop.f32.mrf.mxu0
        %v1375 = vadd.f32 0.0, %v1374
        %1376 = vdwg.mxu0
        %v1377 = vadd.f32 %v1230, %v1302
        %v1378 = vadd.f32 %v1231, %v1304
        %v1379 = vadd.f32 %v1232, %v1373
        %v1380 = vadd.f32 %v1233, %v1375
        %v1381 = vld [vmem:[#allocation7] sm:$0xff]
        %v1382 = vxor.u32 %v1377, 2147483648
        %v1383 = vmul.f32 %v1382, 1.442695
        %v1384 = vpow.pop %v1383
        %v1385 = vadd.f32 %v1384, 1.0
        %v1386 = vrcp.pop %v1385
        %v1387 = vmul.f32 1.0, %v1386
        %v1388 = vxor.u32 %v1378, 2147483648
        %v1389 = vmul.f32 %v1388, 1.442695
        %v1390 = vpow.pop %v1389
        %v1391 = vadd.f32 %v1390, 1.0
        %v1392 = vrcp.pop %v1391
        %v1393 = vmul.f32 1.0, %v1392
        %v1394 = vtanh.pop %v1379
        %v1395 = vxor.u32 %v1380, 2147483648
        %v1396 = vmul.f32 %v1395, 1.442695
        %v1397 = vpow.pop %v1396
        %v1398 = vadd.f32 %v1397, 1.0
        %v1399 = vrcp.pop %v1398
        %v1400 = vmul.f32 1.0, %v1399
        %v1401 = vmul.f32 %v1393, %v1381
        %v1402 = vmul.f32 %v1387, %v1394
        %v1403 = vadd.f32 %v1401, %v1402
        %v1404 = vtanh.pop %v1403
        %v1405 = vmul.f32 %v1400, %v1404
        %1406 = vst [vmem:[#allocation6] sm:$0xff] %v1405
        %1407 = vst [vmem:[#allocation7] sm:$0xff] %v1403
        %s1408 = scalar_lea.vmem %s425, 24
        %1409 = vst [vmem:[%s1408] sm:$0xff] %v1405
        %s1410 = smul.u32 1, 4
        %s1411 = smul.addr %s1410, 8
        %s1412 = scalar_lea.vmem [#allocation2], %s1411
        %v1413 = vld [vmem:[%s1412] sm:$0xff]
        %v1414 = vld [vmem:[%s1412 + $0x8] sm:$0xff]
        %v1415 = vld [vmem:[%s1412 + $0x10] sm:$0xff]
        %v1416 = vld [vmem:[%s1412 + $0x18] sm:$0xff]
        %v1417 = vld [vmem:[#allocation4] sm:$0xff]
        %1418 = vmatprep.subr.mxu0 %v978
        %1419 = vmatpush1.msra.mxu0 %v977
        %1420 = vmatprep.subr.mxu0 %v974
        %1421 = vmatpush1.msra.mxu0 %v973
        %1422 = vmatprep.subr.mxu0 %v970
        %1423 = vmatpush1.msra.mxu0 %v969
        %1424 = vmatprep.subr.mxu0 %v966
        %1425 = vmatpush1.msra.mxu0 %v965
        %1426 = vmatprep.subr.mxu0 %v962
        %1427 = vmatpush1.msra.mxu0 %v961
        %1428 = vmatprep.subr.mxu0 %v958
        %1429 = vmatpush1.msra.mxu0 %v957
        %1430 = vmatprep.subr.mxu0 %v954
        %1431 = vmatpush1.msra.mxu0 %v953
        %1432 = vmatprep.subr.mxu0 %v950
        %1433 = vmatpush1.msra.mxu0 %v949
        %1434 = vmatprep.subr.mxu0 %v946
        %1435 = vmatpush1.msra.mxu0 %v945
        %1436 = vmatprep.subr.mxu0 %v942
        %1437 = vmatpush1.msra.mxu0 %v941
        %1438 = vmatprep.subr.mxu0 %v938
        %1439 = vmatpush1.msra.mxu0 %v937
        %1440 = vmatprep.subr.mxu0 %v934
        %1441 = vmatpush1.msra.mxu0 %v933
        %1442 = vmatprep.subr.mxu0 %v930
        %1443 = vmatpush1.msra.mxu0 %v929
        %1444 = vmatprep.subr.mxu0 %v926
        %1445 = vmatpush1.msra.mxu0 %v925
        %1446 = vmatprep.subr.mxu0 %v922
        %1447 = vmatpush1.msra.mxu0 %v921
        %1448 = vmatprep.subr.mxu0 %v918
        %1449 = vmatpush1.msra.mxu0 %v917
        %1450 = vmatprep.subr.mxu0 0.0
        %1451 = vmatpush2.msra.mxu0 0.0
        %1452 = vmatprep.subr.mxu0 0.0
        %1453 = vmatpush2.msra.mxu0 0.0
        %1454 = vmatprep.subr.mxu0 0.0
        %1455 = vmatpush2.msra.mxu0 0.0
        %1456 = vmatprep.subr.mxu0 0.0
        %1457 = vmatpush2.msra.mxu0 0.0
        %1458 = vmatprep.subr.mxu0 0.0
        %1459 = vmatpush2.msra.mxu0 0.0
        %1460 = vmatprep.subr.mxu0 0.0
        %1461 = vmatpush2.msra.mxu0 0.0
        %1462 = vmatprep.subr.mxu0 0.0
        %1463 = vmatpush2.msra.mxu0 0.0
        %1464 = vmatprep.subr.mxu0 0.0
        %1465 = vmatpush2.msra.mxu0 0.0
        %1466 = vmatprep.subr.mxu0 0.0
        %1467 = vmatpush2.msra.mxu0 0.0
        %1468 = vmatprep.subr.mxu0 0.0
        %1469 = vmatpush2.msra.mxu0 0.0
        %1470 = vmatprep.subr.mxu0 0.0
        %1471 = vmatpush2.msra.mxu0 0.0
        %1472 = vmatprep.subr.mxu0 0.0
        %1473 = vmatpush2.msra.mxu0 0.0
        %1474 = vmatprep.subr.mxu0 0.0
        %1475 = vmatpush2.msra.mxu0 0.0
        %1476 = vmatprep.subr.mxu0 0.0
        %1477 = vmatpush2.msra.mxu0 0.0
        %1478 = vmatprep.subr.mxu0 0.0
        %1479 = vmatpush2.msra.mxu0 0.0
        %1480 = vmatprep.subr.mxu0 0.0
        %1481 = vmatpush2.msra.mxu0 0.0
        %1482 = vmatprep.mubr.f32.mxu0 0.0
        %1483 = vmatmul.mubr.f32.gmra.mxu0 %v1417
        %v1484 = vpop.f32.mrf.mxu0
        %v1485 = vadd.f32 0.0, %v1484
        %v1486 = vpop.f32.mrf.mxu0
        %v1487 = vadd.f32 0.0, %v1486
        %1488 = vdwg.mxu0
        %1489 = vmatprep.subr.mxu0 %v980
        %1490 = vmatpush1.msra.mxu0 %v979
        %1491 = vmatprep.subr.mxu0 %v976
        %1492 = vmatpush1.msra.mxu0 %v975
        %1493 = vmatprep.subr.mxu0 %v972
        %1494 = vmatpush1.msra.mxu0 %v971
        %1495 = vmatprep.subr.mxu0 %v968
        %1496 = vmatpush1.msra.mxu0 %v967
        %1497 = vmatprep.subr.mxu0 %v964
        %1498 = vmatpush1.msra.mxu0 %v963
        %1499 = vmatprep.subr.mxu0 %v960
        %1500 = vmatpush1.msra.mxu0 %v959
        %1501 = vmatprep.subr.mxu0 %v956
        %1502 = vmatpush1.msra.mxu0 %v955
        %1503 = vmatprep.subr.mxu0 %v952
        %1504 = vmatpush1.msra.mxu0 %v951
        %1505 = vmatprep.subr.mxu0 %v948
        %1506 = vmatpush1.msra.mxu0 %v947
        %1507 = vmatprep.subr.mxu0 %v944
        %1508 = vmatpush1.msra.mxu0 %v943
        %1509 = vmatprep.subr.mxu0 %v940
        %1510 = vmatpush1.msra.mxu0 %v939
        %1511 = vmatprep.subr.mxu0 %v936
        %1512 = vmatpush1.msra.mxu0 %v935
        %1513 = vmatprep.subr.mxu0 %v932
        %1514 = vmatpush1.msra.mxu0 %v931
        %1515 = vmatprep.subr.mxu0 %v928
        %1516 = vmatpush1.msra.mxu0 %v927
        %1517 = vmatprep.subr.mxu0 %v924
        %1518 = vmatpush1.msra.mxu0 %v923
        %1519 = vmatprep.subr.mxu0 %v920
        %1520 = vmatpush1.msra.mxu0 %v919
        %1521 = vmatprep.subr.mxu0 0.0
        %1522 = vmatpush2.msra.mxu0 0.0
        %1523 = vmatprep.subr.mxu0 0.0
        %1524 = vmatpush2.msra.mxu0 0.0
        %1525 = vmatprep.subr.mxu0 0.0
        %1526 = vmatpush2.msra.mxu0 0.0
        %1527 = vmatprep.subr.mxu0 0.0
        %1528 = vmatpush2.msra.mxu0 0.0
        %1529 = vmatprep.subr.mxu0 0.0
        %1530 = vmatpush2.msra.mxu0 0.0
        %1531 = vmatprep.subr.mxu0 0.0
        %1532 = vmatpush2.msra.mxu0 0.0
        %1533 = vmatprep.subr.mxu0 0.0
        %1534 = vmatpush2.msra.mxu0 0.0
        %1535 = vmatprep.subr.mxu0 0.0
        %1536 = vmatpush2.msra.mxu0 0.0
        %1537 = vmatprep.subr.mxu0 0.0
        %1538 = vmatpush2.msra.mxu0 0.0
        %1539 = vmatprep.subr.mxu0 0.0
        %1540 = vmatpush2.msra.mxu0 0.0
        %1541 = vmatprep.subr.mxu0 0.0
        %1542 = vmatpush2.msra.mxu0 0.0
        %1543 = vmatprep.subr.mxu0 0.0
        %1544 = vmatpush2.msra.mxu0 0.0
        %1545 = vmatprep.subr.mxu0 0.0
        %1546 = vmatpush2.msra.mxu0 0.0
        %1547 = vmatprep.subr.mxu0 0.0
        %1548 = vmatpush2.msra.mxu0 0.0
        %1549 = vmatprep.subr.mxu0 0.0
        %1550 = vmatpush2.msra.mxu0 0.0
        %1551 = vmatprep.subr.mxu0 0.0
        %1552 = vmatpush2.msra.mxu0 0.0
        %1553 = vmatprep.mubr.f32.mxu0 0.0
        %1554 = vmatmul.mubr.f32.gmra.mxu0 %v1417
        %v1555 = vpop.f32.mrf.mxu0
        %v1556 = vadd.f32 0.0, %v1555
        %v1557 = vpop.f32.mrf.mxu0
        %v1558 = vadd.f32 0.0, %v1557
        %1559 = vdwg.mxu0
        %v1560 = vadd.f32 %v1413, %v1485
        %v1561 = vadd.f32 %v1414, %v1487
        %v1562 = vadd.f32 %v1415, %v1556
        %v1563 = vadd.f32 %v1416, %v1558
        %v1564 = vld [vmem:[#allocation5] sm:$0xff]
        %v1565 = vxor.u32 %v1560, 2147483648
        %v1566 = vmul.f32 %v1565, 1.442695
        %v1567 = vpow.pop %v1566
        %v1568 = vadd.f32 %v1567, 1.0
        %v1569 = vrcp.pop %v1568
        %v1570 = vmul.f32 1.0, %v1569
        %v1571 = vxor.u32 %v1561, 2147483648
        %v1572 = vmul.f32 %v1571, 1.442695
        %v1573 = vpow.pop %v1572
        %v1574 = vadd.f32 %v1573, 1.0
        %v1575 = vrcp.pop %v1574
        %v1576 = vmul.f32 1.0, %v1575
        %v1577 = vtanh.pop %v1562
        %v1578 = vxor.u32 %v1563, 2147483648
        %v1579 = vmul.f32 %v1578, 1.442695
        %v1580 = vpow.pop %v1579
        %v1581 = vadd.f32 %v1580, 1.0
        %v1582 = vrcp.pop %v1581
        %v1583 = vmul.f32 1.0, %v1582
        %v1584 = vmul.f32 %v1576, %v1564
        %v1585 = vmul.f32 %v1570, %v1577
        %v1586 = vadd.f32 %v1584, %v1585
        %v1587 = vtanh.pop %v1586
        %v1588 = vmul.f32 %v1583, %v1587
        %1589 = vst [vmem:[#allocation4] sm:$0xff] %v1588
        %1590 = vst [vmem:[#allocation5] sm:$0xff] %v1586
        %s1591 = scalar_lea.vmem %s418, 8
        %1592 = vst [vmem:[%s1591] sm:$0xff] %v1588
        %s1593 = smul.u32 2, 4
        %s1594 = smul.addr %s1593, 8
        %s1595 = scalar_lea.vmem [#allocation3], %s1594
        %v1596 = vld [vmem:[%s1595] sm:$0xff]
        %v1597 = vld [vmem:[%s1595 + $0x8] sm:$0xff]
        %v1598 = vld [vmem:[%s1595 + $0x10] sm:$0xff]
        %v1599 = vld [vmem:[%s1595 + $0x18] sm:$0xff]
        %v1600 = vld [vmem:[#allocation6] sm:$0xff]
        %1601 = vmatprep.subr.mxu0 %v1042
        %1602 = vmatpush1.msra.mxu0 %v1041
        %1603 = vmatprep.subr.mxu0 %v1038
        %1604 = vmatpush1.msra.mxu0 %v1037
        %1605 = vmatprep.subr.mxu0 %v1034
        %1606 = vmatpush1.msra.mxu0 %v1033
        %1607 = vmatprep.subr.mxu0 %v1030
        %1608 = vmatpush1.msra.mxu0 %v1029
        %1609 = vmatprep.subr.mxu0 %v1026
        %1610 = vmatpush1.msra.mxu0 %v1025
        %1611 = vmatprep.subr.mxu0 %v1022
        %1612 = vmatpush1.msra.mxu0 %v1021
        %1613 = vmatprep.subr.mxu0 %v1018
        %1614 = vmatpush1.msra.mxu0 %v1017
        %1615 = vmatprep.subr.mxu0 %v1014
        %1616 = vmatpush1.msra.mxu0 %v1013
        %1617 = vmatprep.subr.mxu0 %v1010
        %1618 = vmatpush1.msra.mxu0 %v1009
        %1619 = vmatprep.subr.mxu0 %v1006
        %1620 = vmatpush1.msra.mxu0 %v1005
        %1621 = vmatprep.subr.mxu0 %v1002
        %1622 = vmatpush1.msra.mxu0 %v1001
        %1623 = vmatprep.subr.mxu0 %v998
        %1624 = vmatpush1.msra.mxu0 %v997
        %1625 = vmatprep.subr.mxu0 %v994
        %1626 = vmatpush1.msra.mxu0 %v993
        %1627 = vmatprep.subr.mxu0 %v990
        %1628 = vmatpush1.msra.mxu0 %v989
        %1629 = vmatprep.subr.mxu0 %v986
        %1630 = vmatpush1.msra.mxu0 %v985
        %1631 = vmatprep.subr.mxu0 %v982
        %1632 = vmatpush1.msra.mxu0 %v981
        %1633 = vmatprep.subr.mxu0 0.0
        %1634 = vmatpush2.msra.mxu0 0.0
        %1635 = vmatprep.subr.mxu0 0.0
        %1636 = vmatpush2.msra.mxu0 0.0
        %1637 = vmatprep.subr.mxu0 0.0
        %1638 = vmatpush2.msra.mxu0 0.0
        %1639 = vmatprep.subr.mxu0 0.0
        %1640 = vmatpush2.msra.mxu0 0.0
        %1641 = vmatprep.subr.mxu0 0.0
        %1642 = vmatpush2.msra.mxu0 0.0
        %1643 = vmatprep.subr.mxu0 0.0
        %1644 = vmatpush2.msra.mxu0 0.0
        %1645 = vmatprep.subr.mxu0 0.0
        %1646 = vmatpush2.msra.mxu0 0.0
        %1647 = vmatprep.subr.mxu0 0.0
        %1648 = vmatpush2.msra.mxu0 0.0
        %1649 = vmatprep.subr.mxu0 0.0
        %1650 = vmatpush2.msra.mxu0 0.0
        %1651 = vmatprep.subr.mxu0 0.0
        %1652 = vmatpush2.msra.mxu0 0.0
        %1653 = vmatprep.subr.mxu0 0.0
        %1654 = vmatpush2.msra.mxu0 0.0
        %1655 = vmatprep.subr.mxu0 0.0
        %1656 = vmatpush2.msra.mxu0 0.0
        %1657 = vmatprep.subr.mxu0 0.0
        %1658 = vmatpush2.msra.mxu0 0.0
        %1659 = vmatprep.subr.mxu0 0.0
        %1660 = vmatpush2.msra.mxu0 0.0
        %1661 = vmatprep.subr.mxu0 0.0
        %1662 = vmatpush2.msra.mxu0 0.0
        %1663 = vmatprep.subr.mxu0 0.0
        %1664 = vmatpush2.msra.mxu0 0.0
        %1665 = vmatprep.mubr.f32.mxu0 0.0
        %1666 = vmatmul.mubr.f32.gmra.mxu0 %v1600
        %v1667 = vpop.f32.mrf.mxu0
        %v1668 = vadd.f32 0.0, %v1667
        %v1669 = vpop.f32.mrf.mxu0
        %v1670 = vadd.f32 0.0, %v1669
        %1671 = vdwg.mxu0
        %1672 = vmatprep.subr.mxu0 %v1044
        %1673 = vmatpush1.msra.mxu0 %v1043
        %1674 = vmatprep.subr.mxu0 %v1040
        %1675 = vmatpush1.msra.mxu0 %v1039
        %1676 = vmatprep.subr.mxu0 %v1036
        %1677 = vmatpush1.msra.mxu0 %v1035
        %1678 = vmatprep.subr.mxu0 %v1032
        %1679 = vmatpush1.msra.mxu0 %v1031
        %1680 = vmatprep.subr.mxu0 %v1028
        %1681 = vmatpush1.msra.mxu0 %v1027
        %1682 = vmatprep.subr.mxu0 %v1024
        %1683 = vmatpush1.msra.mxu0 %v1023
        %1684 = vmatprep.subr.mxu0 %v1020
        %1685 = vmatpush1.msra.mxu0 %v1019
        %1686 = vmatprep.subr.mxu0 %v1016
        %1687 = vmatpush1.msra.mxu0 %v1015
        %1688 = vmatprep.subr.mxu0 %v1012
        %1689 = vmatpush1.msra.mxu0 %v1011
        %1690 = vmatprep.subr.mxu0 %v1008
        %1691 = vmatpush1.msra.mxu0 %v1007
        %1692 = vmatprep.subr.mxu0 %v1004
        %1693 = vmatpush1.msra.mxu0 %v1003
        %1694 = vmatprep.subr.mxu0 %v1000
        %1695 = vmatpush1.msra.mxu0 %v999
        %1696 = vmatprep.subr.mxu0 %v996
        %1697 = vmatpush1.msra.mxu0 %v995
        %1698 = vmatprep.subr.mxu0 %v992
        %1699 = vmatpush1.msra.mxu0 %v991
        %1700 = vmatprep.subr.mxu0 %v988
        %1701 = vmatpush1.msra.mxu0 %v987
        %1702 = vmatprep.subr.mxu0 %v984
        %1703 = vmatpush1.msra.mxu0 %v983
        %1704 = vmatprep.subr.mxu0 0.0
        %1705 = vmatpush2.msra.mxu0 0.0
        %1706 = vmatprep.subr.mxu0 0.0
        %1707 = vmatpush2.msra.mxu0 0.0
        %1708 = vmatprep.subr.mxu0 0.0
        %1709 = vmatpush2.msra.mxu0 0.0
        %1710 = vmatprep.subr.mxu0 0.0
        %1711 = vmatpush2.msra.mxu0 0.0
        %1712 = vmatprep.subr.mxu0 0.0
        %1713 = vmatpush2.msra.mxu0 0.0
        %1714 = vmatprep.subr.mxu0 0.0
        %1715 = vmatpush2.msra.mxu0 0.0
        %1716 = vmatprep.subr.mxu0 0.0
        %1717 = vmatpush2.msra.mxu0 0.0
        %1718 = vmatprep.subr.mxu0 0.0
        %1719 = vmatpush2.msra.mxu0 0.0
        %1720 = vmatprep.subr.mxu0 0.0
        %1721 = vmatpush2.msra.mxu0 0.0
        %1722 = vmatprep.subr.mxu0 0.0
        %1723 = vmatpush2.msra.mxu0 0.0
        %1724 = vmatprep.subr.mxu0 0.0
        %1725 = vmatpush2.msra.mxu0 0.0
        %1726 = vmatprep.subr.mxu0 0.0
        %1727 = vmatpush2.msra.mxu0 0.0
        %1728 = vmatprep.subr.mxu0 0.0
        %1729 = vmatpush2.msra.mxu0 0.0
        %1730 = vmatprep.subr.mxu0 0.0
        %1731 = vmatpush2.msra.mxu0 0.0
        %1732 = vmatprep.subr.mxu0 0.0
        %1733 = vmatpush2.msra.mxu0 0.0
        %1734 = vmatprep.subr.mxu0 0.0
        %1735 = vmatpush2.msra.mxu0 0.0
        %1736 = vmatprep.mubr.f32.mxu0 0.0
        %1737 = vmatmul.mubr.f32.gmra.mxu0 %v1600
        %v1738 = vpop.f32.mrf.mxu0
        %v1739 = vadd.f32 0.0, %v1738
        %v1740 = vpop.f32.mrf.mxu0
        %v1741 = vadd.f32 0.0, %v1740
        %1742 = vdwg.mxu0
        %v1743 = vadd.f32 %v1596, %v1668
        %v1744 = vadd.f32 %v1597, %v1670
        %v1745 = vadd.f32 %v1598, %v1739
        %v1746 = vadd.f32 %v1599, %v1741
        %v1747 = vld [vmem:[#allocation7] sm:$0xff]
        %v1748 = vxor.u32 %v1743, 2147483648
        %v1749 = vmul.f32 %v1748, 1.442695
        %v1750 = vpow.pop %v1749
        %v1751 = vadd.f32 %v1750, 1.0
        %v1752 = vrcp.pop %v1751
        %v1753 = vmul.f32 1.0, %v1752
        %v1754 = vxor.u32 %v1744, 2147483648
        %v1755 = vmul.f32 %v1754, 1.442695
        %v1756 = vpow.pop %v1755
        %v1757 = vadd.f32 %v1756, 1.0
        %v1758 = vrcp.pop %v1757
        %v1759 = vmul.f32 1.0, %v1758
        %v1760 = vtanh.pop %v1745
        %v1761 = vxor.u32 %v1746, 2147483648
        %v1762 = vmul.f32 %v1761, 1.442695
        %v1763 = vpow.pop %v1762
        %v1764 = vadd.f32 %v1763, 1.0
        %v1765 = vrcp.pop %v1764
        %v1766 = vmul.f32 1.0, %v1765
        %v1767 = vmul.f32 %v1759, %v1747
        %v1768 = vmul.f32 %v1753, %v1760
        %v1769 = vadd.f32 %v1767, %v1768
        %v1770 = vtanh.pop %v1769
        %v1771 = vmul.f32 %v1766, %v1770
        %1772 = vst [vmem:[#allocation6] sm:$0xff] %v1771
        %1773 = vst [vmem:[#allocation7] sm:$0xff] %v1769
        %s1774 = scalar_lea.vmem %s425, 16
        %1775 = vst [vmem:[%s1774] sm:$0xff] %v1771
        %s1776 = smul.addr %s1593, 8
        %s1777 = scalar_lea.vmem [#allocation2], %s1776
        %v1778 = vld [vmem:[%s1777] sm:$0xff]
        %v1779 = vld [vmem:[%s1777 + $0x8] sm:$0xff]
        %v1780 = vld [vmem:[%s1777 + $0x10] sm:$0xff]
        %v1781 = vld [vmem:[%s1777 + $0x18] sm:$0xff]
        %v1782 = vld [vmem:[#allocation4] sm:$0xff]
        %1783 = vmatprep.subr.mxu0 %v978
        %1784 = vmatpush1.msra.mxu0 %v977
        %1785 = vmatprep.subr.mxu0 %v974
        %1786 = vmatpush1.msra.mxu0 %v973
        %1787 = vmatprep.subr.mxu0 %v970
        %1788 = vmatpush1.msra.mxu0 %v969
        %1789 = vmatprep.subr.mxu0 %v966
        %1790 = vmatpush1.msra.mxu0 %v965
        %1791 = vmatprep.subr.mxu0 %v962
        %1792 = vmatpush1.msra.mxu0 %v961
        %1793 = vmatprep.subr.mxu0 %v958
        %1794 = vmatpush1.msra.mxu0 %v957
        %1795 = vmatprep.subr.mxu0 %v954
        %1796 = vmatpush1.msra.mxu0 %v953
        %1797 = vmatprep.subr.mxu0 %v950
        %1798 = vmatpush1.msra.mxu0 %v949
        %1799 = vmatprep.subr.mxu0 %v946
        %1800 = vmatpush1.msra.mxu0 %v945
        %1801 = vmatprep.subr.mxu0 %v942
        %1802 = vmatpush1.msra.mxu0 %v941
        %1803 = vmatprep.subr.mxu0 %v938
        %1804 = vmatpush1.msra.mxu0 %v937
        %1805 = vmatprep.subr.mxu0 %v934
        %1806 = vmatpush1.msra.mxu0 %v933
        %1807 = vmatprep.subr.mxu0 %v930
        %1808 = vmatpush1.msra.mxu0 %v929
        %1809 = vmatprep.subr.mxu0 %v926
        %1810 = vmatpush1.msra.mxu0 %v925
        %1811 = vmatprep.subr.mxu0 %v922
        %1812 = vmatpush1.msra.mxu0 %v921
        %1813 = vmatprep.subr.mxu0 %v918
        %1814 = vmatpush1.msra.mxu0 %v917
        %1815 = vmatprep.subr.mxu0 0.0
        %1816 = vmatpush2.msra.mxu0 0.0
        %1817 = vmatprep.subr.mxu0 0.0
        %1818 = vmatpush2.msra.mxu0 0.0
        %1819 = vmatprep.subr.mxu0 0.0
        %1820 = vmatpush2.msra.mxu0 0.0
        %1821 = vmatprep.subr.mxu0 0.0
        %1822 = vmatpush2.msra.mxu0 0.0
        %1823 = vmatprep.subr.mxu0 0.0
        %1824 = vmatpush2.msra.mxu0 0.0
        %1825 = vmatprep.subr.mxu0 0.0
        %1826 = vmatpush2.msra.mxu0 0.0
        %1827 = vmatprep.subr.mxu0 0.0
        %1828 = vmatpush2.msra.mxu0 0.0
        %1829 = vmatprep.subr.mxu0 0.0
        %1830 = vmatpush2.msra.mxu0 0.0
        %1831 = vmatprep.subr.mxu0 0.0
        %1832 = vmatpush2.msra.mxu0 0.0
        %1833 = vmatprep.subr.mxu0 0.0
        %1834 = vmatpush2.msra.mxu0 0.0
        %1835 = vmatprep.subr.mxu0 0.0
        %1836 = vmatpush2.msra.mxu0 0.0
        %1837 = vmatprep.subr.mxu0 0.0
        %1838 = vmatpush2.msra.mxu0 0.0
        %1839 = vmatprep.subr.mxu0 0.0
        %1840 = vmatpush2.msra.mxu0 0.0
        %1841 = vmatprep.subr.mxu0 0.0
        %1842 = vmatpush2.msra.mxu0 0.0
        %1843 = vmatprep.subr.mxu0 0.0
        %1844 = vmatpush2.msra.mxu0 0.0
        %1845 = vmatprep.subr.mxu0 0.0
        %1846 = vmatpush2.msra.mxu0 0.0
        %1847 = vmatprep.mubr.f32.mxu0 0.0
        %1848 = vmatmul.mubr.f32.gmra.mxu0 %v1782
        %v1849 = vpop.f32.mrf.mxu0
        %v1850 = vadd.f32 0.0, %v1849
        %v1851 = vpop.f32.mrf.mxu0
        %v1852 = vadd.f32 0.0, %v1851
        %1853 = vdwg.mxu0
        %1854 = vmatprep.subr.mxu0 %v980
        %1855 = vmatpush1.msra.mxu0 %v979
        %1856 = vmatprep.subr.mxu0 %v976
        %1857 = vmatpush1.msra.mxu0 %v975
        %1858 = vmatprep.subr.mxu0 %v972
        %1859 = vmatpush1.msra.mxu0 %v971
        %1860 = vmatprep.subr.mxu0 %v968
        %1861 = vmatpush1.msra.mxu0 %v967
        %1862 = vmatprep.subr.mxu0 %v964
        %1863 = vmatpush1.msra.mxu0 %v963
        %1864 = vmatprep.subr.mxu0 %v960
        %1865 = vmatpush1.msra.mxu0 %v959
        %1866 = vmatprep.subr.mxu0 %v956
        %1867 = vmatpush1.msra.mxu0 %v955
        %1868 = vmatprep.subr.mxu0 %v952
        %1869 = vmatpush1.msra.mxu0 %v951
        %1870 = vmatprep.subr.mxu0 %v948
        %1871 = vmatpush1.msra.mxu0 %v947
        %1872 = vmatprep.subr.mxu0 %v944
        %1873 = vmatpush1.msra.mxu0 %v943
        %1874 = vmatprep.subr.mxu0 %v940
        %1875 = vmatpush1.msra.mxu0 %v939
        %1876 = vmatprep.subr.mxu0 %v936
        %1877 = vmatpush1.msra.mxu0 %v935
        %1878 = vmatprep.subr.mxu0 %v932
        %1879 = vmatpush1.msra.mxu0 %v931
        %1880 = vmatprep.subr.mxu0 %v928
        %1881 = vmatpush1.msra.mxu0 %v927
        %1882 = vmatprep.subr.mxu0 %v924
        %1883 = vmatpush1.msra.mxu0 %v923
        %1884 = vmatprep.subr.mxu0 %v920
        %1885 = vmatpush1.msra.mxu0 %v919
        %1886 = vmatprep.subr.mxu0 0.0
        %1887 = vmatpush2.msra.mxu0 0.0
        %1888 = vmatprep.subr.mxu0 0.0
        %1889 = vmatpush2.msra.mxu0 0.0
        %1890 = vmatprep.subr.mxu0 0.0
        %1891 = vmatpush2.msra.mxu0 0.0
        %1892 = vmatprep.subr.mxu0 0.0
        %1893 = vmatpush2.msra.mxu0 0.0
        %1894 = vmatprep.subr.mxu0 0.0
        %1895 = vmatpush2.msra.mxu0 0.0
        %1896 = vmatprep.subr.mxu0 0.0
        %1897 = vmatpush2.msra.mxu0 0.0
        %1898 = vmatprep.subr.mxu0 0.0
        %1899 = vmatpush2.msra.mxu0 0.0
        %1900 = vmatprep.subr.mxu0 0.0
        %1901 = vmatpush2.msra.mxu0 0.0
        %1902 = vmatprep.subr.mxu0 0.0
        %1903 = vmatpush2.msra.mxu0 0.0
        %1904 = vmatprep.subr.mxu0 0.0
        %1905 = vmatpush2.msra.mxu0 0.0
        %1906 = vmatprep.subr.mxu0 0.0
        %1907 = vmatpush2.msra.mxu0 0.0
        %1908 = vmatprep.subr.mxu0 0.0
        %1909 = vmatpush2.msra.mxu0 0.0
        %1910 = vmatprep.subr.mxu0 0.0
        %1911 = vmatpush2.msra.mxu0 0.0
        %1912 = vmatprep.subr.mxu0 0.0
        %1913 = vmatpush2.msra.mxu0 0.0
        %1914 = vmatprep.subr.mxu0 0.0
        %1915 = vmatpush2.msra.mxu0 0.0
        %1916 = vmatprep.subr.mxu0 0.0
        %1917 = vmatpush2.msra.mxu0 0.0
        %1918 = vmatprep.mubr.f32.mxu0 0.0
        %1919 = vmatmul.mubr.f32.gmra.mxu0 %v1782
        %v1920 = vpop.f32.mrf.mxu0
        %v1921 = vadd.f32 0.0, %v1920
        %v1922 = vpop.f32.mrf.mxu0
        %v1923 = vadd.f32 0.0, %v1922
        %1924 = vdwg.mxu0
        %v1925 = vadd.f32 %v1778, %v1850
        %v1926 = vadd.f32 %v1779, %v1852
        %v1927 = vadd.f32 %v1780, %v1921
        %v1928 = vadd.f32 %v1781, %v1923
        %v1929 = vld [vmem:[#allocation5] sm:$0xff]
        %v1930 = vxor.u32 %v1925, 2147483648
        %v1931 = vmul.f32 %v1930, 1.442695
        %v1932 = vpow.pop %v1931
        %v1933 = vadd.f32 %v1932, 1.0
        %v1934 = vrcp.pop %v1933
        %v1935 = vmul.f32 1.0, %v1934
        %v1936 = vxor.u32 %v1926, 2147483648
        %v1937 = vmul.f32 %v1936, 1.442695
        %v1938 = vpow.pop %v1937
        %v1939 = vadd.f32 %v1938, 1.0
        %v1940 = vrcp.pop %v1939
        %v1941 = vmul.f32 1.0, %v1940
        %v1942 = vtanh.pop %v1927
        %v1943 = vxor.u32 %v1928, 2147483648
        %v1944 = vmul.f32 %v1943, 1.442695
        %v1945 = vpow.pop %v1944
        %v1946 = vadd.f32 %v1945, 1.0
        %v1947 = vrcp.pop %v1946
        %v1948 = vmul.f32 1.0, %v1947
        %v1949 = vmul.f32 %v1941, %v1929
        %v1950 = vmul.f32 %v1935, %v1942
        %v1951 = vadd.f32 %v1949, %v1950
        %v1952 = vtanh.pop %v1951
        %v1953 = vmul.f32 %v1948, %v1952
        %1954 = vst [vmem:[#allocation4] sm:$0xff] %v1953
        %1955 = vst [vmem:[#allocation5] sm:$0xff] %v1951
        %s1956 = scalar_lea.vmem %s418, 16
        %1957 = vst [vmem:[%s1956] sm:$0xff] %v1953
        %s1958 = smul.addr %s1410, 8
        %s1959 = scalar_lea.vmem [#allocation3], %s1958
        %v1960 = vld [vmem:[%s1959] sm:$0xff]
        %v1961 = vld [vmem:[%s1959 + $0x8] sm:$0xff]
        %v1962 = vld [vmem:[%s1959 + $0x10] sm:$0xff]
        %v1963 = vld [vmem:[%s1959 + $0x18] sm:$0xff]
        %v1964 = vld [vmem:[#allocation6] sm:$0xff]
        %1965 = vmatprep.subr.mxu0 %v1042
        %1966 = vmatpush1.msra.mxu0 %v1041
        %1967 = vmatprep.subr.mxu0 %v1038
        %1968 = vmatpush1.msra.mxu0 %v1037
        %1969 = vmatprep.subr.mxu0 %v1034
        %1970 = vmatpush1.msra.mxu0 %v1033
        %1971 = vmatprep.subr.mxu0 %v1030
        %1972 = vmatpush1.msra.mxu0 %v1029
        %1973 = vmatprep.subr.mxu0 %v1026
        %1974 = vmatpush1.msra.mxu0 %v1025
        %1975 = vmatprep.subr.mxu0 %v1022
        %1976 = vmatpush1.msra.mxu0 %v1021
        %1977 = vmatprep.subr.mxu0 %v1018
        %1978 = vmatpush1.msra.mxu0 %v1017
        %1979 = vmatprep.subr.mxu0 %v1014
        %1980 = vmatpush1.msra.mxu0 %v1013
        %1981 = vmatprep.subr.mxu0 %v1010
        %1982 = vmatpush1.msra.mxu0 %v1009
        %1983 = vmatprep.subr.mxu0 %v1006
        %1984 = vmatpush1.msra.mxu0 %v1005
        %1985 = vmatprep.subr.mxu0 %v1002
        %1986 = vmatpush1.msra.mxu0 %v1001
        %1987 = vmatprep.subr.mxu0 %v998
        %1988 = vmatpush1.msra.mxu0 %v997
        %1989 = vmatprep.subr.mxu0 %v994
        %1990 = vmatpush1.msra.mxu0 %v993
        %1991 = vmatprep.subr.mxu0 %v990
        %1992 = vmatpush1.msra.mxu0 %v989
        %1993 = vmatprep.subr.mxu0 %v986
        %1994 = vmatpush1.msra.mxu0 %v985
        %1995 = vmatprep.subr.mxu0 %v982
        %1996 = vmatpush1.msra.mxu0 %v981
        %1997 = vmatprep.subr.mxu0 0.0
        %1998 = vmatpush2.msra.mxu0 0.0
        %1999 = vmatprep.subr.mxu0 0.0
        %2000 = vmatpush2.msra.mxu0 0.0
        %2001 = vmatprep.subr.mxu0 0.0
        %2002 = vmatpush2.msra.mxu0 0.0
        %2003 = vmatprep.subr.mxu0 0.0
        %2004 = vmatpush2.msra.mxu0 0.0
        %2005 = vmatprep.subr.mxu0 0.0
        %2006 = vmatpush2.msra.mxu0 0.0
        %2007 = vmatprep.subr.mxu0 0.0
        %2008 = vmatpush2.msra.mxu0 0.0
        %2009 = vmatprep.subr.mxu0 0.0
        %2010 = vmatpush2.msra.mxu0 0.0
        %2011 = vmatprep.subr.mxu0 0.0
        %2012 = vmatpush2.msra.mxu0 0.0
        %2013 = vmatprep.subr.mxu0 0.0
        %2014 = vmatpush2.msra.mxu0 0.0
        %2015 = vmatprep.subr.mxu0 0.0
        %2016 = vmatpush2.msra.mxu0 0.0
        %2017 = vmatprep.subr.mxu0 0.0
        %2018 = vmatpush2.msra.mxu0 0.0
        %2019 = vmatprep.subr.mxu0 0.0
        %2020 = vmatpush2.msra.mxu0 0.0
        %2021 = vmatprep.subr.mxu0 0.0
        %2022 = vmatpush2.msra.mxu0 0.0
        %2023 = vmatprep.subr.mxu0 0.0
        %2024 = vmatpush2.msra.mxu0 0.0
        %2025 = vmatprep.subr.mxu0 0.0
        %2026 = vmatpush2.msra.mxu0 0.0
        %2027 = vmatprep.subr.mxu0 0.0
        %2028 = vmatpush2.msra.mxu0 0.0
        %2029 = vmatprep.mubr.f32.mxu0 0.0
        %2030 = vmatmul.mubr.f32.gmra.mxu0 %v1964
        %v2031 = vpop.f32.mrf.mxu0
        %v2032 = vadd.f32 0.0, %v2031
        %v2033 = vpop.f32.mrf.mxu0
        %v2034 = vadd.f32 0.0, %v2033
        %2035 = vdwg.mxu0
        %2036 = vmatprep.subr.mxu0 %v1044
        %2037 = vmatpush1.msra.mxu0 %v1043
        %2038 = vmatprep.subr.mxu0 %v1040
        %2039 = vmatpush1.msra.mxu0 %v1039
        %2040 = vmatprep.subr.mxu0 %v1036
        %2041 = vmatpush1.msra.mxu0 %v1035
        %2042 = vmatprep.subr.mxu0 %v1032
        %2043 = vmatpush1.msra.mxu0 %v1031
        %2044 = vmatprep.subr.mxu0 %v1028
        %2045 = vmatpush1.msra.mxu0 %v1027
        %2046 = vmatprep.subr.mxu0 %v1024
        %2047 = vmatpush1.msra.mxu0 %v1023
        %2048 = vmatprep.subr.mxu0 %v1020
        %2049 = vmatpush1.msra.mxu0 %v1019
        %2050 = vmatprep.subr.mxu0 %v1016
        %2051 = vmatpush1.msra.mxu0 %v1015
        %2052 = vmatprep.subr.mxu0 %v1012
        %2053 = vmatpush1.msra.mxu0 %v1011
        %2054 = vmatprep.subr.mxu0 %v1008
        %2055 = vmatpush1.msra.mxu0 %v1007
        %2056 = vmatprep.subr.mxu0 %v1004
        %2057 = vmatpush1.msra.mxu0 %v1003
        %2058 = vmatprep.subr.mxu0 %v1000
        %2059 = vmatpush1.msra.mxu0 %v999
        %2060 = vmatprep.subr.mxu0 %v996
        %2061 = vmatpush1.msra.mxu0 %v995
        %2062 = vmatprep.subr.mxu0 %v992
        %2063 = vmatpush1.msra.mxu0 %v991
        %2064 = vmatprep.subr.mxu0 %v988
        %2065 = vmatpush1.msra.mxu0 %v987
        %2066 = vmatprep.subr.mxu0 %v984
        %2067 = vmatpush1.msra.mxu0 %v983
        %2068 = vmatprep.subr.mxu0 0.0
        %2069 = vmatpush2.msra.mxu0 0.0
        %2070 = vmatprep.subr.mxu0 0.0
        %2071 = vmatpush2.msra.mxu0 0.0
        %2072 = vmatprep.subr.mxu0 0.0
        %2073 = vmatpush2.msra.mxu0 0.0
        %2074 = vmatprep.subr.mxu0 0.0
        %2075 = vmatpush2.msra.mxu0 0.0
        %2076 = vmatprep.subr.mxu0 0.0
        %2077 = vmatpush2.msra.mxu0 0.0
        %2078 = vmatprep.subr.mxu0 0.0
        %2079 = vmatpush2.msra.mxu0 0.0
        %2080 = vmatprep.subr.mxu0 0.0
        %2081 = vmatpush2.msra.mxu0 0.0
        %2082 = vmatprep.subr.mxu0 0.0
        %2083 = vmatpush2.msra.mxu0 0.0
        %2084 = vmatprep.subr.mxu0 0.0
        %2085 = vmatpush2.msra.mxu0 0.0
        %2086 = vmatprep.subr.mxu0 0.0
        %2087 = vmatpush2.msra.mxu0 0.0
        %2088 = vmatprep.subr.mxu0 0.0
        %2089 = vmatpush2.msra.mxu0 0.0
        %2090 = vmatprep.subr.mxu0 0.0
        %2091 = vmatpush2.msra.mxu0 0.0
        %2092 = vmatprep.subr.mxu0 0.0
        %2093 = vmatpush2.msra.mxu0 0.0
        %2094 = vmatprep.subr.mxu0 0.0
        %2095 = vmatpush2.msra.mxu0 0.0
        %2096 = vmatprep.subr.mxu0 0.0
        %2097 = vmatpush2.msra.mxu0 0.0
        %2098 = vmatprep.subr.mxu0 0.0
        %2099 = vmatpush2.msra.mxu0 0.0
        %2100 = vmatprep.mubr.f32.mxu0 0.0
        %2101 = vmatmul.mubr.f32.gmra.mxu0 %v1964
        %v2102 = vpop.f32.mrf.mxu0
        %v2103 = vadd.f32 0.0, %v2102
        %v2104 = vpop.f32.mrf.mxu0
        %v2105 = vadd.f32 0.0, %v2104
        %2106 = vdwg.mxu0
        %v2107 = vadd.f32 %v1960, %v2032
        %v2108 = vadd.f32 %v1961, %v2034
        %v2109 = vadd.f32 %v1962, %v2103
        %v2110 = vadd.f32 %v1963, %v2105
        %v2111 = vld [vmem:[#allocation7] sm:$0xff]
        %v2112 = vxor.u32 %v2107, 2147483648
        %v2113 = vmul.f32 %v2112, 1.442695
        %v2114 = vpow.pop %v2113
        %v2115 = vadd.f32 %v2114, 1.0
        %v2116 = vrcp.pop %v2115
        %v2117 = vmul.f32 1.0, %v2116
        %v2118 = vxor.u32 %v2108, 2147483648
        %v2119 = vmul.f32 %v2118, 1.442695
        %v2120 = vpow.pop %v2119
        %v2121 = vadd.f32 %v2120, 1.0
        %v2122 = vrcp.pop %v2121
        %v2123 = vmul.f32 1.0, %v2122
        %v2124 = vtanh.pop %v2109
        %v2125 = vxor.u32 %v2110, 2147483648
        %v2126 = vmul.f32 %v2125, 1.442695
        %v2127 = vpow.pop %v2126
        %v2128 = vadd.f32 %v2127, 1.0
        %v2129 = vrcp.pop %v2128
        %v2130 = vmul.f32 1.0, %v2129
        %v2131 = vmul.f32 %v2123, %v2111
        %v2132 = vmul.f32 %v2117, %v2124
        %v2133 = vadd.f32 %v2131, %v2132
        %v2134 = vtanh.pop %v2133
        %v2135 = vmul.f32 %v2130, %v2134
        %2136 = vst [vmem:[#allocation6] sm:$0xff] %v2135
        %2137 = vst [vmem:[#allocation7] sm:$0xff] %v2133
        %s2138 = scalar_lea.vmem %s425, 8
        %2139 = vst [vmem:[%s2138] sm:$0xff] %v2135
        %s2140 = smul.addr %s1227, 8
        %s2141 = scalar_lea.vmem [#allocation2], %s2140
        %v2142 = vld [vmem:[%s2141] sm:$0xff]
        %v2143 = vld [vmem:[%s2141 + $0x8] sm:$0xff]
        %v2144 = vld [vmem:[%s2141 + $0x10] sm:$0xff]
        %v2145 = vld [vmem:[%s2141 + $0x18] sm:$0xff]
        %v2146 = vld [vmem:[#allocation4] sm:$0xff]
        %2147 = vmatprep.subr.mxu0 %v978
        %2148 = vmatpush1.msra.mxu0 %v977
        %2149 = vmatprep.subr.mxu0 %v974
        %2150 = vmatpush1.msra.mxu0 %v973
        %2151 = vmatprep.subr.mxu0 %v970
        %2152 = vmatpush1.msra.mxu0 %v969
        %2153 = vmatprep.subr.mxu0 %v966
        %2154 = vmatpush1.msra.mxu0 %v965
        %2155 = vmatprep.subr.mxu0 %v962
        %2156 = vmatpush1.msra.mxu0 %v961
        %2157 = vmatprep.subr.mxu0 %v958
        %2158 = vmatpush1.msra.mxu0 %v957
        %2159 = vmatprep.subr.mxu0 %v954
        %2160 = vmatpush1.msra.mxu0 %v953
        %2161 = vmatprep.subr.mxu0 %v950
        %2162 = vmatpush1.msra.mxu0 %v949
        %2163 = vmatprep.subr.mxu0 %v946
        %2164 = vmatpush1.msra.mxu0 %v945
        %2165 = vmatprep.subr.mxu0 %v942
        %2166 = vmatpush1.msra.mxu0 %v941
        %2167 = vmatprep.subr.mxu0 %v938
        %2168 = vmatpush1.msra.mxu0 %v937
        %2169 = vmatprep.subr.mxu0 %v934
        %2170 = vmatpush1.msra.mxu0 %v933
        %2171 = vmatprep.subr.mxu0 %v930
        %2172 = vmatpush1.msra.mxu0 %v929
        %2173 = vmatprep.subr.mxu0 %v926
        %2174 = vmatpush1.msra.mxu0 %v925
        %2175 = vmatprep.subr.mxu0 %v922
        %2176 = vmatpush1.msra.mxu0 %v921
        %2177 = vmatprep.subr.mxu0 %v918
        %2178 = vmatpush1.msra.mxu0 %v917
        %2179 = vmatprep.subr.mxu0 0.0
        %2180 = vmatpush2.msra.mxu0 0.0
        %2181 = vmatprep.subr.mxu0 0.0
        %2182 = vmatpush2.msra.mxu0 0.0
        %2183 = vmatprep.subr.mxu0 0.0
        %2184 = vmatpush2.msra.mxu0 0.0
        %2185 = vmatprep.subr.mxu0 0.0
        %2186 = vmatpush2.msra.mxu0 0.0
        %2187 = vmatprep.subr.mxu0 0.0
        %2188 = vmatpush2.msra.mxu0 0.0
        %2189 = vmatprep.subr.mxu0 0.0
        %2190 = vmatpush2.msra.mxu0 0.0
        %2191 = vmatprep.subr.mxu0 0.0
        %2192 = vmatpush2.msra.mxu0 0.0
        %2193 = vmatprep.subr.mxu0 0.0
        %2194 = vmatpush2.msra.mxu0 0.0
        %2195 = vmatprep.subr.mxu0 0.0
        %2196 = vmatpush2.msra.mxu0 0.0
        %2197 = vmatprep.subr.mxu0 0.0
        %2198 = vmatpush2.msra.mxu0 0.0
        %2199 = vmatprep.subr.mxu0 0.0
        %2200 = vmatpush2.msra.mxu0 0.0
        %2201 = vmatprep.subr.mxu0 0.0
        %2202 = vmatpush2.msra.mxu0 0.0
        %2203 = vmatprep.subr.mxu0 0.0
        %2204 = vmatpush2.msra.mxu0 0.0
        %2205 = vmatprep.subr.mxu0 0.0
        %2206 = vmatpush2.msra.mxu0 0.0
        %2207 = vmatprep.subr.mxu0 0.0
        %2208 = vmatpush2.msra.mxu0 0.0
        %2209 = vmatprep.subr.mxu0 0.0
        %2210 = vmatpush2.msra.mxu0 0.0
        %2211 = vmatprep.mubr.f32.mxu0 0.0
        %2212 = vmatmul.mubr.f32.gmra.mxu0 %v2146
        %v2213 = vpop.f32.mrf.mxu0
        %v2214 = vadd.f32 0.0, %v2213
        %v2215 = vpop.f32.mrf.mxu0
        %v2216 = vadd.f32 0.0, %v2215
        %2217 = vdwg.mxu0
        %2218 = vmatprep.subr.mxu0 %v980
        %2219 = vmatpush1.msra.mxu0 %v979
        %2220 = vmatprep.subr.mxu0 %v976
        %2221 = vmatpush1.msra.mxu0 %v975
        %2222 = vmatprep.subr.mxu0 %v972
        %2223 = vmatpush1.msra.mxu0 %v971
        %2224 = vmatprep.subr.mxu0 %v968
        %2225 = vmatpush1.msra.mxu0 %v967
        %2226 = vmatprep.subr.mxu0 %v964
        %2227 = vmatpush1.msra.mxu0 %v963
        %2228 = vmatprep.subr.mxu0 %v960
        %2229 = vmatpush1.msra.mxu0 %v959
        %2230 = vmatprep.subr.mxu0 %v956
        %2231 = vmatpush1.msra.mxu0 %v955
        %2232 = vmatprep.subr.mxu0 %v952
        %2233 = vmatpush1.msra.mxu0 %v951
        %2234 = vmatprep.subr.mxu0 %v948
        %2235 = vmatpush1.msra.mxu0 %v947
        %2236 = vmatprep.subr.mxu0 %v944
        %2237 = vmatpush1.msra.mxu0 %v943
        %2238 = vmatprep.subr.mxu0 %v940
        %2239 = vmatpush1.msra.mxu0 %v939
        %2240 = vmatprep.subr.mxu0 %v936
        %2241 = vmatpush1.msra.mxu0 %v935
        %2242 = vmatprep.subr.mxu0 %v932
        %2243 = vmatpush1.msra.mxu0 %v931
        %2244 = vmatprep.subr.mxu0 %v928
        %2245 = vmatpush1.msra.mxu0 %v927
        %2246 = vmatprep.subr.mxu0 %v924
        %2247 = vmatpush1.msra.mxu0 %v923
        %2248 = vmatprep.subr.mxu0 %v920
        %2249 = vmatpush1.msra.mxu0 %v919
        %2250 = vmatprep.subr.mxu0 0.0
        %2251 = vmatpush2.msra.mxu0 0.0
        %2252 = vmatprep.subr.mxu0 0.0
        %2253 = vmatpush2.msra.mxu0 0.0
        %2254 = vmatprep.subr.mxu0 0.0
        %2255 = vmatpush2.msra.mxu0 0.0
        %2256 = vmatprep.subr.mxu0 0.0
        %2257 = vmatpush2.msra.mxu0 0.0
        %2258 = vmatprep.subr.mxu0 0.0
        %2259 = vmatpush2.msra.mxu0 0.0
        %2260 = vmatprep.subr.mxu0 0.0
        %2261 = vmatpush2.msra.mxu0 0.0
        %2262 = vmatprep.subr.mxu0 0.0
        %2263 = vmatpush2.msra.mxu0 0.0
        %2264 = vmatprep.subr.mxu0 0.0
        %2265 = vmatpush2.msra.mxu0 0.0
        %2266 = vmatprep.subr.mxu0 0.0
        %2267 = vmatpush2.msra.mxu0 0.0
        %2268 = vmatprep.subr.mxu0 0.0
        %2269 = vmatpush2.msra.mxu0 0.0
        %2270 = vmatprep.subr.mxu0 0.0
        %2271 = vmatpush2.msra.mxu0 0.0
        %2272 = vmatprep.subr.mxu0 0.0
        %2273 = vmatpush2.msra.mxu0 0.0
        %2274 = vmatprep.subr.mxu0 0.0
        %2275 = vmatpush2.msra.mxu0 0.0
        %2276 = vmatprep.subr.mxu0 0.0
        %2277 = vmatpush2.msra.mxu0 0.0
        %2278 = vmatprep.subr.mxu0 0.0
        %2279 = vmatpush2.msra.mxu0 0.0
        %2280 = vmatprep.subr.mxu0 0.0
        %2281 = vmatpush2.msra.mxu0 0.0
        %2282 = vmatprep.mubr.f32.mxu0 0.0
        %2283 = vmatmul.mubr.f32.gmra.mxu0 %v2146
        %v2284 = vpop.f32.mrf.mxu0
        %v2285 = vadd.f32 0.0, %v2284
        %v2286 = vpop.f32.mrf.mxu0
        %v2287 = vadd.f32 0.0, %v2286
        %2288 = vdwg.mxu0
        %v2289 = vadd.f32 %v2142, %v2214
        %v2290 = vadd.f32 %v2143, %v2216
        %v2291 = vadd.f32 %v2144, %v2285
        %v2292 = vadd.f32 %v2145, %v2287
        %v2293 = vld [vmem:[#allocation5] sm:$0xff]
        %v2294 = vxor.u32 %v2289, 2147483648
        %v2295 = vmul.f32 %v2294, 1.442695
        %v2296 = vpow.pop %v2295
        %v2297 = vadd.f32 %v2296, 1.0
        %v2298 = vrcp.pop %v2297
        %v2299 = vmul.f32 1.0, %v2298
        %v2300 = vxor.u32 %v2290, 2147483648
        %v2301 = vmul.f32 %v2300, 1.442695
        %v2302 = vpow.pop %v2301
        %v2303 = vadd.f32 %v2302, 1.0
        %v2304 = vrcp.pop %v2303
        %v2305 = vmul.f32 1.0, %v2304
        %v2306 = vtanh.pop %v2291
        %v2307 = vxor.u32 %v2292, 2147483648
        %v2308 = vmul.f32 %v2307, 1.442695
        %v2309 = vpow.pop %v2308
        %v2310 = vadd.f32 %v2309, 1.0
        %v2311 = vrcp.pop %v2310
        %v2312 = vmul.f32 1.0, %v2311
        %v2313 = vmul.f32 %v2305, %v2293
        %v2314 = vmul.f32 %v2299, %v2306
        %v2315 = vadd.f32 %v2313, %v2314
        %v2316 = vtanh.pop %v2315
        %v2317 = vmul.f32 %v2312, %v2316
        %2318 = vst [vmem:[#allocation4] sm:$0xff] %v2317
        %2319 = vst [vmem:[#allocation5] sm:$0xff] %v2315
        %s2320 = scalar_lea.vmem %s418, 24
        %2321 = vst [vmem:[%s2320] sm:$0xff] %v2317
        %s2322 = smul.addr %s1045, 8
        %s2323 = scalar_lea.vmem [#allocation3], %s2322
        %v2324 = vld [vmem:[%s2323] sm:$0xff]
        %v2325 = vld [vmem:[%s2323 + $0x8] sm:$0xff]
        %v2326 = vld [vmem:[%s2323 + $0x10] sm:$0xff]
        %v2327 = vld [vmem:[%s2323 + $0x18] sm:$0xff]
        %v2328 = vld [vmem:[#allocation6] sm:$0xff]
        %2329 = vmatprep.subr.mxu0 %v1042
        %2330 = vmatpush1.msra.mxu0 %v1041
        %2331 = vmatprep.subr.mxu0 %v1038
        %2332 = vmatpush1.msra.mxu0 %v1037
        %2333 = vmatprep.subr.mxu0 %v1034
        %2334 = vmatpush1.msra.mxu0 %v1033
        %2335 = vmatprep.subr.mxu0 %v1030
        %2336 = vmatpush1.msra.mxu0 %v1029
        %2337 = vmatprep.subr.mxu0 %v1026
        %2338 = vmatpush1.msra.mxu0 %v1025
        %2339 = vmatprep.subr.mxu0 %v1022
        %2340 = vmatpush1.msra.mxu0 %v1021
        %2341 = vmatprep.subr.mxu0 %v1018
        %2342 = vmatpush1.msra.mxu0 %v1017
        %2343 = vmatprep.subr.mxu0 %v1014
        %2344 = vmatpush1.msra.mxu0 %v1013
        %2345 = vmatprep.subr.mxu0 %v1010
        %2346 = vmatpush1.msra.mxu0 %v1009
        %2347 = vmatprep.subr.mxu0 %v1006
        %2348 = vmatpush1.msra.mxu0 %v1005
        %2349 = vmatprep.subr.mxu0 %v1002
        %2350 = vmatpush1.msra.mxu0 %v1001
        %2351 = vmatprep.subr.mxu0 %v998
        %2352 = vmatpush1.msra.mxu0 %v997
        %2353 = vmatprep.subr.mxu0 %v994
        %2354 = vmatpush1.msra.mxu0 %v993
        %2355 = vmatprep.subr.mxu0 %v990
        %2356 = vmatpush1.msra.mxu0 %v989
        %2357 = vmatprep.subr.mxu0 %v986
        %2358 = vmatpush1.msra.mxu0 %v985
        %2359 = vmatprep.subr.mxu0 %v982
        %2360 = vmatpush1.msra.mxu0 %v981
        %2361 = vmatprep.subr.mxu0 0.0
        %2362 = vmatpush2.msra.mxu0 0.0
        %2363 = vmatprep.subr.mxu0 0.0
        %2364 = vmatpush2.msra.mxu0 0.0
        %2365 = vmatprep.subr.mxu0 0.0
        %2366 = vmatpush2.msra.mxu0 0.0
        %2367 = vmatprep.subr.mxu0 0.0
        %2368 = vmatpush2.msra.mxu0 0.0
        %2369 = vmatprep.subr.mxu0 0.0
        %2370 = vmatpush2.msra.mxu0 0.0
        %2371 = vmatprep.subr.mxu0 0.0
        %2372 = vmatpush2.msra.mxu0 0.0
        %2373 = vmatprep.subr.mxu0 0.0
        %2374 = vmatpush2.msra.mxu0 0.0
        %2375 = vmatprep.subr.mxu0 0.0
        %2376 = vmatpush2.msra.mxu0 0.0
        %2377 = vmatprep.subr.mxu0 0.0
        %2378 = vmatpush2.msra.mxu0 0.0
        %2379 = vmatprep.subr.mxu0 0.0
        %2380 = vmatpush2.msra.mxu0 0.0
        %2381 = vmatprep.subr.mxu0 0.0
        %2382 = vmatpush2.msra.mxu0 0.0
        %2383 = vmatprep.subr.mxu0 0.0
        %2384 = vmatpush2.msra.mxu0 0.0
        %2385 = vmatprep.subr.mxu0 0.0
        %2386 = vmatpush2.msra.mxu0 0.0
        %2387 = vmatprep.subr.mxu0 0.0
        %2388 = vmatpush2.msra.mxu0 0.0
        %2389 = vmatprep.subr.mxu0 0.0
        %2390 = vmatpush2.msra.mxu0 0.0
        %2391 = vmatprep.subr.mxu0 0.0
        %2392 = vmatpush2.msra.mxu0 0.0
        %2393 = vmatprep.mubr.f32.mxu0 0.0
        %2394 = vmatmul.mubr.f32.gmra.mxu0 %v2328
        %v2395 = vpop.f32.mrf.mxu0
        %v2396 = vadd.f32 0.0, %v2395
        %v2397 = vpop.f32.mrf.mxu0
        %v2398 = vadd.f32 0.0, %v2397
        %2399 = vdwg.mxu0
        %2400 = vmatprep.subr.mxu0 %v1044
        %2401 = vmatpush1.msra.mxu0 %v1043
        %2402 = vmatprep.subr.mxu0 %v1040
        %2403 = vmatpush1.msra.mxu0 %v1039
        %2404 = vmatprep.subr.mxu0 %v1036
        %2405 = vmatpush1.msra.mxu0 %v1035
        %2406 = vmatprep.subr.mxu0 %v1032
        %2407 = vmatpush1.msra.mxu0 %v1031
        %2408 = vmatprep.subr.mxu0 %v1028
        %2409 = vmatpush1.msra.mxu0 %v1027
        %2410 = vmatprep.subr.mxu0 %v1024
        %2411 = vmatpush1.msra.mxu0 %v1023
        %2412 = vmatprep.subr.mxu0 %v1020
        %2413 = vmatpush1.msra.mxu0 %v1019
        %2414 = vmatprep.subr.mxu0 %v1016
        %2415 = vmatpush1.msra.mxu0 %v1015
        %2416 = vmatprep.subr.mxu0 %v1012
        %2417 = vmatpush1.msra.mxu0 %v1011
        %2418 = vmatprep.subr.mxu0 %v1008
        %2419 = vmatpush1.msra.mxu0 %v1007
        %2420 = vmatprep.subr.mxu0 %v1004
        %2421 = vmatpush1.msra.mxu0 %v1003
        %2422 = vmatprep.subr.mxu0 %v1000
        %2423 = vmatpush1.msra.mxu0 %v999
        %2424 = vmatprep.subr.mxu0 %v996
        %2425 = vmatpush1.msra.mxu0 %v995
        %2426 = vmatprep.subr.mxu0 %v992
        %2427 = vmatpush1.msra.mxu0 %v991
        %2428 = vmatprep.subr.mxu0 %v988
        %2429 = vmatpush1.msra.mxu0 %v987
        %2430 = vmatprep.subr.mxu0 %v984
        %2431 = vmatpush1.msra.mxu0 %v983
        %2432 = vmatprep.subr.mxu0 0.0
        %2433 = vmatpush2.msra.mxu0 0.0
        %2434 = vmatprep.subr.mxu0 0.0
        %2435 = vmatpush2.msra.mxu0 0.0
        %2436 = vmatprep.subr.mxu0 0.0
        %2437 = vmatpush2.msra.mxu0 0.0
        %2438 = vmatprep.subr.mxu0 0.0
        %2439 = vmatpush2.msra.mxu0 0.0
        %2440 = vmatprep.subr.mxu0 0.0
        %2441 = vmatpush2.msra.mxu0 0.0
        %2442 = vmatprep.subr.mxu0 0.0
        %2443 = vmatpush2.msra.mxu0 0.0
        %2444 = vmatprep.subr.mxu0 0.0
        %2445 = vmatpush2.msra.mxu0 0.0
        %2446 = vmatprep.subr.mxu0 0.0
        %2447 = vmatpush2.msra.mxu0 0.0
        %2448 = vmatprep.subr.mxu0 0.0
        %2449 = vmatpush2.msra.mxu0 0.0
        %2450 = vmatprep.subr.mxu0 0.0
        %2451 = vmatpush2.msra.mxu0 0.0
        %2452 = vmatprep.subr.mxu0 0.0
        %2453 = vmatpush2.msra.mxu0 0.0
        %2454 = vmatprep.subr.mxu0 0.0
        %2455 = vmatpush2.msra.mxu0 0.0
        %2456 = vmatprep.subr.mxu0 0.0
        %2457 = vmatpush2.msra.mxu0 0.0
        %2458 = vmatprep.subr.mxu0 0.0
        %2459 = vmatpush2.msra.mxu0 0.0
        %2460 = vmatprep.subr.mxu0 0.0
        %2461 = vmatpush2.msra.mxu0 0.0
        %2462 = vmatprep.subr.mxu0 0.0
        %2463 = vmatpush2.msra.mxu0 0.0
        %2464 = vmatprep.mubr.f32.mxu0 0.0
        %2465 = vmatmul.mubr.f32.gmra.mxu0 %v2328
        %v2466 = vpop.f32.mrf.mxu0
        %v2467 = vadd.f32 0.0, %v2466
        %v2468 = vpop.f32.mrf.mxu0
        %v2469 = vadd.f32 0.0, %v2468
        %2470 = vdwg.mxu0
        %v2471 = vadd.f32 %v2324, %v2396
        %v2472 = vadd.f32 %v2325, %v2398
        %v2473 = vadd.f32 %v2326, %v2467
        %v2474 = vadd.f32 %v2327, %v2469
        %v2475 = vld [vmem:[#allocation7] sm:$0xff]
        %v2476 = vxor.u32 %v2471, 2147483648
        %v2477 = vmul.f32 %v2476, 1.442695
        %v2478 = vpow.pop %v2477
        %v2479 = vadd.f32 %v2478, 1.0
        %v2480 = vrcp.pop %v2479
        %v2481 = vmul.f32 1.0, %v2480
        %v2482 = vxor.u32 %v2472, 2147483648
        %v2483 = vmul.f32 %v2482, 1.442695
        %v2484 = vpow.pop %v2483
        %v2485 = vadd.f32 %v2484, 1.0
        %v2486 = vrcp.pop %v2485
        %v2487 = vmul.f32 1.0, %v2486
        %v2488 = vtanh.pop %v2473
        %v2489 = vxor.u32 %v2474, 2147483648
        %v2490 = vmul.f32 %v2489, 1.442695
        %v2491 = vpow.pop %v2490
        %v2492 = vadd.f32 %v2491, 1.0
        %v2493 = vrcp.pop %v2492
        %v2494 = vmul.f32 1.0, %v2493
        %v2495 = vmul.f32 %v2487, %v2475
        %v2496 = vmul.f32 %v2481, %v2488
        %v2497 = vadd.f32 %v2495, %v2496
        %v2498 = vtanh.pop %v2497
        %v2499 = vmul.f32 %v2494, %v2498
        %2500 = vst [vmem:[#allocation6] sm:$0xff] %v2499
        %2501 = vst [vmem:[#allocation7] sm:$0xff] %v2497
        %2502 = vst [vmem:[%s425] sm:$0xff] %v2499
        %s2503 = smul.u32 4, %s23
        %p2504 = scmp.lt.s32.totalorder %s2503, 7
        %s2505 = scalar_select %p2504, %s2503, 7
        %s2506 = smul.addr %s2505, 8
        %s2507 = scalar_lea.vmem %s8, %s2506
        %s2508 = ssub.s32 1, %s23
        %s2509 = smul.u32 4, %s2508
        %p2510 = scmp.lt.s32.totalorder %s2509, 7
        %s2511 = scalar_select %p2510, %s2509, 7
        %s2512 = smul.addr %s2511, 8
        %s2513 = scalar_lea.vmem %s9, %s2512
        // Predicated region
        $region69: #{blstm_conversion_forward.3} parent=51 // pred_check
          %p2514 = pneg %p221
        $region70: #{blstm_conversion_forward.3} parent=51 // pred_check_branch
          %2516 = sbr.rel (%p2514) target = $region72
        $region71: #{blstm_conversion_forward.3} parent=51 // pred_region
          %s2517 = smul.u32 4, %s23
        $region72: #{blstm_conversion_forward.3} parent=51 // pred_fallthru
          _
        // Predicated region
        $region73: #{blstm_conversion_forward.3} parent=51 // pred_check
          %p2518 = pneg %p249
        $region74: #{blstm_conversion_forward.3} parent=51 // pred_check_branch
          %2520 = sbr.rel (%p2518) target = $region76
        $region75: #{blstm_conversion_forward.3} parent=51 // pred_region
          %s2521 = ssub.s32 1, %s23
          %s2522 = smul.u32 4, %s2521
        $region76: #{blstm_conversion_forward.3} parent=51 // pred_fallthru
          _
      $region52: #{blstm_conversion_forward.3} parent=5 // pred_fallthru
        _
      %p2523 = scmp.le.s32.totalorder 2, %s18
      // Predicated region
      $region77: #{blstm_conversion_forward.3} parent=5 // pred_check
        %p2524 = pneg %p2523
      $region78: #{blstm_conversion_forward.3} parent=5 // pred_check_branch
        %2526 = sbr.rel (%p2524) target = $region80
      $region79: #{blstm_conversion_forward.3} parent=5 // pred_region
        %s2527 = ssub.s32 %s18, 2
        // Predicated region
        $region81: #{blstm_conversion_forward.3} parent=79 // pred_check
          %p2528 = pneg %p227
        $region82: #{blstm_conversion_forward.3} parent=79 // pred_check_branch
          %2530 = sbr.rel (%p2528) target = $region84
        $region83: #{blstm_conversion_forward.3} parent=79 // pred_region
          %s2531 = smul.u32 4, %s24
          %p2532 = scmp.lt.s32.totalorder %s2531, 7
          %s2533 = scalar_select %p2532, %s2531, 7
          %s2534 = smul.addr %s2533, 8
          %s2535 = scalar_lea.vmem %s8, %s2534
        $region84: #{blstm_conversion_forward.3} parent=79 // pred_fallthru
          _
        // Predicated region
        $region85: #{blstm_conversion_forward.3} parent=79 // pred_check
          %p2536 = pneg %p255
        $region86: #{blstm_conversion_forward.3} parent=79 // pred_check_branch
          %2538 = sbr.rel (%p2536) target = $region88
        $region87: #{blstm_conversion_forward.3} parent=79 // pred_region
          %s2539 = ssub.s32 1, %s24
          %s2540 = smul.u32 4, %s2539
          %p2541 = scmp.lt.s32.totalorder %s2540, 7
          %s2542 = scalar_select %p2541, %s2540, 7
          %s2543 = smul.addr %s2542, 8
          %s2544 = scalar_lea.vmem %s9, %s2543
        $region88: #{blstm_conversion_forward.3} parent=79 // pred_fallthru
          _
      $region80: #{blstm_conversion_forward.3} parent=5 // pred_fallthru
        _
    $region6: #{blstm_conversion_forward.3} parent=1 // loop_footer
      %s22 = sadd.s32 1, %s18
    $region7: #{blstm_conversion_forward.3} parent=1 // loop_footer_branch
      %17 = sbr.rel target = $region3
    $region8: #{blstm_conversion_forward.3} parent=1 // loop_exit
      _
    %2545 = vsyncpa [#allocation9], 1
    %s2546 = scalar_lea.sflag [#allocation9], 1
    %2547 = vsyncpa %s2546, 1
    %2548 = vsyncpa [#allocation11], 1

</llo_original>
